<compile_context>
chip_gen: v7x
topology: tpu7x:2x2x1
jax: 0.10.0
libtpu: 0.0.40
codegen_flags: <defaults>
</compile_context>

<pallas_src>
import numpy as np
import jax
import jax.numpy as jnp
from jax import lax
from jax.experimental import pallas as pl
from jax.experimental.pallas import tpu as pltpu

WIN_SIZE = 11
WIN_SIGMA = 1.5
K1, K2 = 0.01, 0.03
C1 = (K1 * 255.0) ** 2
C2 = (K2 * 255.0) ** 2


def _fspecial_gauss_1d(size, sigma):
    coords = np.arange(size, dtype=np.float32) - size // 2
    g = np.exp(-(coords ** 2) / (2.0 * sigma ** 2))
    return (g / g.sum()).astype(np.float32)


# Deterministic Gaussian window baked in as constants.
_G = _fspecial_gauss_1d(WIN_SIZE, WIN_SIGMA)


def _band_matrices(H, W):
    """Band matrices implementing the separable 'valid' Gaussian blur.

    W pass:  tmp = img @ Bw   with Bw[(j+k), j] = g[k]   -> (H, OW)
    H pass:  out = Ah @ tmp   with Ah[i, (i+k)] = g[k]   -> (OH, OW)
    """
    OH, OW = H - WIN_SIZE + 1, W - WIN_SIZE + 1
    bw = np.zeros((W, OW), np.float32)
    for j in range(OW):
        bw[j:j + WIN_SIZE, j] = _G
    ah = np.zeros((OH, H), np.float32)
    for i in range(OH):
        ah[i, i:i + WIN_SIZE] = _G
    return jnp.asarray(bw), jnp.asarray(ah)


def _pick_tb(N, H, W, max_tb=8, byte_budget=2 * 1024 * 1024):
    """Largest divisor of N (<= max_tb) whose f32 plane block fits the budget."""
    tb = 1
    for cand in range(1, min(N, max_tb) + 1):
        if N % cand == 0 and cand * H * W * 4 <= byte_budget:
            tb = cand
    return tb


def _make_ssim_kernel(TB, H, W):
    OH, OW = H - WIN_SIZE + 1, W - WIN_SIZE + 1
    del OH, OW  # shapes are implied by the band matrices

    def _blur(img, bw, ah):
        # Separable valid blur as two MXU band matmuls, full f32 accuracy.
        t = jnp.dot(img, bw, preferred_element_type=jnp.float32,
                    precision=lax.Precision.HIGHEST)          # (H, OW)
        return jnp.dot(ah, t, preferred_element_type=jnp.float32,
                       precision=lax.Precision.HIGHEST)       # (OH, OW)

    def ssim_kernel(x_ref, y_ref, bw_ref, ah_ref, out_ref):
        # x_ref / y_ref block: (TB, 1, H, W) -- TB images, one channel plane.
        bw = bw_ref[...]
        ah = ah_ref[...]
        total = jnp.float32(0.0)
        for b in range(TB):                       # static unroll over batch tile
            xb = x_ref[b, 0].astype(jnp.float32)  # (H, W)
            yb = y_ref[b, 0].astype(jnp.float32)

            mu1 = _blur(xb, bw, ah)
            mu2 = _blur(yb, bw, ah)
            e11 = _blur(xb * xb, bw, ah)
            e22 = _blur(yb * yb, bw, ah)
            e12 = _blur(xb * yb, bw, ah)

            mu1_sq = mu1 * mu1
            mu2_sq = mu2 * mu2
            mu1_mu2 = mu1 * mu2
            sigma1_sq = e11 - mu1_sq
            sigma2_sq = e22 - mu2_sq
            sigma12 = e12 - mu1_mu2

            cs_map = (2.0 * sigma12 + C2) / (sigma1_sq + sigma2_sq + C2)
            ssim_map = (2.0 * mu1_mu2 + C1) / (mu1_sq + mu2_sq + C1) * cs_map

            total = total + jnp.sum(ssim_map)

        # lamda == 1 in SSIM.forward => the (1 - lamda) * L1 term is identically
        # zero, so the abs / full-plane reduction is skipped.
        # Lane-dense partial-sum output: splat into a full (8, 128) vreg block.
        out_ref[...] = jnp.full((1, 1, 8, 128), total, dtype=jnp.float32)

    return ssim_kernel


def ssim_l1_loss(X, Y):
    """Equivalent of SSIM().forward(X, Y) with the module defaults."""
    N, C, H, W = X.shape
    if H < WIN_SIZE or W < WIN_SIZE:
        raise ValueError("Input spatial dims must be >= win_size (11).")
    OH, OW = H - WIN_SIZE + 1, W - WIN_SIZE + 1

    TB = _pick_tb(N, H, W)
    nb = N // TB
    bw, ah = _band_matrices(H, W)

    kernel = _make_ssim_kernel(TB, H, W)
    partial = pl.pallas_call(
        kernel,
        out_shape=jax.ShapeDtypeStruct((nb, C, 8, 128), jnp.float32),
        grid=(nb, C),
        in_specs=[
            pl.BlockSpec((TB, 1, H, W), lambda b, c: (b, c, 0, 0)),
            pl.BlockSpec((TB, 1, H, W), lambda b, c: (b, c, 0, 0)),
            pl.BlockSpec((W, OW), lambda b, c: (0, 0)),
            pl.BlockSpec((OH, H), lambda b, c: (0, 0)),
        ],
        out_specs=pl.BlockSpec((1, 1, 8, 128), lambda b, c: (b, c, 0, 0)),
        compiler_params=pltpu.CompilerParams(
            dimension_semantics=("parallel", "parallel"),
            vmem_limit_bytes=32 * 1024 * 1024,
        ),
    )(X, Y, bw, ah)

    # per-image mean over (C, OH, OW) then mean over batch == global sum / count.
    total = jnp.sum(partial[:, :, 0, 0])
    ssim_val = total / float(N * C * OH * OW)

    # TotalLoss = lamda * ssim + (1 - lamda) * l1, with lamda hard-coded to 1.
    lamda = 1.0
    return lamda * ssim_val


def _pure_jax_reference(X, Y):
    """Plain-JAX reference mirroring the PyTorch math (for the sanity check)."""
    g = jnp.asarray(_G, dtype=jnp.float32)

    def blur(img):  # img: (N, C, H, W), valid separable blur: W pass then H pass
        ow = img.shape[-1] - WIN_SIZE + 1
        tmp = sum(g[k] * img[..., :, k:k + ow] for k in range(WIN_SIZE))
        oh = img.shape[-2] - WIN_SIZE + 1
        return sum(g[k] * tmp[..., k:k + oh, :] for k in range(WIN_SIZE))

    mu1, mu2 = blur(X), blur(Y)
    mu1_sq, mu2_sq, mu1_mu2 = mu1 * mu1, mu2 * mu2, mu1 * mu2
    s1 = blur(X * X) - mu1_sq
    s2 = blur(Y * Y) - mu2_sq
    s12 = blur(X * Y) - mu1_mu2
    cs_map = (2 * s12 + C2) / (s1 + s2 + C2)
    ssim_map = (2 * mu1_mu2 + C1) / (mu1_sq + mu2_sq + C1) * cs_map
    ssim_val = jnp.mean(jnp.mean(ssim_map, axis=(1, 2, 3)))
    l1 = jnp.mean(jnp.abs(X - Y))
    return 1.0 * ssim_val + 0.0 * l1


if __name__ == "__main__":
    # Module default: channel=3 (Gaussian window repeated over 3 channels).
    N, C, H, W = 2, 3, 16, 16
    key = jax.random.PRNGKey(0)
    kx, ky = jax.random.split(key)
    X = jax.random.uniform(kx, (N, C, H, W), dtype=jnp.float32) * 255.0
    Y = jax.random.uniform(ky, (N, C, H, W), dtype=jnp.float32) * 255.0

    out = jax.block_until_ready(ssim_l1_loss(X, Y))
    ref = jax.block_until_ready(_pure_jax_reference(X, Y))
    np.testing.assert_allclose(np.asarray(out), np.asarray(ref), rtol=2e-4, atol=2e-4)

    print("KERNEL_OK")
</pallas_src>

<mosaic_0001>
module attributes {stable_mosaic.version = 11 : i64} {
  func.func @ssim_kernel(%arg0: i32, %arg1: i32, %arg2: memref<2x1x16x16xf32, #tpu.memory_space<vmem>>, %arg3: memref<2x1x16x16xf32, #tpu.memory_space<vmem>>, %arg4: memref<16x6xf32, #tpu.memory_space<vmem>>, %arg5: memref<6x16xf32, #tpu.memory_space<vmem>>, %arg6: memref<1x1x8x128xf32, #tpu.memory_space<vmem>>) attributes {dimension_semantics = [#tpu.dimension_semantics<parallel>, #tpu.dimension_semantics<parallel>], iteration_bounds = array<i64: 1, 3>, scalar_prefetch = 0 : i64, scratch_operands = 0 : i64, tpu.core_type = #tpu.core_type<tc>, window_params = [{transform_indices = @transform_0, window_bounds = array<i64: 2, 1, 16, 16>}, {transform_indices = @transform_1, window_bounds = array<i64: 2, 1, 16, 16>}, {pipeline_mode = #tpu.pipeline_mode<synchronous>, transform_indices = @transform_2, window_bounds = array<i64: 16, 6>}, {pipeline_mode = #tpu.pipeline_mode<synchronous>, transform_indices = @transform_3, window_bounds = array<i64: 6, 16>}, {transform_indices = @transform_4, window_bounds = array<i64: 1, 1, 8, 128>}]} {
    %c0 = arith.constant 0 : index
    %c0_0 = arith.constant 0 : index
    %0 = vector.load %arg4[%c0, %c0_0] : memref<16x6xf32, #tpu.memory_space<vmem>>, vector<16x6xf32>
    %c0_1 = arith.constant 0 : index
    %c0_2 = arith.constant 0 : index
    %1 = vector.load %arg5[%c0_1, %c0_2] : memref<6x16xf32, #tpu.memory_space<vmem>>, vector<6x16xf32>
    %c0_3 = arith.constant 0 : index
    %c0_4 = arith.constant 0 : index
    %c0_5 = arith.constant 0 : index
    %c0_6 = arith.constant 0 : index
    %2 = vector.load %arg2[%c0_3, %c0_4, %c0_5, %c0_6] : memref<2x1x16x16xf32, #tpu.memory_space<vmem>>, vector<1x1x16x16xf32>
    %3 = vector.shape_cast %2 : vector<1x1x16x16xf32> to vector<16x16xf32>
    %c0_7 = arith.constant 0 : index
    %c0_8 = arith.constant 0 : index
    %c0_9 = arith.constant 0 : index
    %c0_10 = arith.constant 0 : index
    %4 = vector.load %arg3[%c0_7, %c0_8, %c0_9, %c0_10] : memref<2x1x16x16xf32, #tpu.memory_space<vmem>>, vector<1x1x16x16xf32>
    %5 = vector.shape_cast %4 : vector<1x1x16x16xf32> to vector<16x16xf32>
    %cst = arith.constant dense<0.000000e+00> : vector<16x6xf32>
    %6 = tpu.matmul %3, %0, %cst {dimension_numbers = #tpu.dot_dimension_numbers<[1], [0], [0], [1], [0, 0, 1, 1], [], []>, precision = #tpu.contract_precision<fp32>} : vector<16x16xf32>, vector<16x6xf32>, vector<16x6xf32> -> vector<16x6xf32>
    %cst_11 = arith.constant dense<0.000000e+00> : vector<6x6xf32>
    %7 = tpu.matmul %1, %6, %cst_11 {dimension_numbers = #tpu.dot_dimension_numbers<[1], [0], [0], [1], [0, 0, 1, 1], [], []>, precision = #tpu.contract_precision<fp32>} : vector<6x16xf32>, vector<16x6xf32>, vector<6x6xf32> -> vector<6x6xf32>
    %cst_12 = arith.constant dense<0.000000e+00> : vector<16x6xf32>
    %8 = tpu.matmul %5, %0, %cst_12 {dimension_numbers = #tpu.dot_dimension_numbers<[1], [0], [0], [1], [0, 0, 1, 1], [], []>, precision = #tpu.contract_precision<fp32>} : vector<16x16xf32>, vector<16x6xf32>, vector<16x6xf32> -> vector<16x6xf32>
    %cst_13 = arith.constant dense<0.000000e+00> : vector<6x6xf32>
    %9 = tpu.matmul %1, %8, %cst_13 {dimension_numbers = #tpu.dot_dimension_numbers<[1], [0], [0], [1], [0, 0, 1, 1], [], []>, precision = #tpu.contract_precision<fp32>} : vector<6x16xf32>, vector<16x6xf32>, vector<6x6xf32> -> vector<6x6xf32>
    %10 = arith.mulf %3, %3 : vector<16x16xf32>
    %cst_14 = arith.constant dense<0.000000e+00> : vector<16x6xf32>
    %11 = tpu.matmul %10, %0, %cst_14 {dimension_numbers = #tpu.dot_dimension_numbers<[1], [0], [0], [1], [0, 0, 1, 1], [], []>, precision = #tpu.contract_precision<fp32>} : vector<16x16xf32>, vector<16x6xf32>, vector<16x6xf32> -> vector<16x6xf32>
    %cst_15 = arith.constant dense<0.000000e+00> : vector<6x6xf32>
    %12 = tpu.matmul %1, %11, %cst_15 {dimension_numbers = #tpu.dot_dimension_numbers<[1], [0], [0], [1], [0, 0, 1, 1], [], []>, precision = #tpu.contract_precision<fp32>} : vector<6x16xf32>, vector<16x6xf32>, vector<6x6xf32> -> vector<6x6xf32>
    %13 = arith.mulf %5, %5 : vector<16x16xf32>
    %cst_16 = arith.constant dense<0.000000e+00> : vector<16x6xf32>
    %14 = tpu.matmul %13, %0, %cst_16 {dimension_numbers = #tpu.dot_dimension_numbers<[1], [0], [0], [1], [0, 0, 1, 1], [], []>, precision = #tpu.contract_precision<fp32>} : vector<16x16xf32>, vector<16x6xf32>, vector<16x6xf32> -> vector<16x6xf32>
    %cst_17 = arith.constant dense<0.000000e+00> : vector<6x6xf32>
    %15 = tpu.matmul %1, %14, %cst_17 {dimension_numbers = #tpu.dot_dimension_numbers<[1], [0], [0], [1], [0, 0, 1, 1], [], []>, precision = #tpu.contract_precision<fp32>} : vector<6x16xf32>, vector<16x6xf32>, vector<6x6xf32> -> vector<6x6xf32>
    %16 = arith.mulf %3, %5 : vector<16x16xf32>
    %cst_18 = arith.constant dense<0.000000e+00> : vector<16x6xf32>
    %17 = tpu.matmul %16, %0, %cst_18 {dimension_numbers = #tpu.dot_dimension_numbers<[1], [0], [0], [1], [0, 0, 1, 1], [], []>, precision = #tpu.contract_precision<fp32>} : vector<16x16xf32>, vector<16x6xf32>, vector<16x6xf32> -> vector<16x6xf32>
    %cst_19 = arith.constant dense<0.000000e+00> : vector<6x6xf32>
    %18 = tpu.matmul %1, %17, %cst_19 {dimension_numbers = #tpu.dot_dimension_numbers<[1], [0], [0], [1], [0, 0, 1, 1], [], []>, precision = #tpu.contract_precision<fp32>} : vector<6x16xf32>, vector<16x6xf32>, vector<6x6xf32> -> vector<6x6xf32>
    %19 = arith.mulf %7, %7 : vector<6x6xf32>
    %20 = arith.mulf %9, %9 : vector<6x6xf32>
    %21 = arith.mulf %7, %9 : vector<6x6xf32>
    %22 = arith.subf %12, %19 : vector<6x6xf32>
    %23 = arith.subf %15, %20 : vector<6x6xf32>
    %24 = arith.subf %18, %21 : vector<6x6xf32>
    %cst_20 = arith.constant 2.000000e+00 : f32
    %25 = vector.broadcast %cst_20 : f32 to vector<6x6xf32>
    %26 = arith.mulf %25, %24 : vector<6x6xf32>
    %cst_21 = arith.constant 5.852250e+01 : f32
    %27 = vector.broadcast %cst_21 : f32 to vector<6x6xf32>
    %28 = arith.addf %26, %27 : vector<6x6xf32>
    %29 = arith.addf %22, %23 : vector<6x6xf32>
    %cst_22 = arith.constant 5.852250e+01 : f32
    %30 = vector.broadcast %cst_22 : f32 to vector<6x6xf32>
    %31 = arith.addf %29, %30 : vector<6x6xf32>
    %32 = arith.divf %28, %31 : vector<6x6xf32>
    %cst_23 = arith.constant 2.000000e+00 : f32
    %33 = vector.broadcast %cst_23 : f32 to vector<6x6xf32>
    %34 = arith.mulf %33, %21 : vector<6x6xf32>
    %cst_24 = arith.constant 6.502500e+00 : f32
    %35 = vector.broadcast %cst_24 : f32 to vector<6x6xf32>
    %36 = arith.addf %34, %35 : vector<6x6xf32>
    %37 = arith.addf %19, %20 : vector<6x6xf32>
    %cst_25 = arith.constant 6.502500e+00 : f32
    %38 = vector.broadcast %cst_25 : f32 to vector<6x6xf32>
    %39 = arith.addf %37, %38 : vector<6x6xf32>
    %40 = arith.divf %36, %39 : vector<6x6xf32>
    %41 = arith.mulf %40, %32 : vector<6x6xf32>
    %42 = vector.shape_cast %41 : vector<6x6xf32> to vector<1x6x6xf32>
    %cst_26 = arith.constant dense<0.000000e+00> : vector<1xf32>
    %43 = vector.multi_reduction <add>, %42, %cst_26 [1, 2] : vector<1x6x6xf32> to vector<1xf32>
    %44 = vector.shape_cast %43 : vector<1xf32> to vector<1x1x1xf32>
    %45 = vector.extract %44[0, 0, 0] : f32 from vector<1x1x1xf32>
    %cst_27 = arith.constant 0.000000e+00 : f32
    %46 = arith.addf %cst_27, %45 : f32
    %c1 = arith.constant 1 : index
    %c0_28 = arith.constant 0 : index
    %c0_29 = arith.constant 0 : index
    %c0_30 = arith.constant 0 : index
    %47 = vector.load %arg2[%c1, %c0_28, %c0_29, %c0_30] : memref<2x1x16x16xf32, #tpu.memory_space<vmem>>, vector<1x1x16x16xf32>
    %48 = vector.shape_cast %47 : vector<1x1x16x16xf32> to vector<16x16xf32>
    %c1_31 = arith.constant 1 : index
    %c0_32 = arith.constant 0 : index
    %c0_33 = arith.constant 0 : index
    %c0_34 = arith.constant 0 : index
    %49 = vector.load %arg3[%c1_31, %c0_32, %c0_33, %c0_34] : memref<2x1x16x16xf32, #tpu.memory_space<vmem>>, vector<1x1x16x16xf32>
    %50 = vector.shape_cast %49 : vector<1x1x16x16xf32> to vector<16x16xf32>
    %cst_35 = arith.constant dense<0.000000e+00> : vector<16x6xf32>
    %51 = tpu.matmul %48, %0, %cst_35 {dimension_numbers = #tpu.dot_dimension_numbers<[1], [0], [0], [1], [0, 0, 1, 1], [], []>, precision = #tpu.contract_precision<fp32>} : vector<16x16xf32>, vector<16x6xf32>, vector<16x6xf32> -> vector<16x6xf32>
    %cst_36 = arith.constant dense<0.000000e+00> : vector<6x6xf32>
    %52 = tpu.matmul %1, %51, %cst_36 {dimension_numbers = #tpu.dot_dimension_numbers<[1], [0], [0], [1], [0, 0, 1, 1], [], []>, precision = #tpu.contract_precision<fp32>} : vector<6x16xf32>, vector<16x6xf32>, vector<6x6xf32> -> vector<6x6xf32>
    %cst_37 = arith.constant dense<0.000000e+00> : vector<16x6xf32>
    %53 = tpu.matmul %50, %0, %cst_37 {dimension_numbers = #tpu.dot_dimension_numbers<[1], [0], [0], [1], [0, 0, 1, 1], [], []>, precision = #tpu.contract_precision<fp32>} : vector<16x16xf32>, vector<16x6xf32>, vector<16x6xf32> -> vector<16x6xf32>
    %cst_38 = arith.constant dense<0.000000e+00> : vector<6x6xf32>
    %54 = tpu.matmul %1, %53, %cst_38 {dimension_numbers = #tpu.dot_dimension_numbers<[1], [0], [0], [1], [0, 0, 1, 1], [], []>, precision = #tpu.contract_precision<fp32>} : vector<6x16xf32>, vector<16x6xf32>, vector<6x6xf32> -> vector<6x6xf32>
    %55 = arith.mulf %48, %48 : vector<16x16xf32>
    %cst_39 = arith.constant dense<0.000000e+00> : vector<16x6xf32>
    %56 = tpu.matmul %55, %0, %cst_39 {dimension_numbers = #tpu.dot_dimension_numbers<[1], [0], [0], [1], [0, 0, 1, 1], [], []>, precision = #tpu.contract_precision<fp32>} : vector<16x16xf32>, vector<16x6xf32>, vector<16x6xf32> -> vector<16x6xf32>
    %cst_40 = arith.constant dense<0.000000e+00> : vector<6x6xf32>
    %57 = tpu.matmul %1, %56, %cst_40 {dimension_numbers = #tpu.dot_dimension_numbers<[1], [0], [0], [1], [0, 0, 1, 1], [], []>, precision = #tpu.contract_precision<fp32>} : vector<6x16xf32>, vector<16x6xf32>, vector<6x6xf32> -> vector<6x6xf32>
    %58 = arith.mulf %50, %50 : vector<16x16xf32>
    %cst_41 = arith.constant dense<0.000000e+00> : vector<16x6xf32>
    %59 = tpu.matmul %58, %0, %cst_41 {dimension_numbers = #tpu.dot_dimension_numbers<[1], [0], [0], [1], [0, 0, 1, 1], [], []>, precision = #tpu.contract_precision<fp32>} : vector<16x16xf32>, vector<16x6xf32>, vector<16x6xf32> -> vector<16x6xf32>
    %cst_42 = arith.constant dense<0.000000e+00> : vector<6x6xf32>
    %60 = tpu.matmul %1, %59, %cst_42 {dimension_numbers = #tpu.dot_dimension_numbers<[1], [0], [0], [1], [0, 0, 1, 1], [], []>, precision = #tpu.contract_precision<fp32>} : vector<6x16xf32>, vector<16x6xf32>, vector<6x6xf32> -> vector<6x6xf32>
    %61 = arith.mulf %48, %50 : vector<16x16xf32>
    %cst_43 = arith.constant dense<0.000000e+00> : vector<16x6xf32>
    %62 = tpu.matmul %61, %0, %cst_43 {dimension_numbers = #tpu.dot_dimension_numbers<[1], [0], [0], [1], [0, 0, 1, 1], [], []>, precision = #tpu.contract_precision<fp32>} : vector<16x16xf32>, vector<16x6xf32>, vector<16x6xf32> -> vector<16x6xf32>
    %cst_44 = arith.constant dense<0.000000e+00> : vector<6x6xf32>
    %63 = tpu.matmul %1, %62, %cst_44 {dimension_numbers = #tpu.dot_dimension_numbers<[1], [0], [0], [1], [0, 0, 1, 1], [], []>, precision = #tpu.contract_precision<fp32>} : vector<6x16xf32>, vector<16x6xf32>, vector<6x6xf32> -> vector<6x6xf32>
    %64 = arith.mulf %52, %52 : vector<6x6xf32>
    %65 = arith.mulf %54, %54 : vector<6x6xf32>
    %66 = arith.mulf %52, %54 : vector<6x6xf32>
    %67 = arith.subf %57, %64 : vector<6x6xf32>
    %68 = arith.subf %60, %65 : vector<6x6xf32>
    %69 = arith.subf %63, %66 : vector<6x6xf32>
    %cst_45 = arith.constant 2.000000e+00 : f32
    %70 = vector.broadcast %cst_45 : f32 to vector<6x6xf32>
    %71 = arith.mulf %70, %69 : vector<6x6xf32>
    %cst_46 = arith.constant 5.852250e+01 : f32
    %72 = vector.broadcast %cst_46 : f32 to vector<6x6xf32>
    %73 = arith.addf %71, %72 : vector<6x6xf32>
    %74 = arith.addf %67, %68 : vector<6x6xf32>
    %cst_47 = arith.constant 5.852250e+01 : f32
    %75 = vector.broadcast %cst_47 : f32 to vector<6x6xf32>
    %76 = arith.addf %74, %75 : vector<6x6xf32>
    %77 = arith.divf %73, %76 : vector<6x6xf32>
    %cst_48 = arith.constant 2.000000e+00 : f32
    %78 = vector.broadcast %cst_48 : f32 to vector<6x6xf32>
    %79 = arith.mulf %78, %66 : vector<6x6xf32>
    %cst_49 = arith.constant 6.502500e+00 : f32
    %80 = vector.broadcast %cst_49 : f32 to vector<6x6xf32>
    %81 = arith.addf %79, %80 : vector<6x6xf32>
    %82 = arith.addf %64, %65 : vector<6x6xf32>
    %cst_50 = arith.constant 6.502500e+00 : f32
    %83 = vector.broadcast %cst_50 : f32 to vector<6x6xf32>
    %84 = arith.addf %82, %83 : vector<6x6xf32>
    %85 = arith.divf %81, %84 : vector<6x6xf32>
    %86 = arith.mulf %85, %77 : vector<6x6xf32>
    %87 = vector.shape_cast %86 : vector<6x6xf32> to vector<1x6x6xf32>
    %cst_51 = arith.constant dense<0.000000e+00> : vector<1xf32>
    %88 = vector.multi_reduction <add>, %87, %cst_51 [1, 2] : vector<1x6x6xf32> to vector<1xf32>
    %89 = vector.shape_cast %88 : vector<1xf32> to vector<1x1x1xf32>
    %90 = vector.extract %89[0, 0, 0] : f32 from vector<1x1x1xf32>
    %91 = arith.addf %46, %90 : f32
    %92 = vector.broadcast %91 : f32 to vector<1x1x8x128xf32>
    %c0_52 = arith.constant 0 : index
    %c0_53 = arith.constant 0 : index
    %c0_54 = arith.constant 0 : index
    %c0_55 = arith.constant 0 : index
    %93 = vector.load %arg6[%c0_52, %c0_53, %c0_54, %c0_55] : memref<1x1x8x128xf32, #tpu.memory_space<vmem>>, vector<1x1x8x128xf32>
    tpu.vector_store %arg6[%c0_52, %c0_53, %c0_54, %c0_55], %92 {strides = array<i32>} : memref<1x1x8x128xf32, #tpu.memory_space<vmem>>, vector<1x1x8x128xf32>,
    return
  }
  func.func @transform_0(%arg0: i32, %arg1: i32) -> (i32, i32, i32, i32) {
    %c0_i32 = arith.constant 0 : i32
    %c0_i32_0 = arith.constant 0 : i32
    %c0_i32_1 = arith.constant 0 : i32
    return %arg0, %arg1, %c0_i32, %c0_i32_0 : i32, i32, i32, i32
  }
  func.func @transform_1(%arg0: i32, %arg1: i32) -> (i32, i32, i32, i32) {
    %c0_i32 = arith.constant 0 : i32
    %c0_i32_0 = arith.constant 0 : i32
    %c0_i32_1 = arith.constant 0 : i32
    return %arg0, %arg1, %c0_i32, %c0_i32_0 : i32, i32, i32, i32
  }
  func.func @transform_2(%arg0: i32, %arg1: i32) -> (i32, i32) {
    %c0_i32 = arith.constant 0 : i32
    %c0_i32_0 = arith.constant 0 : i32
    %c0_i32_1 = arith.constant 0 : i32
    return %c0_i32, %c0_i32_0 : i32, i32
  }
  func.func @transform_3(%arg0: i32, %arg1: i32) -> (i32, i32) {
    %c0_i32 = arith.constant 0 : i32
    %c0_i32_0 = arith.constant 0 : i32
    %c0_i32_1 = arith.constant 0 : i32
    return %c0_i32, %c0_i32_0 : i32, i32
  }
  func.func @transform_4(%arg0: i32, %arg1: i32) -> (i32, i32, i32, i32) {
    %c0_i32 = arith.constant 0 : i32
    %c0_i32_0 = arith.constant 0 : i32
    %c0_i32_1 = arith.constant 0 : i32
    return %arg0, %arg1, %c0_i32, %c0_i32_0 : i32, i32, i32, i32
  }
}

</mosaic_0001>

<llo_original>
// kernel: tpu_custom_call.1
$region0: #{tpu_custom_call.1}
  #allocation0 [shape = 'u32[]', space=smem, size = 0x4, offset = 0x4, fixed_abs, tag = 'smem constant byte address 0x4 - core index']
  #allocation1 [shape = 'u32[144,128]{1,0:T(1,128)}', space=vmem, size = 0x12000, scoped, tag = 'internal scratch']
  #allocation8 [shape = 's32[]', space=sflag, size = 0x4, offset = 0, fixed_abs, tag = 'sflag constant byte address 0x0 - dummy sync flag']
  #allocation10 [shape = 's32[]', space=sflag, size = 0x4, offset = 0, fixed_abs, tag = 'sflag constant byte address 0x0 - dummy sync flag']
  %s0 = inlined_call_operand.hbm [shape: f32[2,3,16,16], index: 0, kind: input, shape index: {}]
  %s1 = inlined_call_operand.hbm [shape: f32[2,3,16,16], index: 1, kind: input, shape index: {}]
  %s2 = inlined_call_operand.vmem [shape: f32[16,6], index: 2, kind: input, shape index: {}]
  %s3 = inlined_call_operand.vmem [shape: f32[6,16], index: 3, kind: input, shape index: {}]
  %s4 = inlined_call_operand.hbm [shape: f32[1,3,8,128], index: 4, kind: output, shape index: {}]
  %s5 = sld [smem:[#allocation0]]
  $region57: #{tpu_custom_call.1} parent=0
    _
  %s7 = ssub.s32 1, %s5
  %s8 = scalar_select 0, %s7, %s5
  $region1: #{tpu_custom_call.1} parent=0
    #allocation2 [shape = 'u8[32768]{0}', space=vmem, size = 0x8000, scoped, tag = 'input window, operand 0']
    #allocation3 [shape = 's32[2]{0}', space=sflag, size = 0x8, scoped, tag = 'scoped memory for tpu_custom_call.1']
    #allocation4 [shape = 's32[2]{0}', space=sflag, size = 0x8, scoped, tag = 'scoped memory for tpu_custom_call.1']
    #allocation5 [shape = 'u8[32768]{0}', space=vmem, size = 0x8000, scoped, tag = 'input window, operand 1']
    #allocation6 [shape = 's32[2]{0}', space=sflag, size = 0x8, scoped, tag = 'scoped memory for tpu_custom_call.1']
    #allocation7 [shape = 'u8[8192]{0}', space=vmem, size = 0x2000, scoped, tag = 'output window, operand 0']
    %9 = vsyncpa [#allocation3], 0
    %s10 = scalar_lea.sflag [#allocation3], 1
    %11 = vsyncpa %s10, 0
    %12 = vsyncpa [#allocation6], 0
    %s13 = scalar_lea.sflag [#allocation6], 1
    %14 = vsyncpa %s13, 0
    %15 = vsyncpa [#allocation4], 0
    %s16 = scalar_lea.sflag [#allocation4], 1
    %17 = vsyncpa %s16, 0
    loop: start=0, step=1, limit=5
    $region2: #{tpu_custom_call.1} parent=1 // loop_pre_header
      _
    $region3: #{tpu_custom_call.1} parent=1 // loop_header
      %s19 = sphi 0, %s23
      %p20 = scmp.ge.s32.totalorder %s19, 5
      %s26 = sphi 0, %s38
      %s27 = sphi 0, %s34
      %s28 = sphi 0, %s26
      %s29 = sphi 0, %s27
      %s30 = sphi 0, %s28
      %s31 = sphi 0, %s29
      %s43 = sphi 0, %s45
      %s46 = sphi 0, %s43
      %s47 = sphi 0, %s46
      %s63 = sphi 0, %s47
      %s71 = sphi 0, %s73
      %s74 = sphi 0, %s71
      %s75 = sphi 0, %s74
      %s91 = sphi 0, %s75
      %s95 = sphi 0, %s95
      %s97 = sphi 0, %s95
      %s98 = sphi 0, %s97
      %s112 = sphi 0, %s98
      %s116 = sphi 0, %s116
      %s118 = sphi 0, %s116
      %s119 = sphi 0, %s118
      %s133 = sphi 0, %s119
      %s141 = sphi 0, %s143
      %s144 = sphi 0, %s141
      %s145 = sphi 0, %s144
      %s161 = sphi 0, %s145
    $region4: #{tpu_custom_call.1} parent=1 // loop_header_branch
      %22 = sbr.rel (%p20) target = $region8
    $region5: #{tpu_custom_call.1} parent=1 // loop_body
      %s24 = ssub.s32 %s19, 1
      %s25 = ssub.s32 %s19, 2
      %s32 = sadd.s32 1, %s27
      %p33 = scmp.ge.s32.totalorder %s32, 3
      %s34 = scalar_select %p33, 0, %s32
      %s35 = sadd.s32 1, %s26
      %s36 = scalar_select %p33, %s35, %s26
      %p37 = scmp.ge.s32.totalorder %s36, 1
      %s38 = scalar_select %p37, 0, %s36
      %s39 = ssub.s32 %s26, %s38
      %s40 = ssub.s32 %s27, %s34
      %s41 = sor.u32 %s39, %s40
      %p42 = scmp.eq.s32.totalorder %s41, 0
      %s44 = sadd.s32 %s43, 1
      %s45 = scalar_select %p42, %s43, %s44
      %p48 = pneg %p42
      %p49 = scmp.eq.s32.totalorder %s19, 2
      %p50 = por %p48, %p49
      %p51 = scmp.ne.s32.totalorder %s43, %s46
      %p52 = scmp.eq.s32.totalorder %s19, 0
      %p53 = por %p51, %p52
      %p54 = scmp.ne.s32.totalorder %s43, %s46
      %p55 = scmp.eq.s32.totalorder %s24, 2
      %p56 = por %p54, %p55
      %p57 = scmp.ne.s32.totalorder %s46, %s47
      %p58 = scmp.eq.s32.totalorder %s24, 0
      %p59 = por %p57, %p58
      %p60 = scmp.ne.s32.totalorder %s46, %s47
      %p61 = scmp.eq.s32.totalorder %s25, 2
      %p62 = por %p60, %p61
      %p64 = scmp.ne.s32.totalorder %s47, %s63
      %p65 = scmp.eq.s32.totalorder %s25, 0
      %p66 = por %p64, %p65
      %s67 = ssub.s32 %s26, %s38
      %s68 = ssub.s32 %s27, %s34
      %s69 = sor.u32 %s67, %s68
      %p70 = scmp.eq.s32.totalorder %s69, 0
      %s72 = sadd.s32 %s71, 1
      %s73 = scalar_select %p70, %s71, %s72
      %p76 = pneg %p70
      %p77 = scmp.eq.s32.totalorder %s19, 2
      %p78 = por %p76, %p77
      %p79 = scmp.ne.s32.totalorder %s71, %s74
      %p80 = scmp.eq.s32.totalorder %s19, 0
      %p81 = por %p79, %p80
      %p82 = scmp.ne.s32.totalorder %s71, %s74
      %p83 = scmp.eq.s32.totalorder %s24, 2
      %p84 = por %p82, %p83
      %p85 = scmp.ne.s32.totalorder %s74, %s75
      %p86 = scmp.eq.s32.totalorder %s24, 0
      %p87 = por %p85, %p86
      %p88 = scmp.ne.s32.totalorder %s74, %s75
      %p89 = scmp.eq.s32.totalorder %s25, 2
      %p90 = por %p88, %p89
      %p92 = scmp.ne.s32.totalorder %s75, %s91
      %p93 = scmp.eq.s32.totalorder %s25, 0
      %p94 = por %p92, %p93
      %s96 = sadd.s32 %s95, 1
      %p99 = scmp.eq.s32.totalorder %s19, 2
      %p100 = scmp.ne.s32.totalorder %s95, %s97
      %p101 = scmp.eq.s32.totalorder %s19, 0
      %p102 = por %p100, %p101
      %p103 = scmp.ne.s32.totalorder %s95, %s97
      %p104 = scmp.eq.s32.totalorder %s24, 2
      %p105 = por %p103, %p104
      %p106 = scmp.ne.s32.totalorder %s97, %s98
      %p107 = scmp.eq.s32.totalorder %s24, 0
      %p108 = por %p106, %p107
      %p109 = scmp.ne.s32.totalorder %s97, %s98
      %p110 = scmp.eq.s32.totalorder %s25, 2
      %p111 = por %p109, %p110
      %p113 = scmp.ne.s32.totalorder %s98, %s112
      %p114 = scmp.eq.s32.totalorder %s25, 0
      %p115 = por %p113, %p114
      %s117 = sadd.s32 %s116, 1
      %p120 = scmp.eq.s32.totalorder %s19, 2
      %p121 = scmp.ne.s32.totalorder %s116, %s118
      %p122 = scmp.eq.s32.totalorder %s19, 0
      %p123 = por %p121, %p122
      %p124 = scmp.ne.s32.totalorder %s116, %s118
      %p125 = scmp.eq.s32.totalorder %s24, 2
      %p126 = por %p124, %p125
      %p127 = scmp.ne.s32.totalorder %s118, %s119
      %p128 = scmp.eq.s32.totalorder %s24, 0
      %p129 = por %p127, %p128
      %p130 = scmp.ne.s32.totalorder %s118, %s119
      %p131 = scmp.eq.s32.totalorder %s25, 2
      %p132 = por %p130, %p131
      %p134 = scmp.ne.s32.totalorder %s119, %s133
      %p135 = scmp.eq.s32.totalorder %s25, 0
      %p136 = por %p134, %p135
      %s137 = ssub.s32 %s26, %s38
      %s138 = ssub.s32 %s27, %s34
      %s139 = sor.u32 %s137, %s138
      %p140 = scmp.eq.s32.totalorder %s139, 0
      %s142 = sadd.s32 %s141, 1
      %s143 = scalar_select %p140, %s141, %s142
      %p146 = pneg %p140
      %p147 = scmp.eq.s32.totalorder %s19, 2
      %p148 = por %p146, %p147
      %p149 = scmp.ne.s32.totalorder %s141, %s144
      %p150 = scmp.eq.s32.totalorder %s19, 0
      %p151 = por %p149, %p150
      %p152 = scmp.ne.s32.totalorder %s141, %s144
      %p153 = scmp.eq.s32.totalorder %s24, 2
      %p154 = por %p152, %p153
      %p155 = scmp.ne.s32.totalorder %s144, %s145
      %p156 = scmp.eq.s32.totalorder %s24, 0
      %p157 = por %p155, %p156
      %p158 = scmp.ne.s32.totalorder %s144, %s145
      %p159 = scmp.eq.s32.totalorder %s25, 2
      %p160 = por %p158, %p159
      %p162 = scmp.ne.s32.totalorder %s145, %s161
      %p163 = scmp.eq.s32.totalorder %s25, 0
      %p164 = por %p162, %p163
      %p165 = scmp.le.s32.totalorder 1, %s19
      %p166 = scmp.lt.s32.totalorder %s19, 4
      %p167 = pnand %p165, %p166
      %p168 = pneg %p167
      // Predicated region
      $region9: #{tpu_custom_call.1} parent=5 // pred_check
        _
      $region10: #{tpu_custom_call.1} parent=5 // pred_check_branch
        %170 = sbr.rel (%p167) target = $region12
      $region11: #{tpu_custom_call.1} parent=5 // pred_region
        %s171 = ssub.s32 %s19, 1
        // Predicated region
        $region13: #{tpu_custom_call.1} parent=11 // pred_check
          %p172 = pneg %p108
        $region14: #{tpu_custom_call.1} parent=11 // pred_check_branch
          %174 = sbr.rel (%p172) target = $region16
        $region15: #{tpu_custom_call.1} parent=11 // pred_region
          _
        $region16: #{tpu_custom_call.1} parent=11 // pred_fallthru
          _
        // Predicated region
        $region17: #{tpu_custom_call.1} parent=11 // pred_check
          %p175 = pneg %p129
        $region18: #{tpu_custom_call.1} parent=11 // pred_check_branch
          %177 = sbr.rel (%p175) target = $region20
        $region19: #{tpu_custom_call.1} parent=11 // pred_region
          _
        $region20: #{tpu_custom_call.1} parent=11 // pred_fallthru
          _
      $region12: #{tpu_custom_call.1} parent=5 // pred_fallthru
        _
      %p178 = scmp.lt.s32.totalorder %s19, 3
      // Predicated region
      $region21: #{tpu_custom_call.1} parent=5 // pred_check
        %p179 = pneg %p178
      $region22: #{tpu_custom_call.1} parent=5 // pred_check_branch
        %181 = sbr.rel (%p179) target = $region24
      $region23: #{tpu_custom_call.1} parent=5 // pred_region
        // Predicated region
        $region25: #{tpu_custom_call.1} parent=23 // pred_check
          %p182 = pneg %p53
        $region26: #{tpu_custom_call.1} parent=23 // pred_check_branch
          %184 = sbr.rel (%p182) target = $region28
        $region27: #{tpu_custom_call.1} parent=23 // pred_region
          #allocation9 [shape = 'u32[6]{0}', space=smem, size = 0x18, scoped, tag = 'DMA stride descriptor']
          %s185 = sand.u32 %s43, 1
          %s186 = scalar_lea.sflag [#allocation3], %s185
          %s187 = sand.u32 %s43, 1
          %s188 = smul.addr %s187, 32
          %s189 = scalar_lea.vmem [#allocation2], %s188
          %s190 = smul.u32 2, %s26
          %s192 = ssub.s32 512, 512
          %193 = vsyncadd %s186, %s192
          %s194 = smul.addr %s27, 2
          %s195 = smul.addr %s190, 6
          %s196 = sadd.s32 %s194, %s195
          %s197 = smul.addr %s196, 128
          %s198 = scalar_lea.hbm %s0, %s197
          %s200 = sshll.u32 1, 14
          %s201 = sxor.u32 4294967295, %s200
          %s203 = sld [smem:[#allocation0]]
          %s204 = sadd.s32 2, %s203
          %s206 = sshll.u32 7, 26
          %s207 = sxor.u32 4294967295, %s206
          %s208 = sand.u32 0, %s207
          %s209 = sshll.u32 %s204, 26
          %s210 = sor.u32 %s208, %s209
          %s211 = sshll.u32 %s189, 4
          %s212 = int_to_ptr.vmem [resolvable:$true] %s211
          %218 = sst [smem:[#allocation9]] 768
          %s219 = scalar_lea.smem [#allocation9], 1
          %220 = sst [smem:[%s219]] 256
          %s221 = scalar_lea.smem [#allocation9], 2
          %222 = sst [smem:[%s221]] 2
          %s223 = scalar_lea.smem [#allocation9], 3
          %224 = sst [smem:[%s223]] 128
          %s225 = scalar_lea.smem [#allocation9], 4
          %226 = sst [smem:[%s225]] 128
          %s227 = scalar_lea.smem [#allocation9], 5
          %228 = sst [smem:[%s227]] 8
          %230 = dma.general %s198, 512, %s212, %s186, [#allocation8], [#allocation9], %s210, 0
        $region28: #{tpu_custom_call.1} parent=23 // pred_fallthru
          _
        // Predicated region
        $region29: #{tpu_custom_call.1} parent=23 // pred_check
          %p231 = pneg %p81
        $region30: #{tpu_custom_call.1} parent=23 // pred_check_branch
          %233 = sbr.rel (%p231) target = $region32
        $region31: #{tpu_custom_call.1} parent=23 // pred_region
          #allocation11 [shape = 'u32[6]{0}', space=smem, size = 0x18, scoped, tag = 'DMA stride descriptor']
          %s234 = sand.u32 %s71, 1
          %s235 = scalar_lea.sflag [#allocation6], %s234
          %s236 = sand.u32 %s71, 1
          %s237 = smul.addr %s236, 32
          %s238 = scalar_lea.vmem [#allocation5], %s237
          %s239 = smul.u32 2, %s26
          %s241 = ssub.s32 512, 512
          %242 = vsyncadd %s235, %s241
          %s243 = smul.addr %s27, 2
          %s244 = smul.addr %s239, 6
          %s245 = sadd.s32 %s243, %s244
          %s246 = smul.addr %s245, 128
          %s247 = scalar_lea.hbm %s1, %s246
          %s249 = sshll.u32 1, 14
          %s250 = sxor.u32 4294967295, %s249
          %s252 = sld [smem:[#allocation0]]
          %s253 = sadd.s32 2, %s252
          %s255 = sshll.u32 7, 26
          %s256 = sxor.u32 4294967295, %s255
          %s257 = sand.u32 0, %s256
          %s258 = sshll.u32 %s253, 26
          %s259 = sor.u32 %s257, %s258
          %s260 = sshll.u32 %s238, 4
          %s261 = int_to_ptr.vmem [resolvable:$true] %s260
          %267 = sst [smem:[#allocation11]] 768
          %s268 = scalar_lea.smem [#allocation11], 1
          %269 = sst [smem:[%s268]] 256
          %s270 = scalar_lea.smem [#allocation11], 2
          %271 = sst [smem:[%s270]] 2
          %s272 = scalar_lea.smem [#allocation11], 3
          %273 = sst [smem:[%s272]] 128
          %s274 = scalar_lea.smem [#allocation11], 4
          %275 = sst [smem:[%s274]] 128
          %s276 = scalar_lea.smem [#allocation11], 5
          %277 = sst [smem:[%s276]] 8
          %279 = dma.general %s247, 512, %s261, %s235, [#allocation10], [#allocation11], %s259, 0
        $region32: #{tpu_custom_call.1} parent=23 // pred_fallthru
          _
      $region24: #{tpu_custom_call.1} parent=5 // pred_fallthru
        _
      %p280 = scmp.le.s32.totalorder 1, %s19
      %p281 = scmp.lt.s32.totalorder %s19, 4
      %p282 = pnand %p280, %p281
      %p283 = pneg %p282
      // Predicated region
      $region33: #{tpu_custom_call.1} parent=5 // pred_check
        _
      $region34: #{tpu_custom_call.1} parent=5 // pred_check_branch
        %285 = sbr.rel (%p282) target = $region36
      $region35: #{tpu_custom_call.1} parent=5 // pred_region
        %s286 = ssub.s32 %s19, 1
        %s287 = sand.u32 %s46, 1
        %s288 = scalar_lea.sflag [#allocation3], %s287
        %s289 = sand.u32 %s46, 1
        %s290 = smul.addr %s289, 32
        %s291 = scalar_lea.vmem [#allocation2], %s290
        // Predicated region
        $region37: #{tpu_custom_call.1} parent=35 // pred_check
          %p292 = pneg %p59
        $region38: #{tpu_custom_call.1} parent=35 // pred_check_branch
          %294 = sbr.rel (%p292) target = $region40
        $region39: #{tpu_custom_call.1} parent=35 // pred_region
          %295 = dma.done %s288, 512
        $region40: #{tpu_custom_call.1} parent=35 // pred_fallthru
          _
        %s296 = sand.u32 %s74, 1
        %s297 = scalar_lea.sflag [#allocation6], %s296
        %s298 = sand.u32 %s74, 1
        %s299 = smul.addr %s298, 32
        %s300 = scalar_lea.vmem [#allocation5], %s299
        // Predicated region
        $region41: #{tpu_custom_call.1} parent=35 // pred_check
          %p301 = pneg %p87
        $region42: #{tpu_custom_call.1} parent=35 // pred_check_branch
          %303 = sbr.rel (%p301) target = $region44
        $region43: #{tpu_custom_call.1} parent=35 // pred_region
          %304 = dma.done %s297, 512
        $region44: #{tpu_custom_call.1} parent=35 // pred_fallthru
          _
        %s305 = sand.u32 %s46, 1
        %s306 = scalar_lea.sflag [#allocation3], %s305
        %s307 = sand.u32 %s46, 1
        %s308 = smul.addr %s307, 32
        %s309 = scalar_lea.vmem [#allocation2], %s308
        %p310 = pneg %p59
        %p311 = pneg %p56
        %s312 = sand.u32 %s74, 1
        %s313 = scalar_lea.sflag [#allocation6], %s312
        %s314 = sand.u32 %s74, 1
        %s315 = smul.addr %s314, 32
        %s316 = scalar_lea.vmem [#allocation5], %s315
        %p317 = pneg %p87
        %p318 = pneg %p84
        %p319 = pneg %p108
        %p320 = pneg %p105
        %p321 = pneg %p129
        %p322 = pneg %p126
        %p323 = pneg %p157
        %p324 = pneg %p154
        %s325 = sand.u32 %s144, 1
        %s326 = scalar_lea.sflag [#allocation4], %s325
        %s327 = sand.u32 %s144, 1
        %s328 = smul.addr %s327, 8
        %s329 = scalar_lea.vmem [#allocation7], %s328
        %s330 = smul.u32 2, %s28
        %s331 = smul.u32 2, %s28
        %v332 = vld [vmem:[%s2] sm:$0xff]
        %v333 = vld [vmem:[%s2 + $0x8] sm:$0xff]
        %v334 = vld [vmem:[%s3] sm:$0x3f]
        %v335 = vld [vmem:[%s291] sm:$0xff]
        %v336 = vld [vmem:[%s291 + $0x8] sm:$0xff]
        %v337 = vld [vmem:[%s300] sm:$0xff]
        %v338 = vld [vmem:[%s300 + $0x8] sm:$0xff]
        %vm339 = vcmask 130048
        %v341 = vsel %vm339, %v335, 0
        %v344 = vsel %vm339, %v336, 0
        %346 = vmatprep.subr.mxu0 0.0
        %v347 = vand.u32 %v332, 4294901760
        %348 = vmatpush1.msra.mxu0 %v347
        %349 = vmatprep.subr.mxu0 0.0
        %v350 = vand.u32 %v333, 4294901760
        %351 = vmatpush1.msra.mxu0 %v350
        %352 = vmatprep.subr.mxu0 0.0
        %353 = vmatpush1.msra.mxu0 0.0
        %354 = vmatprep.subr.mxu0 0.0
        %355 = vmatpush1.msra.mxu0 0.0
        %356 = vmatprep.subr.mxu0 0.0
        %357 = vmatpush1.msra.mxu0 0.0
        %358 = vmatprep.subr.mxu0 0.0
        %359 = vmatpush1.msra.mxu0 0.0
        %360 = vmatprep.subr.mxu0 0.0
        %361 = vmatpush1.msra.mxu0 0.0
        %362 = vmatprep.subr.mxu0 0.0
        %363 = vmatpush1.msra.mxu0 0.0
        %364 = vmatprep.subr.mxu0 0.0
        %365 = vmatpush1.msra.mxu0 0.0
        %366 = vmatprep.subr.mxu0 0.0
        %367 = vmatpush1.msra.mxu0 0.0
        %368 = vmatprep.subr.mxu0 0.0
        %369 = vmatpush1.msra.mxu0 0.0
        %370 = vmatprep.subr.mxu0 0.0
        %371 = vmatpush1.msra.mxu0 0.0
        %372 = vmatprep.subr.mxu0 0.0
        %373 = vmatpush1.msra.mxu0 0.0
        %374 = vmatprep.subr.mxu0 0.0
        %375 = vmatpush1.msra.mxu0 0.0
        %376 = vmatprep.subr.mxu0 0.0
        %377 = vmatpush1.msra.mxu0 0.0
        %378 = vmatprep.subr.mxu0 0.0
        %379 = vmatpush1.msra.mxu0 0.0
        %380 = vmatprep.subr.mxu0 0.0
        %381 = vmatpush1.msra.mxu0 0.0
        %382 = vmatprep.subr.mxu0 0.0
        %383 = vmatpush1.msra.mxu0 0.0
        %384 = vmatprep.subr.mxu0 0.0
        %385 = vmatpush1.msra.mxu0 0.0
        %386 = vmatprep.subr.mxu0 0.0
        %387 = vmatpush1.msra.mxu0 0.0
        %388 = vmatprep.subr.mxu0 0.0
        %389 = vmatpush1.msra.mxu0 0.0
        %390 = vmatprep.subr.mxu0 0.0
        %391 = vmatpush1.msra.mxu0 0.0
        %392 = vmatprep.subr.mxu0 0.0
        %393 = vmatpush1.msra.mxu0 0.0
        %394 = vmatprep.subr.mxu0 0.0
        %395 = vmatpush1.msra.mxu0 0.0
        %396 = vmatprep.subr.mxu0 0.0
        %397 = vmatpush1.msra.mxu0 0.0
        %398 = vmatprep.subr.mxu0 0.0
        %399 = vmatpush1.msra.mxu0 0.0
        %400 = vmatprep.subr.mxu0 0.0
        %401 = vmatpush1.msra.mxu0 0.0
        %402 = vmatprep.subr.mxu0 0.0
        %403 = vmatpush1.msra.mxu0 0.0
        %404 = vmatprep.subr.mxu0 0.0
        %405 = vmatpush1.msra.mxu0 0.0
        %406 = vmatprep.subr.mxu0 0.0
        %407 = vmatpush1.msra.mxu0 0.0
        %408 = vmatprep.subr.mxu0 0.0
        %409 = vmatpush1.msra.mxu0 0.0
        %410 = vmatprep.subr.mxu0 0.0
        %411 = vmatpush1.msra.mxu0 0.0
        %412 = vmatprep.mubr.f32.mxu0 0.0
        %v413 = vand.u32 %v341, 4294901760
        %v414 = vsub.f32 %v341, %v413
        %v415 = vand.u32 %v414, 4294901760
        %v416 = vsub.f32 %v414, %v415
        %v417 = vand.u32 %v416, 4294901760
        %418 = vmatmul.mubr.f32.gmra.mrb[0].mxu0 %v417
        %v419 = vpop.f32.mrb[0].mxu0
        %v420 = vadd.f32 0.0, %v419
        %v421 = vpop.f32.mrb[0].mxu0
        %422 = vmatprep.mubr.f32.mxu0 0.0
        %v423 = vand.u32 %v344, 4294901760
        %v424 = vsub.f32 %v344, %v423
        %v425 = vand.u32 %v424, 4294901760
        %v426 = vsub.f32 %v424, %v425
        %v427 = vand.u32 %v426, 4294901760
        %428 = vmatmul.mubr.f32.gmra.mrb[0].mxu0 %v427
        %v429 = vpop.f32.mrb[0].mxu0
        %v430 = vadd.f32 0.0, %v429
        %v431 = vpop.f32.mrb[0].mxu0
        %432 = vdwg.mxu0
        %433 = vmatprep.subr.mxu0 0.0
        %v434 = vand.u32 %v332, 4294901760
        %v435 = vsub.f32 %v332, %v434
        %v436 = vand.u32 %v435, 4294901760
        %v437 = vsub.f32 %v435, %v436
        %v438 = vand.u32 %v437, 4294901760
        %439 = vmatpush1.msra.mxu0 %v438
        %440 = vmatprep.subr.mxu0 0.0
        %v441 = vand.u32 %v333, 4294901760
        %v442 = vsub.f32 %v333, %v441
        %v443 = vand.u32 %v442, 4294901760
        %v444 = vsub.f32 %v442, %v443
        %v445 = vand.u32 %v444, 4294901760
        %446 = vmatpush1.msra.mxu0 %v445
        %447 = vmatprep.subr.mxu0 0.0
        %448 = vmatpush1.msra.mxu0 0.0
        %449 = vmatprep.subr.mxu0 0.0
        %450 = vmatpush1.msra.mxu0 0.0
        %451 = vmatprep.subr.mxu0 0.0
        %452 = vmatpush1.msra.mxu0 0.0
        %453 = vmatprep.subr.mxu0 0.0
        %454 = vmatpush1.msra.mxu0 0.0
        %455 = vmatprep.subr.mxu0 0.0
        %456 = vmatpush1.msra.mxu0 0.0
        %457 = vmatprep.subr.mxu0 0.0
        %458 = vmatpush1.msra.mxu0 0.0
        %459 = vmatprep.subr.mxu0 0.0
        %460 = vmatpush1.msra.mxu0 0.0
        %461 = vmatprep.subr.mxu0 0.0
        %462 = vmatpush1.msra.mxu0 0.0
        %463 = vmatprep.subr.mxu0 0.0
        %464 = vmatpush1.msra.mxu0 0.0
        %465 = vmatprep.subr.mxu0 0.0
        %466 = vmatpush1.msra.mxu0 0.0
        %467 = vmatprep.subr.mxu0 0.0
        %468 = vmatpush1.msra.mxu0 0.0
        %469 = vmatprep.subr.mxu0 0.0
        %470 = vmatpush1.msra.mxu0 0.0
        %471 = vmatprep.subr.mxu0 0.0
        %472 = vmatpush1.msra.mxu0 0.0
        %473 = vmatprep.subr.mxu0 0.0
        %474 = vmatpush1.msra.mxu0 0.0
        %475 = vmatprep.subr.mxu0 0.0
        %476 = vmatpush1.msra.mxu0 0.0
        %477 = vmatprep.subr.mxu0 0.0
        %478 = vmatpush1.msra.mxu0 0.0
        %479 = vmatprep.subr.mxu0 0.0
        %480 = vmatpush1.msra.mxu0 0.0
        %481 = vmatprep.subr.mxu0 0.0
        %482 = vmatpush1.msra.mxu0 0.0
        %483 = vmatprep.subr.mxu0 0.0
        %484 = vmatpush1.msra.mxu0 0.0
        %485 = vmatprep.subr.mxu0 0.0
        %486 = vmatpush1.msra.mxu0 0.0
        %487 = vmatprep.subr.mxu0 0.0
        %488 = vmatpush1.msra.mxu0 0.0
        %489 = vmatprep.subr.mxu0 0.0
        %490 = vmatpush1.msra.mxu0 0.0
        %491 = vmatprep.subr.mxu0 0.0
        %492 = vmatpush1.msra.mxu0 0.0
        %493 = vmatprep.subr.mxu0 0.0
        %494 = vmatpush1.msra.mxu0 0.0
        %495 = vmatprep.subr.mxu0 0.0
        %496 = vmatpush1.msra.mxu0 0.0
        %497 = vmatprep.subr.mxu0 0.0
        %498 = vmatpush1.msra.mxu0 0.0
        %499 = vmatprep.subr.mxu0 0.0
        %500 = vmatpush1.msra.mxu0 0.0
        %501 = vmatprep.subr.mxu0 0.0
        %502 = vmatpush1.msra.mxu0 0.0
        %503 = vmatprep.subr.mxu0 0.0
        %504 = vmatpush1.msra.mxu0 0.0
        %505 = vmatprep.subr.mxu0 0.0
        %506 = vmatpush1.msra.mxu0 0.0
        %507 = vmatprep.mubr.f32.mxu0 0.0
        %v508 = vand.u32 %v341, 4294901760
        %509 = vmatmul.mubr.f32.gmra.mrb[0].mxu0 %v508
        %v510 = vpop.f32.mrb[0].mxu0
        %v511 = vadd.f32 %v420, %v510
        %v512 = vpop.f32.mrb[0].mxu0
        %513 = vmatprep.mubr.f32.mxu0 0.0
        %v514 = vand.u32 %v344, 4294901760
        %515 = vmatmul.mubr.f32.gmra.mrb[0].mxu0 %v514
        %v516 = vpop.f32.mrb[0].mxu0
        %v517 = vadd.f32 %v430, %v516
        %v518 = vpop.f32.mrb[0].mxu0
        %519 = vdwg.mxu0
        %520 = vmatprep.subr.mxu0 0.0
        %v521 = vand.u32 %v332, 4294901760
        %v522 = vsub.f32 %v332, %v521
        %523 = vmatpush1.msra.mxu0 %v522
        %524 = vmatprep.subr.mxu0 0.0
        %v525 = vand.u32 %v333, 4294901760
        %v526 = vsub.f32 %v333, %v525
        %527 = vmatpush1.msra.mxu0 %v526
        %528 = vmatprep.subr.mxu0 0.0
        %529 = vmatpush1.msra.mxu0 0.0
        %530 = vmatprep.subr.mxu0 0.0
        %531 = vmatpush1.msra.mxu0 0.0
        %532 = vmatprep.subr.mxu0 0.0
        %533 = vmatpush1.msra.mxu0 0.0
        %534 = vmatprep.subr.mxu0 0.0
        %535 = vmatpush1.msra.mxu0 0.0
        %536 = vmatprep.subr.mxu0 0.0
        %537 = vmatpush1.msra.mxu0 0.0
        %538 = vmatprep.subr.mxu0 0.0
        %539 = vmatpush1.msra.mxu0 0.0
        %540 = vmatprep.subr.mxu0 0.0
        %541 = vmatpush1.msra.mxu0 0.0
        %542 = vmatprep.subr.mxu0 0.0
        %543 = vmatpush1.msra.mxu0 0.0
        %544 = vmatprep.subr.mxu0 0.0
        %545 = vmatpush1.msra.mxu0 0.0
        %546 = vmatprep.subr.mxu0 0.0
        %547 = vmatpush1.msra.mxu0 0.0
        %548 = vmatprep.subr.mxu0 0.0
        %549 = vmatpush1.msra.mxu0 0.0
        %550 = vmatprep.subr.mxu0 0.0
        %551 = vmatpush1.msra.mxu0 0.0
        %552 = vmatprep.subr.mxu0 0.0
        %553 = vmatpush1.msra.mxu0 0.0
        %554 = vmatprep.subr.mxu0 0.0
        %555 = vmatpush1.msra.mxu0 0.0
        %556 = vmatprep.subr.mxu0 0.0
        %557 = vmatpush1.msra.mxu0 0.0
        %558 = vmatprep.subr.mxu0 0.0
        %559 = vmatpush1.msra.mxu0 0.0
        %560 = vmatprep.subr.mxu0 0.0
        %561 = vmatpush1.msra.mxu0 0.0
        %562 = vmatprep.subr.mxu0 0.0
        %563 = vmatpush1.msra.mxu0 0.0
        %564 = vmatprep.subr.mxu0 0.0
        %565 = vmatpush1.msra.mxu0 0.0
        %566 = vmatprep.subr.mxu0 0.0
        %567 = vmatpush1.msra.mxu0 0.0
        %568 = vmatprep.subr.mxu0 0.0
        %569 = vmatpush1.msra.mxu0 0.0
        %570 = vmatprep.subr.mxu0 0.0
        %571 = vmatpush1.msra.mxu0 0.0
        %572 = vmatprep.subr.mxu0 0.0
        %573 = vmatpush1.msra.mxu0 0.0
        %574 = vmatprep.subr.mxu0 0.0
        %575 = vmatpush1.msra.mxu0 0.0
        %576 = vmatprep.subr.mxu0 0.0
        %577 = vmatpush1.msra.mxu0 0.0
        %578 = vmatprep.subr.mxu0 0.0
        %579 = vmatpush1.msra.mxu0 0.0
        %580 = vmatprep.subr.mxu0 0.0
        %581 = vmatpush1.msra.mxu0 0.0
        %582 = vmatprep.subr.mxu0 0.0
        %583 = vmatpush1.msra.mxu0 0.0
        %584 = vmatprep.subr.mxu0 0.0
        %585 = vmatpush1.msra.mxu0 0.0
        %586 = vmatprep.subr.mxu0 0.0
        %587 = vmatpush1.msra.mxu0 0.0
        %588 = vmatprep.mubr.f32.mxu0 0.0
        %v589 = vand.u32 %v341, 4294901760
        %v590 = vsub.f32 %v341, %v589
        %591 = vmatmul.mubr.f32.gmra.mrb[0].mxu0 %v590
        %v592 = vpop.f32.mrb[0].mxu0
        %v593 = vadd.f32 %v511, %v592
        %v594 = vpop.f32.mrb[0].mxu0
        %595 = vmatprep.mubr.f32.mxu0 0.0
        %v596 = vand.u32 %v344, 4294901760
        %v597 = vsub.f32 %v344, %v596
        %598 = vmatmul.mubr.f32.gmra.mrb[0].mxu0 %v597
        %v599 = vpop.f32.mrb[0].mxu0
        %v600 = vadd.f32 %v517, %v599
        %v601 = vpop.f32.mrb[0].mxu0
        %602 = vdwg.mxu0
        %603 = vmatprep.subr.mxu0 0.0
        %v604 = vand.u32 %v332, 4294901760
        %605 = vmatpush1.msra.mxu0 %v604
        %606 = vmatprep.subr.mxu0 0.0
        %v607 = vand.u32 %v333, 4294901760
        %608 = vmatpush1.msra.mxu0 %v607
        %609 = vmatprep.subr.mxu0 0.0
        %610 = vmatpush1.msra.mxu0 0.0
        %611 = vmatprep.subr.mxu0 0.0
        %612 = vmatpush1.msra.mxu0 0.0
        %613 = vmatprep.subr.mxu0 0.0
        %614 = vmatpush1.msra.mxu0 0.0
        %615 = vmatprep.subr.mxu0 0.0
        %616 = vmatpush1.msra.mxu0 0.0
        %617 = vmatprep.subr.mxu0 0.0
        %618 = vmatpush1.msra.mxu0 0.0
        %619 = vmatprep.subr.mxu0 0.0
        %620 = vmatpush1.msra.mxu0 0.0
        %621 = vmatprep.subr.mxu0 0.0
        %622 = vmatpush1.msra.mxu0 0.0
        %623 = vmatprep.subr.mxu0 0.0
        %624 = vmatpush1.msra.mxu0 0.0
        %625 = vmatprep.subr.mxu0 0.0
        %626 = vmatpush1.msra.mxu0 0.0
        %627 = vmatprep.subr.mxu0 0.0
        %628 = vmatpush1.msra.mxu0 0.0
        %629 = vmatprep.subr.mxu0 0.0
        %630 = vmatpush1.msra.mxu0 0.0
        %631 = vmatprep.subr.mxu0 0.0
        %632 = vmatpush1.msra.mxu0 0.0
        %633 = vmatprep.subr.mxu0 0.0
        %634 = vmatpush1.msra.mxu0 0.0
        %635 = vmatprep.subr.mxu0 0.0
        %636 = vmatpush1.msra.mxu0 0.0
        %637 = vmatprep.subr.mxu0 0.0
        %638 = vmatpush1.msra.mxu0 0.0
        %639 = vmatprep.subr.mxu0 0.0
        %640 = vmatpush1.msra.mxu0 0.0
        %641 = vmatprep.subr.mxu0 0.0
        %642 = vmatpush1.msra.mxu0 0.0
        %643 = vmatprep.subr.mxu0 0.0
        %644 = vmatpush1.msra.mxu0 0.0
        %645 = vmatprep.subr.mxu0 0.0
        %646 = vmatpush1.msra.mxu0 0.0
        %647 = vmatprep.subr.mxu0 0.0
        %648 = vmatpush1.msra.mxu0 0.0
        %649 = vmatprep.subr.mxu0 0.0
        %650 = vmatpush1.msra.mxu0 0.0
        %651 = vmatprep.subr.mxu0 0.0
        %652 = vmatpush1.msra.mxu0 0.0
        %653 = vmatprep.subr.mxu0 0.0
        %654 = vmatpush1.msra.mxu0 0.0
        %655 = vmatprep.subr.mxu0 0.0
        %656 = vmatpush1.msra.mxu0 0.0
        %657 = vmatprep.subr.mxu0 0.0
        %658 = vmatpush1.msra.mxu0 0.0
        %659 = vmatprep.subr.mxu0 0.0
        %660 = vmatpush1.msra.mxu0 0.0
        %661 = vmatprep.subr.mxu0 0.0
        %662 = vmatpush1.msra.mxu0 0.0
        %663 = vmatprep.subr.mxu0 0.0
        %664 = vmatpush1.msra.mxu0 0.0
        %665 = vmatprep.subr.mxu0 0.0
        %666 = vmatpush1.msra.mxu0 0.0
        %667 = vmatprep.subr.mxu0 0.0
        %668 = vmatpush1.msra.mxu0 0.0
        %669 = vmatprep.mubr.f32.mxu0 0.0
        %v670 = vand.u32 %v341, 4294901760
        %v671 = vsub.f32 %v341, %v670
        %v672 = vand.u32 %v671, 4294901760
        %673 = vmatmul.mubr.f32.gmra.mrb[0].mxu0 %v672
        %v674 = vpop.f32.mrb[0].mxu0
        %v675 = vadd.f32 %v593, %v674
        %v676 = vpop.f32.mrb[0].mxu0
        %677 = vmatprep.mubr.f32.mxu0 0.0
        %v678 = vand.u32 %v344, 4294901760
        %v679 = vsub.f32 %v344, %v678
        %v680 = vand.u32 %v679, 4294901760
        %681 = vmatmul.mubr.f32.gmra.mrb[0].mxu0 %v680
        %v682 = vpop.f32.mrb[0].mxu0
        %v683 = vadd.f32 %v600, %v682
        %v684 = vpop.f32.mrb[0].mxu0
        %685 = vdwg.mxu0
        %686 = vmatprep.subr.mxu0 0.0
        %v687 = vand.u32 %v332, 4294901760
        %v688 = vsub.f32 %v332, %v687
        %v689 = vand.u32 %v688, 4294901760
        %690 = vmatpush1.msra.mxu0 %v689
        %691 = vmatprep.subr.mxu0 0.0
        %v692 = vand.u32 %v333, 4294901760
        %v693 = vsub.f32 %v333, %v692
        %v694 = vand.u32 %v693, 4294901760
        %695 = vmatpush1.msra.mxu0 %v694
        %696 = vmatprep.subr.mxu0 0.0
        %697 = vmatpush1.msra.mxu0 0.0
        %698 = vmatprep.subr.mxu0 0.0
        %699 = vmatpush1.msra.mxu0 0.0
        %700 = vmatprep.subr.mxu0 0.0
        %701 = vmatpush1.msra.mxu0 0.0
        %702 = vmatprep.subr.mxu0 0.0
        %703 = vmatpush1.msra.mxu0 0.0
        %704 = vmatprep.subr.mxu0 0.0
        %705 = vmatpush1.msra.mxu0 0.0
        %706 = vmatprep.subr.mxu0 0.0
        %707 = vmatpush1.msra.mxu0 0.0
        %708 = vmatprep.subr.mxu0 0.0
        %709 = vmatpush1.msra.mxu0 0.0
        %710 = vmatprep.subr.mxu0 0.0
        %711 = vmatpush1.msra.mxu0 0.0
        %712 = vmatprep.subr.mxu0 0.0
        %713 = vmatpush1.msra.mxu0 0.0
        %714 = vmatprep.subr.mxu0 0.0
        %715 = vmatpush1.msra.mxu0 0.0
        %716 = vmatprep.subr.mxu0 0.0
        %717 = vmatpush1.msra.mxu0 0.0
        %718 = vmatprep.subr.mxu0 0.0
        %719 = vmatpush1.msra.mxu0 0.0
        %720 = vmatprep.subr.mxu0 0.0
        %721 = vmatpush1.msra.mxu0 0.0
        %722 = vmatprep.subr.mxu0 0.0
        %723 = vmatpush1.msra.mxu0 0.0
        %724 = vmatprep.subr.mxu0 0.0
        %725 = vmatpush1.msra.mxu0 0.0
        %726 = vmatprep.subr.mxu0 0.0
        %727 = vmatpush1.msra.mxu0 0.0
        %728 = vmatprep.subr.mxu0 0.0
        %729 = vmatpush1.msra.mxu0 0.0
        %730 = vmatprep.subr.mxu0 0.0
        %731 = vmatpush1.msra.mxu0 0.0
        %732 = vmatprep.subr.mxu0 0.0
        %733 = vmatpush1.msra.mxu0 0.0
        %734 = vmatprep.subr.mxu0 0.0
        %735 = vmatpush1.msra.mxu0 0.0
        %736 = vmatprep.subr.mxu0 0.0
        %737 = vmatpush1.msra.mxu0 0.0
        %738 = vmatprep.subr.mxu0 0.0
        %739 = vmatpush1.msra.mxu0 0.0
        %740 = vmatprep.subr.mxu0 0.0
        %741 = vmatpush1.msra.mxu0 0.0
        %742 = vmatprep.subr.mxu0 0.0
        %743 = vmatpush1.msra.mxu0 0.0
        %744 = vmatprep.subr.mxu0 0.0
        %745 = vmatpush1.msra.mxu0 0.0
        %746 = vmatprep.subr.mxu0 0.0
        %747 = vmatpush1.msra.mxu0 0.0
        %748 = vmatprep.subr.mxu0 0.0
        %749 = vmatpush1.msra.mxu0 0.0
        %750 = vmatprep.subr.mxu0 0.0
        %751 = vmatpush1.msra.mxu0 0.0
        %752 = vmatprep.subr.mxu0 0.0
        %753 = vmatpush1.msra.mxu0 0.0
        %754 = vmatprep.subr.mxu0 0.0
        %755 = vmatpush1.msra.mxu0 0.0
        %756 = vmatprep.mubr.f32.mxu0 0.0
        %v757 = vand.u32 %v341, 4294901760
        %758 = vmatmul.mubr.f32.gmra.mrb[0].mxu0 %v757
        %v759 = vpop.f32.mrb[0].mxu0
        %v760 = vadd.f32 %v675, %v759
        %v761 = vpop.f32.mrb[0].mxu0
        %762 = vmatprep.mubr.f32.mxu0 0.0
        %v763 = vand.u32 %v344, 4294901760
        %764 = vmatmul.mubr.f32.gmra.mrb[0].mxu0 %v763
        %v765 = vpop.f32.mrb[0].mxu0
        %v766 = vadd.f32 %v683, %v765
        %v767 = vpop.f32.mrb[0].mxu0
        %768 = vdwg.mxu0
        %769 = vmatprep.subr.mxu0 0.0
        %v770 = vand.u32 %v332, 4294901760
        %771 = vmatpush1.msra.mxu0 %v770
        %772 = vmatprep.subr.mxu0 0.0
        %v773 = vand.u32 %v333, 4294901760
        %774 = vmatpush1.msra.mxu0 %v773
        %775 = vmatprep.subr.mxu0 0.0
        %776 = vmatpush1.msra.mxu0 0.0
        %777 = vmatprep.subr.mxu0 0.0
        %778 = vmatpush1.msra.mxu0 0.0
        %779 = vmatprep.subr.mxu0 0.0
        %780 = vmatpush1.msra.mxu0 0.0
        %781 = vmatprep.subr.mxu0 0.0
        %782 = vmatpush1.msra.mxu0 0.0
        %783 = vmatprep.subr.mxu0 0.0
        %784 = vmatpush1.msra.mxu0 0.0
        %785 = vmatprep.subr.mxu0 0.0
        %786 = vmatpush1.msra.mxu0 0.0
        %787 = vmatprep.subr.mxu0 0.0
        %788 = vmatpush1.msra.mxu0 0.0
        %789 = vmatprep.subr.mxu0 0.0
        %790 = vmatpush1.msra.mxu0 0.0
        %791 = vmatprep.subr.mxu0 0.0
        %792 = vmatpush1.msra.mxu0 0.0
        %793 = vmatprep.subr.mxu0 0.0
        %794 = vmatpush1.msra.mxu0 0.0
        %795 = vmatprep.subr.mxu0 0.0
        %796 = vmatpush1.msra.mxu0 0.0
        %797 = vmatprep.subr.mxu0 0.0
        %798 = vmatpush1.msra.mxu0 0.0
        %799 = vmatprep.subr.mxu0 0.0
        %800 = vmatpush1.msra.mxu0 0.0
        %801 = vmatprep.subr.mxu0 0.0
        %802 = vmatpush1.msra.mxu0 0.0
        %803 = vmatprep.subr.mxu0 0.0
        %804 = vmatpush1.msra.mxu0 0.0
        %805 = vmatprep.subr.mxu0 0.0
        %806 = vmatpush1.msra.mxu0 0.0
        %807 = vmatprep.subr.mxu0 0.0
        %808 = vmatpush1.msra.mxu0 0.0
        %809 = vmatprep.subr.mxu0 0.0
        %810 = vmatpush1.msra.mxu0 0.0
        %811 = vmatprep.subr.mxu0 0.0
        %812 = vmatpush1.msra.mxu0 0.0
        %813 = vmatprep.subr.mxu0 0.0
        %814 = vmatpush1.msra.mxu0 0.0
        %815 = vmatprep.subr.mxu0 0.0
        %816 = vmatpush1.msra.mxu0 0.0
        %817 = vmatprep.subr.mxu0 0.0
        %818 = vmatpush1.msra.mxu0 0.0
        %819 = vmatprep.subr.mxu0 0.0
        %820 = vmatpush1.msra.mxu0 0.0
        %821 = vmatprep.subr.mxu0 0.0
        %822 = vmatpush1.msra.mxu0 0.0
        %823 = vmatprep.subr.mxu0 0.0
        %824 = vmatpush1.msra.mxu0 0.0
        %825 = vmatprep.subr.mxu0 0.0
        %826 = vmatpush1.msra.mxu0 0.0
        %827 = vmatprep.subr.mxu0 0.0
        %828 = vmatpush1.msra.mxu0 0.0
        %829 = vmatprep.subr.mxu0 0.0
        %830 = vmatpush1.msra.mxu0 0.0
        %831 = vmatprep.subr.mxu0 0.0
        %832 = vmatpush1.msra.mxu0 0.0
        %833 = vmatprep.subr.mxu0 0.0
        %834 = vmatpush1.msra.mxu0 0.0
        %835 = vmatprep.mubr.f32.mxu0 0.0
        %v836 = vand.u32 %v341, 4294901760
        %837 = vmatmul.mubr.f32.gmra.mrb[0].mxu0 %v836
        %v838 = vpop.f32.mrb[0].mxu0
        %v839 = vadd.f32 %v760, %v838
        %v840 = vpop.f32.mrb[0].mxu0
        %841 = vmatprep.mubr.f32.mxu0 0.0
        %v842 = vand.u32 %v344, 4294901760
        %843 = vmatmul.mubr.f32.gmra.mrb[0].mxu0 %v842
        %v844 = vpop.f32.mrb[0].mxu0
        %v845 = vadd.f32 %v766, %v844
        %v846 = vpop.f32.mrb[0].mxu0
        %847 = vdwg.mxu0
        %v849 = vsel %vm339, %v334, 0
        %851 = vmatprep.subr.mxu0 0.0
        %v852 = vand.u32 %v839, 4294901760
        %853 = vmatpush1.msra.mxu0 %v852
        %854 = vmatprep.subr.mxu0 0.0
        %v855 = vand.u32 %v845, 4294901760
        %856 = vmatpush1.msra.mxu0 %v855
        %857 = vmatprep.subr.mxu0 0.0
        %858 = vmatpush1.msra.mxu0 0.0
        %859 = vmatprep.subr.mxu0 0.0
        %860 = vmatpush1.msra.mxu0 0.0
        %861 = vmatprep.subr.mxu0 0.0
        %862 = vmatpush1.msra.mxu0 0.0
        %863 = vmatprep.subr.mxu0 0.0
        %864 = vmatpush1.msra.mxu0 0.0
        %865 = vmatprep.subr.mxu0 0.0
        %866 = vmatpush1.msra.mxu0 0.0
        %867 = vmatprep.subr.mxu0 0.0
        %868 = vmatpush1.msra.mxu0 0.0
        %869 = vmatprep.subr.mxu0 0.0
        %870 = vmatpush1.msra.mxu0 0.0
        %871 = vmatprep.subr.mxu0 0.0
        %872 = vmatpush1.msra.mxu0 0.0
        %873 = vmatprep.subr.mxu0 0.0
        %874 = vmatpush1.msra.mxu0 0.0
        %875 = vmatprep.subr.mxu0 0.0
        %876 = vmatpush1.msra.mxu0 0.0
        %877 = vmatprep.subr.mxu0 0.0
        %878 = vmatpush1.msra.mxu0 0.0
        %879 = vmatprep.subr.mxu0 0.0
        %880 = vmatpush1.msra.mxu0 0.0
        %881 = vmatprep.subr.mxu0 0.0
        %882 = vmatpush1.msra.mxu0 0.0
        %883 = vmatprep.subr.mxu0 0.0
        %884 = vmatpush1.msra.mxu0 0.0
        %885 = vmatprep.subr.mxu0 0.0
        %886 = vmatpush1.msra.mxu0 0.0
        %887 = vmatprep.subr.mxu0 0.0
        %888 = vmatpush1.msra.mxu0 0.0
        %889 = vmatprep.subr.mxu0 0.0
        %890 = vmatpush1.msra.mxu0 0.0
        %891 = vmatprep.subr.mxu0 0.0
        %892 = vmatpush1.msra.mxu0 0.0
        %893 = vmatprep.subr.mxu0 0.0
        %894 = vmatpush1.msra.mxu0 0.0
        %895 = vmatprep.subr.mxu0 0.0
        %896 = vmatpush1.msra.mxu0 0.0
        %897 = vmatprep.subr.mxu0 0.0
        %898 = vmatpush1.msra.mxu0 0.0
        %899 = vmatprep.subr.mxu0 0.0
        %900 = vmatpush1.msra.mxu0 0.0
        %901 = vmatprep.subr.mxu0 0.0
        %902 = vmatpush1.msra.mxu0 0.0
        %903 = vmatprep.subr.mxu0 0.0
        %904 = vmatpush1.msra.mxu0 0.0
        %905 = vmatprep.subr.mxu0 0.0
        %906 = vmatpush1.msra.mxu0 0.0
        %907 = vmatprep.subr.mxu0 0.0
        %908 = vmatpush1.msra.mxu0 0.0
        %909 = vmatprep.subr.mxu0 0.0
        %910 = vmatpush1.msra.mxu0 0.0
        %911 = vmatprep.subr.mxu0 0.0
        %912 = vmatpush1.msra.mxu0 0.0
        %913 = vmatprep.subr.mxu0 0.0
        %914 = vmatpush1.msra.mxu0 0.0
        %915 = vmatprep.subr.mxu0 0.0
        %916 = vmatpush1.msra.mxu0 0.0
        %917 = vmatprep.mubr.f32.mxu0 0.0
        %v918 = vand.u32 %v849, 4294901760
        %v919 = vsub.f32 %v849, %v918
        %v920 = vand.u32 %v919, 4294901760
        %v921 = vsub.f32 %v919, %v920
        %v922 = vand.u32 %v921, 4294901760
        %923 = vmatmul.mubr.f32.gmra.mrb[0].mxu0 %v922
        %v924 = vpop.f32.mrb[0].mxu0
        %v925 = vadd.f32 0.0, %v924
        %v926 = vpop.f32.mrb[0].mxu0
        %927 = vdwg.mxu0
        %928 = vmatprep.subr.mxu0 0.0
        %v929 = vand.u32 %v839, 4294901760
        %v930 = vsub.f32 %v839, %v929
        %v931 = vand.u32 %v930, 4294901760
        %v932 = vsub.f32 %v930, %v931
        %v933 = vand.u32 %v932, 4294901760
        %934 = vmatpush1.msra.mxu0 %v933
        %935 = vmatprep.subr.mxu0 0.0
        %v936 = vand.u32 %v845, 4294901760
        %v937 = vsub.f32 %v845, %v936
        %v938 = vand.u32 %v937, 4294901760
        %v939 = vsub.f32 %v937, %v938
        %v940 = vand.u32 %v939, 4294901760
        %941 = vmatpush1.msra.mxu0 %v940
        %942 = vmatprep.subr.mxu0 0.0
        %943 = vmatpush1.msra.mxu0 0.0
        %944 = vmatprep.subr.mxu0 0.0
        %945 = vmatpush1.msra.mxu0 0.0
        %946 = vmatprep.subr.mxu0 0.0
        %947 = vmatpush1.msra.mxu0 0.0
        %948 = vmatprep.subr.mxu0 0.0
        %949 = vmatpush1.msra.mxu0 0.0
        %950 = vmatprep.subr.mxu0 0.0
        %951 = vmatpush1.msra.mxu0 0.0
        %952 = vmatprep.subr.mxu0 0.0
        %953 = vmatpush1.msra.mxu0 0.0
        %954 = vmatprep.subr.mxu0 0.0
        %955 = vmatpush1.msra.mxu0 0.0
        %956 = vmatprep.subr.mxu0 0.0
        %957 = vmatpush1.msra.mxu0 0.0
        %958 = vmatprep.subr.mxu0 0.0
        %959 = vmatpush1.msra.mxu0 0.0
        %960 = vmatprep.subr.mxu0 0.0
        %961 = vmatpush1.msra.mxu0 0.0
        %962 = vmatprep.subr.mxu0 0.0
        %963 = vmatpush1.msra.mxu0 0.0
        %964 = vmatprep.subr.mxu0 0.0
        %965 = vmatpush1.msra.mxu0 0.0
        %966 = vmatprep.subr.mxu0 0.0
        %967 = vmatpush1.msra.mxu0 0.0
        %968 = vmatprep.subr.mxu0 0.0
        %969 = vmatpush1.msra.mxu0 0.0
        %970 = vmatprep.subr.mxu0 0.0
        %971 = vmatpush1.msra.mxu0 0.0
        %972 = vmatprep.subr.mxu0 0.0
        %973 = vmatpush1.msra.mxu0 0.0
        %974 = vmatprep.subr.mxu0 0.0
        %975 = vmatpush1.msra.mxu0 0.0
        %976 = vmatprep.subr.mxu0 0.0
        %977 = vmatpush1.msra.mxu0 0.0
        %978 = vmatprep.subr.mxu0 0.0
        %979 = vmatpush1.msra.mxu0 0.0
        %980 = vmatprep.subr.mxu0 0.0
        %981 = vmatpush1.msra.mxu0 0.0
        %982 = vmatprep.subr.mxu0 0.0
        %983 = vmatpush1.msra.mxu0 0.0
        %984 = vmatprep.subr.mxu0 0.0
        %985 = vmatpush1.msra.mxu0 0.0
        %986 = vmatprep.subr.mxu0 0.0
        %987 = vmatpush1.msra.mxu0 0.0
        %988 = vmatprep.subr.mxu0 0.0
        %989 = vmatpush1.msra.mxu0 0.0
        %990 = vmatprep.subr.mxu0 0.0
        %991 = vmatpush1.msra.mxu0 0.0
        %992 = vmatprep.subr.mxu0 0.0
        %993 = vmatpush1.msra.mxu0 0.0
        %994 = vmatprep.subr.mxu0 0.0
        %995 = vmatpush1.msra.mxu0 0.0
        %996 = vmatprep.subr.mxu0 0.0
        %997 = vmatpush1.msra.mxu0 0.0
        %998 = vmatprep.subr.mxu0 0.0
        %999 = vmatpush1.msra.mxu0 0.0
        %1000 = vmatprep.subr.mxu0 0.0
        %1001 = vmatpush1.msra.mxu0 0.0
        %1002 = vmatprep.mubr.f32.mxu0 0.0
        %v1003 = vand.u32 %v849, 4294901760
        %1004 = vmatmul.mubr.f32.gmra.mrb[0].mxu0 %v1003
        %v1005 = vpop.f32.mrb[0].mxu0
        %v1006 = vadd.f32 %v925, %v1005
        %v1007 = vpop.f32.mrb[0].mxu0
        %1008 = vdwg.mxu0
        %1009 = vmatprep.subr.mxu0 0.0
        %v1010 = vand.u32 %v839, 4294901760
        %v1011 = vsub.f32 %v839, %v1010
        %1012 = vmatpush1.msra.mxu0 %v1011
        %1013 = vmatprep.subr.mxu0 0.0
        %v1014 = vand.u32 %v845, 4294901760
        %v1015 = vsub.f32 %v845, %v1014
        %1016 = vmatpush1.msra.mxu0 %v1015
        %1017 = vmatprep.subr.mxu0 0.0
        %1018 = vmatpush1.msra.mxu0 0.0
        %1019 = vmatprep.subr.mxu0 0.0
        %1020 = vmatpush1.msra.mxu0 0.0
        %1021 = vmatprep.subr.mxu0 0.0
        %1022 = vmatpush1.msra.mxu0 0.0
        %1023 = vmatprep.subr.mxu0 0.0
        %1024 = vmatpush1.msra.mxu0 0.0
        %1025 = vmatprep.subr.mxu0 0.0
        %1026 = vmatpush1.msra.mxu0 0.0
        %1027 = vmatprep.subr.mxu0 0.0
        %1028 = vmatpush1.msra.mxu0 0.0
        %1029 = vmatprep.subr.mxu0 0.0
        %1030 = vmatpush1.msra.mxu0 0.0
        %1031 = vmatprep.subr.mxu0 0.0
        %1032 = vmatpush1.msra.mxu0 0.0
        %1033 = vmatprep.subr.mxu0 0.0
        %1034 = vmatpush1.msra.mxu0 0.0
        %1035 = vmatprep.subr.mxu0 0.0
        %1036 = vmatpush1.msra.mxu0 0.0
        %1037 = vmatprep.subr.mxu0 0.0
        %1038 = vmatpush1.msra.mxu0 0.0
        %1039 = vmatprep.subr.mxu0 0.0
        %1040 = vmatpush1.msra.mxu0 0.0
        %1041 = vmatprep.subr.mxu0 0.0
        %1042 = vmatpush1.msra.mxu0 0.0
        %1043 = vmatprep.subr.mxu0 0.0
        %1044 = vmatpush1.msra.mxu0 0.0
        %1045 = vmatprep.subr.mxu0 0.0
        %1046 = vmatpush1.msra.mxu0 0.0
        %1047 = vmatprep.subr.mxu0 0.0
        %1048 = vmatpush1.msra.mxu0 0.0
        %1049 = vmatprep.subr.mxu0 0.0
        %1050 = vmatpush1.msra.mxu0 0.0
        %1051 = vmatprep.subr.mxu0 0.0
        %1052 = vmatpush1.msra.mxu0 0.0
        %1053 = vmatprep.subr.mxu0 0.0
        %1054 = vmatpush1.msra.mxu0 0.0
        %1055 = vmatprep.subr.mxu0 0.0
        %1056 = vmatpush1.msra.mxu0 0.0
        %1057 = vmatprep.subr.mxu0 0.0
        %1058 = vmatpush1.msra.mxu0 0.0
        %1059 = vmatprep.subr.mxu0 0.0
        %1060 = vmatpush1.msra.mxu0 0.0
        %1061 = vmatprep.subr.mxu0 0.0
        %1062 = vmatpush1.msra.mxu0 0.0
        %1063 = vmatprep.subr.mxu0 0.0
        %1064 = vmatpush1.msra.mxu0 0.0
        %1065 = vmatprep.subr.mxu0 0.0
        %1066 = vmatpush1.msra.mxu0 0.0
        %1067 = vmatprep.subr.mxu0 0.0
        %1068 = vmatpush1.msra.mxu0 0.0
        %1069 = vmatprep.subr.mxu0 0.0
        %1070 = vmatpush1.msra.mxu0 0.0
        %1071 = vmatprep.subr.mxu0 0.0
        %1072 = vmatpush1.msra.mxu0 0.0
        %1073 = vmatprep.subr.mxu0 0.0
        %1074 = vmatpush1.msra.mxu0 0.0
        %1075 = vmatprep.subr.mxu0 0.0
        %1076 = vmatpush1.msra.mxu0 0.0
        %1077 = vmatprep.mubr.f32.mxu0 0.0
        %v1078 = vand.u32 %v849, 4294901760
        %v1079 = vsub.f32 %v849, %v1078
        %1080 = vmatmul.mubr.f32.gmra.mrb[0].mxu0 %v1079
        %v1081 = vpop.f32.mrb[0].mxu0
        %v1082 = vadd.f32 %v1006, %v1081
        %v1083 = vpop.f32.mrb[0].mxu0
        %1084 = vdwg.mxu0
        %1085 = vmatprep.subr.mxu0 0.0
        %v1086 = vand.u32 %v839, 4294901760
        %1087 = vmatpush1.msra.mxu0 %v1086
        %1088 = vmatprep.subr.mxu0 0.0
        %v1089 = vand.u32 %v845, 4294901760
        %1090 = vmatpush1.msra.mxu0 %v1089
        %1091 = vmatprep.subr.mxu0 0.0
        %1092 = vmatpush1.msra.mxu0 0.0
        %1093 = vmatprep.subr.mxu0 0.0
        %1094 = vmatpush1.msra.mxu0 0.0
        %1095 = vmatprep.subr.mxu0 0.0
        %1096 = vmatpush1.msra.mxu0 0.0
        %1097 = vmatprep.subr.mxu0 0.0
        %1098 = vmatpush1.msra.mxu0 0.0
        %1099 = vmatprep.subr.mxu0 0.0
        %1100 = vmatpush1.msra.mxu0 0.0
        %1101 = vmatprep.subr.mxu0 0.0
        %1102 = vmatpush1.msra.mxu0 0.0
        %1103 = vmatprep.subr.mxu0 0.0
        %1104 = vmatpush1.msra.mxu0 0.0
        %1105 = vmatprep.subr.mxu0 0.0
        %1106 = vmatpush1.msra.mxu0 0.0
        %1107 = vmatprep.subr.mxu0 0.0
        %1108 = vmatpush1.msra.mxu0 0.0
        %1109 = vmatprep.subr.mxu0 0.0
        %1110 = vmatpush1.msra.mxu0 0.0
        %1111 = vmatprep.subr.mxu0 0.0
        %1112 = vmatpush1.msra.mxu0 0.0
        %1113 = vmatprep.subr.mxu0 0.0
        %1114 = vmatpush1.msra.mxu0 0.0
        %1115 = vmatprep.subr.mxu0 0.0
        %1116 = vmatpush1.msra.mxu0 0.0
        %1117 = vmatprep.subr.mxu0 0.0
        %1118 = vmatpush1.msra.mxu0 0.0
        %1119 = vmatprep.subr.mxu0 0.0
        %1120 = vmatpush1.msra.mxu0 0.0
        %1121 = vmatprep.subr.mxu0 0.0
        %1122 = vmatpush1.msra.mxu0 0.0
        %1123 = vmatprep.subr.mxu0 0.0
        %1124 = vmatpush1.msra.mxu0 0.0
        %1125 = vmatprep.subr.mxu0 0.0
        %1126 = vmatpush1.msra.mxu0 0.0
        %1127 = vmatprep.subr.mxu0 0.0
        %1128 = vmatpush1.msra.mxu0 0.0
        %1129 = vmatprep.subr.mxu0 0.0
        %1130 = vmatpush1.msra.mxu0 0.0
        %1131 = vmatprep.subr.mxu0 0.0
        %1132 = vmatpush1.msra.mxu0 0.0
        %1133 = vmatprep.subr.mxu0 0.0
        %1134 = vmatpush1.msra.mxu0 0.0
        %1135 = vmatprep.subr.mxu0 0.0
        %1136 = vmatpush1.msra.mxu0 0.0
        %1137 = vmatprep.subr.mxu0 0.0
        %1138 = vmatpush1.msra.mxu0 0.0
        %1139 = vmatprep.subr.mxu0 0.0
        %1140 = vmatpush1.msra.mxu0 0.0
        %1141 = vmatprep.subr.mxu0 0.0
        %1142 = vmatpush1.msra.mxu0 0.0
        %1143 = vmatprep.subr.mxu0 0.0
        %1144 = vmatpush1.msra.mxu0 0.0
        %1145 = vmatprep.subr.mxu0 0.0
        %1146 = vmatpush1.msra.mxu0 0.0
        %1147 = vmatprep.subr.mxu0 0.0
        %1148 = vmatpush1.msra.mxu0 0.0
        %1149 = vmatprep.subr.mxu0 0.0
        %1150 = vmatpush1.msra.mxu0 0.0
        %1151 = vmatprep.mubr.f32.mxu0 0.0
        %v1152 = vand.u32 %v849, 4294901760
        %v1153 = vsub.f32 %v849, %v1152
        %v1154 = vand.u32 %v1153, 4294901760
        %1155 = vmatmul.mubr.f32.gmra.mrb[0].mxu0 %v1154
        %v1156 = vpop.f32.mrb[0].mxu0
        %v1157 = vadd.f32 %v1082, %v1156
        %v1158 = vpop.f32.mrb[0].mxu0
        %1159 = vdwg.mxu0
        %1160 = vmatprep.subr.mxu0 0.0
        %v1161 = vand.u32 %v839, 4294901760
        %v1162 = vsub.f32 %v839, %v1161
        %v1163 = vand.u32 %v1162, 4294901760
        %1164 = vmatpush1.msra.mxu0 %v1163
        %1165 = vmatprep.subr.mxu0 0.0
        %v1166 = vand.u32 %v845, 4294901760
        %v1167 = vsub.f32 %v845, %v1166
        %v1168 = vand.u32 %v1167, 4294901760
        %1169 = vmatpush1.msra.mxu0 %v1168
        %1170 = vmatprep.subr.mxu0 0.0
        %1171 = vmatpush1.msra.mxu0 0.0
        %1172 = vmatprep.subr.mxu0 0.0
        %1173 = vmatpush1.msra.mxu0 0.0
        %1174 = vmatprep.subr.mxu0 0.0
        %1175 = vmatpush1.msra.mxu0 0.0
        %1176 = vmatprep.subr.mxu0 0.0
        %1177 = vmatpush1.msra.mxu0 0.0
        %1178 = vmatprep.subr.mxu0 0.0
        %1179 = vmatpush1.msra.mxu0 0.0
        %1180 = vmatprep.subr.mxu0 0.0
        %1181 = vmatpush1.msra.mxu0 0.0
        %1182 = vmatprep.subr.mxu0 0.0
        %1183 = vmatpush1.msra.mxu0 0.0
        %1184 = vmatprep.subr.mxu0 0.0
        %1185 = vmatpush1.msra.mxu0 0.0
        %1186 = vmatprep.subr.mxu0 0.0
        %1187 = vmatpush1.msra.mxu0 0.0
        %1188 = vmatprep.subr.mxu0 0.0
        %1189 = vmatpush1.msra.mxu0 0.0
        %1190 = vmatprep.subr.mxu0 0.0
        %1191 = vmatpush1.msra.mxu0 0.0
        %1192 = vmatprep.subr.mxu0 0.0
        %1193 = vmatpush1.msra.mxu0 0.0
        %1194 = vmatprep.subr.mxu0 0.0
        %1195 = vmatpush1.msra.mxu0 0.0
        %1196 = vmatprep.subr.mxu0 0.0
        %1197 = vmatpush1.msra.mxu0 0.0
        %1198 = vmatprep.subr.mxu0 0.0
        %1199 = vmatpush1.msra.mxu0 0.0
        %1200 = vmatprep.subr.mxu0 0.0
        %1201 = vmatpush1.msra.mxu0 0.0
        %1202 = vmatprep.subr.mxu0 0.0
        %1203 = vmatpush1.msra.mxu0 0.0
        %1204 = vmatprep.subr.mxu0 0.0
        %1205 = vmatpush1.msra.mxu0 0.0
        %1206 = vmatprep.subr.mxu0 0.0
        %1207 = vmatpush1.msra.mxu0 0.0
        %1208 = vmatprep.subr.mxu0 0.0
        %1209 = vmatpush1.msra.mxu0 0.0
        %1210 = vmatprep.subr.mxu0 0.0
        %1211 = vmatpush1.msra.mxu0 0.0
        %1212 = vmatprep.subr.mxu0 0.0
        %1213 = vmatpush1.msra.mxu0 0.0
        %1214 = vmatprep.subr.mxu0 0.0
        %1215 = vmatpush1.msra.mxu0 0.0
        %1216 = vmatprep.subr.mxu0 0.0
        %1217 = vmatpush1.msra.mxu0 0.0
        %1218 = vmatprep.subr.mxu0 0.0
        %1219 = vmatpush1.msra.mxu0 0.0
        %1220 = vmatprep.subr.mxu0 0.0
        %1221 = vmatpush1.msra.mxu0 0.0
        %1222 = vmatprep.subr.mxu0 0.0
        %1223 = vmatpush1.msra.mxu0 0.0
        %1224 = vmatprep.subr.mxu0 0.0
        %1225 = vmatpush1.msra.mxu0 0.0
        %1226 = vmatprep.subr.mxu0 0.0
        %1227 = vmatpush1.msra.mxu0 0.0
        %1228 = vmatprep.subr.mxu0 0.0
        %1229 = vmatpush1.msra.mxu0 0.0
        %1230 = vmatprep.mubr.f32.mxu0 0.0
        %v1231 = vand.u32 %v849, 4294901760
        %1232 = vmatmul.mubr.f32.gmra.mrb[0].mxu0 %v1231
        %v1233 = vpop.f32.mrb[0].mxu0
        %v1234 = vadd.f32 %v1157, %v1233
        %v1235 = vpop.f32.mrb[0].mxu0
        %1236 = vdwg.mxu0
        %1237 = vmatprep.subr.mxu0 0.0
        %v1238 = vand.u32 %v839, 4294901760
        %1239 = vmatpush1.msra.mxu0 %v1238
        %1240 = vmatprep.subr.mxu0 0.0
        %v1241 = vand.u32 %v845, 4294901760
        %1242 = vmatpush1.msra.mxu0 %v1241
        %1243 = vmatprep.subr.mxu0 0.0
        %1244 = vmatpush1.msra.mxu0 0.0
        %1245 = vmatprep.subr.mxu0 0.0
        %1246 = vmatpush1.msra.mxu0 0.0
        %1247 = vmatprep.subr.mxu0 0.0
        %1248 = vmatpush1.msra.mxu0 0.0
        %1249 = vmatprep.subr.mxu0 0.0
        %1250 = vmatpush1.msra.mxu0 0.0
        %1251 = vmatprep.subr.mxu0 0.0
        %1252 = vmatpush1.msra.mxu0 0.0
        %1253 = vmatprep.subr.mxu0 0.0
        %1254 = vmatpush1.msra.mxu0 0.0
        %1255 = vmatprep.subr.mxu0 0.0
        %1256 = vmatpush1.msra.mxu0 0.0
        %1257 = vmatprep.subr.mxu0 0.0
        %1258 = vmatpush1.msra.mxu0 0.0
        %1259 = vmatprep.subr.mxu0 0.0
        %1260 = vmatpush1.msra.mxu0 0.0
        %1261 = vmatprep.subr.mxu0 0.0
        %1262 = vmatpush1.msra.mxu0 0.0
        %1263 = vmatprep.subr.mxu0 0.0
        %1264 = vmatpush1.msra.mxu0 0.0
        %1265 = vmatprep.subr.mxu0 0.0
        %1266 = vmatpush1.msra.mxu0 0.0
        %1267 = vmatprep.subr.mxu0 0.0
        %1268 = vmatpush1.msra.mxu0 0.0
        %1269 = vmatprep.subr.mxu0 0.0
        %1270 = vmatpush1.msra.mxu0 0.0
        %1271 = vmatprep.subr.mxu0 0.0
        %1272 = vmatpush1.msra.mxu0 0.0
        %1273 = vmatprep.subr.mxu0 0.0
        %1274 = vmatpush1.msra.mxu0 0.0
        %1275 = vmatprep.subr.mxu0 0.0
        %1276 = vmatpush1.msra.mxu0 0.0
        %1277 = vmatprep.subr.mxu0 0.0
        %1278 = vmatpush1.msra.mxu0 0.0
        %1279 = vmatprep.subr.mxu0 0.0
        %1280 = vmatpush1.msra.mxu0 0.0
        %1281 = vmatprep.subr.mxu0 0.0
        %1282 = vmatpush1.msra.mxu0 0.0
        %1283 = vmatprep.subr.mxu0 0.0
        %1284 = vmatpush1.msra.mxu0 0.0
        %1285 = vmatprep.subr.mxu0 0.0
        %1286 = vmatpush1.msra.mxu0 0.0
        %1287 = vmatprep.subr.mxu0 0.0
        %1288 = vmatpush1.msra.mxu0 0.0
        %1289 = vmatprep.subr.mxu0 0.0
        %1290 = vmatpush1.msra.mxu0 0.0
        %1291 = vmatprep.subr.mxu0 0.0
        %1292 = vmatpush1.msra.mxu0 0.0
        %1293 = vmatprep.subr.mxu0 0.0
        %1294 = vmatpush1.msra.mxu0 0.0
        %1295 = vmatprep.subr.mxu0 0.0
        %1296 = vmatpush1.msra.mxu0 0.0
        %1297 = vmatprep.subr.mxu0 0.0
        %1298 = vmatpush1.msra.mxu0 0.0
        %1299 = vmatprep.subr.mxu0 0.0
        %1300 = vmatpush1.msra.mxu0 0.0
        %1301 = vmatprep.subr.mxu0 0.0
        %1302 = vmatpush1.msra.mxu0 0.0
        %1303 = vmatprep.mubr.f32.mxu0 0.0
        %v1304 = vand.u32 %v849, 4294901760
        %1305 = vmatmul.mubr.f32.gmra.mrb[0].mxu0 %v1304
        %v1306 = vpop.f32.mrb[0].mxu0
        %v1307 = vadd.f32 %v1234, %v1306
        %v1308 = vpop.f32.mrb[0].mxu0
        %1309 = vdwg.mxu0
        %v1311 = vsel %vm339, %v337, 0
        %v1314 = vsel %vm339, %v338, 0
        %1316 = vmatprep.subr.mxu0 0.0
        %v1317 = vand.u32 %v332, 4294901760
        %1318 = vmatpush1.msra.mxu0 %v1317
        %1319 = vmatprep.subr.mxu0 0.0
        %v1320 = vand.u32 %v333, 4294901760
        %1321 = vmatpush1.msra.mxu0 %v1320
        %1322 = vmatprep.subr.mxu0 0.0
        %1323 = vmatpush1.msra.mxu0 0.0
        %1324 = vmatprep.subr.mxu0 0.0
        %1325 = vmatpush1.msra.mxu0 0.0
        %1326 = vmatprep.subr.mxu0 0.0
        %1327 = vmatpush1.msra.mxu0 0.0
        %1328 = vmatprep.subr.mxu0 0.0
        %1329 = vmatpush1.msra.mxu0 0.0
        %1330 = vmatprep.subr.mxu0 0.0
        %1331 = vmatpush1.msra.mxu0 0.0
        %1332 = vmatprep.subr.mxu0 0.0
        %1333 = vmatpush1.msra.mxu0 0.0
        %1334 = vmatprep.subr.mxu0 0.0
        %1335 = vmatpush1.msra.mxu0 0.0
        %1336 = vmatprep.subr.mxu0 0.0
        %1337 = vmatpush1.msra.mxu0 0.0
        %1338 = vmatprep.subr.mxu0 0.0
        %1339 = vmatpush1.msra.mxu0 0.0
        %1340 = vmatprep.subr.mxu0 0.0
        %1341 = vmatpush1.msra.mxu0 0.0
        %1342 = vmatprep.subr.mxu0 0.0
        %1343 = vmatpush1.msra.mxu0 0.0
        %1344 = vmatprep.subr.mxu0 0.0
        %1345 = vmatpush1.msra.mxu0 0.0
        %1346 = vmatprep.subr.mxu0 0.0
        %1347 = vmatpush1.msra.mxu0 0.0
        %1348 = vmatprep.subr.mxu0 0.0
        %1349 = vmatpush1.msra.mxu0 0.0
        %1350 = vmatprep.subr.mxu0 0.0
        %1351 = vmatpush1.msra.mxu0 0.0
        %1352 = vmatprep.subr.mxu0 0.0
        %1353 = vmatpush1.msra.mxu0 0.0
        %1354 = vmatprep.subr.mxu0 0.0
        %1355 = vmatpush1.msra.mxu0 0.0
        %1356 = vmatprep.subr.mxu0 0.0
        %1357 = vmatpush1.msra.mxu0 0.0
        %1358 = vmatprep.subr.mxu0 0.0
        %1359 = vmatpush1.msra.mxu0 0.0
        %1360 = vmatprep.subr.mxu0 0.0
        %1361 = vmatpush1.msra.mxu0 0.0
        %1362 = vmatprep.subr.mxu0 0.0
        %1363 = vmatpush1.msra.mxu0 0.0
        %1364 = vmatprep.subr.mxu0 0.0
        %1365 = vmatpush1.msra.mxu0 0.0
        %1366 = vmatprep.subr.mxu0 0.0
        %1367 = vmatpush1.msra.mxu0 0.0
        %1368 = vmatprep.subr.mxu0 0.0
        %1369 = vmatpush1.msra.mxu0 0.0
        %1370 = vmatprep.subr.mxu0 0.0
        %1371 = vmatpush1.msra.mxu0 0.0
        %1372 = vmatprep.subr.mxu0 0.0
        %1373 = vmatpush1.msra.mxu0 0.0
        %1374 = vmatprep.subr.mxu0 0.0
        %1375 = vmatpush1.msra.mxu0 0.0
        %1376 = vmatprep.subr.mxu0 0.0
        %1377 = vmatpush1.msra.mxu0 0.0
        %1378 = vmatprep.subr.mxu0 0.0
        %1379 = vmatpush1.msra.mxu0 0.0
        %1380 = vmatprep.subr.mxu0 0.0
        %1381 = vmatpush1.msra.mxu0 0.0
        %1382 = vmatprep.mubr.f32.mxu0 0.0
        %v1383 = vand.u32 %v1311, 4294901760
        %v1384 = vsub.f32 %v1311, %v1383
        %v1385 = vand.u32 %v1384, 4294901760
        %v1386 = vsub.f32 %v1384, %v1385
        %v1387 = vand.u32 %v1386, 4294901760
        %1388 = vmatmul.mubr.f32.gmra.mrb[0].mxu0 %v1387
        %v1389 = vpop.f32.mrb[0].mxu0
        %v1390 = vadd.f32 0.0, %v1389
        %v1391 = vpop.f32.mrb[0].mxu0
        %1392 = vmatprep.mubr.f32.mxu0 0.0
        %v1393 = vand.u32 %v1314, 4294901760
        %v1394 = vsub.f32 %v1314, %v1393
        %v1395 = vand.u32 %v1394, 4294901760
        %v1396 = vsub.f32 %v1394, %v1395
        %v1397 = vand.u32 %v1396, 4294901760
        %1398 = vmatmul.mubr.f32.gmra.mrb[0].mxu0 %v1397
        %v1399 = vpop.f32.mrb[0].mxu0
        %v1400 = vadd.f32 0.0, %v1399
        %v1401 = vpop.f32.mrb[0].mxu0
        %1402 = vdwg.mxu0
        %1403 = vmatprep.subr.mxu0 0.0
        %v1404 = vand.u32 %v332, 4294901760
        %v1405 = vsub.f32 %v332, %v1404
        %v1406 = vand.u32 %v1405, 4294901760
        %v1407 = vsub.f32 %v1405, %v1406
        %v1408 = vand.u32 %v1407, 4294901760
        %1409 = vmatpush1.msra.mxu0 %v1408
        %1410 = vmatprep.subr.mxu0 0.0
        %v1411 = vand.u32 %v333, 4294901760
        %v1412 = vsub.f32 %v333, %v1411
        %v1413 = vand.u32 %v1412, 4294901760
        %v1414 = vsub.f32 %v1412, %v1413
        %v1415 = vand.u32 %v1414, 4294901760
        %1416 = vmatpush1.msra.mxu0 %v1415
        %1417 = vmatprep.subr.mxu0 0.0
        %1418 = vmatpush1.msra.mxu0 0.0
        %1419 = vmatprep.subr.mxu0 0.0
        %1420 = vmatpush1.msra.mxu0 0.0
        %1421 = vmatprep.subr.mxu0 0.0
        %1422 = vmatpush1.msra.mxu0 0.0
        %1423 = vmatprep.subr.mxu0 0.0
        %1424 = vmatpush1.msra.mxu0 0.0
        %1425 = vmatprep.subr.mxu0 0.0
        %1426 = vmatpush1.msra.mxu0 0.0
        %1427 = vmatprep.subr.mxu0 0.0
        %1428 = vmatpush1.msra.mxu0 0.0
        %1429 = vmatprep.subr.mxu0 0.0
        %1430 = vmatpush1.msra.mxu0 0.0
        %1431 = vmatprep.subr.mxu0 0.0
        %1432 = vmatpush1.msra.mxu0 0.0
        %1433 = vmatprep.subr.mxu0 0.0
        %1434 = vmatpush1.msra.mxu0 0.0
        %1435 = vmatprep.subr.mxu0 0.0
        %1436 = vmatpush1.msra.mxu0 0.0
        %1437 = vmatprep.subr.mxu0 0.0
        %1438 = vmatpush1.msra.mxu0 0.0
        %1439 = vmatprep.subr.mxu0 0.0
        %1440 = vmatpush1.msra.mxu0 0.0
        %1441 = vmatprep.subr.mxu0 0.0
        %1442 = vmatpush1.msra.mxu0 0.0
        %1443 = vmatprep.subr.mxu0 0.0
        %1444 = vmatpush1.msra.mxu0 0.0
        %1445 = vmatprep.subr.mxu0 0.0
        %1446 = vmatpush1.msra.mxu0 0.0
        %1447 = vmatprep.subr.mxu0 0.0
        %1448 = vmatpush1.msra.mxu0 0.0
        %1449 = vmatprep.subr.mxu0 0.0
        %1450 = vmatpush1.msra.mxu0 0.0
        %1451 = vmatprep.subr.mxu0 0.0
        %1452 = vmatpush1.msra.mxu0 0.0
        %1453 = vmatprep.subr.mxu0 0.0
        %1454 = vmatpush1.msra.mxu0 0.0
        %1455 = vmatprep.subr.mxu0 0.0
        %1456 = vmatpush1.msra.mxu0 0.0
        %1457 = vmatprep.subr.mxu0 0.0
        %1458 = vmatpush1.msra.mxu0 0.0
        %1459 = vmatprep.subr.mxu0 0.0
        %1460 = vmatpush1.msra.mxu0 0.0
        %1461 = vmatprep.subr.mxu0 0.0
        %1462 = vmatpush1.msra.mxu0 0.0
        %1463 = vmatprep.subr.mxu0 0.0
        %1464 = vmatpush1.msra.mxu0 0.0
        %1465 = vmatprep.subr.mxu0 0.0
        %1466 = vmatpush1.msra.mxu0 0.0
        %1467 = vmatprep.subr.mxu0 0.0
        %1468 = vmatpush1.msra.mxu0 0.0
        %1469 = vmatprep.subr.mxu0 0.0
        %1470 = vmatpush1.msra.mxu0 0.0
        %1471 = vmatprep.subr.mxu0 0.0
        %1472 = vmatpush1.msra.mxu0 0.0
        %1473 = vmatprep.subr.mxu0 0.0
        %1474 = vmatpush1.msra.mxu0 0.0
        %1475 = vmatprep.subr.mxu0 0.0
        %1476 = vmatpush1.msra.mxu0 0.0
        %1477 = vmatprep.mubr.f32.mxu0 0.0
        %v1478 = vand.u32 %v1311, 4294901760
        %1479 = vmatmul.mubr.f32.gmra.mrb[0].mxu0 %v1478
        %v1480 = vpop.f32.mrb[0].mxu0
        %v1481 = vadd.f32 %v1390, %v1480
        %v1482 = vpop.f32.mrb[0].mxu0
        %1483 = vmatprep.mubr.f32.mxu0 0.0
        %v1484 = vand.u32 %v1314, 4294901760
        %1485 = vmatmul.mubr.f32.gmra.mrb[0].mxu0 %v1484
        %v1486 = vpop.f32.mrb[0].mxu0
        %v1487 = vadd.f32 %v1400, %v1486
        %v1488 = vpop.f32.mrb[0].mxu0
        %1489 = vdwg.mxu0
        %1490 = vmatprep.subr.mxu0 0.0
        %v1491 = vand.u32 %v332, 4294901760
        %v1492 = vsub.f32 %v332, %v1491
        %1493 = vmatpush1.msra.mxu0 %v1492
        %1494 = vmatprep.subr.mxu0 0.0
        %v1495 = vand.u32 %v333, 4294901760
        %v1496 = vsub.f32 %v333, %v1495
        %1497 = vmatpush1.msra.mxu0 %v1496
        %1498 = vmatprep.subr.mxu0 0.0
        %1499 = vmatpush1.msra.mxu0 0.0
        %1500 = vmatprep.subr.mxu0 0.0
        %1501 = vmatpush1.msra.mxu0 0.0
        %1502 = vmatprep.subr.mxu0 0.0
        %1503 = vmatpush1.msra.mxu0 0.0
        %1504 = vmatprep.subr.mxu0 0.0
        %1505 = vmatpush1.msra.mxu0 0.0
        %1506 = vmatprep.subr.mxu0 0.0
        %1507 = vmatpush1.msra.mxu0 0.0
        %1508 = vmatprep.subr.mxu0 0.0
        %1509 = vmatpush1.msra.mxu0 0.0
        %1510 = vmatprep.subr.mxu0 0.0
        %1511 = vmatpush1.msra.mxu0 0.0
        %1512 = vmatprep.subr.mxu0 0.0
        %1513 = vmatpush1.msra.mxu0 0.0
        %1514 = vmatprep.subr.mxu0 0.0
        %1515 = vmatpush1.msra.mxu0 0.0
        %1516 = vmatprep.subr.mxu0 0.0
        %1517 = vmatpush1.msra.mxu0 0.0
        %1518 = vmatprep.subr.mxu0 0.0
        %1519 = vmatpush1.msra.mxu0 0.0
        %1520 = vmatprep.subr.mxu0 0.0
        %1521 = vmatpush1.msra.mxu0 0.0
        %1522 = vmatprep.subr.mxu0 0.0
        %1523 = vmatpush1.msra.mxu0 0.0
        %1524 = vmatprep.subr.mxu0 0.0
        %1525 = vmatpush1.msra.mxu0 0.0
        %1526 = vmatprep.subr.mxu0 0.0
        %1527 = vmatpush1.msra.mxu0 0.0
        %1528 = vmatprep.subr.mxu0 0.0
        %1529 = vmatpush1.msra.mxu0 0.0
        %1530 = vmatprep.subr.mxu0 0.0
        %1531 = vmatpush1.msra.mxu0 0.0
        %1532 = vmatprep.subr.mxu0 0.0
        %1533 = vmatpush1.msra.mxu0 0.0
        %1534 = vmatprep.subr.mxu0 0.0
        %1535 = vmatpush1.msra.mxu0 0.0
        %1536 = vmatprep.subr.mxu0 0.0
        %1537 = vmatpush1.msra.mxu0 0.0
        %1538 = vmatprep.subr.mxu0 0.0
        %1539 = vmatpush1.msra.mxu0 0.0
        %1540 = vmatprep.subr.mxu0 0.0
        %1541 = vmatpush1.msra.mxu0 0.0
        %1542 = vmatprep.subr.mxu0 0.0
        %1543 = vmatpush1.msra.mxu0 0.0
        %1544 = vmatprep.subr.mxu0 0.0
        %1545 = vmatpush1.msra.mxu0 0.0
        %1546 = vmatprep.subr.mxu0 0.0
        %1547 = vmatpush1.msra.mxu0 0.0
        %1548 = vmatprep.subr.mxu0 0.0
        %1549 = vmatpush1.msra.mxu0 0.0
        %1550 = vmatprep.subr.mxu0 0.0
        %1551 = vmatpush1.msra.mxu0 0.0
        %1552 = vmatprep.subr.mxu0 0.0
        %1553 = vmatpush1.msra.mxu0 0.0
        %1554 = vmatprep.subr.mxu0 0.0
        %1555 = vmatpush1.msra.mxu0 0.0
        %1556 = vmatprep.subr.mxu0 0.0
        %1557 = vmatpush1.msra.mxu0 0.0
        %1558 = vmatprep.mubr.f32.mxu0 0.0
        %v1559 = vand.u32 %v1311, 4294901760
        %v1560 = vsub.f32 %v1311, %v1559
        %1561 = vmatmul.mubr.f32.gmra.mrb[0].mxu0 %v1560
        %v1562 = vpop.f32.mrb[0].mxu0
        %v1563 = vadd.f32 %v1481, %v1562
        %v1564 = vpop.f32.mrb[0].mxu0
        %1565 = vmatprep.mubr.f32.mxu0 0.0
        %v1566 = vand.u32 %v1314, 4294901760
        %v1567 = vsub.f32 %v1314, %v1566
        %1568 = vmatmul.mubr.f32.gmra.mrb[0].mxu0 %v1567
        %v1569 = vpop.f32.mrb[0].mxu0
        %v1570 = vadd.f32 %v1487, %v1569
        %v1571 = vpop.f32.mrb[0].mxu0
        %1572 = vdwg.mxu0
        %1573 = vmatprep.subr.mxu0 0.0
        %v1574 = vand.u32 %v332, 4294901760
        %1575 = vmatpush1.msra.mxu0 %v1574
        %1576 = vmatprep.subr.mxu0 0.0
        %v1577 = vand.u32 %v333, 4294901760
        %1578 = vmatpush1.msra.mxu0 %v1577
        %1579 = vmatprep.subr.mxu0 0.0
        %1580 = vmatpush1.msra.mxu0 0.0
        %1581 = vmatprep.subr.mxu0 0.0
        %1582 = vmatpush1.msra.mxu0 0.0
        %1583 = vmatprep.subr.mxu0 0.0
        %1584 = vmatpush1.msra.mxu0 0.0
        %1585 = vmatprep.subr.mxu0 0.0
        %1586 = vmatpush1.msra.mxu0 0.0
        %1587 = vmatprep.subr.mxu0 0.0
        %1588 = vmatpush1.msra.mxu0 0.0
        %1589 = vmatprep.subr.mxu0 0.0
        %1590 = vmatpush1.msra.mxu0 0.0
        %1591 = vmatprep.subr.mxu0 0.0
        %1592 = vmatpush1.msra.mxu0 0.0
        %1593 = vmatprep.subr.mxu0 0.0
        %1594 = vmatpush1.msra.mxu0 0.0
        %1595 = vmatprep.subr.mxu0 0.0
        %1596 = vmatpush1.msra.mxu0 0.0
        %1597 = vmatprep.subr.mxu0 0.0
        %1598 = vmatpush1.msra.mxu0 0.0
        %1599 = vmatprep.subr.mxu0 0.0
        %1600 = vmatpush1.msra.mxu0 0.0
        %1601 = vmatprep.subr.mxu0 0.0
        %1602 = vmatpush1.msra.mxu0 0.0
        %1603 = vmatprep.subr.mxu0 0.0
        %1604 = vmatpush1.msra.mxu0 0.0
        %1605 = vmatprep.subr.mxu0 0.0
        %1606 = vmatpush1.msra.mxu0 0.0
        %1607 = vmatprep.subr.mxu0 0.0
        %1608 = vmatpush1.msra.mxu0 0.0
        %1609 = vmatprep.subr.mxu0 0.0
        %1610 = vmatpush1.msra.mxu0 0.0
        %1611 = vmatprep.subr.mxu0 0.0
        %1612 = vmatpush1.msra.mxu0 0.0
        %1613 = vmatprep.subr.mxu0 0.0
        %1614 = vmatpush1.msra.mxu0 0.0
        %1615 = vmatprep.subr.mxu0 0.0
        %1616 = vmatpush1.msra.mxu0 0.0
        %1617 = vmatprep.subr.mxu0 0.0
        %1618 = vmatpush1.msra.mxu0 0.0
        %1619 = vmatprep.subr.mxu0 0.0
        %1620 = vmatpush1.msra.mxu0 0.0
        %1621 = vmatprep.subr.mxu0 0.0
        %1622 = vmatpush1.msra.mxu0 0.0
        %1623 = vmatprep.subr.mxu0 0.0
        %1624 = vmatpush1.msra.mxu0 0.0
        %1625 = vmatprep.subr.mxu0 0.0
        %1626 = vmatpush1.msra.mxu0 0.0
        %1627 = vmatprep.subr.mxu0 0.0
        %1628 = vmatpush1.msra.mxu0 0.0
        %1629 = vmatprep.subr.mxu0 0.0
        %1630 = vmatpush1.msra.mxu0 0.0
        %1631 = vmatprep.subr.mxu0 0.0
        %1632 = vmatpush1.msra.mxu0 0.0
        %1633 = vmatprep.subr.mxu0 0.0
        %1634 = vmatpush1.msra.mxu0 0.0
        %1635 = vmatprep.subr.mxu0 0.0
        %1636 = vmatpush1.msra.mxu0 0.0
        %1637 = vmatprep.subr.mxu0 0.0
        %1638 = vmatpush1.msra.mxu0 0.0
        %1639 = vmatprep.mubr.f32.mxu0 0.0
        %v1640 = vand.u32 %v1311, 4294901760
        %v1641 = vsub.f32 %v1311, %v1640
        %v1642 = vand.u32 %v1641, 4294901760
        %1643 = vmatmul.mubr.f32.gmra.mrb[0].mxu0 %v1642
        %v1644 = vpop.f32.mrb[0].mxu0
        %v1645 = vadd.f32 %v1563, %v1644
        %v1646 = vpop.f32.mrb[0].mxu0
        %1647 = vmatprep.mubr.f32.mxu0 0.0
        %v1648 = vand.u32 %v1314, 4294901760
        %v1649 = vsub.f32 %v1314, %v1648
        %v1650 = vand.u32 %v1649, 4294901760
        %1651 = vmatmul.mubr.f32.gmra.mrb[0].mxu0 %v1650
        %v1652 = vpop.f32.mrb[0].mxu0
        %v1653 = vadd.f32 %v1570, %v1652
        %v1654 = vpop.f32.mrb[0].mxu0
        %1655 = vdwg.mxu0
        %1656 = vmatprep.subr.mxu0 0.0
        %v1657 = vand.u32 %v332, 4294901760
        %v1658 = vsub.f32 %v332, %v1657
        %v1659 = vand.u32 %v1658, 4294901760
        %1660 = vmatpush1.msra.mxu0 %v1659
        %1661 = vmatprep.subr.mxu0 0.0
        %v1662 = vand.u32 %v333, 4294901760
        %v1663 = vsub.f32 %v333, %v1662
        %v1664 = vand.u32 %v1663, 4294901760
        %1665 = vmatpush1.msra.mxu0 %v1664
        %1666 = vmatprep.subr.mxu0 0.0
        %1667 = vmatpush1.msra.mxu0 0.0
        %1668 = vmatprep.subr.mxu0 0.0
        %1669 = vmatpush1.msra.mxu0 0.0
        %1670 = vmatprep.subr.mxu0 0.0
        %1671 = vmatpush1.msra.mxu0 0.0
        %1672 = vmatprep.subr.mxu0 0.0
        %1673 = vmatpush1.msra.mxu0 0.0
        %1674 = vmatprep.subr.mxu0 0.0
        %1675 = vmatpush1.msra.mxu0 0.0
        %1676 = vmatprep.subr.mxu0 0.0
        %1677 = vmatpush1.msra.mxu0 0.0
        %1678 = vmatprep.subr.mxu0 0.0
        %1679 = vmatpush1.msra.mxu0 0.0
        %1680 = vmatprep.subr.mxu0 0.0
        %1681 = vmatpush1.msra.mxu0 0.0
        %1682 = vmatprep.subr.mxu0 0.0
        %1683 = vmatpush1.msra.mxu0 0.0
        %1684 = vmatprep.subr.mxu0 0.0
        %1685 = vmatpush1.msra.mxu0 0.0
        %1686 = vmatprep.subr.mxu0 0.0
        %1687 = vmatpush1.msra.mxu0 0.0
        %1688 = vmatprep.subr.mxu0 0.0
        %1689 = vmatpush1.msra.mxu0 0.0
        %1690 = vmatprep.subr.mxu0 0.0
        %1691 = vmatpush1.msra.mxu0 0.0
        %1692 = vmatprep.subr.mxu0 0.0
        %1693 = vmatpush1.msra.mxu0 0.0
        %1694 = vmatprep.subr.mxu0 0.0
        %1695 = vmatpush1.msra.mxu0 0.0
        %1696 = vmatprep.subr.mxu0 0.0
        %1697 = vmatpush1.msra.mxu0 0.0
        %1698 = vmatprep.subr.mxu0 0.0
        %1699 = vmatpush1.msra.mxu0 0.0
        %1700 = vmatprep.subr.mxu0 0.0
        %1701 = vmatpush1.msra.mxu0 0.0
        %1702 = vmatprep.subr.mxu0 0.0
        %1703 = vmatpush1.msra.mxu0 0.0
        %1704 = vmatprep.subr.mxu0 0.0
        %1705 = vmatpush1.msra.mxu0 0.0
        %1706 = vmatprep.subr.mxu0 0.0
        %1707 = vmatpush1.msra.mxu0 0.0
        %1708 = vmatprep.subr.mxu0 0.0
        %1709 = vmatpush1.msra.mxu0 0.0
        %1710 = vmatprep.subr.mxu0 0.0
        %1711 = vmatpush1.msra.mxu0 0.0
        %1712 = vmatprep.subr.mxu0 0.0
        %1713 = vmatpush1.msra.mxu0 0.0
        %1714 = vmatprep.subr.mxu0 0.0
        %1715 = vmatpush1.msra.mxu0 0.0
        %1716 = vmatprep.subr.mxu0 0.0
        %1717 = vmatpush1.msra.mxu0 0.0
        %1718 = vmatprep.subr.mxu0 0.0
        %1719 = vmatpush1.msra.mxu0 0.0
        %1720 = vmatprep.subr.mxu0 0.0
        %1721 = vmatpush1.msra.mxu0 0.0
        %1722 = vmatprep.subr.mxu0 0.0
        %1723 = vmatpush1.msra.mxu0 0.0
        %1724 = vmatprep.subr.mxu0 0.0
        %1725 = vmatpush1.msra.mxu0 0.0
        %1726 = vmatprep.mubr.f32.mxu0 0.0
        %v1727 = vand.u32 %v1311, 4294901760
        %1728 = vmatmul.mubr.f32.gmra.mrb[0].mxu0 %v1727
        %v1729 = vpop.f32.mrb[0].mxu0
        %v1730 = vadd.f32 %v1645, %v1729
        %v1731 = vpop.f32.mrb[0].mxu0
        %1732 = vmatprep.mubr.f32.mxu0 0.0
        %v1733 = vand.u32 %v1314, 4294901760
        %1734 = vmatmul.mubr.f32.gmra.mrb[0].mxu0 %v1733
        %v1735 = vpop.f32.mrb[0].mxu0
        %v1736 = vadd.f32 %v1653, %v1735
        %v1737 = vpop.f32.mrb[0].mxu0
        %1738 = vdwg.mxu0
        %1739 = vmatprep.subr.mxu0 0.0
        %v1740 = vand.u32 %v332, 4294901760
        %1741 = vmatpush1.msra.mxu0 %v1740
        %1742 = vmatprep.subr.mxu0 0.0
        %v1743 = vand.u32 %v333, 4294901760
        %1744 = vmatpush1.msra.mxu0 %v1743
        %1745 = vmatprep.subr.mxu0 0.0
        %1746 = vmatpush1.msra.mxu0 0.0
        %1747 = vmatprep.subr.mxu0 0.0
        %1748 = vmatpush1.msra.mxu0 0.0
        %1749 = vmatprep.subr.mxu0 0.0
        %1750 = vmatpush1.msra.mxu0 0.0
        %1751 = vmatprep.subr.mxu0 0.0
        %1752 = vmatpush1.msra.mxu0 0.0
        %1753 = vmatprep.subr.mxu0 0.0
        %1754 = vmatpush1.msra.mxu0 0.0
        %1755 = vmatprep.subr.mxu0 0.0
        %1756 = vmatpush1.msra.mxu0 0.0
        %1757 = vmatprep.subr.mxu0 0.0
        %1758 = vmatpush1.msra.mxu0 0.0
        %1759 = vmatprep.subr.mxu0 0.0
        %1760 = vmatpush1.msra.mxu0 0.0
        %1761 = vmatprep.subr.mxu0 0.0
        %1762 = vmatpush1.msra.mxu0 0.0
        %1763 = vmatprep.subr.mxu0 0.0
        %1764 = vmatpush1.msra.mxu0 0.0
        %1765 = vmatprep.subr.mxu0 0.0
        %1766 = vmatpush1.msra.mxu0 0.0
        %1767 = vmatprep.subr.mxu0 0.0
        %1768 = vmatpush1.msra.mxu0 0.0
        %1769 = vmatprep.subr.mxu0 0.0
        %1770 = vmatpush1.msra.mxu0 0.0
        %1771 = vmatprep.subr.mxu0 0.0
        %1772 = vmatpush1.msra.mxu0 0.0
        %1773 = vmatprep.subr.mxu0 0.0
        %1774 = vmatpush1.msra.mxu0 0.0
        %1775 = vmatprep.subr.mxu0 0.0
        %1776 = vmatpush1.msra.mxu0 0.0
        %1777 = vmatprep.subr.mxu0 0.0
        %1778 = vmatpush1.msra.mxu0 0.0
        %1779 = vmatprep.subr.mxu0 0.0
        %1780 = vmatpush1.msra.mxu0 0.0
        %1781 = vmatprep.subr.mxu0 0.0
        %1782 = vmatpush1.msra.mxu0 0.0
        %1783 = vmatprep.subr.mxu0 0.0
        %1784 = vmatpush1.msra.mxu0 0.0
        %1785 = vmatprep.subr.mxu0 0.0
        %1786 = vmatpush1.msra.mxu0 0.0
        %1787 = vmatprep.subr.mxu0 0.0
        %1788 = vmatpush1.msra.mxu0 0.0
        %1789 = vmatprep.subr.mxu0 0.0
        %1790 = vmatpush1.msra.mxu0 0.0
        %1791 = vmatprep.subr.mxu0 0.0
        %1792 = vmatpush1.msra.mxu0 0.0
        %1793 = vmatprep.subr.mxu0 0.0
        %1794 = vmatpush1.msra.mxu0 0.0
        %1795 = vmatprep.subr.mxu0 0.0
        %1796 = vmatpush1.msra.mxu0 0.0
        %1797 = vmatprep.subr.mxu0 0.0
        %1798 = vmatpush1.msra.mxu0 0.0
        %1799 = vmatprep.subr.mxu0 0.0
        %1800 = vmatpush1.msra.mxu0 0.0
        %1801 = vmatprep.subr.mxu0 0.0
        %1802 = vmatpush1.msra.mxu0 0.0
        %1803 = vmatprep.subr.mxu0 0.0
        %1804 = vmatpush1.msra.mxu0 0.0
        %1805 = vmatprep.mubr.f32.mxu0 0.0
        %v1806 = vand.u32 %v1311, 4294901760
        %1807 = vmatmul.mubr.f32.gmra.mrb[0].mxu0 %v1806
        %v1808 = vpop.f32.mrb[0].mxu0
        %v1809 = vadd.f32 %v1730, %v1808
        %v1810 = vpop.f32.mrb[0].mxu0
        %1811 = vmatprep.mubr.f32.mxu0 0.0
        %v1812 = vand.u32 %v1314, 4294901760
        %1813 = vmatmul.mubr.f32.gmra.mrb[0].mxu0 %v1812
        %v1814 = vpop.f32.mrb[0].mxu0
        %v1815 = vadd.f32 %v1736, %v1814
        %v1816 = vpop.f32.mrb[0].mxu0
        %1817 = vdwg.mxu0
        %1818 = vmatprep.subr.mxu0 0.0
        %v1819 = vand.u32 %v1809, 4294901760
        %1820 = vmatpush1.msra.mxu0 %v1819
        %1821 = vmatprep.subr.mxu0 0.0
        %v1822 = vand.u32 %v1815, 4294901760
        %1823 = vmatpush1.msra.mxu0 %v1822
        %1824 = vmatprep.subr.mxu0 0.0
        %1825 = vmatpush1.msra.mxu0 0.0
        %1826 = vmatprep.subr.mxu0 0.0
        %1827 = vmatpush1.msra.mxu0 0.0
        %1828 = vmatprep.subr.mxu0 0.0
        %1829 = vmatpush1.msra.mxu0 0.0
        %1830 = vmatprep.subr.mxu0 0.0
        %1831 = vmatpush1.msra.mxu0 0.0
        %1832 = vmatprep.subr.mxu0 0.0
        %1833 = vmatpush1.msra.mxu0 0.0
        %1834 = vmatprep.subr.mxu0 0.0
        %1835 = vmatpush1.msra.mxu0 0.0
        %1836 = vmatprep.subr.mxu0 0.0
        %1837 = vmatpush1.msra.mxu0 0.0
        %1838 = vmatprep.subr.mxu0 0.0
        %1839 = vmatpush1.msra.mxu0 0.0
        %1840 = vmatprep.subr.mxu0 0.0
        %1841 = vmatpush1.msra.mxu0 0.0
        %1842 = vmatprep.subr.mxu0 0.0
        %1843 = vmatpush1.msra.mxu0 0.0
        %1844 = vmatprep.subr.mxu0 0.0
        %1845 = vmatpush1.msra.mxu0 0.0
        %1846 = vmatprep.subr.mxu0 0.0
        %1847 = vmatpush1.msra.mxu0 0.0
        %1848 = vmatprep.subr.mxu0 0.0
        %1849 = vmatpush1.msra.mxu0 0.0
        %1850 = vmatprep.subr.mxu0 0.0
        %1851 = vmatpush1.msra.mxu0 0.0
        %1852 = vmatprep.subr.mxu0 0.0
        %1853 = vmatpush1.msra.mxu0 0.0
        %1854 = vmatprep.subr.mxu0 0.0
        %1855 = vmatpush1.msra.mxu0 0.0
        %1856 = vmatprep.subr.mxu0 0.0
        %1857 = vmatpush1.msra.mxu0 0.0
        %1858 = vmatprep.subr.mxu0 0.0
        %1859 = vmatpush1.msra.mxu0 0.0
        %1860 = vmatprep.subr.mxu0 0.0
        %1861 = vmatpush1.msra.mxu0 0.0
        %1862 = vmatprep.subr.mxu0 0.0
        %1863 = vmatpush1.msra.mxu0 0.0
        %1864 = vmatprep.subr.mxu0 0.0
        %1865 = vmatpush1.msra.mxu0 0.0
        %1866 = vmatprep.subr.mxu0 0.0
        %1867 = vmatpush1.msra.mxu0 0.0
        %1868 = vmatprep.subr.mxu0 0.0
        %1869 = vmatpush1.msra.mxu0 0.0
        %1870 = vmatprep.subr.mxu0 0.0
        %1871 = vmatpush1.msra.mxu0 0.0
        %1872 = vmatprep.subr.mxu0 0.0
        %1873 = vmatpush1.msra.mxu0 0.0
        %1874 = vmatprep.subr.mxu0 0.0
        %1875 = vmatpush1.msra.mxu0 0.0
        %1876 = vmatprep.subr.mxu0 0.0
        %1877 = vmatpush1.msra.mxu0 0.0
        %1878 = vmatprep.subr.mxu0 0.0
        %1879 = vmatpush1.msra.mxu0 0.0
        %1880 = vmatprep.subr.mxu0 0.0
        %1881 = vmatpush1.msra.mxu0 0.0
        %1882 = vmatprep.subr.mxu0 0.0
        %1883 = vmatpush1.msra.mxu0 0.0
        %1884 = vmatprep.mubr.f32.mxu0 0.0
        %v1885 = vand.u32 %v849, 4294901760
        %v1886 = vsub.f32 %v849, %v1885
        %v1887 = vand.u32 %v1886, 4294901760
        %v1888 = vsub.f32 %v1886, %v1887
        %v1889 = vand.u32 %v1888, 4294901760
        %1890 = vmatmul.mubr.f32.gmra.mrb[0].mxu0 %v1889
        %v1891 = vpop.f32.mrb[0].mxu0
        %v1892 = vadd.f32 0.0, %v1891
        %v1893 = vpop.f32.mrb[0].mxu0
        %1894 = vdwg.mxu0
        %1895 = vmatprep.subr.mxu0 0.0
        %v1896 = vand.u32 %v1809, 4294901760
        %v1897 = vsub.f32 %v1809, %v1896
        %v1898 = vand.u32 %v1897, 4294901760
        %v1899 = vsub.f32 %v1897, %v1898
        %v1900 = vand.u32 %v1899, 4294901760
        %1901 = vmatpush1.msra.mxu0 %v1900
        %1902 = vmatprep.subr.mxu0 0.0
        %v1903 = vand.u32 %v1815, 4294901760
        %v1904 = vsub.f32 %v1815, %v1903
        %v1905 = vand.u32 %v1904, 4294901760
        %v1906 = vsub.f32 %v1904, %v1905
        %v1907 = vand.u32 %v1906, 4294901760
        %1908 = vmatpush1.msra.mxu0 %v1907
        %1909 = vmatprep.subr.mxu0 0.0
        %1910 = vmatpush1.msra.mxu0 0.0
        %1911 = vmatprep.subr.mxu0 0.0
        %1912 = vmatpush1.msra.mxu0 0.0
        %1913 = vmatprep.subr.mxu0 0.0
        %1914 = vmatpush1.msra.mxu0 0.0
        %1915 = vmatprep.subr.mxu0 0.0
        %1916 = vmatpush1.msra.mxu0 0.0
        %1917 = vmatprep.subr.mxu0 0.0
        %1918 = vmatpush1.msra.mxu0 0.0
        %1919 = vmatprep.subr.mxu0 0.0
        %1920 = vmatpush1.msra.mxu0 0.0
        %1921 = vmatprep.subr.mxu0 0.0
        %1922 = vmatpush1.msra.mxu0 0.0
        %1923 = vmatprep.subr.mxu0 0.0
        %1924 = vmatpush1.msra.mxu0 0.0
        %1925 = vmatprep.subr.mxu0 0.0
        %1926 = vmatpush1.msra.mxu0 0.0
        %1927 = vmatprep.subr.mxu0 0.0
        %1928 = vmatpush1.msra.mxu0 0.0
        %1929 = vmatprep.subr.mxu0 0.0
        %1930 = vmatpush1.msra.mxu0 0.0
        %1931 = vmatprep.subr.mxu0 0.0
        %1932 = vmatpush1.msra.mxu0 0.0
        %1933 = vmatprep.subr.mxu0 0.0
        %1934 = vmatpush1.msra.mxu0 0.0
        %1935 = vmatprep.subr.mxu0 0.0
        %1936 = vmatpush1.msra.mxu0 0.0
        %1937 = vmatprep.subr.mxu0 0.0
        %1938 = vmatpush1.msra.mxu0 0.0
        %1939 = vmatprep.subr.mxu0 0.0
        %1940 = vmatpush1.msra.mxu0 0.0
        %1941 = vmatprep.subr.mxu0 0.0
        %1942 = vmatpush1.msra.mxu0 0.0
        %1943 = vmatprep.subr.mxu0 0.0
        %1944 = vmatpush1.msra.mxu0 0.0
        %1945 = vmatprep.subr.mxu0 0.0
        %1946 = vmatpush1.msra.mxu0 0.0
        %1947 = vmatprep.subr.mxu0 0.0
        %1948 = vmatpush1.msra.mxu0 0.0
        %1949 = vmatprep.subr.mxu0 0.0
        %1950 = vmatpush1.msra.mxu0 0.0
        %1951 = vmatprep.subr.mxu0 0.0
        %1952 = vmatpush1.msra.mxu0 0.0
        %1953 = vmatprep.subr.mxu0 0.0
        %1954 = vmatpush1.msra.mxu0 0.0
        %1955 = vmatprep.subr.mxu0 0.0
        %1956 = vmatpush1.msra.mxu0 0.0
        %1957 = vmatprep.subr.mxu0 0.0
        %1958 = vmatpush1.msra.mxu0 0.0
        %1959 = vmatprep.subr.mxu0 0.0
        %1960 = vmatpush1.msra.mxu0 0.0
        %1961 = vmatprep.subr.mxu0 0.0
        %1962 = vmatpush1.msra.mxu0 0.0
        %1963 = vmatprep.subr.mxu0 0.0
        %1964 = vmatpush1.msra.mxu0 0.0
        %1965 = vmatprep.subr.mxu0 0.0
        %1966 = vmatpush1.msra.mxu0 0.0
        %1967 = vmatprep.subr.mxu0 0.0
        %1968 = vmatpush1.msra.mxu0 0.0
        %1969 = vmatprep.mubr.f32.mxu0 0.0
        %v1970 = vand.u32 %v849, 4294901760
        %1971 = vmatmul.mubr.f32.gmra.mrb[0].mxu0 %v1970
        %v1972 = vpop.f32.mrb[0].mxu0
        %v1973 = vadd.f32 %v1892, %v1972
        %v1974 = vpop.f32.mrb[0].mxu0
        %1975 = vdwg.mxu0
        %1976 = vmatprep.subr.mxu0 0.0
        %v1977 = vand.u32 %v1809, 4294901760
        %v1978 = vsub.f32 %v1809, %v1977
        %1979 = vmatpush1.msra.mxu0 %v1978
        %1980 = vmatprep.subr.mxu0 0.0
        %v1981 = vand.u32 %v1815, 4294901760
        %v1982 = vsub.f32 %v1815, %v1981
        %1983 = vmatpush1.msra.mxu0 %v1982
        %1984 = vmatprep.subr.mxu0 0.0
        %1985 = vmatpush1.msra.mxu0 0.0
        %1986 = vmatprep.subr.mxu0 0.0
        %1987 = vmatpush1.msra.mxu0 0.0
        %1988 = vmatprep.subr.mxu0 0.0
        %1989 = vmatpush1.msra.mxu0 0.0
        %1990 = vmatprep.subr.mxu0 0.0
        %1991 = vmatpush1.msra.mxu0 0.0
        %1992 = vmatprep.subr.mxu0 0.0
        %1993 = vmatpush1.msra.mxu0 0.0
        %1994 = vmatprep.subr.mxu0 0.0
        %1995 = vmatpush1.msra.mxu0 0.0
        %1996 = vmatprep.subr.mxu0 0.0
        %1997 = vmatpush1.msra.mxu0 0.0
        %1998 = vmatprep.subr.mxu0 0.0
        %1999 = vmatpush1.msra.mxu0 0.0
        %2000 = vmatprep.subr.mxu0 0.0
        %2001 = vmatpush1.msra.mxu0 0.0
        %2002 = vmatprep.subr.mxu0 0.0
        %2003 = vmatpush1.msra.mxu0 0.0
        %2004 = vmatprep.subr.mxu0 0.0
        %2005 = vmatpush1.msra.mxu0 0.0
        %2006 = vmatprep.subr.mxu0 0.0
        %2007 = vmatpush1.msra.mxu0 0.0
        %2008 = vmatprep.subr.mxu0 0.0
        %2009 = vmatpush1.msra.mxu0 0.0
        %2010 = vmatprep.subr.mxu0 0.0
        %2011 = vmatpush1.msra.mxu0 0.0
        %2012 = vmatprep.subr.mxu0 0.0
        %2013 = vmatpush1.msra.mxu0 0.0
        %2014 = vmatprep.subr.mxu0 0.0
        %2015 = vmatpush1.msra.mxu0 0.0
        %2016 = vmatprep.subr.mxu0 0.0
        %2017 = vmatpush1.msra.mxu0 0.0
        %2018 = vmatprep.subr.mxu0 0.0
        %2019 = vmatpush1.msra.mxu0 0.0
        %2020 = vmatprep.subr.mxu0 0.0
        %2021 = vmatpush1.msra.mxu0 0.0
        %2022 = vmatprep.subr.mxu0 0.0
        %2023 = vmatpush1.msra.mxu0 0.0
        %2024 = vmatprep.subr.mxu0 0.0
        %2025 = vmatpush1.msra.mxu0 0.0
        %2026 = vmatprep.subr.mxu0 0.0
        %2027 = vmatpush1.msra.mxu0 0.0
        %2028 = vmatprep.subr.mxu0 0.0
        %2029 = vmatpush1.msra.mxu0 0.0
        %2030 = vmatprep.subr.mxu0 0.0
        %2031 = vmatpush1.msra.mxu0 0.0
        %2032 = vmatprep.subr.mxu0 0.0
        %2033 = vmatpush1.msra.mxu0 0.0
        %2034 = vmatprep.subr.mxu0 0.0
        %2035 = vmatpush1.msra.mxu0 0.0
        %2036 = vmatprep.subr.mxu0 0.0
        %2037 = vmatpush1.msra.mxu0 0.0
        %2038 = vmatprep.subr.mxu0 0.0
        %2039 = vmatpush1.msra.mxu0 0.0
        %2040 = vmatprep.subr.mxu0 0.0
        %2041 = vmatpush1.msra.mxu0 0.0
        %2042 = vmatprep.subr.mxu0 0.0
        %2043 = vmatpush1.msra.mxu0 0.0
        %2044 = vmatprep.mubr.f32.mxu0 0.0
        %v2045 = vand.u32 %v849, 4294901760
        %v2046 = vsub.f32 %v849, %v2045
        %2047 = vmatmul.mubr.f32.gmra.mrb[0].mxu0 %v2046
        %v2048 = vpop.f32.mrb[0].mxu0
        %v2049 = vadd.f32 %v1973, %v2048
        %v2050 = vpop.f32.mrb[0].mxu0
        %2051 = vdwg.mxu0
        %2052 = vmatprep.subr.mxu0 0.0
        %v2053 = vand.u32 %v1809, 4294901760
        %2054 = vmatpush1.msra.mxu0 %v2053
        %2055 = vmatprep.subr.mxu0 0.0
        %v2056 = vand.u32 %v1815, 4294901760
        %2057 = vmatpush1.msra.mxu0 %v2056
        %2058 = vmatprep.subr.mxu0 0.0
        %2059 = vmatpush1.msra.mxu0 0.0
        %2060 = vmatprep.subr.mxu0 0.0
        %2061 = vmatpush1.msra.mxu0 0.0
        %2062 = vmatprep.subr.mxu0 0.0
        %2063 = vmatpush1.msra.mxu0 0.0
        %2064 = vmatprep.subr.mxu0 0.0
        %2065 = vmatpush1.msra.mxu0 0.0
        %2066 = vmatprep.subr.mxu0 0.0
        %2067 = vmatpush1.msra.mxu0 0.0
        %2068 = vmatprep.subr.mxu0 0.0
        %2069 = vmatpush1.msra.mxu0 0.0
        %2070 = vmatprep.subr.mxu0 0.0
        %2071 = vmatpush1.msra.mxu0 0.0
        %2072 = vmatprep.subr.mxu0 0.0
        %2073 = vmatpush1.msra.mxu0 0.0
        %2074 = vmatprep.subr.mxu0 0.0
        %2075 = vmatpush1.msra.mxu0 0.0
        %2076 = vmatprep.subr.mxu0 0.0
        %2077 = vmatpush1.msra.mxu0 0.0
        %2078 = vmatprep.subr.mxu0 0.0
        %2079 = vmatpush1.msra.mxu0 0.0
        %2080 = vmatprep.subr.mxu0 0.0
        %2081 = vmatpush1.msra.mxu0 0.0
        %2082 = vmatprep.subr.mxu0 0.0
        %2083 = vmatpush1.msra.mxu0 0.0
        %2084 = vmatprep.subr.mxu0 0.0
        %2085 = vmatpush1.msra.mxu0 0.0
        %2086 = vmatprep.subr.mxu0 0.0
        %2087 = vmatpush1.msra.mxu0 0.0
        %2088 = vmatprep.subr.mxu0 0.0
        %2089 = vmatpush1.msra.mxu0 0.0
        %2090 = vmatprep.subr.mxu0 0.0
        %2091 = vmatpush1.msra.mxu0 0.0
        %2092 = vmatprep.subr.mxu0 0.0
        %2093 = vmatpush1.msra.mxu0 0.0
        %2094 = vmatprep.subr.mxu0 0.0
        %2095 = vmatpush1.msra.mxu0 0.0
        %2096 = vmatprep.subr.mxu0 0.0
        %2097 = vmatpush1.msra.mxu0 0.0
        %2098 = vmatprep.subr.mxu0 0.0
        %2099 = vmatpush1.msra.mxu0 0.0
        %2100 = vmatprep.subr.mxu0 0.0
        %2101 = vmatpush1.msra.mxu0 0.0
        %2102 = vmatprep.subr.mxu0 0.0
        %2103 = vmatpush1.msra.mxu0 0.0
        %2104 = vmatprep.subr.mxu0 0.0
        %2105 = vmatpush1.msra.mxu0 0.0
        %2106 = vmatprep.subr.mxu0 0.0
        %2107 = vmatpush1.msra.mxu0 0.0
        %2108 = vmatprep.subr.mxu0 0.0
        %2109 = vmatpush1.msra.mxu0 0.0
        %2110 = vmatprep.subr.mxu0 0.0
        %2111 = vmatpush1.msra.mxu0 0.0
        %2112 = vmatprep.subr.mxu0 0.0
        %2113 = vmatpush1.msra.mxu0 0.0
        %2114 = vmatprep.subr.mxu0 0.0
        %2115 = vmatpush1.msra.mxu0 0.0
        %2116 = vmatprep.subr.mxu0 0.0
        %2117 = vmatpush1.msra.mxu0 0.0
        %2118 = vmatprep.mubr.f32.mxu0 0.0
        %v2119 = vand.u32 %v849, 4294901760
        %v2120 = vsub.f32 %v849, %v2119
        %v2121 = vand.u32 %v2120, 4294901760
        %2122 = vmatmul.mubr.f32.gmra.mrb[0].mxu0 %v2121
        %v2123 = vpop.f32.mrb[0].mxu0
        %v2124 = vadd.f32 %v2049, %v2123
        %v2125 = vpop.f32.mrb[0].mxu0
        %2126 = vdwg.mxu0
        %2127 = vmatprep.subr.mxu0 0.0
        %v2128 = vand.u32 %v1809, 4294901760
        %v2129 = vsub.f32 %v1809, %v2128
        %v2130 = vand.u32 %v2129, 4294901760
        %2131 = vmatpush1.msra.mxu0 %v2130
        %2132 = vmatprep.subr.mxu0 0.0
        %v2133 = vand.u32 %v1815, 4294901760
        %v2134 = vsub.f32 %v1815, %v2133
        %v2135 = vand.u32 %v2134, 4294901760
        %2136 = vmatpush1.msra.mxu0 %v2135
        %2137 = vmatprep.subr.mxu0 0.0
        %2138 = vmatpush1.msra.mxu0 0.0
        %2139 = vmatprep.subr.mxu0 0.0
        %2140 = vmatpush1.msra.mxu0 0.0
        %2141 = vmatprep.subr.mxu0 0.0
        %2142 = vmatpush1.msra.mxu0 0.0
        %2143 = vmatprep.subr.mxu0 0.0
        %2144 = vmatpush1.msra.mxu0 0.0
        %2145 = vmatprep.subr.mxu0 0.0
        %2146 = vmatpush1.msra.mxu0 0.0
        %2147 = vmatprep.subr.mxu0 0.0
        %2148 = vmatpush1.msra.mxu0 0.0
        %2149 = vmatprep.subr.mxu0 0.0
        %2150 = vmatpush1.msra.mxu0 0.0
        %2151 = vmatprep.subr.mxu0 0.0
        %2152 = vmatpush1.msra.mxu0 0.0
        %2153 = vmatprep.subr.mxu0 0.0
        %2154 = vmatpush1.msra.mxu0 0.0
        %2155 = vmatprep.subr.mxu0 0.0
        %2156 = vmatpush1.msra.mxu0 0.0
        %2157 = vmatprep.subr.mxu0 0.0
        %2158 = vmatpush1.msra.mxu0 0.0
        %2159 = vmatprep.subr.mxu0 0.0
        %2160 = vmatpush1.msra.mxu0 0.0
        %2161 = vmatprep.subr.mxu0 0.0
        %2162 = vmatpush1.msra.mxu0 0.0
        %2163 = vmatprep.subr.mxu0 0.0
        %2164 = vmatpush1.msra.mxu0 0.0
        %2165 = vmatprep.subr.mxu0 0.0
        %2166 = vmatpush1.msra.mxu0 0.0
        %2167 = vmatprep.subr.mxu0 0.0
        %2168 = vmatpush1.msra.mxu0 0.0
        %2169 = vmatprep.subr.mxu0 0.0
        %2170 = vmatpush1.msra.mxu0 0.0
        %2171 = vmatprep.subr.mxu0 0.0
        %2172 = vmatpush1.msra.mxu0 0.0
        %2173 = vmatprep.subr.mxu0 0.0
        %2174 = vmatpush1.msra.mxu0 0.0
        %2175 = vmatprep.subr.mxu0 0.0
        %2176 = vmatpush1.msra.mxu0 0.0
        %2177 = vmatprep.subr.mxu0 0.0
        %2178 = vmatpush1.msra.mxu0 0.0
        %2179 = vmatprep.subr.mxu0 0.0
        %2180 = vmatpush1.msra.mxu0 0.0
        %2181 = vmatprep.subr.mxu0 0.0
        %2182 = vmatpush1.msra.mxu0 0.0
        %2183 = vmatprep.subr.mxu0 0.0
        %2184 = vmatpush1.msra.mxu0 0.0
        %2185 = vmatprep.subr.mxu0 0.0
        %2186 = vmatpush1.msra.mxu0 0.0
        %2187 = vmatprep.subr.mxu0 0.0
        %2188 = vmatpush1.msra.mxu0 0.0
        %2189 = vmatprep.subr.mxu0 0.0
        %2190 = vmatpush1.msra.mxu0 0.0
        %2191 = vmatprep.subr.mxu0 0.0
        %2192 = vmatpush1.msra.mxu0 0.0
        %2193 = vmatprep.subr.mxu0 0.0
        %2194 = vmatpush1.msra.mxu0 0.0
        %2195 = vmatprep.subr.mxu0 0.0
        %2196 = vmatpush1.msra.mxu0 0.0
        %2197 = vmatprep.mubr.f32.mxu0 0.0
        %v2198 = vand.u32 %v849, 4294901760
        %2199 = vmatmul.mubr.f32.gmra.mrb[0].mxu0 %v2198
        %v2200 = vpop.f32.mrb[0].mxu0
        %v2201 = vadd.f32 %v2124, %v2200
        %v2202 = vpop.f32.mrb[0].mxu0
        %2203 = vdwg.mxu0
        %2204 = vmatprep.subr.mxu0 0.0
        %v2205 = vand.u32 %v1809, 4294901760
        %2206 = vmatpush1.msra.mxu0 %v2205
        %2207 = vmatprep.subr.mxu0 0.0
        %v2208 = vand.u32 %v1815, 4294901760
        %2209 = vmatpush1.msra.mxu0 %v2208
        %2210 = vmatprep.subr.mxu0 0.0
        %2211 = vmatpush1.msra.mxu0 0.0
        %2212 = vmatprep.subr.mxu0 0.0
        %2213 = vmatpush1.msra.mxu0 0.0
        %2214 = vmatprep.subr.mxu0 0.0
        %2215 = vmatpush1.msra.mxu0 0.0
        %2216 = vmatprep.subr.mxu0 0.0
        %2217 = vmatpush1.msra.mxu0 0.0
        %2218 = vmatprep.subr.mxu0 0.0
        %2219 = vmatpush1.msra.mxu0 0.0
        %2220 = vmatprep.subr.mxu0 0.0
        %2221 = vmatpush1.msra.mxu0 0.0
        %2222 = vmatprep.subr.mxu0 0.0
        %2223 = vmatpush1.msra.mxu0 0.0
        %2224 = vmatprep.subr.mxu0 0.0
        %2225 = vmatpush1.msra.mxu0 0.0
        %2226 = vmatprep.subr.mxu0 0.0
        %2227 = vmatpush1.msra.mxu0 0.0
        %2228 = vmatprep.subr.mxu0 0.0
        %2229 = vmatpush1.msra.mxu0 0.0
        %2230 = vmatprep.subr.mxu0 0.0
        %2231 = vmatpush1.msra.mxu0 0.0
        %2232 = vmatprep.subr.mxu0 0.0
        %2233 = vmatpush1.msra.mxu0 0.0
        %2234 = vmatprep.subr.mxu0 0.0
        %2235 = vmatpush1.msra.mxu0 0.0
        %2236 = vmatprep.subr.mxu0 0.0
        %2237 = vmatpush1.msra.mxu0 0.0
        %2238 = vmatprep.subr.mxu0 0.0
        %2239 = vmatpush1.msra.mxu0 0.0
        %2240 = vmatprep.subr.mxu0 0.0
        %2241 = vmatpush1.msra.mxu0 0.0
        %2242 = vmatprep.subr.mxu0 0.0
        %2243 = vmatpush1.msra.mxu0 0.0
        %2244 = vmatprep.subr.mxu0 0.0
        %2245 = vmatpush1.msra.mxu0 0.0
        %2246 = vmatprep.subr.mxu0 0.0
        %2247 = vmatpush1.msra.mxu0 0.0
        %2248 = vmatprep.subr.mxu0 0.0
        %2249 = vmatpush1.msra.mxu0 0.0
        %2250 = vmatprep.subr.mxu0 0.0
        %2251 = vmatpush1.msra.mxu0 0.0
        %2252 = vmatprep.subr.mxu0 0.0
        %2253 = vmatpush1.msra.mxu0 0.0
        %2254 = vmatprep.subr.mxu0 0.0
        %2255 = vmatpush1.msra.mxu0 0.0
        %2256 = vmatprep.subr.mxu0 0.0
        %2257 = vmatpush1.msra.mxu0 0.0
        %2258 = vmatprep.subr.mxu0 0.0
        %2259 = vmatpush1.msra.mxu0 0.0
        %2260 = vmatprep.subr.mxu0 0.0
        %2261 = vmatpush1.msra.mxu0 0.0
        %2262 = vmatprep.subr.mxu0 0.0
        %2263 = vmatpush1.msra.mxu0 0.0
        %2264 = vmatprep.subr.mxu0 0.0
        %2265 = vmatpush1.msra.mxu0 0.0
        %2266 = vmatprep.subr.mxu0 0.0
        %2267 = vmatpush1.msra.mxu0 0.0
        %2268 = vmatprep.subr.mxu0 0.0
        %2269 = vmatpush1.msra.mxu0 0.0
        %2270 = vmatprep.mubr.f32.mxu0 0.0
        %v2271 = vand.u32 %v849, 4294901760
        %2272 = vmatmul.mubr.f32.gmra.mrb[0].mxu0 %v2271
        %v2273 = vpop.f32.mrb[0].mxu0
        %v2274 = vadd.f32 %v2201, %v2273
        %v2275 = vpop.f32.mrb[0].mxu0
        %2276 = vdwg.mxu0
        %v2277 = vmul.f32 %v335, %v335
        %v2278 = vmul.f32 %v336, %v336
        %v2280 = vsel %vm339, %v2277, 0
        %v2283 = vsel %vm339, %v2278, 0
        %2285 = vmatprep.subr.mxu0 0.0
        %v2286 = vand.u32 %v332, 4294901760
        %2287 = vmatpush1.msra.mxu0 %v2286
        %2288 = vmatprep.subr.mxu0 0.0
        %v2289 = vand.u32 %v333, 4294901760
        %2290 = vmatpush1.msra.mxu0 %v2289
        %2291 = vmatprep.subr.mxu0 0.0
        %2292 = vmatpush1.msra.mxu0 0.0
        %2293 = vmatprep.subr.mxu0 0.0
        %2294 = vmatpush1.msra.mxu0 0.0
        %2295 = vmatprep.subr.mxu0 0.0
        %2296 = vmatpush1.msra.mxu0 0.0
        %2297 = vmatprep.subr.mxu0 0.0
        %2298 = vmatpush1.msra.mxu0 0.0
        %2299 = vmatprep.subr.mxu0 0.0
        %2300 = vmatpush1.msra.mxu0 0.0
        %2301 = vmatprep.subr.mxu0 0.0
        %2302 = vmatpush1.msra.mxu0 0.0
        %2303 = vmatprep.subr.mxu0 0.0
        %2304 = vmatpush1.msra.mxu0 0.0
        %2305 = vmatprep.subr.mxu0 0.0
        %2306 = vmatpush1.msra.mxu0 0.0
        %2307 = vmatprep.subr.mxu0 0.0
        %2308 = vmatpush1.msra.mxu0 0.0
        %2309 = vmatprep.subr.mxu0 0.0
        %2310 = vmatpush1.msra.mxu0 0.0
        %2311 = vmatprep.subr.mxu0 0.0
        %2312 = vmatpush1.msra.mxu0 0.0
        %2313 = vmatprep.subr.mxu0 0.0
        %2314 = vmatpush1.msra.mxu0 0.0
        %2315 = vmatprep.subr.mxu0 0.0
        %2316 = vmatpush1.msra.mxu0 0.0
        %2317 = vmatprep.subr.mxu0 0.0
        %2318 = vmatpush1.msra.mxu0 0.0
        %2319 = vmatprep.subr.mxu0 0.0
        %2320 = vmatpush1.msra.mxu0 0.0
        %2321 = vmatprep.subr.mxu0 0.0
        %2322 = vmatpush1.msra.mxu0 0.0
        %2323 = vmatprep.subr.mxu0 0.0
        %2324 = vmatpush1.msra.mxu0 0.0
        %2325 = vmatprep.subr.mxu0 0.0
        %2326 = vmatpush1.msra.mxu0 0.0
        %2327 = vmatprep.subr.mxu0 0.0
        %2328 = vmatpush1.msra.mxu0 0.0
        %2329 = vmatprep.subr.mxu0 0.0
        %2330 = vmatpush1.msra.mxu0 0.0
        %2331 = vmatprep.subr.mxu0 0.0
        %2332 = vmatpush1.msra.mxu0 0.0
        %2333 = vmatprep.subr.mxu0 0.0
        %2334 = vmatpush1.msra.mxu0 0.0
        %2335 = vmatprep.subr.mxu0 0.0
        %2336 = vmatpush1.msra.mxu0 0.0
        %2337 = vmatprep.subr.mxu0 0.0
        %2338 = vmatpush1.msra.mxu0 0.0
        %2339 = vmatprep.subr.mxu0 0.0
        %2340 = vmatpush1.msra.mxu0 0.0
        %2341 = vmatprep.subr.mxu0 0.0
        %2342 = vmatpush1.msra.mxu0 0.0
        %2343 = vmatprep.subr.mxu0 0.0
        %2344 = vmatpush1.msra.mxu0 0.0
        %2345 = vmatprep.subr.mxu0 0.0
        %2346 = vmatpush1.msra.mxu0 0.0
        %2347 = vmatprep.subr.mxu0 0.0
        %2348 = vmatpush1.msra.mxu0 0.0
        %2349 = vmatprep.subr.mxu0 0.0
        %2350 = vmatpush1.msra.mxu0 0.0
        %2351 = vmatprep.mubr.f32.mxu0 0.0
        %v2352 = vand.u32 %v2280, 4294901760
        %v2353 = vsub.f32 %v2280, %v2352
        %v2354 = vand.u32 %v2353, 4294901760
        %v2355 = vsub.f32 %v2353, %v2354
        %v2356 = vand.u32 %v2355, 4294901760
        %2357 = vmatmul.mubr.f32.gmra.mrb[0].mxu0 %v2356
        %v2358 = vpop.f32.mrb[0].mxu0
        %v2359 = vadd.f32 0.0, %v2358
        %v2360 = vpop.f32.mrb[0].mxu0
        %2361 = vmatprep.mubr.f32.mxu0 0.0
        %v2362 = vand.u32 %v2283, 4294901760
        %v2363 = vsub.f32 %v2283, %v2362
        %v2364 = vand.u32 %v2363, 4294901760
        %v2365 = vsub.f32 %v2363, %v2364
        %v2366 = vand.u32 %v2365, 4294901760
        %2367 = vmatmul.mubr.f32.gmra.mrb[0].mxu0 %v2366
        %v2368 = vpop.f32.mrb[0].mxu0
        %v2369 = vadd.f32 0.0, %v2368
        %v2370 = vpop.f32.mrb[0].mxu0
        %2371 = vdwg.mxu0
        %2372 = vmatprep.subr.mxu0 0.0
        %v2373 = vand.u32 %v332, 4294901760
        %v2374 = vsub.f32 %v332, %v2373
        %v2375 = vand.u32 %v2374, 4294901760
        %v2376 = vsub.f32 %v2374, %v2375
        %v2377 = vand.u32 %v2376, 4294901760
        %2378 = vmatpush1.msra.mxu0 %v2377
        %2379 = vmatprep.subr.mxu0 0.0
        %v2380 = vand.u32 %v333, 4294901760
        %v2381 = vsub.f32 %v333, %v2380
        %v2382 = vand.u32 %v2381, 4294901760
        %v2383 = vsub.f32 %v2381, %v2382
        %v2384 = vand.u32 %v2383, 4294901760
        %2385 = vmatpush1.msra.mxu0 %v2384
        %2386 = vmatprep.subr.mxu0 0.0
        %2387 = vmatpush1.msra.mxu0 0.0
        %2388 = vmatprep.subr.mxu0 0.0
        %2389 = vmatpush1.msra.mxu0 0.0
        %2390 = vmatprep.subr.mxu0 0.0
        %2391 = vmatpush1.msra.mxu0 0.0
        %2392 = vmatprep.subr.mxu0 0.0
        %2393 = vmatpush1.msra.mxu0 0.0
        %2394 = vmatprep.subr.mxu0 0.0
        %2395 = vmatpush1.msra.mxu0 0.0
        %2396 = vmatprep.subr.mxu0 0.0
        %2397 = vmatpush1.msra.mxu0 0.0
        %2398 = vmatprep.subr.mxu0 0.0
        %2399 = vmatpush1.msra.mxu0 0.0
        %2400 = vmatprep.subr.mxu0 0.0
        %2401 = vmatpush1.msra.mxu0 0.0
        %2402 = vmatprep.subr.mxu0 0.0
        %2403 = vmatpush1.msra.mxu0 0.0
        %2404 = vmatprep.subr.mxu0 0.0
        %2405 = vmatpush1.msra.mxu0 0.0
        %2406 = vmatprep.subr.mxu0 0.0
        %2407 = vmatpush1.msra.mxu0 0.0
        %2408 = vmatprep.subr.mxu0 0.0
        %2409 = vmatpush1.msra.mxu0 0.0
        %2410 = vmatprep.subr.mxu0 0.0
        %2411 = vmatpush1.msra.mxu0 0.0
        %2412 = vmatprep.subr.mxu0 0.0
        %2413 = vmatpush1.msra.mxu0 0.0
        %2414 = vmatprep.subr.mxu0 0.0
        %2415 = vmatpush1.msra.mxu0 0.0
        %2416 = vmatprep.subr.mxu0 0.0
        %2417 = vmatpush1.msra.mxu0 0.0
        %2418 = vmatprep.subr.mxu0 0.0
        %2419 = vmatpush1.msra.mxu0 0.0
        %2420 = vmatprep.subr.mxu0 0.0
        %2421 = vmatpush1.msra.mxu0 0.0
        %2422 = vmatprep.subr.mxu0 0.0
        %2423 = vmatpush1.msra.mxu0 0.0
        %2424 = vmatprep.subr.mxu0 0.0
        %2425 = vmatpush1.msra.mxu0 0.0
        %2426 = vmatprep.subr.mxu0 0.0
        %2427 = vmatpush1.msra.mxu0 0.0
        %2428 = vmatprep.subr.mxu0 0.0
        %2429 = vmatpush1.msra.mxu0 0.0
        %2430 = vmatprep.subr.mxu0 0.0
        %2431 = vmatpush1.msra.mxu0 0.0
        %2432 = vmatprep.subr.mxu0 0.0
        %2433 = vmatpush1.msra.mxu0 0.0
        %2434 = vmatprep.subr.mxu0 0.0
        %2435 = vmatpush1.msra.mxu0 0.0
        %2436 = vmatprep.subr.mxu0 0.0
        %2437 = vmatpush1.msra.mxu0 0.0
        %2438 = vmatprep.subr.mxu0 0.0
        %2439 = vmatpush1.msra.mxu0 0.0
        %2440 = vmatprep.subr.mxu0 0.0
        %2441 = vmatpush1.msra.mxu0 0.0
        %2442 = vmatprep.subr.mxu0 0.0
        %2443 = vmatpush1.msra.mxu0 0.0
        %2444 = vmatprep.subr.mxu0 0.0
        %2445 = vmatpush1.msra.mxu0 0.0
        %2446 = vmatprep.mubr.f32.mxu0 0.0
        %v2447 = vand.u32 %v2280, 4294901760
        %2448 = vmatmul.mubr.f32.gmra.mrb[0].mxu0 %v2447
        %v2449 = vpop.f32.mrb[0].mxu0
        %v2450 = vadd.f32 %v2359, %v2449
        %v2451 = vpop.f32.mrb[0].mxu0
        %2452 = vmatprep.mubr.f32.mxu0 0.0
        %v2453 = vand.u32 %v2283, 4294901760
        %2454 = vmatmul.mubr.f32.gmra.mrb[0].mxu0 %v2453
        %v2455 = vpop.f32.mrb[0].mxu0
        %v2456 = vadd.f32 %v2369, %v2455
        %v2457 = vpop.f32.mrb[0].mxu0
        %2458 = vdwg.mxu0
        %2459 = vmatprep.subr.mxu0 0.0
        %v2460 = vand.u32 %v332, 4294901760
        %v2461 = vsub.f32 %v332, %v2460
        %2462 = vmatpush1.msra.mxu0 %v2461
        %2463 = vmatprep.subr.mxu0 0.0
        %v2464 = vand.u32 %v333, 4294901760
        %v2465 = vsub.f32 %v333, %v2464
        %2466 = vmatpush1.msra.mxu0 %v2465
        %2467 = vmatprep.subr.mxu0 0.0
        %2468 = vmatpush1.msra.mxu0 0.0
        %2469 = vmatprep.subr.mxu0 0.0
        %2470 = vmatpush1.msra.mxu0 0.0
        %2471 = vmatprep.subr.mxu0 0.0
        %2472 = vmatpush1.msra.mxu0 0.0
        %2473 = vmatprep.subr.mxu0 0.0
        %2474 = vmatpush1.msra.mxu0 0.0
        %2475 = vmatprep.subr.mxu0 0.0
        %2476 = vmatpush1.msra.mxu0 0.0
        %2477 = vmatprep.subr.mxu0 0.0
        %2478 = vmatpush1.msra.mxu0 0.0
        %2479 = vmatprep.subr.mxu0 0.0
        %2480 = vmatpush1.msra.mxu0 0.0
        %2481 = vmatprep.subr.mxu0 0.0
        %2482 = vmatpush1.msra.mxu0 0.0
        %2483 = vmatprep.subr.mxu0 0.0
        %2484 = vmatpush1.msra.mxu0 0.0
        %2485 = vmatprep.subr.mxu0 0.0
        %2486 = vmatpush1.msra.mxu0 0.0
        %2487 = vmatprep.subr.mxu0 0.0
        %2488 = vmatpush1.msra.mxu0 0.0
        %2489 = vmatprep.subr.mxu0 0.0
        %2490 = vmatpush1.msra.mxu0 0.0
        %2491 = vmatprep.subr.mxu0 0.0
        %2492 = vmatpush1.msra.mxu0 0.0
        %2493 = vmatprep.subr.mxu0 0.0
        %2494 = vmatpush1.msra.mxu0 0.0
        %2495 = vmatprep.subr.mxu0 0.0
        %2496 = vmatpush1.msra.mxu0 0.0
        %2497 = vmatprep.subr.mxu0 0.0
        %2498 = vmatpush1.msra.mxu0 0.0
        %2499 = vmatprep.subr.mxu0 0.0
        %2500 = vmatpush1.msra.mxu0 0.0
        %2501 = vmatprep.subr.mxu0 0.0
        %2502 = vmatpush1.msra.mxu0 0.0
        %2503 = vmatprep.subr.mxu0 0.0
        %2504 = vmatpush1.msra.mxu0 0.0
        %2505 = vmatprep.subr.mxu0 0.0
        %2506 = vmatpush1.msra.mxu0 0.0
        %2507 = vmatprep.subr.mxu0 0.0
        %2508 = vmatpush1.msra.mxu0 0.0
        %2509 = vmatprep.subr.mxu0 0.0
        %2510 = vmatpush1.msra.mxu0 0.0
        %2511 = vmatprep.subr.mxu0 0.0
        %2512 = vmatpush1.msra.mxu0 0.0
        %2513 = vmatprep.subr.mxu0 0.0
        %2514 = vmatpush1.msra.mxu0 0.0
        %2515 = vmatprep.subr.mxu0 0.0
        %2516 = vmatpush1.msra.mxu0 0.0
        %2517 = vmatprep.subr.mxu0 0.0
        %2518 = vmatpush1.msra.mxu0 0.0
        %2519 = vmatprep.subr.mxu0 0.0
        %2520 = vmatpush1.msra.mxu0 0.0
        %2521 = vmatprep.subr.mxu0 0.0
        %2522 = vmatpush1.msra.mxu0 0.0
        %2523 = vmatprep.subr.mxu0 0.0
        %2524 = vmatpush1.msra.mxu0 0.0
        %2525 = vmatprep.subr.mxu0 0.0
        %2526 = vmatpush1.msra.mxu0 0.0
        %2527 = vmatprep.mubr.f32.mxu0 0.0
        %v2528 = vand.u32 %v2280, 4294901760
        %v2529 = vsub.f32 %v2280, %v2528
        %2530 = vmatmul.mubr.f32.gmra.mrb[0].mxu0 %v2529
        %v2531 = vpop.f32.mrb[0].mxu0
        %v2532 = vadd.f32 %v2450, %v2531
        %v2533 = vpop.f32.mrb[0].mxu0
        %2534 = vmatprep.mubr.f32.mxu0 0.0
        %v2535 = vand.u32 %v2283, 4294901760
        %v2536 = vsub.f32 %v2283, %v2535
        %2537 = vmatmul.mubr.f32.gmra.mrb[0].mxu0 %v2536
        %v2538 = vpop.f32.mrb[0].mxu0
        %v2539 = vadd.f32 %v2456, %v2538
        %v2540 = vpop.f32.mrb[0].mxu0
        %2541 = vdwg.mxu0
        %2542 = vmatprep.subr.mxu0 0.0
        %v2543 = vand.u32 %v332, 4294901760
        %2544 = vmatpush1.msra.mxu0 %v2543
        %2545 = vmatprep.subr.mxu0 0.0
        %v2546 = vand.u32 %v333, 4294901760
        %2547 = vmatpush1.msra.mxu0 %v2546
        %2548 = vmatprep.subr.mxu0 0.0
        %2549 = vmatpush1.msra.mxu0 0.0
        %2550 = vmatprep.subr.mxu0 0.0
        %2551 = vmatpush1.msra.mxu0 0.0
        %2552 = vmatprep.subr.mxu0 0.0
        %2553 = vmatpush1.msra.mxu0 0.0
        %2554 = vmatprep.subr.mxu0 0.0
        %2555 = vmatpush1.msra.mxu0 0.0
        %2556 = vmatprep.subr.mxu0 0.0
        %2557 = vmatpush1.msra.mxu0 0.0
        %2558 = vmatprep.subr.mxu0 0.0
        %2559 = vmatpush1.msra.mxu0 0.0
        %2560 = vmatprep.subr.mxu0 0.0
        %2561 = vmatpush1.msra.mxu0 0.0
        %2562 = vmatprep.subr.mxu0 0.0
        %2563 = vmatpush1.msra.mxu0 0.0
        %2564 = vmatprep.subr.mxu0 0.0
        %2565 = vmatpush1.msra.mxu0 0.0
        %2566 = vmatprep.subr.mxu0 0.0
        %2567 = vmatpush1.msra.mxu0 0.0
        %2568 = vmatprep.subr.mxu0 0.0
        %2569 = vmatpush1.msra.mxu0 0.0
        %2570 = vmatprep.subr.mxu0 0.0
        %2571 = vmatpush1.msra.mxu0 0.0
        %2572 = vmatprep.subr.mxu0 0.0
        %2573 = vmatpush1.msra.mxu0 0.0
        %2574 = vmatprep.subr.mxu0 0.0
        %2575 = vmatpush1.msra.mxu0 0.0
        %2576 = vmatprep.subr.mxu0 0.0
        %2577 = vmatpush1.msra.mxu0 0.0
        %2578 = vmatprep.subr.mxu0 0.0
        %2579 = vmatpush1.msra.mxu0 0.0
        %2580 = vmatprep.subr.mxu0 0.0
        %2581 = vmatpush1.msra.mxu0 0.0
        %2582 = vmatprep.subr.mxu0 0.0
        %2583 = vmatpush1.msra.mxu0 0.0
        %2584 = vmatprep.subr.mxu0 0.0
        %2585 = vmatpush1.msra.mxu0 0.0
        %2586 = vmatprep.subr.mxu0 0.0
        %2587 = vmatpush1.msra.mxu0 0.0
        %2588 = vmatprep.subr.mxu0 0.0
        %2589 = vmatpush1.msra.mxu0 0.0
        %2590 = vmatprep.subr.mxu0 0.0
        %2591 = vmatpush1.msra.mxu0 0.0
        %2592 = vmatprep.subr.mxu0 0.0
        %2593 = vmatpush1.msra.mxu0 0.0
        %2594 = vmatprep.subr.mxu0 0.0
        %2595 = vmatpush1.msra.mxu0 0.0
        %2596 = vmatprep.subr.mxu0 0.0
        %2597 = vmatpush1.msra.mxu0 0.0
        %2598 = vmatprep.subr.mxu0 0.0
        %2599 = vmatpush1.msra.mxu0 0.0
        %2600 = vmatprep.subr.mxu0 0.0
        %2601 = vmatpush1.msra.mxu0 0.0
        %2602 = vmatprep.subr.mxu0 0.0
        %2603 = vmatpush1.msra.mxu0 0.0
        %2604 = vmatprep.subr.mxu0 0.0
        %2605 = vmatpush1.msra.mxu0 0.0
        %2606 = vmatprep.subr.mxu0 0.0
        %2607 = vmatpush1.msra.mxu0 0.0
        %2608 = vmatprep.mubr.f32.mxu0 0.0
        %v2609 = vand.u32 %v2280, 4294901760
        %v2610 = vsub.f32 %v2280, %v2609
        %v2611 = vand.u32 %v2610, 4294901760
        %2612 = vmatmul.mubr.f32.gmra.mrb[0].mxu0 %v2611
        %v2613 = vpop.f32.mrb[0].mxu0
        %v2614 = vadd.f32 %v2532, %v2613
        %v2615 = vpop.f32.mrb[0].mxu0
        %2616 = vmatprep.mubr.f32.mxu0 0.0
        %v2617 = vand.u32 %v2283, 4294901760
        %v2618 = vsub.f32 %v2283, %v2617
        %v2619 = vand.u32 %v2618, 4294901760
        %2620 = vmatmul.mubr.f32.gmra.mrb[0].mxu0 %v2619
        %v2621 = vpop.f32.mrb[0].mxu0
        %v2622 = vadd.f32 %v2539, %v2621
        %v2623 = vpop.f32.mrb[0].mxu0
        %2624 = vdwg.mxu0
        %2625 = vmatprep.subr.mxu0 0.0
        %v2626 = vand.u32 %v332, 4294901760
        %v2627 = vsub.f32 %v332, %v2626
        %v2628 = vand.u32 %v2627, 4294901760
        %2629 = vmatpush1.msra.mxu0 %v2628
        %2630 = vmatprep.subr.mxu0 0.0
        %v2631 = vand.u32 %v333, 4294901760
        %v2632 = vsub.f32 %v333, %v2631
        %v2633 = vand.u32 %v2632, 4294901760
        %2634 = vmatpush1.msra.mxu0 %v2633
        %2635 = vmatprep.subr.mxu0 0.0
        %2636 = vmatpush1.msra.mxu0 0.0
        %2637 = vmatprep.subr.mxu0 0.0
        %2638 = vmatpush1.msra.mxu0 0.0
        %2639 = vmatprep.subr.mxu0 0.0
        %2640 = vmatpush1.msra.mxu0 0.0
        %2641 = vmatprep.subr.mxu0 0.0
        %2642 = vmatpush1.msra.mxu0 0.0
        %2643 = vmatprep.subr.mxu0 0.0
        %2644 = vmatpush1.msra.mxu0 0.0
        %2645 = vmatprep.subr.mxu0 0.0
        %2646 = vmatpush1.msra.mxu0 0.0
        %2647 = vmatprep.subr.mxu0 0.0
        %2648 = vmatpush1.msra.mxu0 0.0
        %2649 = vmatprep.subr.mxu0 0.0
        %2650 = vmatpush1.msra.mxu0 0.0
        %2651 = vmatprep.subr.mxu0 0.0
        %2652 = vmatpush1.msra.mxu0 0.0
        %2653 = vmatprep.subr.mxu0 0.0
        %2654 = vmatpush1.msra.mxu0 0.0
        %2655 = vmatprep.subr.mxu0 0.0
        %2656 = vmatpush1.msra.mxu0 0.0
        %2657 = vmatprep.subr.mxu0 0.0
        %2658 = vmatpush1.msra.mxu0 0.0
        %2659 = vmatprep.subr.mxu0 0.0
        %2660 = vmatpush1.msra.mxu0 0.0
        %2661 = vmatprep.subr.mxu0 0.0
        %2662 = vmatpush1.msra.mxu0 0.0
        %2663 = vmatprep.subr.mxu0 0.0
        %2664 = vmatpush1.msra.mxu0 0.0
        %2665 = vmatprep.subr.mxu0 0.0
        %2666 = vmatpush1.msra.mxu0 0.0
        %2667 = vmatprep.subr.mxu0 0.0
        %2668 = vmatpush1.msra.mxu0 0.0
        %2669 = vmatprep.subr.mxu0 0.0
        %2670 = vmatpush1.msra.mxu0 0.0
        %2671 = vmatprep.subr.mxu0 0.0
        %2672 = vmatpush1.msra.mxu0 0.0
        %2673 = vmatprep.subr.mxu0 0.0
        %2674 = vmatpush1.msra.mxu0 0.0
        %2675 = vmatprep.subr.mxu0 0.0
        %2676 = vmatpush1.msra.mxu0 0.0
        %2677 = vmatprep.subr.mxu0 0.0
        %2678 = vmatpush1.msra.mxu0 0.0
        %2679 = vmatprep.subr.mxu0 0.0
        %2680 = vmatpush1.msra.mxu0 0.0
        %2681 = vmatprep.subr.mxu0 0.0
        %2682 = vmatpush1.msra.mxu0 0.0
        %2683 = vmatprep.subr.mxu0 0.0
        %2684 = vmatpush1.msra.mxu0 0.0
        %2685 = vmatprep.subr.mxu0 0.0
        %2686 = vmatpush1.msra.mxu0 0.0
        %2687 = vmatprep.subr.mxu0 0.0
        %2688 = vmatpush1.msra.mxu0 0.0
        %2689 = vmatprep.subr.mxu0 0.0
        %2690 = vmatpush1.msra.mxu0 0.0
        %2691 = vmatprep.subr.mxu0 0.0
        %2692 = vmatpush1.msra.mxu0 0.0
        %2693 = vmatprep.subr.mxu0 0.0
        %2694 = vmatpush1.msra.mxu0 0.0
        %2695 = vmatprep.mubr.f32.mxu0 0.0
        %v2696 = vand.u32 %v2280, 4294901760
        %2697 = vmatmul.mubr.f32.gmra.mrb[0].mxu0 %v2696
        %v2698 = vpop.f32.mrb[0].mxu0
        %v2699 = vadd.f32 %v2614, %v2698
        %v2700 = vpop.f32.mrb[0].mxu0
        %2701 = vmatprep.mubr.f32.mxu0 0.0
        %v2702 = vand.u32 %v2283, 4294901760
        %2703 = vmatmul.mubr.f32.gmra.mrb[0].mxu0 %v2702
        %v2704 = vpop.f32.mrb[0].mxu0
        %v2705 = vadd.f32 %v2622, %v2704
        %v2706 = vpop.f32.mrb[0].mxu0
        %2707 = vdwg.mxu0
        %2708 = vmatprep.subr.mxu0 0.0
        %v2709 = vand.u32 %v332, 4294901760
        %2710 = vmatpush1.msra.mxu0 %v2709
        %2711 = vmatprep.subr.mxu0 0.0
        %v2712 = vand.u32 %v333, 4294901760
        %2713 = vmatpush1.msra.mxu0 %v2712
        %2714 = vmatprep.subr.mxu0 0.0
        %2715 = vmatpush1.msra.mxu0 0.0
        %2716 = vmatprep.subr.mxu0 0.0
        %2717 = vmatpush1.msra.mxu0 0.0
        %2718 = vmatprep.subr.mxu0 0.0
        %2719 = vmatpush1.msra.mxu0 0.0
        %2720 = vmatprep.subr.mxu0 0.0
        %2721 = vmatpush1.msra.mxu0 0.0
        %2722 = vmatprep.subr.mxu0 0.0
        %2723 = vmatpush1.msra.mxu0 0.0
        %2724 = vmatprep.subr.mxu0 0.0
        %2725 = vmatpush1.msra.mxu0 0.0
        %2726 = vmatprep.subr.mxu0 0.0
        %2727 = vmatpush1.msra.mxu0 0.0
        %2728 = vmatprep.subr.mxu0 0.0
        %2729 = vmatpush1.msra.mxu0 0.0
        %2730 = vmatprep.subr.mxu0 0.0
        %2731 = vmatpush1.msra.mxu0 0.0
        %2732 = vmatprep.subr.mxu0 0.0
        %2733 = vmatpush1.msra.mxu0 0.0
        %2734 = vmatprep.subr.mxu0 0.0
        %2735 = vmatpush1.msra.mxu0 0.0
        %2736 = vmatprep.subr.mxu0 0.0
        %2737 = vmatpush1.msra.mxu0 0.0
        %2738 = vmatprep.subr.mxu0 0.0
        %2739 = vmatpush1.msra.mxu0 0.0
        %2740 = vmatprep.subr.mxu0 0.0
        %2741 = vmatpush1.msra.mxu0 0.0
        %2742 = vmatprep.subr.mxu0 0.0
        %2743 = vmatpush1.msra.mxu0 0.0
        %2744 = vmatprep.subr.mxu0 0.0
        %2745 = vmatpush1.msra.mxu0 0.0
        %2746 = vmatprep.subr.mxu0 0.0
        %2747 = vmatpush1.msra.mxu0 0.0
        %2748 = vmatprep.subr.mxu0 0.0
        %2749 = vmatpush1.msra.mxu0 0.0
        %2750 = vmatprep.subr.mxu0 0.0
        %2751 = vmatpush1.msra.mxu0 0.0
        %2752 = vmatprep.subr.mxu0 0.0
        %2753 = vmatpush1.msra.mxu0 0.0
        %2754 = vmatprep.subr.mxu0 0.0
        %2755 = vmatpush1.msra.mxu0 0.0
        %2756 = vmatprep.subr.mxu0 0.0
        %2757 = vmatpush1.msra.mxu0 0.0
        %2758 = vmatprep.subr.mxu0 0.0
        %2759 = vmatpush1.msra.mxu0 0.0
        %2760 = vmatprep.subr.mxu0 0.0
        %2761 = vmatpush1.msra.mxu0 0.0
        %2762 = vmatprep.subr.mxu0 0.0
        %2763 = vmatpush1.msra.mxu0 0.0
        %2764 = vmatprep.subr.mxu0 0.0
        %2765 = vmatpush1.msra.mxu0 0.0
        %2766 = vmatprep.subr.mxu0 0.0
        %2767 = vmatpush1.msra.mxu0 0.0
        %2768 = vmatprep.subr.mxu0 0.0
        %2769 = vmatpush1.msra.mxu0 0.0
        %2770 = vmatprep.subr.mxu0 0.0
        %2771 = vmatpush1.msra.mxu0 0.0
        %2772 = vmatprep.subr.mxu0 0.0
        %2773 = vmatpush1.msra.mxu0 0.0
        %2774 = vmatprep.mubr.f32.mxu0 0.0
        %v2775 = vand.u32 %v2280, 4294901760
        %2776 = vmatmul.mubr.f32.gmra.mrb[0].mxu0 %v2775
        %v2777 = vpop.f32.mrb[0].mxu0
        %v2778 = vadd.f32 %v2699, %v2777
        %v2779 = vpop.f32.mrb[0].mxu0
        %2780 = vmatprep.mubr.f32.mxu0 0.0
        %v2781 = vand.u32 %v2283, 4294901760
        %2782 = vmatmul.mubr.f32.gmra.mrb[0].mxu0 %v2781
        %v2783 = vpop.f32.mrb[0].mxu0
        %v2784 = vadd.f32 %v2705, %v2783
        %v2785 = vpop.f32.mrb[0].mxu0
        %2786 = vdwg.mxu0
        %2787 = vmatprep.subr.mxu0 0.0
        %v2788 = vand.u32 %v2778, 4294901760
        %2789 = vmatpush1.msra.mxu0 %v2788
        %2790 = vmatprep.subr.mxu0 0.0
        %v2791 = vand.u32 %v2784, 4294901760
        %2792 = vmatpush1.msra.mxu0 %v2791
        %2793 = vmatprep.subr.mxu0 0.0
        %2794 = vmatpush1.msra.mxu0 0.0
        %2795 = vmatprep.subr.mxu0 0.0
        %2796 = vmatpush1.msra.mxu0 0.0
        %2797 = vmatprep.subr.mxu0 0.0
        %2798 = vmatpush1.msra.mxu0 0.0
        %2799 = vmatprep.subr.mxu0 0.0
        %2800 = vmatpush1.msra.mxu0 0.0
        %2801 = vmatprep.subr.mxu0 0.0
        %2802 = vmatpush1.msra.mxu0 0.0
        %2803 = vmatprep.subr.mxu0 0.0
        %2804 = vmatpush1.msra.mxu0 0.0
        %2805 = vmatprep.subr.mxu0 0.0
        %2806 = vmatpush1.msra.mxu0 0.0
        %2807 = vmatprep.subr.mxu0 0.0
        %2808 = vmatpush1.msra.mxu0 0.0
        %2809 = vmatprep.subr.mxu0 0.0
        %2810 = vmatpush1.msra.mxu0 0.0
        %2811 = vmatprep.subr.mxu0 0.0
        %2812 = vmatpush1.msra.mxu0 0.0
        %2813 = vmatprep.subr.mxu0 0.0
        %2814 = vmatpush1.msra.mxu0 0.0
        %2815 = vmatprep.subr.mxu0 0.0
        %2816 = vmatpush1.msra.mxu0 0.0
        %2817 = vmatprep.subr.mxu0 0.0
        %2818 = vmatpush1.msra.mxu0 0.0
        %2819 = vmatprep.subr.mxu0 0.0
        %2820 = vmatpush1.msra.mxu0 0.0
        %2821 = vmatprep.subr.mxu0 0.0
        %2822 = vmatpush1.msra.mxu0 0.0
        %2823 = vmatprep.subr.mxu0 0.0
        %2824 = vmatpush1.msra.mxu0 0.0
        %2825 = vmatprep.subr.mxu0 0.0
        %2826 = vmatpush1.msra.mxu0 0.0
        %2827 = vmatprep.subr.mxu0 0.0
        %2828 = vmatpush1.msra.mxu0 0.0
        %2829 = vmatprep.subr.mxu0 0.0
        %2830 = vmatpush1.msra.mxu0 0.0
        %2831 = vmatprep.subr.mxu0 0.0
        %2832 = vmatpush1.msra.mxu0 0.0
        %2833 = vmatprep.subr.mxu0 0.0
        %2834 = vmatpush1.msra.mxu0 0.0
        %2835 = vmatprep.subr.mxu0 0.0
        %2836 = vmatpush1.msra.mxu0 0.0
        %2837 = vmatprep.subr.mxu0 0.0
        %2838 = vmatpush1.msra.mxu0 0.0
        %2839 = vmatprep.subr.mxu0 0.0
        %2840 = vmatpush1.msra.mxu0 0.0
        %2841 = vmatprep.subr.mxu0 0.0
        %2842 = vmatpush1.msra.mxu0 0.0
        %2843 = vmatprep.subr.mxu0 0.0
        %2844 = vmatpush1.msra.mxu0 0.0
        %2845 = vmatprep.subr.mxu0 0.0
        %2846 = vmatpush1.msra.mxu0 0.0
        %2847 = vmatprep.subr.mxu0 0.0
        %2848 = vmatpush1.msra.mxu0 0.0
        %2849 = vmatprep.subr.mxu0 0.0
        %2850 = vmatpush1.msra.mxu0 0.0
        %2851 = vmatprep.subr.mxu0 0.0
        %2852 = vmatpush1.msra.mxu0 0.0
        %2853 = vmatprep.mubr.f32.mxu0 0.0
        %v2854 = vand.u32 %v849, 4294901760
        %v2855 = vsub.f32 %v849, %v2854
        %v2856 = vand.u32 %v2855, 4294901760
        %v2857 = vsub.f32 %v2855, %v2856
        %v2858 = vand.u32 %v2857, 4294901760
        %2859 = vmatmul.mubr.f32.gmra.mrb[0].mxu0 %v2858
        %v2860 = vpop.f32.mrb[0].mxu0
        %v2861 = vadd.f32 0.0, %v2860
        %v2862 = vpop.f32.mrb[0].mxu0
        %2863 = vdwg.mxu0
        %2864 = vmatprep.subr.mxu0 0.0
        %v2865 = vand.u32 %v2778, 4294901760
        %v2866 = vsub.f32 %v2778, %v2865
        %v2867 = vand.u32 %v2866, 4294901760
        %v2868 = vsub.f32 %v2866, %v2867
        %v2869 = vand.u32 %v2868, 4294901760
        %2870 = vmatpush1.msra.mxu0 %v2869
        %2871 = vmatprep.subr.mxu0 0.0
        %v2872 = vand.u32 %v2784, 4294901760
        %v2873 = vsub.f32 %v2784, %v2872
        %v2874 = vand.u32 %v2873, 4294901760
        %v2875 = vsub.f32 %v2873, %v2874
        %v2876 = vand.u32 %v2875, 4294901760
        %2877 = vmatpush1.msra.mxu0 %v2876
        %2878 = vmatprep.subr.mxu0 0.0
        %2879 = vmatpush1.msra.mxu0 0.0
        %2880 = vmatprep.subr.mxu0 0.0
        %2881 = vmatpush1.msra.mxu0 0.0
        %2882 = vmatprep.subr.mxu0 0.0
        %2883 = vmatpush1.msra.mxu0 0.0
        %2884 = vmatprep.subr.mxu0 0.0
        %2885 = vmatpush1.msra.mxu0 0.0
        %2886 = vmatprep.subr.mxu0 0.0
        %2887 = vmatpush1.msra.mxu0 0.0
        %2888 = vmatprep.subr.mxu0 0.0
        %2889 = vmatpush1.msra.mxu0 0.0
        %2890 = vmatprep.subr.mxu0 0.0
        %2891 = vmatpush1.msra.mxu0 0.0
        %2892 = vmatprep.subr.mxu0 0.0
        %2893 = vmatpush1.msra.mxu0 0.0
        %2894 = vmatprep.subr.mxu0 0.0
        %2895 = vmatpush1.msra.mxu0 0.0
        %2896 = vmatprep.subr.mxu0 0.0
        %2897 = vmatpush1.msra.mxu0 0.0
        %2898 = vmatprep.subr.mxu0 0.0
        %2899 = vmatpush1.msra.mxu0 0.0
        %2900 = vmatprep.subr.mxu0 0.0
        %2901 = vmatpush1.msra.mxu0 0.0
        %2902 = vmatprep.subr.mxu0 0.0
        %2903 = vmatpush1.msra.mxu0 0.0
        %2904 = vmatprep.subr.mxu0 0.0
        %2905 = vmatpush1.msra.mxu0 0.0
        %2906 = vmatprep.subr.mxu0 0.0
        %2907 = vmatpush1.msra.mxu0 0.0
        %2908 = vmatprep.subr.mxu0 0.0
        %2909 = vmatpush1.msra.mxu0 0.0
        %2910 = vmatprep.subr.mxu0 0.0
        %2911 = vmatpush1.msra.mxu0 0.0
        %2912 = vmatprep.subr.mxu0 0.0
        %2913 = vmatpush1.msra.mxu0 0.0
        %2914 = vmatprep.subr.mxu0 0.0
        %2915 = vmatpush1.msra.mxu0 0.0
        %2916 = vmatprep.subr.mxu0 0.0
        %2917 = vmatpush1.msra.mxu0 0.0
        %2918 = vmatprep.subr.mxu0 0.0
        %2919 = vmatpush1.msra.mxu0 0.0
        %2920 = vmatprep.subr.mxu0 0.0
        %2921 = vmatpush1.msra.mxu0 0.0
        %2922 = vmatprep.subr.mxu0 0.0
        %2923 = vmatpush1.msra.mxu0 0.0
        %2924 = vmatprep.subr.mxu0 0.0
        %2925 = vmatpush1.msra.mxu0 0.0
        %2926 = vmatprep.subr.mxu0 0.0
        %2927 = vmatpush1.msra.mxu0 0.0
        %2928 = vmatprep.subr.mxu0 0.0
        %2929 = vmatpush1.msra.mxu0 0.0
        %2930 = vmatprep.subr.mxu0 0.0
        %2931 = vmatpush1.msra.mxu0 0.0
        %2932 = vmatprep.subr.mxu0 0.0
        %2933 = vmatpush1.msra.mxu0 0.0
        %2934 = vmatprep.subr.mxu0 0.0
        %2935 = vmatpush1.msra.mxu0 0.0
        %2936 = vmatprep.subr.mxu0 0.0
        %2937 = vmatpush1.msra.mxu0 0.0
        %2938 = vmatprep.mubr.f32.mxu0 0.0
        %v2939 = vand.u32 %v849, 4294901760
        %2940 = vmatmul.mubr.f32.gmra.mrb[0].mxu0 %v2939
        %v2941 = vpop.f32.mrb[0].mxu0
        %v2942 = vadd.f32 %v2861, %v2941
        %v2943 = vpop.f32.mrb[0].mxu0
        %2944 = vdwg.mxu0
        %2945 = vmatprep.subr.mxu0 0.0
        %v2946 = vand.u32 %v2778, 4294901760
        %v2947 = vsub.f32 %v2778, %v2946
        %2948 = vmatpush1.msra.mxu0 %v2947
        %2949 = vmatprep.subr.mxu0 0.0
        %v2950 = vand.u32 %v2784, 4294901760
        %v2951 = vsub.f32 %v2784, %v2950
        %2952 = vmatpush1.msra.mxu0 %v2951
        %2953 = vmatprep.subr.mxu0 0.0
        %2954 = vmatpush1.msra.mxu0 0.0
        %2955 = vmatprep.subr.mxu0 0.0
        %2956 = vmatpush1.msra.mxu0 0.0
        %2957 = vmatprep.subr.mxu0 0.0
        %2958 = vmatpush1.msra.mxu0 0.0
        %2959 = vmatprep.subr.mxu0 0.0
        %2960 = vmatpush1.msra.mxu0 0.0
        %2961 = vmatprep.subr.mxu0 0.0
        %2962 = vmatpush1.msra.mxu0 0.0
        %2963 = vmatprep.subr.mxu0 0.0
        %2964 = vmatpush1.msra.mxu0 0.0
        %2965 = vmatprep.subr.mxu0 0.0
        %2966 = vmatpush1.msra.mxu0 0.0
        %2967 = vmatprep.subr.mxu0 0.0
        %2968 = vmatpush1.msra.mxu0 0.0
        %2969 = vmatprep.subr.mxu0 0.0
        %2970 = vmatpush1.msra.mxu0 0.0
        %2971 = vmatprep.subr.mxu0 0.0
        %2972 = vmatpush1.msra.mxu0 0.0
        %2973 = vmatprep.subr.mxu0 0.0
        %2974 = vmatpush1.msra.mxu0 0.0
        %2975 = vmatprep.subr.mxu0 0.0
        %2976 = vmatpush1.msra.mxu0 0.0
        %2977 = vmatprep.subr.mxu0 0.0
        %2978 = vmatpush1.msra.mxu0 0.0
        %2979 = vmatprep.subr.mxu0 0.0
        %2980 = vmatpush1.msra.mxu0 0.0
        %2981 = vmatprep.subr.mxu0 0.0
        %2982 = vmatpush1.msra.mxu0 0.0
        %2983 = vmatprep.subr.mxu0 0.0
        %2984 = vmatpush1.msra.mxu0 0.0
        %2985 = vmatprep.subr.mxu0 0.0
        %2986 = vmatpush1.msra.mxu0 0.0
        %2987 = vmatprep.subr.mxu0 0.0
        %2988 = vmatpush1.msra.mxu0 0.0
        %2989 = vmatprep.subr.mxu0 0.0
        %2990 = vmatpush1.msra.mxu0 0.0
        %2991 = vmatprep.subr.mxu0 0.0
        %2992 = vmatpush1.msra.mxu0 0.0
        %2993 = vmatprep.subr.mxu0 0.0
        %2994 = vmatpush1.msra.mxu0 0.0
        %2995 = vmatprep.subr.mxu0 0.0
        %2996 = vmatpush1.msra.mxu0 0.0
        %2997 = vmatprep.subr.mxu0 0.0
        %2998 = vmatpush1.msra.mxu0 0.0
        %2999 = vmatprep.subr.mxu0 0.0
        %3000 = vmatpush1.msra.mxu0 0.0
        %3001 = vmatprep.subr.mxu0 0.0
        %3002 = vmatpush1.msra.mxu0 0.0
        %3003 = vmatprep.subr.mxu0 0.0
        %3004 = vmatpush1.msra.mxu0 0.0
        %3005 = vmatprep.subr.mxu0 0.0
        %3006 = vmatpush1.msra.mxu0 0.0
        %3007 = vmatprep.subr.mxu0 0.0
        %3008 = vmatpush1.msra.mxu0 0.0
        %3009 = vmatprep.subr.mxu0 0.0
        %3010 = vmatpush1.msra.mxu0 0.0
        %3011 = vmatprep.subr.mxu0 0.0
        %3012 = vmatpush1.msra.mxu0 0.0
        %3013 = vmatprep.mubr.f32.mxu0 0.0
        %v3014 = vand.u32 %v849, 4294901760
        %v3015 = vsub.f32 %v849, %v3014
        %3016 = vmatmul.mubr.f32.gmra.mrb[0].mxu0 %v3015
        %v3017 = vpop.f32.mrb[0].mxu0
        %v3018 = vadd.f32 %v2942, %v3017
        %v3019 = vpop.f32.mrb[0].mxu0
        %3020 = vdwg.mxu0
        %3021 = vmatprep.subr.mxu0 0.0
        %v3022 = vand.u32 %v2778, 4294901760
        %3023 = vmatpush1.msra.mxu0 %v3022
        %3024 = vmatprep.subr.mxu0 0.0
        %v3025 = vand.u32 %v2784, 4294901760
        %3026 = vmatpush1.msra.mxu0 %v3025
        %3027 = vmatprep.subr.mxu0 0.0
        %3028 = vmatpush1.msra.mxu0 0.0
        %3029 = vmatprep.subr.mxu0 0.0
        %3030 = vmatpush1.msra.mxu0 0.0
        %3031 = vmatprep.subr.mxu0 0.0
        %3032 = vmatpush1.msra.mxu0 0.0
        %3033 = vmatprep.subr.mxu0 0.0
        %3034 = vmatpush1.msra.mxu0 0.0
        %3035 = vmatprep.subr.mxu0 0.0
        %3036 = vmatpush1.msra.mxu0 0.0
        %3037 = vmatprep.subr.mxu0 0.0
        %3038 = vmatpush1.msra.mxu0 0.0
        %3039 = vmatprep.subr.mxu0 0.0
        %3040 = vmatpush1.msra.mxu0 0.0
        %3041 = vmatprep.subr.mxu0 0.0
        %3042 = vmatpush1.msra.mxu0 0.0
        %3043 = vmatprep.subr.mxu0 0.0
        %3044 = vmatpush1.msra.mxu0 0.0
        %3045 = vmatprep.subr.mxu0 0.0
        %3046 = vmatpush1.msra.mxu0 0.0
        %3047 = vmatprep.subr.mxu0 0.0
        %3048 = vmatpush1.msra.mxu0 0.0
        %3049 = vmatprep.subr.mxu0 0.0
        %3050 = vmatpush1.msra.mxu0 0.0
        %3051 = vmatprep.subr.mxu0 0.0
        %3052 = vmatpush1.msra.mxu0 0.0
        %3053 = vmatprep.subr.mxu0 0.0
        %3054 = vmatpush1.msra.mxu0 0.0
        %3055 = vmatprep.subr.mxu0 0.0
        %3056 = vmatpush1.msra.mxu0 0.0
        %3057 = vmatprep.subr.mxu0 0.0
        %3058 = vmatpush1.msra.mxu0 0.0
        %3059 = vmatprep.subr.mxu0 0.0
        %3060 = vmatpush1.msra.mxu0 0.0
        %3061 = vmatprep.subr.mxu0 0.0
        %3062 = vmatpush1.msra.mxu0 0.0
        %3063 = vmatprep.subr.mxu0 0.0
        %3064 = vmatpush1.msra.mxu0 0.0
        %3065 = vmatprep.subr.mxu0 0.0
        %3066 = vmatpush1.msra.mxu0 0.0
        %3067 = vmatprep.subr.mxu0 0.0
        %3068 = vmatpush1.msra.mxu0 0.0
        %3069 = vmatprep.subr.mxu0 0.0
        %3070 = vmatpush1.msra.mxu0 0.0
        %3071 = vmatprep.subr.mxu0 0.0
        %3072 = vmatpush1.msra.mxu0 0.0
        %3073 = vmatprep.subr.mxu0 0.0
        %3074 = vmatpush1.msra.mxu0 0.0
        %3075 = vmatprep.subr.mxu0 0.0
        %3076 = vmatpush1.msra.mxu0 0.0
        %3077 = vmatprep.subr.mxu0 0.0
        %3078 = vmatpush1.msra.mxu0 0.0
        %3079 = vmatprep.subr.mxu0 0.0
        %3080 = vmatpush1.msra.mxu0 0.0
        %3081 = vmatprep.subr.mxu0 0.0
        %3082 = vmatpush1.msra.mxu0 0.0
        %3083 = vmatprep.subr.mxu0 0.0
        %3084 = vmatpush1.msra.mxu0 0.0
        %3085 = vmatprep.subr.mxu0 0.0
        %3086 = vmatpush1.msra.mxu0 0.0
        %3087 = vmatprep.mubr.f32.mxu0 0.0
        %v3088 = vand.u32 %v849, 4294901760
        %v3089 = vsub.f32 %v849, %v3088
        %v3090 = vand.u32 %v3089, 4294901760
        %3091 = vmatmul.mubr.f32.gmra.mrb[0].mxu0 %v3090
        %v3092 = vpop.f32.mrb[0].mxu0
        %v3093 = vadd.f32 %v3018, %v3092
        %v3094 = vpop.f32.mrb[0].mxu0
        %3095 = vdwg.mxu0
        %3096 = vmatprep.subr.mxu0 0.0
        %v3097 = vand.u32 %v2778, 4294901760
        %v3098 = vsub.f32 %v2778, %v3097
        %v3099 = vand.u32 %v3098, 4294901760
        %3100 = vmatpush1.msra.mxu0 %v3099
        %3101 = vmatprep.subr.mxu0 0.0
        %v3102 = vand.u32 %v2784, 4294901760
        %v3103 = vsub.f32 %v2784, %v3102
        %v3104 = vand.u32 %v3103, 4294901760
        %3105 = vmatpush1.msra.mxu0 %v3104
        %3106 = vmatprep.subr.mxu0 0.0
        %3107 = vmatpush1.msra.mxu0 0.0
        %3108 = vmatprep.subr.mxu0 0.0
        %3109 = vmatpush1.msra.mxu0 0.0
        %3110 = vmatprep.subr.mxu0 0.0
        %3111 = vmatpush1.msra.mxu0 0.0
        %3112 = vmatprep.subr.mxu0 0.0
        %3113 = vmatpush1.msra.mxu0 0.0
        %3114 = vmatprep.subr.mxu0 0.0
        %3115 = vmatpush1.msra.mxu0 0.0
        %3116 = vmatprep.subr.mxu0 0.0
        %3117 = vmatpush1.msra.mxu0 0.0
        %3118 = vmatprep.subr.mxu0 0.0
        %3119 = vmatpush1.msra.mxu0 0.0
        %3120 = vmatprep.subr.mxu0 0.0
        %3121 = vmatpush1.msra.mxu0 0.0
        %3122 = vmatprep.subr.mxu0 0.0
        %3123 = vmatpush1.msra.mxu0 0.0
        %3124 = vmatprep.subr.mxu0 0.0
        %3125 = vmatpush1.msra.mxu0 0.0
        %3126 = vmatprep.subr.mxu0 0.0
        %3127 = vmatpush1.msra.mxu0 0.0
        %3128 = vmatprep.subr.mxu0 0.0
        %3129 = vmatpush1.msra.mxu0 0.0
        %3130 = vmatprep.subr.mxu0 0.0
        %3131 = vmatpush1.msra.mxu0 0.0
        %3132 = vmatprep.subr.mxu0 0.0
        %3133 = vmatpush1.msra.mxu0 0.0
        %3134 = vmatprep.subr.mxu0 0.0
        %3135 = vmatpush1.msra.mxu0 0.0
        %3136 = vmatprep.subr.mxu0 0.0
        %3137 = vmatpush1.msra.mxu0 0.0
        %3138 = vmatprep.subr.mxu0 0.0
        %3139 = vmatpush1.msra.mxu0 0.0
        %3140 = vmatprep.subr.mxu0 0.0
        %3141 = vmatpush1.msra.mxu0 0.0
        %3142 = vmatprep.subr.mxu0 0.0
        %3143 = vmatpush1.msra.mxu0 0.0
        %3144 = vmatprep.subr.mxu0 0.0
        %3145 = vmatpush1.msra.mxu0 0.0
        %3146 = vmatprep.subr.mxu0 0.0
        %3147 = vmatpush1.msra.mxu0 0.0
        %3148 = vmatprep.subr.mxu0 0.0
        %3149 = vmatpush1.msra.mxu0 0.0
        %3150 = vmatprep.subr.mxu0 0.0
        %3151 = vmatpush1.msra.mxu0 0.0
        %3152 = vmatprep.subr.mxu0 0.0
        %3153 = vmatpush1.msra.mxu0 0.0
        %3154 = vmatprep.subr.mxu0 0.0
        %3155 = vmatpush1.msra.mxu0 0.0
        %3156 = vmatprep.subr.mxu0 0.0
        %3157 = vmatpush1.msra.mxu0 0.0
        %3158 = vmatprep.subr.mxu0 0.0
        %3159 = vmatpush1.msra.mxu0 0.0
        %3160 = vmatprep.subr.mxu0 0.0
        %3161 = vmatpush1.msra.mxu0 0.0
        %3162 = vmatprep.subr.mxu0 0.0
        %3163 = vmatpush1.msra.mxu0 0.0
        %3164 = vmatprep.subr.mxu0 0.0
        %3165 = vmatpush1.msra.mxu0 0.0
        %3166 = vmatprep.mubr.f32.mxu0 0.0
        %v3167 = vand.u32 %v849, 4294901760
        %3168 = vmatmul.mubr.f32.gmra.mrb[0].mxu0 %v3167
        %v3169 = vpop.f32.mrb[0].mxu0
        %v3170 = vadd.f32 %v3093, %v3169
        %v3171 = vpop.f32.mrb[0].mxu0
        %3172 = vdwg.mxu0
        %3173 = vmatprep.subr.mxu0 0.0
        %v3174 = vand.u32 %v2778, 4294901760
        %3175 = vmatpush1.msra.mxu0 %v3174
        %3176 = vmatprep.subr.mxu0 0.0
        %v3177 = vand.u32 %v2784, 4294901760
        %3178 = vmatpush1.msra.mxu0 %v3177
        %3179 = vmatprep.subr.mxu0 0.0
        %3180 = vmatpush1.msra.mxu0 0.0
        %3181 = vmatprep.subr.mxu0 0.0
        %3182 = vmatpush1.msra.mxu0 0.0
        %3183 = vmatprep.subr.mxu0 0.0
        %3184 = vmatpush1.msra.mxu0 0.0
        %3185 = vmatprep.subr.mxu0 0.0
        %3186 = vmatpush1.msra.mxu0 0.0
        %3187 = vmatprep.subr.mxu0 0.0
        %3188 = vmatpush1.msra.mxu0 0.0
        %3189 = vmatprep.subr.mxu0 0.0
        %3190 = vmatpush1.msra.mxu0 0.0
        %3191 = vmatprep.subr.mxu0 0.0
        %3192 = vmatpush1.msra.mxu0 0.0
        %3193 = vmatprep.subr.mxu0 0.0
        %3194 = vmatpush1.msra.mxu0 0.0
        %3195 = vmatprep.subr.mxu0 0.0
        %3196 = vmatpush1.msra.mxu0 0.0
        %3197 = vmatprep.subr.mxu0 0.0
        %3198 = vmatpush1.msra.mxu0 0.0
        %3199 = vmatprep.subr.mxu0 0.0
        %3200 = vmatpush1.msra.mxu0 0.0
        %3201 = vmatprep.subr.mxu0 0.0
        %3202 = vmatpush1.msra.mxu0 0.0
        %3203 = vmatprep.subr.mxu0 0.0
        %3204 = vmatpush1.msra.mxu0 0.0
        %3205 = vmatprep.subr.mxu0 0.0
        %3206 = vmatpush1.msra.mxu0 0.0
        %3207 = vmatprep.subr.mxu0 0.0
        %3208 = vmatpush1.msra.mxu0 0.0
        %3209 = vmatprep.subr.mxu0 0.0
        %3210 = vmatpush1.msra.mxu0 0.0
        %3211 = vmatprep.subr.mxu0 0.0
        %3212 = vmatpush1.msra.mxu0 0.0
        %3213 = vmatprep.subr.mxu0 0.0
        %3214 = vmatpush1.msra.mxu0 0.0
        %3215 = vmatprep.subr.mxu0 0.0
        %3216 = vmatpush1.msra.mxu0 0.0
        %3217 = vmatprep.subr.mxu0 0.0
        %3218 = vmatpush1.msra.mxu0 0.0
        %3219 = vmatprep.subr.mxu0 0.0
        %3220 = vmatpush1.msra.mxu0 0.0
        %3221 = vmatprep.subr.mxu0 0.0
        %3222 = vmatpush1.msra.mxu0 0.0
        %3223 = vmatprep.subr.mxu0 0.0
        %3224 = vmatpush1.msra.mxu0 0.0
        %3225 = vmatprep.subr.mxu0 0.0
        %3226 = vmatpush1.msra.mxu0 0.0
        %3227 = vmatprep.subr.mxu0 0.0
        %3228 = vmatpush1.msra.mxu0 0.0
        %3229 = vmatprep.subr.mxu0 0.0
        %3230 = vmatpush1.msra.mxu0 0.0
        %3231 = vmatprep.subr.mxu0 0.0
        %3232 = vmatpush1.msra.mxu0 0.0
        %3233 = vmatprep.subr.mxu0 0.0
        %3234 = vmatpush1.msra.mxu0 0.0
        %3235 = vmatprep.subr.mxu0 0.0
        %3236 = vmatpush1.msra.mxu0 0.0
        %3237 = vmatprep.subr.mxu0 0.0
        %3238 = vmatpush1.msra.mxu0 0.0
        %3239 = vmatprep.mubr.f32.mxu0 0.0
        %v3240 = vand.u32 %v849, 4294901760
        %3241 = vmatmul.mubr.f32.gmra.mrb[0].mxu0 %v3240
        %v3242 = vpop.f32.mrb[0].mxu0
        %v3243 = vadd.f32 %v3170, %v3242
        %v3244 = vpop.f32.mrb[0].mxu0
        %3245 = vdwg.mxu0
        %v3246 = vmul.f32 %v337, %v337
        %v3247 = vmul.f32 %v338, %v338
        %v3249 = vsel %vm339, %v3246, 0
        %v3252 = vsel %vm339, %v3247, 0
        %3254 = vmatprep.subr.mxu0 0.0
        %v3255 = vand.u32 %v332, 4294901760
        %3256 = vmatpush1.msra.mxu0 %v3255
        %3257 = vmatprep.subr.mxu0 0.0
        %v3258 = vand.u32 %v333, 4294901760
        %3259 = vmatpush1.msra.mxu0 %v3258
        %3260 = vmatprep.subr.mxu0 0.0
        %3261 = vmatpush1.msra.mxu0 0.0
        %3262 = vmatprep.subr.mxu0 0.0
        %3263 = vmatpush1.msra.mxu0 0.0
        %3264 = vmatprep.subr.mxu0 0.0
        %3265 = vmatpush1.msra.mxu0 0.0
        %3266 = vmatprep.subr.mxu0 0.0
        %3267 = vmatpush1.msra.mxu0 0.0
        %3268 = vmatprep.subr.mxu0 0.0
        %3269 = vmatpush1.msra.mxu0 0.0
        %3270 = vmatprep.subr.mxu0 0.0
        %3271 = vmatpush1.msra.mxu0 0.0
        %3272 = vmatprep.subr.mxu0 0.0
        %3273 = vmatpush1.msra.mxu0 0.0
        %3274 = vmatprep.subr.mxu0 0.0
        %3275 = vmatpush1.msra.mxu0 0.0
        %3276 = vmatprep.subr.mxu0 0.0
        %3277 = vmatpush1.msra.mxu0 0.0
        %3278 = vmatprep.subr.mxu0 0.0
        %3279 = vmatpush1.msra.mxu0 0.0
        %3280 = vmatprep.subr.mxu0 0.0
        %3281 = vmatpush1.msra.mxu0 0.0
        %3282 = vmatprep.subr.mxu0 0.0
        %3283 = vmatpush1.msra.mxu0 0.0
        %3284 = vmatprep.subr.mxu0 0.0
        %3285 = vmatpush1.msra.mxu0 0.0
        %3286 = vmatprep.subr.mxu0 0.0
        %3287 = vmatpush1.msra.mxu0 0.0
        %3288 = vmatprep.subr.mxu0 0.0
        %3289 = vmatpush1.msra.mxu0 0.0
        %3290 = vmatprep.subr.mxu0 0.0
        %3291 = vmatpush1.msra.mxu0 0.0
        %3292 = vmatprep.subr.mxu0 0.0
        %3293 = vmatpush1.msra.mxu0 0.0
        %3294 = vmatprep.subr.mxu0 0.0
        %3295 = vmatpush1.msra.mxu0 0.0
        %3296 = vmatprep.subr.mxu0 0.0
        %3297 = vmatpush1.msra.mxu0 0.0
        %3298 = vmatprep.subr.mxu0 0.0
        %3299 = vmatpush1.msra.mxu0 0.0
        %3300 = vmatprep.subr.mxu0 0.0
        %3301 = vmatpush1.msra.mxu0 0.0
        %3302 = vmatprep.subr.mxu0 0.0
        %3303 = vmatpush1.msra.mxu0 0.0
        %3304 = vmatprep.subr.mxu0 0.0
        %3305 = vmatpush1.msra.mxu0 0.0
        %3306 = vmatprep.subr.mxu0 0.0
        %3307 = vmatpush1.msra.mxu0 0.0
        %3308 = vmatprep.subr.mxu0 0.0
        %3309 = vmatpush1.msra.mxu0 0.0
        %3310 = vmatprep.subr.mxu0 0.0
        %3311 = vmatpush1.msra.mxu0 0.0
        %3312 = vmatprep.subr.mxu0 0.0
        %3313 = vmatpush1.msra.mxu0 0.0
        %3314 = vmatprep.subr.mxu0 0.0
        %3315 = vmatpush1.msra.mxu0 0.0
        %3316 = vmatprep.subr.mxu0 0.0
        %3317 = vmatpush1.msra.mxu0 0.0
        %3318 = vmatprep.subr.mxu0 0.0
        %3319 = vmatpush1.msra.mxu0 0.0
        %3320 = vmatprep.mubr.f32.mxu0 0.0
        %v3321 = vand.u32 %v3249, 4294901760
        %v3322 = vsub.f32 %v3249, %v3321
        %v3323 = vand.u32 %v3322, 4294901760
        %v3324 = vsub.f32 %v3322, %v3323
        %v3325 = vand.u32 %v3324, 4294901760
        %3326 = vmatmul.mubr.f32.gmra.mrb[0].mxu0 %v3325
        %v3327 = vpop.f32.mrb[0].mxu0
        %v3328 = vadd.f32 0.0, %v3327
        %v3329 = vpop.f32.mrb[0].mxu0
        %3330 = vmatprep.mubr.f32.mxu0 0.0
        %v3331 = vand.u32 %v3252, 4294901760
        %v3332 = vsub.f32 %v3252, %v3331
        %v3333 = vand.u32 %v3332, 4294901760
        %v3334 = vsub.f32 %v3332, %v3333
        %v3335 = vand.u32 %v3334, 4294901760
        %3336 = vmatmul.mubr.f32.gmra.mrb[0].mxu0 %v3335
        %v3337 = vpop.f32.mrb[0].mxu0
        %v3338 = vadd.f32 0.0, %v3337
        %v3339 = vpop.f32.mrb[0].mxu0
        %3340 = vdwg.mxu0
        %3341 = vmatprep.subr.mxu0 0.0
        %v3342 = vand.u32 %v332, 4294901760
        %v3343 = vsub.f32 %v332, %v3342
        %v3344 = vand.u32 %v3343, 4294901760
        %v3345 = vsub.f32 %v3343, %v3344
        %v3346 = vand.u32 %v3345, 4294901760
        %3347 = vmatpush1.msra.mxu0 %v3346
        %3348 = vmatprep.subr.mxu0 0.0
        %v3349 = vand.u32 %v333, 4294901760
        %v3350 = vsub.f32 %v333, %v3349
        %v3351 = vand.u32 %v3350, 4294901760
        %v3352 = vsub.f32 %v3350, %v3351
        %v3353 = vand.u32 %v3352, 4294901760
        %3354 = vmatpush1.msra.mxu0 %v3353
        %3355 = vmatprep.subr.mxu0 0.0
        %3356 = vmatpush1.msra.mxu0 0.0
        %3357 = vmatprep.subr.mxu0 0.0
        %3358 = vmatpush1.msra.mxu0 0.0
        %3359 = vmatprep.subr.mxu0 0.0
        %3360 = vmatpush1.msra.mxu0 0.0
        %3361 = vmatprep.subr.mxu0 0.0
        %3362 = vmatpush1.msra.mxu0 0.0
        %3363 = vmatprep.subr.mxu0 0.0
        %3364 = vmatpush1.msra.mxu0 0.0
        %3365 = vmatprep.subr.mxu0 0.0
        %3366 = vmatpush1.msra.mxu0 0.0
        %3367 = vmatprep.subr.mxu0 0.0
        %3368 = vmatpush1.msra.mxu0 0.0
        %3369 = vmatprep.subr.mxu0 0.0
        %3370 = vmatpush1.msra.mxu0 0.0
        %3371 = vmatprep.subr.mxu0 0.0
        %3372 = vmatpush1.msra.mxu0 0.0
        %3373 = vmatprep.subr.mxu0 0.0
        %3374 = vmatpush1.msra.mxu0 0.0
        %3375 = vmatprep.subr.mxu0 0.0
        %3376 = vmatpush1.msra.mxu0 0.0
        %3377 = vmatprep.subr.mxu0 0.0
        %3378 = vmatpush1.msra.mxu0 0.0
        %3379 = vmatprep.subr.mxu0 0.0
        %3380 = vmatpush1.msra.mxu0 0.0
        %3381 = vmatprep.subr.mxu0 0.0
        %3382 = vmatpush1.msra.mxu0 0.0
        %3383 = vmatprep.subr.mxu0 0.0
        %3384 = vmatpush1.msra.mxu0 0.0
        %3385 = vmatprep.subr.mxu0 0.0
        %3386 = vmatpush1.msra.mxu0 0.0
        %3387 = vmatprep.subr.mxu0 0.0
        %3388 = vmatpush1.msra.mxu0 0.0
        %3389 = vmatprep.subr.mxu0 0.0
        %3390 = vmatpush1.msra.mxu0 0.0
        %3391 = vmatprep.subr.mxu0 0.0
        %3392 = vmatpush1.msra.mxu0 0.0
        %3393 = vmatprep.subr.mxu0 0.0
        %3394 = vmatpush1.msra.mxu0 0.0
        %3395 = vmatprep.subr.mxu0 0.0
        %3396 = vmatpush1.msra.mxu0 0.0
        %3397 = vmatprep.subr.mxu0 0.0
        %3398 = vmatpush1.msra.mxu0 0.0
        %3399 = vmatprep.subr.mxu0 0.0
        %3400 = vmatpush1.msra.mxu0 0.0
        %3401 = vmatprep.subr.mxu0 0.0
        %3402 = vmatpush1.msra.mxu0 0.0
        %3403 = vmatprep.subr.mxu0 0.0
        %3404 = vmatpush1.msra.mxu0 0.0
        %3405 = vmatprep.subr.mxu0 0.0
        %3406 = vmatpush1.msra.mxu0 0.0
        %3407 = vmatprep.subr.mxu0 0.0
        %3408 = vmatpush1.msra.mxu0 0.0
        %3409 = vmatprep.subr.mxu0 0.0
        %3410 = vmatpush1.msra.mxu0 0.0
        %3411 = vmatprep.subr.mxu0 0.0
        %3412 = vmatpush1.msra.mxu0 0.0
        %3413 = vmatprep.subr.mxu0 0.0
        %3414 = vmatpush1.msra.mxu0 0.0
        %3415 = vmatprep.mubr.f32.mxu0 0.0
        %v3416 = vand.u32 %v3249, 4294901760
        %3417 = vmatmul.mubr.f32.gmra.mrb[0].mxu0 %v3416
        %v3418 = vpop.f32.mrb[0].mxu0
        %v3419 = vadd.f32 %v3328, %v3418
        %v3420 = vpop.f32.mrb[0].mxu0
        %3421 = vmatprep.mubr.f32.mxu0 0.0
        %v3422 = vand.u32 %v3252, 4294901760
        %3423 = vmatmul.mubr.f32.gmra.mrb[0].mxu0 %v3422
        %v3424 = vpop.f32.mrb[0].mxu0
        %v3425 = vadd.f32 %v3338, %v3424
        %v3426 = vpop.f32.mrb[0].mxu0
        %3427 = vdwg.mxu0
        %3428 = vmatprep.subr.mxu0 0.0
        %v3429 = vand.u32 %v332, 4294901760
        %v3430 = vsub.f32 %v332, %v3429
        %3431 = vmatpush1.msra.mxu0 %v3430
        %3432 = vmatprep.subr.mxu0 0.0
        %v3433 = vand.u32 %v333, 4294901760
        %v3434 = vsub.f32 %v333, %v3433
        %3435 = vmatpush1.msra.mxu0 %v3434
        %3436 = vmatprep.subr.mxu0 0.0
        %3437 = vmatpush1.msra.mxu0 0.0
        %3438 = vmatprep.subr.mxu0 0.0
        %3439 = vmatpush1.msra.mxu0 0.0
        %3440 = vmatprep.subr.mxu0 0.0
        %3441 = vmatpush1.msra.mxu0 0.0
        %3442 = vmatprep.subr.mxu0 0.0
        %3443 = vmatpush1.msra.mxu0 0.0
        %3444 = vmatprep.subr.mxu0 0.0
        %3445 = vmatpush1.msra.mxu0 0.0
        %3446 = vmatprep.subr.mxu0 0.0
        %3447 = vmatpush1.msra.mxu0 0.0
        %3448 = vmatprep.subr.mxu0 0.0
        %3449 = vmatpush1.msra.mxu0 0.0
        %3450 = vmatprep.subr.mxu0 0.0
        %3451 = vmatpush1.msra.mxu0 0.0
        %3452 = vmatprep.subr.mxu0 0.0
        %3453 = vmatpush1.msra.mxu0 0.0
        %3454 = vmatprep.subr.mxu0 0.0
        %3455 = vmatpush1.msra.mxu0 0.0
        %3456 = vmatprep.subr.mxu0 0.0
        %3457 = vmatpush1.msra.mxu0 0.0
        %3458 = vmatprep.subr.mxu0 0.0
        %3459 = vmatpush1.msra.mxu0 0.0
        %3460 = vmatprep.subr.mxu0 0.0
        %3461 = vmatpush1.msra.mxu0 0.0
        %3462 = vmatprep.subr.mxu0 0.0
        %3463 = vmatpush1.msra.mxu0 0.0
        %3464 = vmatprep.subr.mxu0 0.0
        %3465 = vmatpush1.msra.mxu0 0.0
        %3466 = vmatprep.subr.mxu0 0.0
        %3467 = vmatpush1.msra.mxu0 0.0
        %3468 = vmatprep.subr.mxu0 0.0
        %3469 = vmatpush1.msra.mxu0 0.0
        %3470 = vmatprep.subr.mxu0 0.0
        %3471 = vmatpush1.msra.mxu0 0.0
        %3472 = vmatprep.subr.mxu0 0.0
        %3473 = vmatpush1.msra.mxu0 0.0
        %3474 = vmatprep.subr.mxu0 0.0
        %3475 = vmatpush1.msra.mxu0 0.0
        %3476 = vmatprep.subr.mxu0 0.0
        %3477 = vmatpush1.msra.mxu0 0.0
        %3478 = vmatprep.subr.mxu0 0.0
        %3479 = vmatpush1.msra.mxu0 0.0
        %3480 = vmatprep.subr.mxu0 0.0
        %3481 = vmatpush1.msra.mxu0 0.0
        %3482 = vmatprep.subr.mxu0 0.0
        %3483 = vmatpush1.msra.mxu0 0.0
        %3484 = vmatprep.subr.mxu0 0.0
        %3485 = vmatpush1.msra.mxu0 0.0
        %3486 = vmatprep.subr.mxu0 0.0
        %3487 = vmatpush1.msra.mxu0 0.0
        %3488 = vmatprep.subr.mxu0 0.0
        %3489 = vmatpush1.msra.mxu0 0.0
        %3490 = vmatprep.subr.mxu0 0.0
        %3491 = vmatpush1.msra.mxu0 0.0
        %3492 = vmatprep.subr.mxu0 0.0
        %3493 = vmatpush1.msra.mxu0 0.0
        %3494 = vmatprep.subr.mxu0 0.0
        %3495 = vmatpush1.msra.mxu0 0.0
        %3496 = vmatprep.mubr.f32.mxu0 0.0
        %v3497 = vand.u32 %v3249, 4294901760
        %v3498 = vsub.f32 %v3249, %v3497
        %3499 = vmatmul.mubr.f32.gmra.mrb[0].mxu0 %v3498
        %v3500 = vpop.f32.mrb[0].mxu0
        %v3501 = vadd.f32 %v3419, %v3500
        %v3502 = vpop.f32.mrb[0].mxu0
        %3503 = vmatprep.mubr.f32.mxu0 0.0
        %v3504 = vand.u32 %v3252, 4294901760
        %v3505 = vsub.f32 %v3252, %v3504
        %3506 = vmatmul.mubr.f32.gmra.mrb[0].mxu0 %v3505
        %v3507 = vpop.f32.mrb[0].mxu0
        %v3508 = vadd.f32 %v3425, %v3507
        %v3509 = vpop.f32.mrb[0].mxu0
        %3510 = vdwg.mxu0
        %3511 = vmatprep.subr.mxu0 0.0
        %v3512 = vand.u32 %v332, 4294901760
        %3513 = vmatpush1.msra.mxu0 %v3512
        %3514 = vmatprep.subr.mxu0 0.0
        %v3515 = vand.u32 %v333, 4294901760
        %3516 = vmatpush1.msra.mxu0 %v3515
        %3517 = vmatprep.subr.mxu0 0.0
        %3518 = vmatpush1.msra.mxu0 0.0
        %3519 = vmatprep.subr.mxu0 0.0
        %3520 = vmatpush1.msra.mxu0 0.0
        %3521 = vmatprep.subr.mxu0 0.0
        %3522 = vmatpush1.msra.mxu0 0.0
        %3523 = vmatprep.subr.mxu0 0.0
        %3524 = vmatpush1.msra.mxu0 0.0
        %3525 = vmatprep.subr.mxu0 0.0
        %3526 = vmatpush1.msra.mxu0 0.0
        %3527 = vmatprep.subr.mxu0 0.0
        %3528 = vmatpush1.msra.mxu0 0.0
        %3529 = vmatprep.subr.mxu0 0.0
        %3530 = vmatpush1.msra.mxu0 0.0
        %3531 = vmatprep.subr.mxu0 0.0
        %3532 = vmatpush1.msra.mxu0 0.0
        %3533 = vmatprep.subr.mxu0 0.0
        %3534 = vmatpush1.msra.mxu0 0.0
        %3535 = vmatprep.subr.mxu0 0.0
        %3536 = vmatpush1.msra.mxu0 0.0
        %3537 = vmatprep.subr.mxu0 0.0
        %3538 = vmatpush1.msra.mxu0 0.0
        %3539 = vmatprep.subr.mxu0 0.0
        %3540 = vmatpush1.msra.mxu0 0.0
        %3541 = vmatprep.subr.mxu0 0.0
        %3542 = vmatpush1.msra.mxu0 0.0
        %3543 = vmatprep.subr.mxu0 0.0
        %3544 = vmatpush1.msra.mxu0 0.0
        %3545 = vmatprep.subr.mxu0 0.0
        %3546 = vmatpush1.msra.mxu0 0.0
        %3547 = vmatprep.subr.mxu0 0.0
        %3548 = vmatpush1.msra.mxu0 0.0
        %3549 = vmatprep.subr.mxu0 0.0
        %3550 = vmatpush1.msra.mxu0 0.0
        %3551 = vmatprep.subr.mxu0 0.0
        %3552 = vmatpush1.msra.mxu0 0.0
        %3553 = vmatprep.subr.mxu0 0.0
        %3554 = vmatpush1.msra.mxu0 0.0
        %3555 = vmatprep.subr.mxu0 0.0
        %3556 = vmatpush1.msra.mxu0 0.0
        %3557 = vmatprep.subr.mxu0 0.0
        %3558 = vmatpush1.msra.mxu0 0.0
        %3559 = vmatprep.subr.mxu0 0.0
        %3560 = vmatpush1.msra.mxu0 0.0
        %3561 = vmatprep.subr.mxu0 0.0
        %3562 = vmatpush1.msra.mxu0 0.0
        %3563 = vmatprep.subr.mxu0 0.0
        %3564 = vmatpush1.msra.mxu0 0.0
        %3565 = vmatprep.subr.mxu0 0.0
        %3566 = vmatpush1.msra.mxu0 0.0
        %3567 = vmatprep.subr.mxu0 0.0
        %3568 = vmatpush1.msra.mxu0 0.0
        %3569 = vmatprep.subr.mxu0 0.0
        %3570 = vmatpush1.msra.mxu0 0.0
        %3571 = vmatprep.subr.mxu0 0.0
        %3572 = vmatpush1.msra.mxu0 0.0
        %3573 = vmatprep.subr.mxu0 0.0
        %3574 = vmatpush1.msra.mxu0 0.0
        %3575 = vmatprep.subr.mxu0 0.0
        %3576 = vmatpush1.msra.mxu0 0.0
        %3577 = vmatprep.mubr.f32.mxu0 0.0
        %v3578 = vand.u32 %v3249, 4294901760
        %v3579 = vsub.f32 %v3249, %v3578
        %v3580 = vand.u32 %v3579, 4294901760
        %3581 = vmatmul.mubr.f32.gmra.mrb[0].mxu0 %v3580
        %v3582 = vpop.f32.mrb[0].mxu0
        %v3583 = vadd.f32 %v3501, %v3582
        %v3584 = vpop.f32.mrb[0].mxu0
        %3585 = vmatprep.mubr.f32.mxu0 0.0
        %v3586 = vand.u32 %v3252, 4294901760
        %v3587 = vsub.f32 %v3252, %v3586
        %v3588 = vand.u32 %v3587, 4294901760
        %3589 = vmatmul.mubr.f32.gmra.mrb[0].mxu0 %v3588
        %v3590 = vpop.f32.mrb[0].mxu0
        %v3591 = vadd.f32 %v3508, %v3590
        %v3592 = vpop.f32.mrb[0].mxu0
        %3593 = vdwg.mxu0
        %3594 = vmatprep.subr.mxu0 0.0
        %v3595 = vand.u32 %v332, 4294901760
        %v3596 = vsub.f32 %v332, %v3595
        %v3597 = vand.u32 %v3596, 4294901760
        %3598 = vmatpush1.msra.mxu0 %v3597
        %3599 = vmatprep.subr.mxu0 0.0
        %v3600 = vand.u32 %v333, 4294901760
        %v3601 = vsub.f32 %v333, %v3600
        %v3602 = vand.u32 %v3601, 4294901760
        %3603 = vmatpush1.msra.mxu0 %v3602
        %3604 = vmatprep.subr.mxu0 0.0
        %3605 = vmatpush1.msra.mxu0 0.0
        %3606 = vmatprep.subr.mxu0 0.0
        %3607 = vmatpush1.msra.mxu0 0.0
        %3608 = vmatprep.subr.mxu0 0.0
        %3609 = vmatpush1.msra.mxu0 0.0
        %3610 = vmatprep.subr.mxu0 0.0
        %3611 = vmatpush1.msra.mxu0 0.0
        %3612 = vmatprep.subr.mxu0 0.0
        %3613 = vmatpush1.msra.mxu0 0.0
        %3614 = vmatprep.subr.mxu0 0.0
        %3615 = vmatpush1.msra.mxu0 0.0
        %3616 = vmatprep.subr.mxu0 0.0
        %3617 = vmatpush1.msra.mxu0 0.0
        %3618 = vmatprep.subr.mxu0 0.0
        %3619 = vmatpush1.msra.mxu0 0.0
        %3620 = vmatprep.subr.mxu0 0.0
        %3621 = vmatpush1.msra.mxu0 0.0
        %3622 = vmatprep.subr.mxu0 0.0
        %3623 = vmatpush1.msra.mxu0 0.0
        %3624 = vmatprep.subr.mxu0 0.0
        %3625 = vmatpush1.msra.mxu0 0.0
        %3626 = vmatprep.subr.mxu0 0.0
        %3627 = vmatpush1.msra.mxu0 0.0
        %3628 = vmatprep.subr.mxu0 0.0
        %3629 = vmatpush1.msra.mxu0 0.0
        %3630 = vmatprep.subr.mxu0 0.0
        %3631 = vmatpush1.msra.mxu0 0.0
        %3632 = vmatprep.subr.mxu0 0.0
        %3633 = vmatpush1.msra.mxu0 0.0
        %3634 = vmatprep.subr.mxu0 0.0
        %3635 = vmatpush1.msra.mxu0 0.0
        %3636 = vmatprep.subr.mxu0 0.0
        %3637 = vmatpush1.msra.mxu0 0.0
        %3638 = vmatprep.subr.mxu0 0.0
        %3639 = vmatpush1.msra.mxu0 0.0
        %3640 = vmatprep.subr.mxu0 0.0
        %3641 = vmatpush1.msra.mxu0 0.0
        %3642 = vmatprep.subr.mxu0 0.0
        %3643 = vmatpush1.msra.mxu0 0.0
        %3644 = vmatprep.subr.mxu0 0.0
        %3645 = vmatpush1.msra.mxu0 0.0
        %3646 = vmatprep.subr.mxu0 0.0
        %3647 = vmatpush1.msra.mxu0 0.0
        %3648 = vmatprep.subr.mxu0 0.0
        %3649 = vmatpush1.msra.mxu0 0.0
        %3650 = vmatprep.subr.mxu0 0.0
        %3651 = vmatpush1.msra.mxu0 0.0
        %3652 = vmatprep.subr.mxu0 0.0
        %3653 = vmatpush1.msra.mxu0 0.0
        %3654 = vmatprep.subr.mxu0 0.0
        %3655 = vmatpush1.msra.mxu0 0.0
        %3656 = vmatprep.subr.mxu0 0.0
        %3657 = vmatpush1.msra.mxu0 0.0
        %3658 = vmatprep.subr.mxu0 0.0
        %3659 = vmatpush1.msra.mxu0 0.0
        %3660 = vmatprep.subr.mxu0 0.0
        %3661 = vmatpush1.msra.mxu0 0.0
        %3662 = vmatprep.subr.mxu0 0.0
        %3663 = vmatpush1.msra.mxu0 0.0
        %3664 = vmatprep.mubr.f32.mxu0 0.0
        %v3665 = vand.u32 %v3249, 4294901760
        %3666 = vmatmul.mubr.f32.gmra.mrb[0].mxu0 %v3665
        %v3667 = vpop.f32.mrb[0].mxu0
        %v3668 = vadd.f32 %v3583, %v3667
        %v3669 = vpop.f32.mrb[0].mxu0
        %3670 = vmatprep.mubr.f32.mxu0 0.0
        %v3671 = vand.u32 %v3252, 4294901760
        %3672 = vmatmul.mubr.f32.gmra.mrb[0].mxu0 %v3671
        %v3673 = vpop.f32.mrb[0].mxu0
        %v3674 = vadd.f32 %v3591, %v3673
        %v3675 = vpop.f32.mrb[0].mxu0
        %3676 = vdwg.mxu0
        %3677 = vmatprep.subr.mxu0 0.0
        %v3678 = vand.u32 %v332, 4294901760
        %3679 = vmatpush1.msra.mxu0 %v3678
        %3680 = vmatprep.subr.mxu0 0.0
        %v3681 = vand.u32 %v333, 4294901760
        %3682 = vmatpush1.msra.mxu0 %v3681
        %3683 = vmatprep.subr.mxu0 0.0
        %3684 = vmatpush1.msra.mxu0 0.0
        %3685 = vmatprep.subr.mxu0 0.0
        %3686 = vmatpush1.msra.mxu0 0.0
        %3687 = vmatprep.subr.mxu0 0.0
        %3688 = vmatpush1.msra.mxu0 0.0
        %3689 = vmatprep.subr.mxu0 0.0
        %3690 = vmatpush1.msra.mxu0 0.0
        %3691 = vmatprep.subr.mxu0 0.0
        %3692 = vmatpush1.msra.mxu0 0.0
        %3693 = vmatprep.subr.mxu0 0.0
        %3694 = vmatpush1.msra.mxu0 0.0
        %3695 = vmatprep.subr.mxu0 0.0
        %3696 = vmatpush1.msra.mxu0 0.0
        %3697 = vmatprep.subr.mxu0 0.0
        %3698 = vmatpush1.msra.mxu0 0.0
        %3699 = vmatprep.subr.mxu0 0.0
        %3700 = vmatpush1.msra.mxu0 0.0
        %3701 = vmatprep.subr.mxu0 0.0
        %3702 = vmatpush1.msra.mxu0 0.0
        %3703 = vmatprep.subr.mxu0 0.0
        %3704 = vmatpush1.msra.mxu0 0.0
        %3705 = vmatprep.subr.mxu0 0.0
        %3706 = vmatpush1.msra.mxu0 0.0
        %3707 = vmatprep.subr.mxu0 0.0
        %3708 = vmatpush1.msra.mxu0 0.0
        %3709 = vmatprep.subr.mxu0 0.0
        %3710 = vmatpush1.msra.mxu0 0.0
        %3711 = vmatprep.subr.mxu0 0.0
        %3712 = vmatpush1.msra.mxu0 0.0
        %3713 = vmatprep.subr.mxu0 0.0
        %3714 = vmatpush1.msra.mxu0 0.0
        %3715 = vmatprep.subr.mxu0 0.0
        %3716 = vmatpush1.msra.mxu0 0.0
        %3717 = vmatprep.subr.mxu0 0.0
        %3718 = vmatpush1.msra.mxu0 0.0
        %3719 = vmatprep.subr.mxu0 0.0
        %3720 = vmatpush1.msra.mxu0 0.0
        %3721 = vmatprep.subr.mxu0 0.0
        %3722 = vmatpush1.msra.mxu0 0.0
        %3723 = vmatprep.subr.mxu0 0.0
        %3724 = vmatpush1.msra.mxu0 0.0
        %3725 = vmatprep.subr.mxu0 0.0
        %3726 = vmatpush1.msra.mxu0 0.0
        %3727 = vmatprep.subr.mxu0 0.0
        %3728 = vmatpush1.msra.mxu0 0.0
        %3729 = vmatprep.subr.mxu0 0.0
        %3730 = vmatpush1.msra.mxu0 0.0
        %3731 = vmatprep.subr.mxu0 0.0
        %3732 = vmatpush1.msra.mxu0 0.0
        %3733 = vmatprep.subr.mxu0 0.0
        %3734 = vmatpush1.msra.mxu0 0.0
        %3735 = vmatprep.subr.mxu0 0.0
        %3736 = vmatpush1.msra.mxu0 0.0
        %3737 = vmatprep.subr.mxu0 0.0
        %3738 = vmatpush1.msra.mxu0 0.0
        %3739 = vmatprep.subr.mxu0 0.0
        %3740 = vmatpush1.msra.mxu0 0.0
        %3741 = vmatprep.subr.mxu0 0.0
        %3742 = vmatpush1.msra.mxu0 0.0
        %3743 = vmatprep.mubr.f32.mxu0 0.0
        %v3744 = vand.u32 %v3249, 4294901760
        %3745 = vmatmul.mubr.f32.gmra.mrb[0].mxu0 %v3744
        %v3746 = vpop.f32.mrb[0].mxu0
        %v3747 = vadd.f32 %v3668, %v3746
        %v3748 = vpop.f32.mrb[0].mxu0
        %3749 = vmatprep.mubr.f32.mxu0 0.0
        %v3750 = vand.u32 %v3252, 4294901760
        %3751 = vmatmul.mubr.f32.gmra.mrb[0].mxu0 %v3750
        %v3752 = vpop.f32.mrb[0].mxu0
        %v3753 = vadd.f32 %v3674, %v3752
        %v3754 = vpop.f32.mrb[0].mxu0
        %3755 = vdwg.mxu0
        %3756 = vmatprep.subr.mxu0 0.0
        %v3757 = vand.u32 %v3747, 4294901760
        %3758 = vmatpush1.msra.mxu0 %v3757
        %3759 = vmatprep.subr.mxu0 0.0
        %v3760 = vand.u32 %v3753, 4294901760
        %3761 = vmatpush1.msra.mxu0 %v3760
        %3762 = vmatprep.subr.mxu0 0.0
        %3763 = vmatpush1.msra.mxu0 0.0
        %3764 = vmatprep.subr.mxu0 0.0
        %3765 = vmatpush1.msra.mxu0 0.0
        %3766 = vmatprep.subr.mxu0 0.0
        %3767 = vmatpush1.msra.mxu0 0.0
        %3768 = vmatprep.subr.mxu0 0.0
        %3769 = vmatpush1.msra.mxu0 0.0
        %3770 = vmatprep.subr.mxu0 0.0
        %3771 = vmatpush1.msra.mxu0 0.0
        %3772 = vmatprep.subr.mxu0 0.0
        %3773 = vmatpush1.msra.mxu0 0.0
        %3774 = vmatprep.subr.mxu0 0.0
        %3775 = vmatpush1.msra.mxu0 0.0
        %3776 = vmatprep.subr.mxu0 0.0
        %3777 = vmatpush1.msra.mxu0 0.0
        %3778 = vmatprep.subr.mxu0 0.0
        %3779 = vmatpush1.msra.mxu0 0.0
        %3780 = vmatprep.subr.mxu0 0.0
        %3781 = vmatpush1.msra.mxu0 0.0
        %3782 = vmatprep.subr.mxu0 0.0
        %3783 = vmatpush1.msra.mxu0 0.0
        %3784 = vmatprep.subr.mxu0 0.0
        %3785 = vmatpush1.msra.mxu0 0.0
        %3786 = vmatprep.subr.mxu0 0.0
        %3787 = vmatpush1.msra.mxu0 0.0
        %3788 = vmatprep.subr.mxu0 0.0
        %3789 = vmatpush1.msra.mxu0 0.0
        %3790 = vmatprep.subr.mxu0 0.0
        %3791 = vmatpush1.msra.mxu0 0.0
        %3792 = vmatprep.subr.mxu0 0.0
        %3793 = vmatpush1.msra.mxu0 0.0
        %3794 = vmatprep.subr.mxu0 0.0
        %3795 = vmatpush1.msra.mxu0 0.0
        %3796 = vmatprep.subr.mxu0 0.0
        %3797 = vmatpush1.msra.mxu0 0.0
        %3798 = vmatprep.subr.mxu0 0.0
        %3799 = vmatpush1.msra.mxu0 0.0
        %3800 = vmatprep.subr.mxu0 0.0
        %3801 = vmatpush1.msra.mxu0 0.0
        %3802 = vmatprep.subr.mxu0 0.0
        %3803 = vmatpush1.msra.mxu0 0.0
        %3804 = vmatprep.subr.mxu0 0.0
        %3805 = vmatpush1.msra.mxu0 0.0
        %3806 = vmatprep.subr.mxu0 0.0
        %3807 = vmatpush1.msra.mxu0 0.0
        %3808 = vmatprep.subr.mxu0 0.0
        %3809 = vmatpush1.msra.mxu0 0.0
        %3810 = vmatprep.subr.mxu0 0.0
        %3811 = vmatpush1.msra.mxu0 0.0
        %3812 = vmatprep.subr.mxu0 0.0
        %3813 = vmatpush1.msra.mxu0 0.0
        %3814 = vmatprep.subr.mxu0 0.0
        %3815 = vmatpush1.msra.mxu0 0.0
        %3816 = vmatprep.subr.mxu0 0.0
        %3817 = vmatpush1.msra.mxu0 0.0
        %3818 = vmatprep.subr.mxu0 0.0
        %3819 = vmatpush1.msra.mxu0 0.0
        %3820 = vmatprep.subr.mxu0 0.0
        %3821 = vmatpush1.msra.mxu0 0.0
        %3822 = vmatprep.mubr.f32.mxu0 0.0
        %v3823 = vand.u32 %v849, 4294901760
        %v3824 = vsub.f32 %v849, %v3823
        %v3825 = vand.u32 %v3824, 4294901760
        %v3826 = vsub.f32 %v3824, %v3825
        %v3827 = vand.u32 %v3826, 4294901760
        %3828 = vmatmul.mubr.f32.gmra.mrb[0].mxu0 %v3827
        %v3829 = vpop.f32.mrb[0].mxu0
        %v3830 = vadd.f32 0.0, %v3829
        %v3831 = vpop.f32.mrb[0].mxu0
        %3832 = vdwg.mxu0
        %3833 = vmatprep.subr.mxu0 0.0
        %v3834 = vand.u32 %v3747, 4294901760
        %v3835 = vsub.f32 %v3747, %v3834
        %v3836 = vand.u32 %v3835, 4294901760
        %v3837 = vsub.f32 %v3835, %v3836
        %v3838 = vand.u32 %v3837, 4294901760
        %3839 = vmatpush1.msra.mxu0 %v3838
        %3840 = vmatprep.subr.mxu0 0.0
        %v3841 = vand.u32 %v3753, 4294901760
        %v3842 = vsub.f32 %v3753, %v3841
        %v3843 = vand.u32 %v3842, 4294901760
        %v3844 = vsub.f32 %v3842, %v3843
        %v3845 = vand.u32 %v3844, 4294901760
        %3846 = vmatpush1.msra.mxu0 %v3845
        %3847 = vmatprep.subr.mxu0 0.0
        %3848 = vmatpush1.msra.mxu0 0.0
        %3849 = vmatprep.subr.mxu0 0.0
        %3850 = vmatpush1.msra.mxu0 0.0
        %3851 = vmatprep.subr.mxu0 0.0
        %3852 = vmatpush1.msra.mxu0 0.0
        %3853 = vmatprep.subr.mxu0 0.0
        %3854 = vmatpush1.msra.mxu0 0.0
        %3855 = vmatprep.subr.mxu0 0.0
        %3856 = vmatpush1.msra.mxu0 0.0
        %3857 = vmatprep.subr.mxu0 0.0
        %3858 = vmatpush1.msra.mxu0 0.0
        %3859 = vmatprep.subr.mxu0 0.0
        %3860 = vmatpush1.msra.mxu0 0.0
        %3861 = vmatprep.subr.mxu0 0.0
        %3862 = vmatpush1.msra.mxu0 0.0
        %3863 = vmatprep.subr.mxu0 0.0
        %3864 = vmatpush1.msra.mxu0 0.0
        %3865 = vmatprep.subr.mxu0 0.0
        %3866 = vmatpush1.msra.mxu0 0.0
        %3867 = vmatprep.subr.mxu0 0.0
        %3868 = vmatpush1.msra.mxu0 0.0
        %3869 = vmatprep.subr.mxu0 0.0
        %3870 = vmatpush1.msra.mxu0 0.0
        %3871 = vmatprep.subr.mxu0 0.0
        %3872 = vmatpush1.msra.mxu0 0.0
        %3873 = vmatprep.subr.mxu0 0.0
        %3874 = vmatpush1.msra.mxu0 0.0
        %3875 = vmatprep.subr.mxu0 0.0
        %3876 = vmatpush1.msra.mxu0 0.0
        %3877 = vmatprep.subr.mxu0 0.0
        %3878 = vmatpush1.msra.mxu0 0.0
        %3879 = vmatprep.subr.mxu0 0.0
        %3880 = vmatpush1.msra.mxu0 0.0
        %3881 = vmatprep.subr.mxu0 0.0
        %3882 = vmatpush1.msra.mxu0 0.0
        %3883 = vmatprep.subr.mxu0 0.0
        %3884 = vmatpush1.msra.mxu0 0.0
        %3885 = vmatprep.subr.mxu0 0.0
        %3886 = vmatpush1.msra.mxu0 0.0
        %3887 = vmatprep.subr.mxu0 0.0
        %3888 = vmatpush1.msra.mxu0 0.0
        %3889 = vmatprep.subr.mxu0 0.0
        %3890 = vmatpush1.msra.mxu0 0.0
        %3891 = vmatprep.subr.mxu0 0.0
        %3892 = vmatpush1.msra.mxu0 0.0
        %3893 = vmatprep.subr.mxu0 0.0
        %3894 = vmatpush1.msra.mxu0 0.0
        %3895 = vmatprep.subr.mxu0 0.0
        %3896 = vmatpush1.msra.mxu0 0.0
        %3897 = vmatprep.subr.mxu0 0.0
        %3898 = vmatpush1.msra.mxu0 0.0
        %3899 = vmatprep.subr.mxu0 0.0
        %3900 = vmatpush1.msra.mxu0 0.0
        %3901 = vmatprep.subr.mxu0 0.0
        %3902 = vmatpush1.msra.mxu0 0.0
        %3903 = vmatprep.subr.mxu0 0.0
        %3904 = vmatpush1.msra.mxu0 0.0
        %3905 = vmatprep.subr.mxu0 0.0
        %3906 = vmatpush1.msra.mxu0 0.0
        %3907 = vmatprep.mubr.f32.mxu0 0.0
        %v3908 = vand.u32 %v849, 4294901760
        %3909 = vmatmul.mubr.f32.gmra.mrb[0].mxu0 %v3908
        %v3910 = vpop.f32.mrb[0].mxu0
        %v3911 = vadd.f32 %v3830, %v3910
        %v3912 = vpop.f32.mrb[0].mxu0
        %3913 = vdwg.mxu0
        %3914 = vmatprep.subr.mxu0 0.0
        %v3915 = vand.u32 %v3747, 4294901760
        %v3916 = vsub.f32 %v3747, %v3915
        %3917 = vmatpush1.msra.mxu0 %v3916
        %3918 = vmatprep.subr.mxu0 0.0
        %v3919 = vand.u32 %v3753, 4294901760
        %v3920 = vsub.f32 %v3753, %v3919
        %3921 = vmatpush1.msra.mxu0 %v3920
        %3922 = vmatprep.subr.mxu0 0.0
        %3923 = vmatpush1.msra.mxu0 0.0
        %3924 = vmatprep.subr.mxu0 0.0
        %3925 = vmatpush1.msra.mxu0 0.0
        %3926 = vmatprep.subr.mxu0 0.0
        %3927 = vmatpush1.msra.mxu0 0.0
        %3928 = vmatprep.subr.mxu0 0.0
        %3929 = vmatpush1.msra.mxu0 0.0
        %3930 = vmatprep.subr.mxu0 0.0
        %3931 = vmatpush1.msra.mxu0 0.0
        %3932 = vmatprep.subr.mxu0 0.0
        %3933 = vmatpush1.msra.mxu0 0.0
        %3934 = vmatprep.subr.mxu0 0.0
        %3935 = vmatpush1.msra.mxu0 0.0
        %3936 = vmatprep.subr.mxu0 0.0
        %3937 = vmatpush1.msra.mxu0 0.0
        %3938 = vmatprep.subr.mxu0 0.0
        %3939 = vmatpush1.msra.mxu0 0.0
        %3940 = vmatprep.subr.mxu0 0.0
        %3941 = vmatpush1.msra.mxu0 0.0
        %3942 = vmatprep.subr.mxu0 0.0
        %3943 = vmatpush1.msra.mxu0 0.0
        %3944 = vmatprep.subr.mxu0 0.0
        %3945 = vmatpush1.msra.mxu0 0.0
        %3946 = vmatprep.subr.mxu0 0.0
        %3947 = vmatpush1.msra.mxu0 0.0
        %3948 = vmatprep.subr.mxu0 0.0
        %3949 = vmatpush1.msra.mxu0 0.0
        %3950 = vmatprep.subr.mxu0 0.0
        %3951 = vmatpush1.msra.mxu0 0.0
        %3952 = vmatprep.subr.mxu0 0.0
        %3953 = vmatpush1.msra.mxu0 0.0
        %3954 = vmatprep.subr.mxu0 0.0
        %3955 = vmatpush1.msra.mxu0 0.0
        %3956 = vmatprep.subr.mxu0 0.0
        %3957 = vmatpush1.msra.mxu0 0.0
        %3958 = vmatprep.subr.mxu0 0.0
        %3959 = vmatpush1.msra.mxu0 0.0
        %3960 = vmatprep.subr.mxu0 0.0
        %3961 = vmatpush1.msra.mxu0 0.0
        %3962 = vmatprep.subr.mxu0 0.0
        %3963 = vmatpush1.msra.mxu0 0.0
        %3964 = vmatprep.subr.mxu0 0.0
        %3965 = vmatpush1.msra.mxu0 0.0
        %3966 = vmatprep.subr.mxu0 0.0
        %3967 = vmatpush1.msra.mxu0 0.0
        %3968 = vmatprep.subr.mxu0 0.0
        %3969 = vmatpush1.msra.mxu0 0.0
        %3970 = vmatprep.subr.mxu0 0.0
        %3971 = vmatpush1.msra.mxu0 0.0
        %3972 = vmatprep.subr.mxu0 0.0
        %3973 = vmatpush1.msra.mxu0 0.0
        %3974 = vmatprep.subr.mxu0 0.0
        %3975 = vmatpush1.msra.mxu0 0.0
        %3976 = vmatprep.subr.mxu0 0.0
        %3977 = vmatpush1.msra.mxu0 0.0
        %3978 = vmatprep.subr.mxu0 0.0
        %3979 = vmatpush1.msra.mxu0 0.0
        %3980 = vmatprep.subr.mxu0 0.0
        %3981 = vmatpush1.msra.mxu0 0.0
        %3982 = vmatprep.mubr.f32.mxu0 0.0
        %v3983 = vand.u32 %v849, 4294901760
        %v3984 = vsub.f32 %v849, %v3983
        %3985 = vmatmul.mubr.f32.gmra.mrb[0].mxu0 %v3984
        %v3986 = vpop.f32.mrb[0].mxu0
        %v3987 = vadd.f32 %v3911, %v3986
        %v3988 = vpop.f32.mrb[0].mxu0
        %3989 = vdwg.mxu0
        %3990 = vmatprep.subr.mxu0 0.0
        %v3991 = vand.u32 %v3747, 4294901760
        %3992 = vmatpush1.msra.mxu0 %v3991
        %3993 = vmatprep.subr.mxu0 0.0
        %v3994 = vand.u32 %v3753, 4294901760
        %3995 = vmatpush1.msra.mxu0 %v3994
        %3996 = vmatprep.subr.mxu0 0.0
        %3997 = vmatpush1.msra.mxu0 0.0
        %3998 = vmatprep.subr.mxu0 0.0
        %3999 = vmatpush1.msra.mxu0 0.0
        %4000 = vmatprep.subr.mxu0 0.0
        %4001 = vmatpush1.msra.mxu0 0.0
        %4002 = vmatprep.subr.mxu0 0.0
        %4003 = vmatpush1.msra.mxu0 0.0
        %4004 = vmatprep.subr.mxu0 0.0
        %4005 = vmatpush1.msra.mxu0 0.0
        %4006 = vmatprep.subr.mxu0 0.0
        %4007 = vmatpush1.msra.mxu0 0.0
        %4008 = vmatprep.subr.mxu0 0.0
        %4009 = vmatpush1.msra.mxu0 0.0
        %4010 = vmatprep.subr.mxu0 0.0
        %4011 = vmatpush1.msra.mxu0 0.0
        %4012 = vmatprep.subr.mxu0 0.0
        %4013 = vmatpush1.msra.mxu0 0.0
        %4014 = vmatprep.subr.mxu0 0.0
        %4015 = vmatpush1.msra.mxu0 0.0
        %4016 = vmatprep.subr.mxu0 0.0
        %4017 = vmatpush1.msra.mxu0 0.0
        %4018 = vmatprep.subr.mxu0 0.0
        %4019 = vmatpush1.msra.mxu0 0.0
        %4020 = vmatprep.subr.mxu0 0.0
        %4021 = vmatpush1.msra.mxu0 0.0
        %4022 = vmatprep.subr.mxu0 0.0
        %4023 = vmatpush1.msra.mxu0 0.0
        %4024 = vmatprep.subr.mxu0 0.0
        %4025 = vmatpush1.msra.mxu0 0.0
        %4026 = vmatprep.subr.mxu0 0.0
        %4027 = vmatpush1.msra.mxu0 0.0
        %4028 = vmatprep.subr.mxu0 0.0
        %4029 = vmatpush1.msra.mxu0 0.0
        %4030 = vmatprep.subr.mxu0 0.0
        %4031 = vmatpush1.msra.mxu0 0.0
        %4032 = vmatprep.subr.mxu0 0.0
        %4033 = vmatpush1.msra.mxu0 0.0
        %4034 = vmatprep.subr.mxu0 0.0
        %4035 = vmatpush1.msra.mxu0 0.0
        %4036 = vmatprep.subr.mxu0 0.0
        %4037 = vmatpush1.msra.mxu0 0.0
        %4038 = vmatprep.subr.mxu0 0.0
        %4039 = vmatpush1.msra.mxu0 0.0
        %4040 = vmatprep.subr.mxu0 0.0
        %4041 = vmatpush1.msra.mxu0 0.0
        %4042 = vmatprep.subr.mxu0 0.0
        %4043 = vmatpush1.msra.mxu0 0.0
        %4044 = vmatprep.subr.mxu0 0.0
        %4045 = vmatpush1.msra.mxu0 0.0
        %4046 = vmatprep.subr.mxu0 0.0
        %4047 = vmatpush1.msra.mxu0 0.0
        %4048 = vmatprep.subr.mxu0 0.0
        %4049 = vmatpush1.msra.mxu0 0.0
        %4050 = vmatprep.subr.mxu0 0.0
        %4051 = vmatpush1.msra.mxu0 0.0
        %4052 = vmatprep.subr.mxu0 0.0
        %4053 = vmatpush1.msra.mxu0 0.0
        %4054 = vmatprep.subr.mxu0 0.0
        %4055 = vmatpush1.msra.mxu0 0.0
        %4056 = vmatprep.mubr.f32.mxu0 0.0
        %v4057 = vand.u32 %v849, 4294901760
        %v4058 = vsub.f32 %v849, %v4057
        %v4059 = vand.u32 %v4058, 4294901760
        %4060 = vmatmul.mubr.f32.gmra.mrb[0].mxu0 %v4059
        %v4061 = vpop.f32.mrb[0].mxu0
        %v4062 = vadd.f32 %v3987, %v4061
        %v4063 = vpop.f32.mrb[0].mxu0
        %4064 = vdwg.mxu0
        %4065 = vmatprep.subr.mxu0 0.0
        %v4066 = vand.u32 %v3747, 4294901760
        %v4067 = vsub.f32 %v3747, %v4066
        %v4068 = vand.u32 %v4067, 4294901760
        %4069 = vmatpush1.msra.mxu0 %v4068
        %4070 = vmatprep.subr.mxu0 0.0
        %v4071 = vand.u32 %v3753, 4294901760
        %v4072 = vsub.f32 %v3753, %v4071
        %v4073 = vand.u32 %v4072, 4294901760
        %4074 = vmatpush1.msra.mxu0 %v4073
        %4075 = vmatprep.subr.mxu0 0.0
        %4076 = vmatpush1.msra.mxu0 0.0
        %4077 = vmatprep.subr.mxu0 0.0
        %4078 = vmatpush1.msra.mxu0 0.0
        %4079 = vmatprep.subr.mxu0 0.0
        %4080 = vmatpush1.msra.mxu0 0.0
        %4081 = vmatprep.subr.mxu0 0.0
        %4082 = vmatpush1.msra.mxu0 0.0
        %4083 = vmatprep.subr.mxu0 0.0
        %4084 = vmatpush1.msra.mxu0 0.0
        %4085 = vmatprep.subr.mxu0 0.0
        %4086 = vmatpush1.msra.mxu0 0.0
        %4087 = vmatprep.subr.mxu0 0.0
        %4088 = vmatpush1.msra.mxu0 0.0
        %4089 = vmatprep.subr.mxu0 0.0
        %4090 = vmatpush1.msra.mxu0 0.0
        %4091 = vmatprep.subr.mxu0 0.0
        %4092 = vmatpush1.msra.mxu0 0.0
        %4093 = vmatprep.subr.mxu0 0.0
        %4094 = vmatpush1.msra.mxu0 0.0
        %4095 = vmatprep.subr.mxu0 0.0
        %4096 = vmatpush1.msra.mxu0 0.0
        %4097 = vmatprep.subr.mxu0 0.0
        %4098 = vmatpush1.msra.mxu0 0.0
        %4099 = vmatprep.subr.mxu0 0.0
        %4100 = vmatpush1.msra.mxu0 0.0
        %4101 = vmatprep.subr.mxu0 0.0
        %4102 = vmatpush1.msra.mxu0 0.0
        %4103 = vmatprep.subr.mxu0 0.0
        %4104 = vmatpush1.msra.mxu0 0.0
        %4105 = vmatprep.subr.mxu0 0.0
        %4106 = vmatpush1.msra.mxu0 0.0
        %4107 = vmatprep.subr.mxu0 0.0
        %4108 = vmatpush1.msra.mxu0 0.0
        %4109 = vmatprep.subr.mxu0 0.0
        %4110 = vmatpush1.msra.mxu0 0.0
        %4111 = vmatprep.subr.mxu0 0.0
        %4112 = vmatpush1.msra.mxu0 0.0
        %4113 = vmatprep.subr.mxu0 0.0
        %4114 = vmatpush1.msra.mxu0 0.0
        %4115 = vmatprep.subr.mxu0 0.0
        %4116 = vmatpush1.msra.mxu0 0.0
        %4117 = vmatprep.subr.mxu0 0.0
        %4118 = vmatpush1.msra.mxu0 0.0
        %4119 = vmatprep.subr.mxu0 0.0
        %4120 = vmatpush1.msra.mxu0 0.0
        %4121 = vmatprep.subr.mxu0 0.0
        %4122 = vmatpush1.msra.mxu0 0.0
        %4123 = vmatprep.subr.mxu0 0.0
        %4124 = vmatpush1.msra.mxu0 0.0
        %4125 = vmatprep.subr.mxu0 0.0
        %4126 = vmatpush1.msra.mxu0 0.0
        %4127 = vmatprep.subr.mxu0 0.0
        %4128 = vmatpush1.msra.mxu0 0.0
        %4129 = vmatprep.subr.mxu0 0.0
        %4130 = vmatpush1.msra.mxu0 0.0
        %4131 = vmatprep.subr.mxu0 0.0
        %4132 = vmatpush1.msra.mxu0 0.0
        %4133 = vmatprep.subr.mxu0 0.0
        %4134 = vmatpush1.msra.mxu0 0.0
        %4135 = vmatprep.mubr.f32.mxu0 0.0
        %v4136 = vand.u32 %v849, 4294901760
        %4137 = vmatmul.mubr.f32.gmra.mrb[0].mxu0 %v4136
        %v4138 = vpop.f32.mrb[0].mxu0
        %v4139 = vadd.f32 %v4062, %v4138
        %v4140 = vpop.f32.mrb[0].mxu0
        %4141 = vdwg.mxu0
        %4142 = vmatprep.subr.mxu0 0.0
        %v4143 = vand.u32 %v3747, 4294901760
        %4144 = vmatpush1.msra.mxu0 %v4143
        %4145 = vmatprep.subr.mxu0 0.0
        %v4146 = vand.u32 %v3753, 4294901760
        %4147 = vmatpush1.msra.mxu0 %v4146
        %4148 = vmatprep.subr.mxu0 0.0
        %4149 = vmatpush1.msra.mxu0 0.0
        %4150 = vmatprep.subr.mxu0 0.0
        %4151 = vmatpush1.msra.mxu0 0.0
        %4152 = vmatprep.subr.mxu0 0.0
        %4153 = vmatpush1.msra.mxu0 0.0
        %4154 = vmatprep.subr.mxu0 0.0
        %4155 = vmatpush1.msra.mxu0 0.0
        %4156 = vmatprep.subr.mxu0 0.0
        %4157 = vmatpush1.msra.mxu0 0.0
        %4158 = vmatprep.subr.mxu0 0.0
        %4159 = vmatpush1.msra.mxu0 0.0
        %4160 = vmatprep.subr.mxu0 0.0
        %4161 = vmatpush1.msra.mxu0 0.0
        %4162 = vmatprep.subr.mxu0 0.0
        %4163 = vmatpush1.msra.mxu0 0.0
        %4164 = vmatprep.subr.mxu0 0.0
        %4165 = vmatpush1.msra.mxu0 0.0
        %4166 = vmatprep.subr.mxu0 0.0
        %4167 = vmatpush1.msra.mxu0 0.0
        %4168 = vmatprep.subr.mxu0 0.0
        %4169 = vmatpush1.msra.mxu0 0.0
        %4170 = vmatprep.subr.mxu0 0.0
        %4171 = vmatpush1.msra.mxu0 0.0
        %4172 = vmatprep.subr.mxu0 0.0
        %4173 = vmatpush1.msra.mxu0 0.0
        %4174 = vmatprep.subr.mxu0 0.0
        %4175 = vmatpush1.msra.mxu0 0.0
        %4176 = vmatprep.subr.mxu0 0.0
        %4177 = vmatpush1.msra.mxu0 0.0
        %4178 = vmatprep.subr.mxu0 0.0
        %4179 = vmatpush1.msra.mxu0 0.0
        %4180 = vmatprep.subr.mxu0 0.0
        %4181 = vmatpush1.msra.mxu0 0.0
        %4182 = vmatprep.subr.mxu0 0.0
        %4183 = vmatpush1.msra.mxu0 0.0
        %4184 = vmatprep.subr.mxu0 0.0
        %4185 = vmatpush1.msra.mxu0 0.0
        %4186 = vmatprep.subr.mxu0 0.0
        %4187 = vmatpush1.msra.mxu0 0.0
        %4188 = vmatprep.subr.mxu0 0.0
        %4189 = vmatpush1.msra.mxu0 0.0
        %4190 = vmatprep.subr.mxu0 0.0
        %4191 = vmatpush1.msra.mxu0 0.0
        %4192 = vmatprep.subr.mxu0 0.0
        %4193 = vmatpush1.msra.mxu0 0.0
        %4194 = vmatprep.subr.mxu0 0.0
        %4195 = vmatpush1.msra.mxu0 0.0
        %4196 = vmatprep.subr.mxu0 0.0
        %4197 = vmatpush1.msra.mxu0 0.0
        %4198 = vmatprep.subr.mxu0 0.0
        %4199 = vmatpush1.msra.mxu0 0.0
        %4200 = vmatprep.subr.mxu0 0.0
        %4201 = vmatpush1.msra.mxu0 0.0
        %4202 = vmatprep.subr.mxu0 0.0
        %4203 = vmatpush1.msra.mxu0 0.0
        %4204 = vmatprep.subr.mxu0 0.0
        %4205 = vmatpush1.msra.mxu0 0.0
        %4206 = vmatprep.subr.mxu0 0.0
        %4207 = vmatpush1.msra.mxu0 0.0
        %4208 = vmatprep.mubr.f32.mxu0 0.0
        %v4209 = vand.u32 %v849, 4294901760
        %4210 = vmatmul.mubr.f32.gmra.mrb[0].mxu0 %v4209
        %v4211 = vpop.f32.mrb[0].mxu0
        %v4212 = vadd.f32 %v4139, %v4211
        %v4213 = vpop.f32.mrb[0].mxu0
        %4214 = vdwg.mxu0
        %v4215 = vmul.f32 %v335, %v337
        %v4216 = vmul.f32 %v336, %v338
        %v4218 = vsel %vm339, %v4215, 0
        %v4221 = vsel %vm339, %v4216, 0
        %4223 = vmatprep.subr.mxu0 0.0
        %v4224 = vand.u32 %v332, 4294901760
        %4225 = vmatpush1.msra.mxu0 %v4224
        %4226 = vmatprep.subr.mxu0 0.0
        %v4227 = vand.u32 %v333, 4294901760
        %4228 = vmatpush1.msra.mxu0 %v4227
        %4229 = vmatprep.subr.mxu0 0.0
        %4230 = vmatpush1.msra.mxu0 0.0
        %4231 = vmatprep.subr.mxu0 0.0
        %4232 = vmatpush1.msra.mxu0 0.0
        %4233 = vmatprep.subr.mxu0 0.0
        %4234 = vmatpush1.msra.mxu0 0.0
        %4235 = vmatprep.subr.mxu0 0.0
        %4236 = vmatpush1.msra.mxu0 0.0
        %4237 = vmatprep.subr.mxu0 0.0
        %4238 = vmatpush1.msra.mxu0 0.0
        %4239 = vmatprep.subr.mxu0 0.0
        %4240 = vmatpush1.msra.mxu0 0.0
        %4241 = vmatprep.subr.mxu0 0.0
        %4242 = vmatpush1.msra.mxu0 0.0
        %4243 = vmatprep.subr.mxu0 0.0
        %4244 = vmatpush1.msra.mxu0 0.0
        %4245 = vmatprep.subr.mxu0 0.0
        %4246 = vmatpush1.msra.mxu0 0.0
        %4247 = vmatprep.subr.mxu0 0.0
        %4248 = vmatpush1.msra.mxu0 0.0
        %4249 = vmatprep.subr.mxu0 0.0
        %4250 = vmatpush1.msra.mxu0 0.0
        %4251 = vmatprep.subr.mxu0 0.0
        %4252 = vmatpush1.msra.mxu0 0.0
        %4253 = vmatprep.subr.mxu0 0.0
        %4254 = vmatpush1.msra.mxu0 0.0
        %4255 = vmatprep.subr.mxu0 0.0
        %4256 = vmatpush1.msra.mxu0 0.0
        %4257 = vmatprep.subr.mxu0 0.0
        %4258 = vmatpush1.msra.mxu0 0.0
        %4259 = vmatprep.subr.mxu0 0.0
        %4260 = vmatpush1.msra.mxu0 0.0
        %4261 = vmatprep.subr.mxu0 0.0
        %4262 = vmatpush1.msra.mxu0 0.0
        %4263 = vmatprep.subr.mxu0 0.0
        %4264 = vmatpush1.msra.mxu0 0.0
        %4265 = vmatprep.subr.mxu0 0.0
        %4266 = vmatpush1.msra.mxu0 0.0
        %4267 = vmatprep.subr.mxu0 0.0
        %4268 = vmatpush1.msra.mxu0 0.0
        %4269 = vmatprep.subr.mxu0 0.0
        %4270 = vmatpush1.msra.mxu0 0.0
        %4271 = vmatprep.subr.mxu0 0.0
        %4272 = vmatpush1.msra.mxu0 0.0
        %4273 = vmatprep.subr.mxu0 0.0
        %4274 = vmatpush1.msra.mxu0 0.0
        %4275 = vmatprep.subr.mxu0 0.0
        %4276 = vmatpush1.msra.mxu0 0.0
        %4277 = vmatprep.subr.mxu0 0.0
        %4278 = vmatpush1.msra.mxu0 0.0
        %4279 = vmatprep.subr.mxu0 0.0
        %4280 = vmatpush1.msra.mxu0 0.0
        %4281 = vmatprep.subr.mxu0 0.0
        %4282 = vmatpush1.msra.mxu0 0.0
        %4283 = vmatprep.subr.mxu0 0.0
        %4284 = vmatpush1.msra.mxu0 0.0
        %4285 = vmatprep.subr.mxu0 0.0
        %4286 = vmatpush1.msra.mxu0 0.0
        %4287 = vmatprep.subr.mxu0 0.0
        %4288 = vmatpush1.msra.mxu0 0.0
        %4289 = vmatprep.mubr.f32.mxu0 0.0
        %v4290 = vand.u32 %v4218, 4294901760
        %v4291 = vsub.f32 %v4218, %v4290
        %v4292 = vand.u32 %v4291, 4294901760
        %v4293 = vsub.f32 %v4291, %v4292
        %v4294 = vand.u32 %v4293, 4294901760
        %4295 = vmatmul.mubr.f32.gmra.mrb[0].mxu0 %v4294
        %v4296 = vpop.f32.mrb[0].mxu0
        %v4297 = vadd.f32 0.0, %v4296
        %v4298 = vpop.f32.mrb[0].mxu0
        %4299 = vmatprep.mubr.f32.mxu0 0.0
        %v4300 = vand.u32 %v4221, 4294901760
        %v4301 = vsub.f32 %v4221, %v4300
        %v4302 = vand.u32 %v4301, 4294901760
        %v4303 = vsub.f32 %v4301, %v4302
        %v4304 = vand.u32 %v4303, 4294901760
        %4305 = vmatmul.mubr.f32.gmra.mrb[0].mxu0 %v4304
        %v4306 = vpop.f32.mrb[0].mxu0
        %v4307 = vadd.f32 0.0, %v4306
        %v4308 = vpop.f32.mrb[0].mxu0
        %4309 = vdwg.mxu0
        %4310 = vmatprep.subr.mxu0 0.0
        %v4311 = vand.u32 %v332, 4294901760
        %v4312 = vsub.f32 %v332, %v4311
        %v4313 = vand.u32 %v4312, 4294901760
        %v4314 = vsub.f32 %v4312, %v4313
        %v4315 = vand.u32 %v4314, 4294901760
        %4316 = vmatpush1.msra.mxu0 %v4315
        %4317 = vmatprep.subr.mxu0 0.0
        %v4318 = vand.u32 %v333, 4294901760
        %v4319 = vsub.f32 %v333, %v4318
        %v4320 = vand.u32 %v4319, 4294901760
        %v4321 = vsub.f32 %v4319, %v4320
        %v4322 = vand.u32 %v4321, 4294901760
        %4323 = vmatpush1.msra.mxu0 %v4322
        %4324 = vmatprep.subr.mxu0 0.0
        %4325 = vmatpush1.msra.mxu0 0.0
        %4326 = vmatprep.subr.mxu0 0.0
        %4327 = vmatpush1.msra.mxu0 0.0
        %4328 = vmatprep.subr.mxu0 0.0
        %4329 = vmatpush1.msra.mxu0 0.0
        %4330 = vmatprep.subr.mxu0 0.0
        %4331 = vmatpush1.msra.mxu0 0.0
        %4332 = vmatprep.subr.mxu0 0.0
        %4333 = vmatpush1.msra.mxu0 0.0
        %4334 = vmatprep.subr.mxu0 0.0
        %4335 = vmatpush1.msra.mxu0 0.0
        %4336 = vmatprep.subr.mxu0 0.0
        %4337 = vmatpush1.msra.mxu0 0.0
        %4338 = vmatprep.subr.mxu0 0.0
        %4339 = vmatpush1.msra.mxu0 0.0
        %4340 = vmatprep.subr.mxu0 0.0
        %4341 = vmatpush1.msra.mxu0 0.0
        %4342 = vmatprep.subr.mxu0 0.0
        %4343 = vmatpush1.msra.mxu0 0.0
        %4344 = vmatprep.subr.mxu0 0.0
        %4345 = vmatpush1.msra.mxu0 0.0
        %4346 = vmatprep.subr.mxu0 0.0
        %4347 = vmatpush1.msra.mxu0 0.0
        %4348 = vmatprep.subr.mxu0 0.0
        %4349 = vmatpush1.msra.mxu0 0.0
        %4350 = vmatprep.subr.mxu0 0.0
        %4351 = vmatpush1.msra.mxu0 0.0
        %4352 = vmatprep.subr.mxu0 0.0
        %4353 = vmatpush1.msra.mxu0 0.0
        %4354 = vmatprep.subr.mxu0 0.0
        %4355 = vmatpush1.msra.mxu0 0.0
        %4356 = vmatprep.subr.mxu0 0.0
        %4357 = vmatpush1.msra.mxu0 0.0
        %4358 = vmatprep.subr.mxu0 0.0
        %4359 = vmatpush1.msra.mxu0 0.0
        %4360 = vmatprep.subr.mxu0 0.0
        %4361 = vmatpush1.msra.mxu0 0.0
        %4362 = vmatprep.subr.mxu0 0.0
        %4363 = vmatpush1.msra.mxu0 0.0
        %4364 = vmatprep.subr.mxu0 0.0
        %4365 = vmatpush1.msra.mxu0 0.0
        %4366 = vmatprep.subr.mxu0 0.0
        %4367 = vmatpush1.msra.mxu0 0.0
        %4368 = vmatprep.subr.mxu0 0.0
        %4369 = vmatpush1.msra.mxu0 0.0
        %4370 = vmatprep.subr.mxu0 0.0
        %4371 = vmatpush1.msra.mxu0 0.0
        %4372 = vmatprep.subr.mxu0 0.0
        %4373 = vmatpush1.msra.mxu0 0.0
        %4374 = vmatprep.subr.mxu0 0.0
        %4375 = vmatpush1.msra.mxu0 0.0
        %4376 = vmatprep.subr.mxu0 0.0
        %4377 = vmatpush1.msra.mxu0 0.0
        %4378 = vmatprep.subr.mxu0 0.0
        %4379 = vmatpush1.msra.mxu0 0.0
        %4380 = vmatprep.subr.mxu0 0.0
        %4381 = vmatpush1.msra.mxu0 0.0
        %4382 = vmatprep.subr.mxu0 0.0
        %4383 = vmatpush1.msra.mxu0 0.0
        %4384 = vmatprep.mubr.f32.mxu0 0.0
        %v4385 = vand.u32 %v4218, 4294901760
        %4386 = vmatmul.mubr.f32.gmra.mrb[0].mxu0 %v4385
        %v4387 = vpop.f32.mrb[0].mxu0
        %v4388 = vadd.f32 %v4297, %v4387
        %v4389 = vpop.f32.mrb[0].mxu0
        %4390 = vmatprep.mubr.f32.mxu0 0.0
        %v4391 = vand.u32 %v4221, 4294901760
        %4392 = vmatmul.mubr.f32.gmra.mrb[0].mxu0 %v4391
        %v4393 = vpop.f32.mrb[0].mxu0
        %v4394 = vadd.f32 %v4307, %v4393
        %v4395 = vpop.f32.mrb[0].mxu0
        %4396 = vdwg.mxu0
        %4397 = vmatprep.subr.mxu0 0.0
        %v4398 = vand.u32 %v332, 4294901760
        %v4399 = vsub.f32 %v332, %v4398
        %4400 = vmatpush1.msra.mxu0 %v4399
        %4401 = vmatprep.subr.mxu0 0.0
        %v4402 = vand.u32 %v333, 4294901760
        %v4403 = vsub.f32 %v333, %v4402
        %4404 = vmatpush1.msra.mxu0 %v4403
        %4405 = vmatprep.subr.mxu0 0.0
        %4406 = vmatpush1.msra.mxu0 0.0
        %4407 = vmatprep.subr.mxu0 0.0
        %4408 = vmatpush1.msra.mxu0 0.0
        %4409 = vmatprep.subr.mxu0 0.0
        %4410 = vmatpush1.msra.mxu0 0.0
        %4411 = vmatprep.subr.mxu0 0.0
        %4412 = vmatpush1.msra.mxu0 0.0
        %4413 = vmatprep.subr.mxu0 0.0
        %4414 = vmatpush1.msra.mxu0 0.0
        %4415 = vmatprep.subr.mxu0 0.0
        %4416 = vmatpush1.msra.mxu0 0.0
        %4417 = vmatprep.subr.mxu0 0.0
        %4418 = vmatpush1.msra.mxu0 0.0
        %4419 = vmatprep.subr.mxu0 0.0
        %4420 = vmatpush1.msra.mxu0 0.0
        %4421 = vmatprep.subr.mxu0 0.0
        %4422 = vmatpush1.msra.mxu0 0.0
        %4423 = vmatprep.subr.mxu0 0.0
        %4424 = vmatpush1.msra.mxu0 0.0
        %4425 = vmatprep.subr.mxu0 0.0
        %4426 = vmatpush1.msra.mxu0 0.0
        %4427 = vmatprep.subr.mxu0 0.0
        %4428 = vmatpush1.msra.mxu0 0.0
        %4429 = vmatprep.subr.mxu0 0.0
        %4430 = vmatpush1.msra.mxu0 0.0
        %4431 = vmatprep.subr.mxu0 0.0
        %4432 = vmatpush1.msra.mxu0 0.0
        %4433 = vmatprep.subr.mxu0 0.0
        %4434 = vmatpush1.msra.mxu0 0.0
        %4435 = vmatprep.subr.mxu0 0.0
        %4436 = vmatpush1.msra.mxu0 0.0
        %4437 = vmatprep.subr.mxu0 0.0
        %4438 = vmatpush1.msra.mxu0 0.0
        %4439 = vmatprep.subr.mxu0 0.0
        %4440 = vmatpush1.msra.mxu0 0.0
        %4441 = vmatprep.subr.mxu0 0.0
        %4442 = vmatpush1.msra.mxu0 0.0
        %4443 = vmatprep.subr.mxu0 0.0
        %4444 = vmatpush1.msra.mxu0 0.0
        %4445 = vmatprep.subr.mxu0 0.0
        %4446 = vmatpush1.msra.mxu0 0.0
        %4447 = vmatprep.subr.mxu0 0.0
        %4448 = vmatpush1.msra.mxu0 0.0
        %4449 = vmatprep.subr.mxu0 0.0
        %4450 = vmatpush1.msra.mxu0 0.0
        %4451 = vmatprep.subr.mxu0 0.0
        %4452 = vmatpush1.msra.mxu0 0.0
        %4453 = vmatprep.subr.mxu0 0.0
        %4454 = vmatpush1.msra.mxu0 0.0
        %4455 = vmatprep.subr.mxu0 0.0
        %4456 = vmatpush1.msra.mxu0 0.0
        %4457 = vmatprep.subr.mxu0 0.0
        %4458 = vmatpush1.msra.mxu0 0.0
        %4459 = vmatprep.subr.mxu0 0.0
        %4460 = vmatpush1.msra.mxu0 0.0
        %4461 = vmatprep.subr.mxu0 0.0
        %4462 = vmatpush1.msra.mxu0 0.0
        %4463 = vmatprep.subr.mxu0 0.0
        %4464 = vmatpush1.msra.mxu0 0.0
        %4465 = vmatprep.mubr.f32.mxu0 0.0
        %v4466 = vand.u32 %v4218, 4294901760
        %v4467 = vsub.f32 %v4218, %v4466
        %4468 = vmatmul.mubr.f32.gmra.mrb[0].mxu0 %v4467
        %v4469 = vpop.f32.mrb[0].mxu0
        %v4470 = vadd.f32 %v4388, %v4469
        %v4471 = vpop.f32.mrb[0].mxu0
        %4472 = vmatprep.mubr.f32.mxu0 0.0
        %v4473 = vand.u32 %v4221, 4294901760
        %v4474 = vsub.f32 %v4221, %v4473
        %4475 = vmatmul.mubr.f32.gmra.mrb[0].mxu0 %v4474
        %v4476 = vpop.f32.mrb[0].mxu0
        %v4477 = vadd.f32 %v4394, %v4476
        %v4478 = vpop.f32.mrb[0].mxu0
        %4479 = vdwg.mxu0
        %4480 = vmatprep.subr.mxu0 0.0
        %v4481 = vand.u32 %v332, 4294901760
        %4482 = vmatpush1.msra.mxu0 %v4481
        %4483 = vmatprep.subr.mxu0 0.0
        %v4484 = vand.u32 %v333, 4294901760
        %4485 = vmatpush1.msra.mxu0 %v4484
        %4486 = vmatprep.subr.mxu0 0.0
        %4487 = vmatpush1.msra.mxu0 0.0
        %4488 = vmatprep.subr.mxu0 0.0
        %4489 = vmatpush1.msra.mxu0 0.0
        %4490 = vmatprep.subr.mxu0 0.0
        %4491 = vmatpush1.msra.mxu0 0.0
        %4492 = vmatprep.subr.mxu0 0.0
        %4493 = vmatpush1.msra.mxu0 0.0
        %4494 = vmatprep.subr.mxu0 0.0
        %4495 = vmatpush1.msra.mxu0 0.0
        %4496 = vmatprep.subr.mxu0 0.0
        %4497 = vmatpush1.msra.mxu0 0.0
        %4498 = vmatprep.subr.mxu0 0.0
        %4499 = vmatpush1.msra.mxu0 0.0
        %4500 = vmatprep.subr.mxu0 0.0
        %4501 = vmatpush1.msra.mxu0 0.0
        %4502 = vmatprep.subr.mxu0 0.0
        %4503 = vmatpush1.msra.mxu0 0.0
        %4504 = vmatprep.subr.mxu0 0.0
        %4505 = vmatpush1.msra.mxu0 0.0
        %4506 = vmatprep.subr.mxu0 0.0
        %4507 = vmatpush1.msra.mxu0 0.0
        %4508 = vmatprep.subr.mxu0 0.0
        %4509 = vmatpush1.msra.mxu0 0.0
        %4510 = vmatprep.subr.mxu0 0.0
        %4511 = vmatpush1.msra.mxu0 0.0
        %4512 = vmatprep.subr.mxu0 0.0
        %4513 = vmatpush1.msra.mxu0 0.0
        %4514 = vmatprep.subr.mxu0 0.0
        %4515 = vmatpush1.msra.mxu0 0.0
        %4516 = vmatprep.subr.mxu0 0.0
        %4517 = vmatpush1.msra.mxu0 0.0
        %4518 = vmatprep.subr.mxu0 0.0
        %4519 = vmatpush1.msra.mxu0 0.0
        %4520 = vmatprep.subr.mxu0 0.0
        %4521 = vmatpush1.msra.mxu0 0.0
        %4522 = vmatprep.subr.mxu0 0.0
        %4523 = vmatpush1.msra.mxu0 0.0
        %4524 = vmatprep.subr.mxu0 0.0
        %4525 = vmatpush1.msra.mxu0 0.0
        %4526 = vmatprep.subr.mxu0 0.0
        %4527 = vmatpush1.msra.mxu0 0.0
        %4528 = vmatprep.subr.mxu0 0.0
        %4529 = vmatpush1.msra.mxu0 0.0
        %4530 = vmatprep.subr.mxu0 0.0
        %4531 = vmatpush1.msra.mxu0 0.0
        %4532 = vmatprep.subr.mxu0 0.0
        %4533 = vmatpush1.msra.mxu0 0.0
        %4534 = vmatprep.subr.mxu0 0.0
        %4535 = vmatpush1.msra.mxu0 0.0
        %4536 = vmatprep.subr.mxu0 0.0
        %4537 = vmatpush1.msra.mxu0 0.0
        %4538 = vmatprep.subr.mxu0 0.0
        %4539 = vmatpush1.msra.mxu0 0.0
        %4540 = vmatprep.subr.mxu0 0.0
        %4541 = vmatpush1.msra.mxu0 0.0
        %4542 = vmatprep.subr.mxu0 0.0
        %4543 = vmatpush1.msra.mxu0 0.0
        %4544 = vmatprep.subr.mxu0 0.0
        %4545 = vmatpush1.msra.mxu0 0.0
        %4546 = vmatprep.mubr.f32.mxu0 0.0
        %v4547 = vand.u32 %v4218, 4294901760
        %v4548 = vsub.f32 %v4218, %v4547
        %v4549 = vand.u32 %v4548, 4294901760
        %4550 = vmatmul.mubr.f32.gmra.mrb[0].mxu0 %v4549
        %v4551 = vpop.f32.mrb[0].mxu0
        %v4552 = vadd.f32 %v4470, %v4551
        %v4553 = vpop.f32.mrb[0].mxu0
        %4554 = vmatprep.mubr.f32.mxu0 0.0
        %v4555 = vand.u32 %v4221, 4294901760
        %v4556 = vsub.f32 %v4221, %v4555
        %v4557 = vand.u32 %v4556, 4294901760
        %4558 = vmatmul.mubr.f32.gmra.mrb[0].mxu0 %v4557
        %v4559 = vpop.f32.mrb[0].mxu0
        %v4560 = vadd.f32 %v4477, %v4559
        %v4561 = vpop.f32.mrb[0].mxu0
        %4562 = vdwg.mxu0
        %4563 = vmatprep.subr.mxu0 0.0
        %v4564 = vand.u32 %v332, 4294901760
        %v4565 = vsub.f32 %v332, %v4564
        %v4566 = vand.u32 %v4565, 4294901760
        %4567 = vmatpush1.msra.mxu0 %v4566
        %4568 = vmatprep.subr.mxu0 0.0
        %v4569 = vand.u32 %v333, 4294901760
        %v4570 = vsub.f32 %v333, %v4569
        %v4571 = vand.u32 %v4570, 4294901760
        %4572 = vmatpush1.msra.mxu0 %v4571
        %4573 = vmatprep.subr.mxu0 0.0
        %4574 = vmatpush1.msra.mxu0 0.0
        %4575 = vmatprep.subr.mxu0 0.0
        %4576 = vmatpush1.msra.mxu0 0.0
        %4577 = vmatprep.subr.mxu0 0.0
        %4578 = vmatpush1.msra.mxu0 0.0
        %4579 = vmatprep.subr.mxu0 0.0
        %4580 = vmatpush1.msra.mxu0 0.0
        %4581 = vmatprep.subr.mxu0 0.0
        %4582 = vmatpush1.msra.mxu0 0.0
        %4583 = vmatprep.subr.mxu0 0.0
        %4584 = vmatpush1.msra.mxu0 0.0
        %4585 = vmatprep.subr.mxu0 0.0
        %4586 = vmatpush1.msra.mxu0 0.0
        %4587 = vmatprep.subr.mxu0 0.0
        %4588 = vmatpush1.msra.mxu0 0.0
        %4589 = vmatprep.subr.mxu0 0.0
        %4590 = vmatpush1.msra.mxu0 0.0
        %4591 = vmatprep.subr.mxu0 0.0
        %4592 = vmatpush1.msra.mxu0 0.0
        %4593 = vmatprep.subr.mxu0 0.0
        %4594 = vmatpush1.msra.mxu0 0.0
        %4595 = vmatprep.subr.mxu0 0.0
        %4596 = vmatpush1.msra.mxu0 0.0
        %4597 = vmatprep.subr.mxu0 0.0
        %4598 = vmatpush1.msra.mxu0 0.0
        %4599 = vmatprep.subr.mxu0 0.0
        %4600 = vmatpush1.msra.mxu0 0.0
        %4601 = vmatprep.subr.mxu0 0.0
        %4602 = vmatpush1.msra.mxu0 0.0
        %4603 = vmatprep.subr.mxu0 0.0
        %4604 = vmatpush1.msra.mxu0 0.0
        %4605 = vmatprep.subr.mxu0 0.0
        %4606 = vmatpush1.msra.mxu0 0.0
        %4607 = vmatprep.subr.mxu0 0.0
        %4608 = vmatpush1.msra.mxu0 0.0
        %4609 = vmatprep.subr.mxu0 0.0
        %4610 = vmatpush1.msra.mxu0 0.0
        %4611 = vmatprep.subr.mxu0 0.0
        %4612 = vmatpush1.msra.mxu0 0.0
        %4613 = vmatprep.subr.mxu0 0.0
        %4614 = vmatpush1.msra.mxu0 0.0
        %4615 = vmatprep.subr.mxu0 0.0
        %4616 = vmatpush1.msra.mxu0 0.0
        %4617 = vmatprep.subr.mxu0 0.0
        %4618 = vmatpush1.msra.mxu0 0.0
        %4619 = vmatprep.subr.mxu0 0.0
        %4620 = vmatpush1.msra.mxu0 0.0
        %4621 = vmatprep.subr.mxu0 0.0
        %4622 = vmatpush1.msra.mxu0 0.0
        %4623 = vmatprep.subr.mxu0 0.0
        %4624 = vmatpush1.msra.mxu0 0.0
        %4625 = vmatprep.subr.mxu0 0.0
        %4626 = vmatpush1.msra.mxu0 0.0
        %4627 = vmatprep.subr.mxu0 0.0
        %4628 = vmatpush1.msra.mxu0 0.0
        %4629 = vmatprep.subr.mxu0 0.0
        %4630 = vmatpush1.msra.mxu0 0.0
        %4631 = vmatprep.subr.mxu0 0.0
        %4632 = vmatpush1.msra.mxu0 0.0
        %4633 = vmatprep.mubr.f32.mxu0 0.0
        %v4634 = vand.u32 %v4218, 4294901760
        %4635 = vmatmul.mubr.f32.gmra.mrb[0].mxu0 %v4634
        %v4636 = vpop.f32.mrb[0].mxu0
        %v4637 = vadd.f32 %v4552, %v4636
        %v4638 = vpop.f32.mrb[0].mxu0
        %4639 = vmatprep.mubr.f32.mxu0 0.0
        %v4640 = vand.u32 %v4221, 4294901760
        %4641 = vmatmul.mubr.f32.gmra.mrb[0].mxu0 %v4640
        %v4642 = vpop.f32.mrb[0].mxu0
        %v4643 = vadd.f32 %v4560, %v4642
        %v4644 = vpop.f32.mrb[0].mxu0
        %4645 = vdwg.mxu0
        %4646 = vmatprep.subr.mxu0 0.0
        %v4647 = vand.u32 %v332, 4294901760
        %4648 = vmatpush1.msra.mxu0 %v4647
        %4649 = vmatprep.subr.mxu0 0.0
        %v4650 = vand.u32 %v333, 4294901760
        %4651 = vmatpush1.msra.mxu0 %v4650
        %4652 = vmatprep.subr.mxu0 0.0
        %4653 = vmatpush1.msra.mxu0 0.0
        %4654 = vmatprep.subr.mxu0 0.0
        %4655 = vmatpush1.msra.mxu0 0.0
        %4656 = vmatprep.subr.mxu0 0.0
        %4657 = vmatpush1.msra.mxu0 0.0
        %4658 = vmatprep.subr.mxu0 0.0
        %4659 = vmatpush1.msra.mxu0 0.0
        %4660 = vmatprep.subr.mxu0 0.0
        %4661 = vmatpush1.msra.mxu0 0.0
        %4662 = vmatprep.subr.mxu0 0.0
        %4663 = vmatpush1.msra.mxu0 0.0
        %4664 = vmatprep.subr.mxu0 0.0
        %4665 = vmatpush1.msra.mxu0 0.0
        %4666 = vmatprep.subr.mxu0 0.0
        %4667 = vmatpush1.msra.mxu0 0.0
        %4668 = vmatprep.subr.mxu0 0.0
        %4669 = vmatpush1.msra.mxu0 0.0
        %4670 = vmatprep.subr.mxu0 0.0
        %4671 = vmatpush1.msra.mxu0 0.0
        %4672 = vmatprep.subr.mxu0 0.0
        %4673 = vmatpush1.msra.mxu0 0.0
        %4674 = vmatprep.subr.mxu0 0.0
        %4675 = vmatpush1.msra.mxu0 0.0
        %4676 = vmatprep.subr.mxu0 0.0
        %4677 = vmatpush1.msra.mxu0 0.0
        %4678 = vmatprep.subr.mxu0 0.0
        %4679 = vmatpush1.msra.mxu0 0.0
        %4680 = vmatprep.subr.mxu0 0.0
        %4681 = vmatpush1.msra.mxu0 0.0
        %4682 = vmatprep.subr.mxu0 0.0
        %4683 = vmatpush1.msra.mxu0 0.0
        %4684 = vmatprep.subr.mxu0 0.0
        %4685 = vmatpush1.msra.mxu0 0.0
        %4686 = vmatprep.subr.mxu0 0.0
        %4687 = vmatpush1.msra.mxu0 0.0
        %4688 = vmatprep.subr.mxu0 0.0
        %4689 = vmatpush1.msra.mxu0 0.0
        %4690 = vmatprep.subr.mxu0 0.0
        %4691 = vmatpush1.msra.mxu0 0.0
        %4692 = vmatprep.subr.mxu0 0.0
        %4693 = vmatpush1.msra.mxu0 0.0
        %4694 = vmatprep.subr.mxu0 0.0
        %4695 = vmatpush1.msra.mxu0 0.0
        %4696 = vmatprep.subr.mxu0 0.0
        %4697 = vmatpush1.msra.mxu0 0.0
        %4698 = vmatprep.subr.mxu0 0.0
        %4699 = vmatpush1.msra.mxu0 0.0
        %4700 = vmatprep.subr.mxu0 0.0
        %4701 = vmatpush1.msra.mxu0 0.0
        %4702 = vmatprep.subr.mxu0 0.0
        %4703 = vmatpush1.msra.mxu0 0.0
        %4704 = vmatprep.subr.mxu0 0.0
        %4705 = vmatpush1.msra.mxu0 0.0
        %4706 = vmatprep.subr.mxu0 0.0
        %4707 = vmatpush1.msra.mxu0 0.0
        %4708 = vmatprep.subr.mxu0 0.0
        %4709 = vmatpush1.msra.mxu0 0.0
        %4710 = vmatprep.subr.mxu0 0.0
        %4711 = vmatpush1.msra.mxu0 0.0
        %4712 = vmatprep.mubr.f32.mxu0 0.0
        %v4713 = vand.u32 %v4218, 4294901760
        %4714 = vmatmul.mubr.f32.gmra.mrb[0].mxu0 %v4713
        %v4715 = vpop.f32.mrb[0].mxu0
        %v4716 = vadd.f32 %v4637, %v4715
        %v4717 = vpop.f32.mrb[0].mxu0
        %4718 = vmatprep.mubr.f32.mxu0 0.0
        %v4719 = vand.u32 %v4221, 4294901760
        %4720 = vmatmul.mubr.f32.gmra.mrb[0].mxu0 %v4719
        %v4721 = vpop.f32.mrb[0].mxu0
        %v4722 = vadd.f32 %v4643, %v4721
        %v4723 = vpop.f32.mrb[0].mxu0
        %4724 = vdwg.mxu0
        %4725 = vmatprep.subr.mxu0 0.0
        %v4726 = vand.u32 %v4716, 4294901760
        %4727 = vmatpush1.msra.mxu0 %v4726
        %4728 = vmatprep.subr.mxu0 0.0
        %v4729 = vand.u32 %v4722, 4294901760
        %4730 = vmatpush1.msra.mxu0 %v4729
        %4731 = vmatprep.subr.mxu0 0.0
        %4732 = vmatpush1.msra.mxu0 0.0
        %4733 = vmatprep.subr.mxu0 0.0
        %4734 = vmatpush1.msra.mxu0 0.0
        %4735 = vmatprep.subr.mxu0 0.0
        %4736 = vmatpush1.msra.mxu0 0.0
        %4737 = vmatprep.subr.mxu0 0.0
        %4738 = vmatpush1.msra.mxu0 0.0
        %4739 = vmatprep.subr.mxu0 0.0
        %4740 = vmatpush1.msra.mxu0 0.0
        %4741 = vmatprep.subr.mxu0 0.0
        %4742 = vmatpush1.msra.mxu0 0.0
        %4743 = vmatprep.subr.mxu0 0.0
        %4744 = vmatpush1.msra.mxu0 0.0
        %4745 = vmatprep.subr.mxu0 0.0
        %4746 = vmatpush1.msra.mxu0 0.0
        %4747 = vmatprep.subr.mxu0 0.0
        %4748 = vmatpush1.msra.mxu0 0.0
        %4749 = vmatprep.subr.mxu0 0.0
        %4750 = vmatpush1.msra.mxu0 0.0
        %4751 = vmatprep.subr.mxu0 0.0
        %4752 = vmatpush1.msra.mxu0 0.0
        %4753 = vmatprep.subr.mxu0 0.0
        %4754 = vmatpush1.msra.mxu0 0.0
        %4755 = vmatprep.subr.mxu0 0.0
        %4756 = vmatpush1.msra.mxu0 0.0
        %4757 = vmatprep.subr.mxu0 0.0
        %4758 = vmatpush1.msra.mxu0 0.0
        %4759 = vmatprep.subr.mxu0 0.0
        %4760 = vmatpush1.msra.mxu0 0.0
        %4761 = vmatprep.subr.mxu0 0.0
        %4762 = vmatpush1.msra.mxu0 0.0
        %4763 = vmatprep.subr.mxu0 0.0
        %4764 = vmatpush1.msra.mxu0 0.0
        %4765 = vmatprep.subr.mxu0 0.0
        %4766 = vmatpush1.msra.mxu0 0.0
        %4767 = vmatprep.subr.mxu0 0.0
        %4768 = vmatpush1.msra.mxu0 0.0
        %4769 = vmatprep.subr.mxu0 0.0
        %4770 = vmatpush1.msra.mxu0 0.0
        %4771 = vmatprep.subr.mxu0 0.0
        %4772 = vmatpush1.msra.mxu0 0.0
        %4773 = vmatprep.subr.mxu0 0.0
        %4774 = vmatpush1.msra.mxu0 0.0
        %4775 = vmatprep.subr.mxu0 0.0
        %4776 = vmatpush1.msra.mxu0 0.0
        %4777 = vmatprep.subr.mxu0 0.0
        %4778 = vmatpush1.msra.mxu0 0.0
        %4779 = vmatprep.subr.mxu0 0.0
        %4780 = vmatpush1.msra.mxu0 0.0
        %4781 = vmatprep.subr.mxu0 0.0
        %4782 = vmatpush1.msra.mxu0 0.0
        %4783 = vmatprep.subr.mxu0 0.0
        %4784 = vmatpush1.msra.mxu0 0.0
        %4785 = vmatprep.subr.mxu0 0.0
        %4786 = vmatpush1.msra.mxu0 0.0
        %4787 = vmatprep.subr.mxu0 0.0
        %4788 = vmatpush1.msra.mxu0 0.0
        %4789 = vmatprep.subr.mxu0 0.0
        %4790 = vmatpush1.msra.mxu0 0.0
        %4791 = vmatprep.mubr.f32.mxu0 0.0
        %v4792 = vand.u32 %v849, 4294901760
        %v4793 = vsub.f32 %v849, %v4792
        %v4794 = vand.u32 %v4793, 4294901760
        %v4795 = vsub.f32 %v4793, %v4794
        %v4796 = vand.u32 %v4795, 4294901760
        %4797 = vmatmul.mubr.f32.gmra.mrb[0].mxu0 %v4796
        %v4798 = vpop.f32.mrb[0].mxu0
        %v4799 = vadd.f32 0.0, %v4798
        %v4800 = vpop.f32.mrb[0].mxu0
        %4801 = vdwg.mxu0
        %4802 = vmatprep.subr.mxu0 0.0
        %v4803 = vand.u32 %v4716, 4294901760
        %v4804 = vsub.f32 %v4716, %v4803
        %v4805 = vand.u32 %v4804, 4294901760
        %v4806 = vsub.f32 %v4804, %v4805
        %v4807 = vand.u32 %v4806, 4294901760
        %4808 = vmatpush1.msra.mxu0 %v4807
        %4809 = vmatprep.subr.mxu0 0.0
        %v4810 = vand.u32 %v4722, 4294901760
        %v4811 = vsub.f32 %v4722, %v4810
        %v4812 = vand.u32 %v4811, 4294901760
        %v4813 = vsub.f32 %v4811, %v4812
        %v4814 = vand.u32 %v4813, 4294901760
        %4815 = vmatpush1.msra.mxu0 %v4814
        %4816 = vmatprep.subr.mxu0 0.0
        %4817 = vmatpush1.msra.mxu0 0.0
        %4818 = vmatprep.subr.mxu0 0.0
        %4819 = vmatpush1.msra.mxu0 0.0
        %4820 = vmatprep.subr.mxu0 0.0
        %4821 = vmatpush1.msra.mxu0 0.0
        %4822 = vmatprep.subr.mxu0 0.0
        %4823 = vmatpush1.msra.mxu0 0.0
        %4824 = vmatprep.subr.mxu0 0.0
        %4825 = vmatpush1.msra.mxu0 0.0
        %4826 = vmatprep.subr.mxu0 0.0
        %4827 = vmatpush1.msra.mxu0 0.0
        %4828 = vmatprep.subr.mxu0 0.0
        %4829 = vmatpush1.msra.mxu0 0.0
        %4830 = vmatprep.subr.mxu0 0.0
        %4831 = vmatpush1.msra.mxu0 0.0
        %4832 = vmatprep.subr.mxu0 0.0
        %4833 = vmatpush1.msra.mxu0 0.0
        %4834 = vmatprep.subr.mxu0 0.0
        %4835 = vmatpush1.msra.mxu0 0.0
        %4836 = vmatprep.subr.mxu0 0.0
        %4837 = vmatpush1.msra.mxu0 0.0
        %4838 = vmatprep.subr.mxu0 0.0
        %4839 = vmatpush1.msra.mxu0 0.0
        %4840 = vmatprep.subr.mxu0 0.0
        %4841 = vmatpush1.msra.mxu0 0.0
        %4842 = vmatprep.subr.mxu0 0.0
        %4843 = vmatpush1.msra.mxu0 0.0
        %4844 = vmatprep.subr.mxu0 0.0
        %4845 = vmatpush1.msra.mxu0 0.0
        %4846 = vmatprep.subr.mxu0 0.0
        %4847 = vmatpush1.msra.mxu0 0.0
        %4848 = vmatprep.subr.mxu0 0.0
        %4849 = vmatpush1.msra.mxu0 0.0
        %4850 = vmatprep.subr.mxu0 0.0
        %4851 = vmatpush1.msra.mxu0 0.0
        %4852 = vmatprep.subr.mxu0 0.0
        %4853 = vmatpush1.msra.mxu0 0.0
        %4854 = vmatprep.subr.mxu0 0.0
        %4855 = vmatpush1.msra.mxu0 0.0
        %4856 = vmatprep.subr.mxu0 0.0
        %4857 = vmatpush1.msra.mxu0 0.0
        %4858 = vmatprep.subr.mxu0 0.0
        %4859 = vmatpush1.msra.mxu0 0.0
        %4860 = vmatprep.subr.mxu0 0.0
        %4861 = vmatpush1.msra.mxu0 0.0
        %4862 = vmatprep.subr.mxu0 0.0
        %4863 = vmatpush1.msra.mxu0 0.0
        %4864 = vmatprep.subr.mxu0 0.0
        %4865 = vmatpush1.msra.mxu0 0.0
        %4866 = vmatprep.subr.mxu0 0.0
        %4867 = vmatpush1.msra.mxu0 0.0
        %4868 = vmatprep.subr.mxu0 0.0
        %4869 = vmatpush1.msra.mxu0 0.0
        %4870 = vmatprep.subr.mxu0 0.0
        %4871 = vmatpush1.msra.mxu0 0.0
        %4872 = vmatprep.subr.mxu0 0.0
        %4873 = vmatpush1.msra.mxu0 0.0
        %4874 = vmatprep.subr.mxu0 0.0
        %4875 = vmatpush1.msra.mxu0 0.0
        %4876 = vmatprep.mubr.f32.mxu0 0.0
        %v4877 = vand.u32 %v849, 4294901760
        %4878 = vmatmul.mubr.f32.gmra.mrb[0].mxu0 %v4877
        %v4879 = vpop.f32.mrb[0].mxu0
        %v4880 = vadd.f32 %v4799, %v4879
        %v4881 = vpop.f32.mrb[0].mxu0
        %4882 = vdwg.mxu0
        %4883 = vmatprep.subr.mxu0 0.0
        %v4884 = vand.u32 %v4716, 4294901760
        %v4885 = vsub.f32 %v4716, %v4884
        %4886 = vmatpush1.msra.mxu0 %v4885
        %4887 = vmatprep.subr.mxu0 0.0
        %v4888 = vand.u32 %v4722, 4294901760
        %v4889 = vsub.f32 %v4722, %v4888
        %4890 = vmatpush1.msra.mxu0 %v4889
        %4891 = vmatprep.subr.mxu0 0.0
        %4892 = vmatpush1.msra.mxu0 0.0
        %4893 = vmatprep.subr.mxu0 0.0
        %4894 = vmatpush1.msra.mxu0 0.0
        %4895 = vmatprep.subr.mxu0 0.0
        %4896 = vmatpush1.msra.mxu0 0.0
        %4897 = vmatprep.subr.mxu0 0.0
        %4898 = vmatpush1.msra.mxu0 0.0
        %4899 = vmatprep.subr.mxu0 0.0
        %4900 = vmatpush1.msra.mxu0 0.0
        %4901 = vmatprep.subr.mxu0 0.0
        %4902 = vmatpush1.msra.mxu0 0.0
        %4903 = vmatprep.subr.mxu0 0.0
        %4904 = vmatpush1.msra.mxu0 0.0
        %4905 = vmatprep.subr.mxu0 0.0
        %4906 = vmatpush1.msra.mxu0 0.0
        %4907 = vmatprep.subr.mxu0 0.0
        %4908 = vmatpush1.msra.mxu0 0.0
        %4909 = vmatprep.subr.mxu0 0.0
        %4910 = vmatpush1.msra.mxu0 0.0
        %4911 = vmatprep.subr.mxu0 0.0
        %4912 = vmatpush1.msra.mxu0 0.0
        %4913 = vmatprep.subr.mxu0 0.0
        %4914 = vmatpush1.msra.mxu0 0.0
        %4915 = vmatprep.subr.mxu0 0.0
        %4916 = vmatpush1.msra.mxu0 0.0
        %4917 = vmatprep.subr.mxu0 0.0
        %4918 = vmatpush1.msra.mxu0 0.0
        %4919 = vmatprep.subr.mxu0 0.0
        %4920 = vmatpush1.msra.mxu0 0.0
        %4921 = vmatprep.subr.mxu0 0.0
        %4922 = vmatpush1.msra.mxu0 0.0
        %4923 = vmatprep.subr.mxu0 0.0
        %4924 = vmatpush1.msra.mxu0 0.0
        %4925 = vmatprep.subr.mxu0 0.0
        %4926 = vmatpush1.msra.mxu0 0.0
        %4927 = vmatprep.subr.mxu0 0.0
        %4928 = vmatpush1.msra.mxu0 0.0
        %4929 = vmatprep.subr.mxu0 0.0
        %4930 = vmatpush1.msra.mxu0 0.0
        %4931 = vmatprep.subr.mxu0 0.0
        %4932 = vmatpush1.msra.mxu0 0.0
        %4933 = vmatprep.subr.mxu0 0.0
        %4934 = vmatpush1.msra.mxu0 0.0
        %4935 = vmatprep.subr.mxu0 0.0
        %4936 = vmatpush1.msra.mxu0 0.0
        %4937 = vmatprep.subr.mxu0 0.0
        %4938 = vmatpush1.msra.mxu0 0.0
        %4939 = vmatprep.subr.mxu0 0.0
        %4940 = vmatpush1.msra.mxu0 0.0
        %4941 = vmatprep.subr.mxu0 0.0
        %4942 = vmatpush1.msra.mxu0 0.0
        %4943 = vmatprep.subr.mxu0 0.0
        %4944 = vmatpush1.msra.mxu0 0.0
        %4945 = vmatprep.subr.mxu0 0.0
        %4946 = vmatpush1.msra.mxu0 0.0
        %4947 = vmatprep.subr.mxu0 0.0
        %4948 = vmatpush1.msra.mxu0 0.0
        %4949 = vmatprep.subr.mxu0 0.0
        %4950 = vmatpush1.msra.mxu0 0.0
        %4951 = vmatprep.mubr.f32.mxu0 0.0
        %v4952 = vand.u32 %v849, 4294901760
        %v4953 = vsub.f32 %v849, %v4952
        %4954 = vmatmul.mubr.f32.gmra.mrb[0].mxu0 %v4953
        %v4955 = vpop.f32.mrb[0].mxu0
        %v4956 = vadd.f32 %v4880, %v4955
        %v4957 = vpop.f32.mrb[0].mxu0
        %4958 = vdwg.mxu0
        %4959 = vmatprep.subr.mxu0 0.0
        %v4960 = vand.u32 %v4716, 4294901760
        %4961 = vmatpush1.msra.mxu0 %v4960
        %4962 = vmatprep.subr.mxu0 0.0
        %v4963 = vand.u32 %v4722, 4294901760
        %4964 = vmatpush1.msra.mxu0 %v4963
        %4965 = vmatprep.subr.mxu0 0.0
        %4966 = vmatpush1.msra.mxu0 0.0
        %4967 = vmatprep.subr.mxu0 0.0
        %4968 = vmatpush1.msra.mxu0 0.0
        %4969 = vmatprep.subr.mxu0 0.0
        %4970 = vmatpush1.msra.mxu0 0.0
        %4971 = vmatprep.subr.mxu0 0.0
        %4972 = vmatpush1.msra.mxu0 0.0
        %4973 = vmatprep.subr.mxu0 0.0
        %4974 = vmatpush1.msra.mxu0 0.0
        %4975 = vmatprep.subr.mxu0 0.0
        %4976 = vmatpush1.msra.mxu0 0.0
        %4977 = vmatprep.subr.mxu0 0.0
        %4978 = vmatpush1.msra.mxu0 0.0
        %4979 = vmatprep.subr.mxu0 0.0
        %4980 = vmatpush1.msra.mxu0 0.0
        %4981 = vmatprep.subr.mxu0 0.0
        %4982 = vmatpush1.msra.mxu0 0.0
        %4983 = vmatprep.subr.mxu0 0.0
        %4984 = vmatpush1.msra.mxu0 0.0
        %4985 = vmatprep.subr.mxu0 0.0
        %4986 = vmatpush1.msra.mxu0 0.0
        %4987 = vmatprep.subr.mxu0 0.0
        %4988 = vmatpush1.msra.mxu0 0.0
        %4989 = vmatprep.subr.mxu0 0.0
        %4990 = vmatpush1.msra.mxu0 0.0
        %4991 = vmatprep.subr.mxu0 0.0
        %4992 = vmatpush1.msra.mxu0 0.0
        %4993 = vmatprep.subr.mxu0 0.0
        %4994 = vmatpush1.msra.mxu0 0.0
        %4995 = vmatprep.subr.mxu0 0.0
        %4996 = vmatpush1.msra.mxu0 0.0
        %4997 = vmatprep.subr.mxu0 0.0
        %4998 = vmatpush1.msra.mxu0 0.0
        %4999 = vmatprep.subr.mxu0 0.0
        %5000 = vmatpush1.msra.mxu0 0.0
        %5001 = vmatprep.subr.mxu0 0.0
        %5002 = vmatpush1.msra.mxu0 0.0
        %5003 = vmatprep.subr.mxu0 0.0
        %5004 = vmatpush1.msra.mxu0 0.0
        %5005 = vmatprep.subr.mxu0 0.0
        %5006 = vmatpush1.msra.mxu0 0.0
        %5007 = vmatprep.subr.mxu0 0.0
        %5008 = vmatpush1.msra.mxu0 0.0
        %5009 = vmatprep.subr.mxu0 0.0
        %5010 = vmatpush1.msra.mxu0 0.0
        %5011 = vmatprep.subr.mxu0 0.0
        %5012 = vmatpush1.msra.mxu0 0.0
        %5013 = vmatprep.subr.mxu0 0.0
        %5014 = vmatpush1.msra.mxu0 0.0
        %5015 = vmatprep.subr.mxu0 0.0
        %5016 = vmatpush1.msra.mxu0 0.0
        %5017 = vmatprep.subr.mxu0 0.0
        %5018 = vmatpush1.msra.mxu0 0.0
        %5019 = vmatprep.subr.mxu0 0.0
        %5020 = vmatpush1.msra.mxu0 0.0
        %5021 = vmatprep.subr.mxu0 0.0
        %5022 = vmatpush1.msra.mxu0 0.0
        %5023 = vmatprep.subr.mxu0 0.0
        %5024 = vmatpush1.msra.mxu0 0.0
        %5025 = vmatprep.mubr.f32.mxu0 0.0
        %v5026 = vand.u32 %v849, 4294901760
        %v5027 = vsub.f32 %v849, %v5026
        %v5028 = vand.u32 %v5027, 4294901760
        %5029 = vmatmul.mubr.f32.gmra.mrb[0].mxu0 %v5028
        %v5030 = vpop.f32.mrb[0].mxu0
        %v5031 = vadd.f32 %v4956, %v5030
        %v5032 = vpop.f32.mrb[0].mxu0
        %5033 = vdwg.mxu0
        %5034 = vmatprep.subr.mxu0 0.0
        %v5035 = vand.u32 %v4716, 4294901760
        %v5036 = vsub.f32 %v4716, %v5035
        %v5037 = vand.u32 %v5036, 4294901760
        %5038 = vmatpush1.msra.mxu0 %v5037
        %5039 = vmatprep.subr.mxu0 0.0
        %v5040 = vand.u32 %v4722, 4294901760
        %v5041 = vsub.f32 %v4722, %v5040
        %v5042 = vand.u32 %v5041, 4294901760
        %5043 = vmatpush1.msra.mxu0 %v5042
        %5044 = vmatprep.subr.mxu0 0.0
        %5045 = vmatpush1.msra.mxu0 0.0
        %5046 = vmatprep.subr.mxu0 0.0
        %5047 = vmatpush1.msra.mxu0 0.0
        %5048 = vmatprep.subr.mxu0 0.0
        %5049 = vmatpush1.msra.mxu0 0.0
        %5050 = vmatprep.subr.mxu0 0.0
        %5051 = vmatpush1.msra.mxu0 0.0
        %5052 = vmatprep.subr.mxu0 0.0
        %5053 = vmatpush1.msra.mxu0 0.0
        %5054 = vmatprep.subr.mxu0 0.0
        %5055 = vmatpush1.msra.mxu0 0.0
        %5056 = vmatprep.subr.mxu0 0.0
        %5057 = vmatpush1.msra.mxu0 0.0
        %5058 = vmatprep.subr.mxu0 0.0
        %5059 = vmatpush1.msra.mxu0 0.0
        %5060 = vmatprep.subr.mxu0 0.0
        %5061 = vmatpush1.msra.mxu0 0.0
        %5062 = vmatprep.subr.mxu0 0.0
        %5063 = vmatpush1.msra.mxu0 0.0
        %5064 = vmatprep.subr.mxu0 0.0
        %5065 = vmatpush1.msra.mxu0 0.0
        %5066 = vmatprep.subr.mxu0 0.0
        %5067 = vmatpush1.msra.mxu0 0.0
        %5068 = vmatprep.subr.mxu0 0.0
        %5069 = vmatpush1.msra.mxu0 0.0
        %5070 = vmatprep.subr.mxu0 0.0
        %5071 = vmatpush1.msra.mxu0 0.0
        %5072 = vmatprep.subr.mxu0 0.0
        %5073 = vmatpush1.msra.mxu0 0.0
        %5074 = vmatprep.subr.mxu0 0.0
        %5075 = vmatpush1.msra.mxu0 0.0
        %5076 = vmatprep.subr.mxu0 0.0
        %5077 = vmatpush1.msra.mxu0 0.0
        %5078 = vmatprep.subr.mxu0 0.0
        %5079 = vmatpush1.msra.mxu0 0.0
        %5080 = vmatprep.subr.mxu0 0.0
        %5081 = vmatpush1.msra.mxu0 0.0
        %5082 = vmatprep.subr.mxu0 0.0
        %5083 = vmatpush1.msra.mxu0 0.0
        %5084 = vmatprep.subr.mxu0 0.0
        %5085 = vmatpush1.msra.mxu0 0.0
        %5086 = vmatprep.subr.mxu0 0.0
        %5087 = vmatpush1.msra.mxu0 0.0
        %5088 = vmatprep.subr.mxu0 0.0
        %5089 = vmatpush1.msra.mxu0 0.0
        %5090 = vmatprep.subr.mxu0 0.0
        %5091 = vmatpush1.msra.mxu0 0.0
        %5092 = vmatprep.subr.mxu0 0.0
        %5093 = vmatpush1.msra.mxu0 0.0
        %5094 = vmatprep.subr.mxu0 0.0
        %5095 = vmatpush1.msra.mxu0 0.0
        %5096 = vmatprep.subr.mxu0 0.0
        %5097 = vmatpush1.msra.mxu0 0.0
        %5098 = vmatprep.subr.mxu0 0.0
        %5099 = vmatpush1.msra.mxu0 0.0
        %5100 = vmatprep.subr.mxu0 0.0
        %5101 = vmatpush1.msra.mxu0 0.0
        %5102 = vmatprep.subr.mxu0 0.0
        %5103 = vmatpush1.msra.mxu0 0.0
        %5104 = vmatprep.mubr.f32.mxu0 0.0
        %v5105 = vand.u32 %v849, 4294901760
        %5106 = vmatmul.mubr.f32.gmra.mrb[0].mxu0 %v5105
        %v5107 = vpop.f32.mrb[0].mxu0
        %v5108 = vadd.f32 %v5031, %v5107
        %v5109 = vpop.f32.mrb[0].mxu0
        %5110 = vdwg.mxu0
        %5111 = vmatprep.subr.mxu0 0.0
        %v5112 = vand.u32 %v4716, 4294901760
        %5113 = vmatpush1.msra.mxu0 %v5112
        %5114 = vmatprep.subr.mxu0 0.0
        %v5115 = vand.u32 %v4722, 4294901760
        %5116 = vmatpush1.msra.mxu0 %v5115
        %5117 = vmatprep.subr.mxu0 0.0
        %5118 = vmatpush1.msra.mxu0 0.0
        %5119 = vmatprep.subr.mxu0 0.0
        %5120 = vmatpush1.msra.mxu0 0.0
        %5121 = vmatprep.subr.mxu0 0.0
        %5122 = vmatpush1.msra.mxu0 0.0
        %5123 = vmatprep.subr.mxu0 0.0
        %5124 = vmatpush1.msra.mxu0 0.0
        %5125 = vmatprep.subr.mxu0 0.0
        %5126 = vmatpush1.msra.mxu0 0.0
        %5127 = vmatprep.subr.mxu0 0.0
        %5128 = vmatpush1.msra.mxu0 0.0
        %5129 = vmatprep.subr.mxu0 0.0
        %5130 = vmatpush1.msra.mxu0 0.0
        %5131 = vmatprep.subr.mxu0 0.0
        %5132 = vmatpush1.msra.mxu0 0.0
        %5133 = vmatprep.subr.mxu0 0.0
        %5134 = vmatpush1.msra.mxu0 0.0
        %5135 = vmatprep.subr.mxu0 0.0
        %5136 = vmatpush1.msra.mxu0 0.0
        %5137 = vmatprep.subr.mxu0 0.0
        %5138 = vmatpush1.msra.mxu0 0.0
        %5139 = vmatprep.subr.mxu0 0.0
        %5140 = vmatpush1.msra.mxu0 0.0
        %5141 = vmatprep.subr.mxu0 0.0
        %5142 = vmatpush1.msra.mxu0 0.0
        %5143 = vmatprep.subr.mxu0 0.0
        %5144 = vmatpush1.msra.mxu0 0.0
        %5145 = vmatprep.subr.mxu0 0.0
        %5146 = vmatpush1.msra.mxu0 0.0
        %5147 = vmatprep.subr.mxu0 0.0
        %5148 = vmatpush1.msra.mxu0 0.0
        %5149 = vmatprep.subr.mxu0 0.0
        %5150 = vmatpush1.msra.mxu0 0.0
        %5151 = vmatprep.subr.mxu0 0.0
        %5152 = vmatpush1.msra.mxu0 0.0
        %5153 = vmatprep.subr.mxu0 0.0
        %5154 = vmatpush1.msra.mxu0 0.0
        %5155 = vmatprep.subr.mxu0 0.0
        %5156 = vmatpush1.msra.mxu0 0.0
        %5157 = vmatprep.subr.mxu0 0.0
        %5158 = vmatpush1.msra.mxu0 0.0
        %5159 = vmatprep.subr.mxu0 0.0
        %5160 = vmatpush1.msra.mxu0 0.0
        %5161 = vmatprep.subr.mxu0 0.0
        %5162 = vmatpush1.msra.mxu0 0.0
        %5163 = vmatprep.subr.mxu0 0.0
        %5164 = vmatpush1.msra.mxu0 0.0
        %5165 = vmatprep.subr.mxu0 0.0
        %5166 = vmatpush1.msra.mxu0 0.0
        %5167 = vmatprep.subr.mxu0 0.0
        %5168 = vmatpush1.msra.mxu0 0.0
        %5169 = vmatprep.subr.mxu0 0.0
        %5170 = vmatpush1.msra.mxu0 0.0
        %5171 = vmatprep.subr.mxu0 0.0
        %5172 = vmatpush1.msra.mxu0 0.0
        %5173 = vmatprep.subr.mxu0 0.0
        %5174 = vmatpush1.msra.mxu0 0.0
        %5175 = vmatprep.subr.mxu0 0.0
        %5176 = vmatpush1.msra.mxu0 0.0
        %5177 = vmatprep.mubr.f32.mxu0 0.0
        %v5178 = vand.u32 %v849, 4294901760
        %5179 = vmatmul.mubr.f32.gmra.mrb[0].mxu0 %v5178
        %v5180 = vpop.f32.mrb[0].mxu0
        %v5181 = vadd.f32 %v5108, %v5180
        %v5182 = vpop.f32.mrb[0].mxu0
        %5183 = vdwg.mxu0
        %v5184 = vmul.f32 %v1307, %v1307
        %v5185 = vmul.f32 %v2274, %v2274
        %v5186 = vmul.f32 %v1307, %v2274
        %v5187 = vsub.f32 %v3243, %v5184
        %v5188 = vsub.f32 %v4212, %v5185
        %v5189 = vsub.f32 %v5181, %v5186
        %v5190 = vmul.f32 %v5189, 2.0
        %v5191 = vadd.f32 %v5190, 58.5225
        %v5192 = vadd.f32 %v5187, %v5188
        %v5193 = vadd.f32 %v5192, 58.5225
        %v5194 = vrcp.pop %v5193
        %v5195 = vmul.f32 %v5191, %v5194
        %v5196 = vmul.f32 %v5186, 2.0
        %v5197 = vadd.f32 %v5196, 6.5025
        %v5198 = vadd.f32 %v5184, %v5185
        %v5199 = vadd.f32 %v5198, 6.5025
        %v5200 = vrcp.pop %v5199
        %v5201 = vmul.f32 %v5197, %v5200
        %v5202 = vmul.f32 %v5201, %v5195
        %vm5203 = vcmask 46080
        %v5204 = vsel %vm5203, %v5202, 0.0
        %5205 = vadd.xlane.f32.xlu0 %v5204
        %v5206 = vpop.xlane.xlu0 %5205
        %v5207 = vrot.slane %v5206, 4
        %v5208 = vadd.f32 %v5206, %v5207
        %v5209 = vrot.slane %v5208, 2
        %v5210 = vadd.f32 %v5208, %v5209
        %v5211 = vrot.slane %v5210, 1
        %v5212 = vadd.f32 %v5210, %v5211
        %s5213 = vtos %v5212
        %s5214 = sadd.f32 %s5213, 0.0
        %s5215 = scalar_lea.vmem %s291, 16 [#allocation2]
        %v5216 = vld [vmem:[%s5215] sm:$0xff]
        %v5217 = vld [vmem:[%s5215 + $0x8] sm:$0xff]
        %s5218 = scalar_lea.vmem %s300, 16 [#allocation5]
        %v5219 = vld [vmem:[%s5218] sm:$0xff]
        %v5220 = vld [vmem:[%s5218 + $0x8] sm:$0xff]
        %v5222 = vsel %vm339, %v5216, 0
        %v5225 = vsel %vm339, %v5217, 0
        %5227 = vmatprep.subr.mxu0 0.0
        %v5228 = vand.u32 %v332, 4294901760
        %5229 = vmatpush1.msra.mxu0 %v5228
        %5230 = vmatprep.subr.mxu0 0.0
        %v5231 = vand.u32 %v333, 4294901760
        %5232 = vmatpush1.msra.mxu0 %v5231
        %5233 = vmatprep.subr.mxu0 0.0
        %5234 = vmatpush1.msra.mxu0 0.0
        %5235 = vmatprep.subr.mxu0 0.0
        %5236 = vmatpush1.msra.mxu0 0.0
        %5237 = vmatprep.subr.mxu0 0.0
        %5238 = vmatpush1.msra.mxu0 0.0
        %5239 = vmatprep.subr.mxu0 0.0
        %5240 = vmatpush1.msra.mxu0 0.0
        %5241 = vmatprep.subr.mxu0 0.0
        %5242 = vmatpush1.msra.mxu0 0.0
        %5243 = vmatprep.subr.mxu0 0.0
        %5244 = vmatpush1.msra.mxu0 0.0
        %5245 = vmatprep.subr.mxu0 0.0
        %5246 = vmatpush1.msra.mxu0 0.0
        %5247 = vmatprep.subr.mxu0 0.0
        %5248 = vmatpush1.msra.mxu0 0.0
        %5249 = vmatprep.subr.mxu0 0.0
        %5250 = vmatpush1.msra.mxu0 0.0
        %5251 = vmatprep.subr.mxu0 0.0
        %5252 = vmatpush1.msra.mxu0 0.0
        %5253 = vmatprep.subr.mxu0 0.0
        %5254 = vmatpush1.msra.mxu0 0.0
        %5255 = vmatprep.subr.mxu0 0.0
        %5256 = vmatpush1.msra.mxu0 0.0
        %5257 = vmatprep.subr.mxu0 0.0
        %5258 = vmatpush1.msra.mxu0 0.0
        %5259 = vmatprep.subr.mxu0 0.0
        %5260 = vmatpush1.msra.mxu0 0.0
        %5261 = vmatprep.subr.mxu0 0.0
        %5262 = vmatpush1.msra.mxu0 0.0
        %5263 = vmatprep.subr.mxu0 0.0
        %5264 = vmatpush1.msra.mxu0 0.0
        %5265 = vmatprep.subr.mxu0 0.0
        %5266 = vmatpush1.msra.mxu0 0.0
        %5267 = vmatprep.subr.mxu0 0.0
        %5268 = vmatpush1.msra.mxu0 0.0
        %5269 = vmatprep.subr.mxu0 0.0
        %5270 = vmatpush1.msra.mxu0 0.0
        %5271 = vmatprep.subr.mxu0 0.0
        %5272 = vmatpush1.msra.mxu0 0.0
        %5273 = vmatprep.subr.mxu0 0.0
        %5274 = vmatpush1.msra.mxu0 0.0
        %5275 = vmatprep.subr.mxu0 0.0
        %5276 = vmatpush1.msra.mxu0 0.0
        %5277 = vmatprep.subr.mxu0 0.0
        %5278 = vmatpush1.msra.mxu0 0.0
        %5279 = vmatprep.subr.mxu0 0.0
        %5280 = vmatpush1.msra.mxu0 0.0
        %5281 = vmatprep.subr.mxu0 0.0
        %5282 = vmatpush1.msra.mxu0 0.0
        %5283 = vmatprep.subr.mxu0 0.0
        %5284 = vmatpush1.msra.mxu0 0.0
        %5285 = vmatprep.subr.mxu0 0.0
        %5286 = vmatpush1.msra.mxu0 0.0
        %5287 = vmatprep.subr.mxu0 0.0
        %5288 = vmatpush1.msra.mxu0 0.0
        %5289 = vmatprep.subr.mxu0 0.0
        %5290 = vmatpush1.msra.mxu0 0.0
        %5291 = vmatprep.subr.mxu0 0.0
        %5292 = vmatpush1.msra.mxu0 0.0
        %5293 = vmatprep.mubr.f32.mxu0 0.0
        %v5294 = vand.u32 %v5222, 4294901760
        %v5295 = vsub.f32 %v5222, %v5294
        %v5296 = vand.u32 %v5295, 4294901760
        %v5297 = vsub.f32 %v5295, %v5296
        %v5298 = vand.u32 %v5297, 4294901760
        %5299 = vmatmul.mubr.f32.gmra.mrb[0].mxu0 %v5298
        %v5300 = vpop.f32.mrb[0].mxu0
        %v5301 = vadd.f32 0.0, %v5300
        %v5302 = vpop.f32.mrb[0].mxu0
        %5303 = vmatprep.mubr.f32.mxu0 0.0
        %v5304 = vand.u32 %v5225, 4294901760
        %v5305 = vsub.f32 %v5225, %v5304
        %v5306 = vand.u32 %v5305, 4294901760
        %v5307 = vsub.f32 %v5305, %v5306
        %v5308 = vand.u32 %v5307, 4294901760
        %5309 = vmatmul.mubr.f32.gmra.mrb[0].mxu0 %v5308
        %v5310 = vpop.f32.mrb[0].mxu0
        %v5311 = vadd.f32 0.0, %v5310
        %v5312 = vpop.f32.mrb[0].mxu0
        %5313 = vdwg.mxu0
        %5314 = vmatprep.subr.mxu0 0.0
        %v5315 = vand.u32 %v332, 4294901760
        %v5316 = vsub.f32 %v332, %v5315
        %v5317 = vand.u32 %v5316, 4294901760
        %v5318 = vsub.f32 %v5316, %v5317
        %v5319 = vand.u32 %v5318, 4294901760
        %5320 = vmatpush1.msra.mxu0 %v5319
        %5321 = vmatprep.subr.mxu0 0.0
        %v5322 = vand.u32 %v333, 4294901760
        %v5323 = vsub.f32 %v333, %v5322
        %v5324 = vand.u32 %v5323, 4294901760
        %v5325 = vsub.f32 %v5323, %v5324
        %v5326 = vand.u32 %v5325, 4294901760
        %5327 = vmatpush1.msra.mxu0 %v5326
        %5328 = vmatprep.subr.mxu0 0.0
        %5329 = vmatpush1.msra.mxu0 0.0
        %5330 = vmatprep.subr.mxu0 0.0
        %5331 = vmatpush1.msra.mxu0 0.0
        %5332 = vmatprep.subr.mxu0 0.0
        %5333 = vmatpush1.msra.mxu0 0.0
        %5334 = vmatprep.subr.mxu0 0.0
        %5335 = vmatpush1.msra.mxu0 0.0
        %5336 = vmatprep.subr.mxu0 0.0
        %5337 = vmatpush1.msra.mxu0 0.0
        %5338 = vmatprep.subr.mxu0 0.0
        %5339 = vmatpush1.msra.mxu0 0.0
        %5340 = vmatprep.subr.mxu0 0.0
        %5341 = vmatpush1.msra.mxu0 0.0
        %5342 = vmatprep.subr.mxu0 0.0
        %5343 = vmatpush1.msra.mxu0 0.0
        %5344 = vmatprep.subr.mxu0 0.0
        %5345 = vmatpush1.msra.mxu0 0.0
        %5346 = vmatprep.subr.mxu0 0.0
        %5347 = vmatpush1.msra.mxu0 0.0
        %5348 = vmatprep.subr.mxu0 0.0
        %5349 = vmatpush1.msra.mxu0 0.0
        %5350 = vmatprep.subr.mxu0 0.0
        %5351 = vmatpush1.msra.mxu0 0.0
        %5352 = vmatprep.subr.mxu0 0.0
        %5353 = vmatpush1.msra.mxu0 0.0
        %5354 = vmatprep.subr.mxu0 0.0
        %5355 = vmatpush1.msra.mxu0 0.0
        %5356 = vmatprep.subr.mxu0 0.0
        %5357 = vmatpush1.msra.mxu0 0.0
        %5358 = vmatprep.subr.mxu0 0.0
        %5359 = vmatpush1.msra.mxu0 0.0
        %5360 = vmatprep.subr.mxu0 0.0
        %5361 = vmatpush1.msra.mxu0 0.0
        %5362 = vmatprep.subr.mxu0 0.0
        %5363 = vmatpush1.msra.mxu0 0.0
        %5364 = vmatprep.subr.mxu0 0.0
        %5365 = vmatpush1.msra.mxu0 0.0
        %5366 = vmatprep.subr.mxu0 0.0
        %5367 = vmatpush1.msra.mxu0 0.0
        %5368 = vmatprep.subr.mxu0 0.0
        %5369 = vmatpush1.msra.mxu0 0.0
        %5370 = vmatprep.subr.mxu0 0.0
        %5371 = vmatpush1.msra.mxu0 0.0
        %5372 = vmatprep.subr.mxu0 0.0
        %5373 = vmatpush1.msra.mxu0 0.0
        %5374 = vmatprep.subr.mxu0 0.0
        %5375 = vmatpush1.msra.mxu0 0.0
        %5376 = vmatprep.subr.mxu0 0.0
        %5377 = vmatpush1.msra.mxu0 0.0
        %5378 = vmatprep.subr.mxu0 0.0
        %5379 = vmatpush1.msra.mxu0 0.0
        %5380 = vmatprep.subr.mxu0 0.0
        %5381 = vmatpush1.msra.mxu0 0.0
        %5382 = vmatprep.subr.mxu0 0.0
        %5383 = vmatpush1.msra.mxu0 0.0
        %5384 = vmatprep.subr.mxu0 0.0
        %5385 = vmatpush1.msra.mxu0 0.0
        %5386 = vmatprep.subr.mxu0 0.0
        %5387 = vmatpush1.msra.mxu0 0.0
        %5388 = vmatprep.mubr.f32.mxu0 0.0
        %v5389 = vand.u32 %v5222, 4294901760
        %5390 = vmatmul.mubr.f32.gmra.mrb[0].mxu0 %v5389
        %v5391 = vpop.f32.mrb[0].mxu0
        %v5392 = vadd.f32 %v5301, %v5391
        %v5393 = vpop.f32.mrb[0].mxu0
        %5394 = vmatprep.mubr.f32.mxu0 0.0
        %v5395 = vand.u32 %v5225, 4294901760
        %5396 = vmatmul.mubr.f32.gmra.mrb[0].mxu0 %v5395
        %v5397 = vpop.f32.mrb[0].mxu0
        %v5398 = vadd.f32 %v5311, %v5397
        %v5399 = vpop.f32.mrb[0].mxu0
        %5400 = vdwg.mxu0
        %5401 = vmatprep.subr.mxu0 0.0
        %v5402 = vand.u32 %v332, 4294901760
        %v5403 = vsub.f32 %v332, %v5402
        %5404 = vmatpush1.msra.mxu0 %v5403
        %5405 = vmatprep.subr.mxu0 0.0
        %v5406 = vand.u32 %v333, 4294901760
        %v5407 = vsub.f32 %v333, %v5406
        %5408 = vmatpush1.msra.mxu0 %v5407
        %5409 = vmatprep.subr.mxu0 0.0
        %5410 = vmatpush1.msra.mxu0 0.0
        %5411 = vmatprep.subr.mxu0 0.0
        %5412 = vmatpush1.msra.mxu0 0.0
        %5413 = vmatprep.subr.mxu0 0.0
        %5414 = vmatpush1.msra.mxu0 0.0
        %5415 = vmatprep.subr.mxu0 0.0
        %5416 = vmatpush1.msra.mxu0 0.0
        %5417 = vmatprep.subr.mxu0 0.0
        %5418 = vmatpush1.msra.mxu0 0.0
        %5419 = vmatprep.subr.mxu0 0.0
        %5420 = vmatpush1.msra.mxu0 0.0
        %5421 = vmatprep.subr.mxu0 0.0
        %5422 = vmatpush1.msra.mxu0 0.0
        %5423 = vmatprep.subr.mxu0 0.0
        %5424 = vmatpush1.msra.mxu0 0.0
        %5425 = vmatprep.subr.mxu0 0.0
        %5426 = vmatpush1.msra.mxu0 0.0
        %5427 = vmatprep.subr.mxu0 0.0
        %5428 = vmatpush1.msra.mxu0 0.0
        %5429 = vmatprep.subr.mxu0 0.0
        %5430 = vmatpush1.msra.mxu0 0.0
        %5431 = vmatprep.subr.mxu0 0.0
        %5432 = vmatpush1.msra.mxu0 0.0
        %5433 = vmatprep.subr.mxu0 0.0
        %5434 = vmatpush1.msra.mxu0 0.0
        %5435 = vmatprep.subr.mxu0 0.0
        %5436 = vmatpush1.msra.mxu0 0.0
        %5437 = vmatprep.subr.mxu0 0.0
        %5438 = vmatpush1.msra.mxu0 0.0
        %5439 = vmatprep.subr.mxu0 0.0
        %5440 = vmatpush1.msra.mxu0 0.0
        %5441 = vmatprep.subr.mxu0 0.0
        %5442 = vmatpush1.msra.mxu0 0.0
        %5443 = vmatprep.subr.mxu0 0.0
        %5444 = vmatpush1.msra.mxu0 0.0
        %5445 = vmatprep.subr.mxu0 0.0
        %5446 = vmatpush1.msra.mxu0 0.0
        %5447 = vmatprep.subr.mxu0 0.0
        %5448 = vmatpush1.msra.mxu0 0.0
        %5449 = vmatprep.subr.mxu0 0.0
        %5450 = vmatpush1.msra.mxu0 0.0
        %5451 = vmatprep.subr.mxu0 0.0
        %5452 = vmatpush1.msra.mxu0 0.0
        %5453 = vmatprep.subr.mxu0 0.0
        %5454 = vmatpush1.msra.mxu0 0.0
        %5455 = vmatprep.subr.mxu0 0.0
        %5456 = vmatpush1.msra.mxu0 0.0
        %5457 = vmatprep.subr.mxu0 0.0
        %5458 = vmatpush1.msra.mxu0 0.0
        %5459 = vmatprep.subr.mxu0 0.0
        %5460 = vmatpush1.msra.mxu0 0.0
        %5461 = vmatprep.subr.mxu0 0.0
        %5462 = vmatpush1.msra.mxu0 0.0
        %5463 = vmatprep.subr.mxu0 0.0
        %5464 = vmatpush1.msra.mxu0 0.0
        %5465 = vmatprep.subr.mxu0 0.0
        %5466 = vmatpush1.msra.mxu0 0.0
        %5467 = vmatprep.subr.mxu0 0.0
        %5468 = vmatpush1.msra.mxu0 0.0
        %5469 = vmatprep.mubr.f32.mxu0 0.0
        %v5470 = vand.u32 %v5222, 4294901760
        %v5471 = vsub.f32 %v5222, %v5470
        %5472 = vmatmul.mubr.f32.gmra.mrb[0].mxu0 %v5471
        %v5473 = vpop.f32.mrb[0].mxu0
        %v5474 = vadd.f32 %v5392, %v5473
        %v5475 = vpop.f32.mrb[0].mxu0
        %5476 = vmatprep.mubr.f32.mxu0 0.0
        %v5477 = vand.u32 %v5225, 4294901760
        %v5478 = vsub.f32 %v5225, %v5477
        %5479 = vmatmul.mubr.f32.gmra.mrb[0].mxu0 %v5478
        %v5480 = vpop.f32.mrb[0].mxu0
        %v5481 = vadd.f32 %v5398, %v5480
        %v5482 = vpop.f32.mrb[0].mxu0
        %5483 = vdwg.mxu0
        %5484 = vmatprep.subr.mxu0 0.0
        %v5485 = vand.u32 %v332, 4294901760
        %5486 = vmatpush1.msra.mxu0 %v5485
        %5487 = vmatprep.subr.mxu0 0.0
        %v5488 = vand.u32 %v333, 4294901760
        %5489 = vmatpush1.msra.mxu0 %v5488
        %5490 = vmatprep.subr.mxu0 0.0
        %5491 = vmatpush1.msra.mxu0 0.0
        %5492 = vmatprep.subr.mxu0 0.0
        %5493 = vmatpush1.msra.mxu0 0.0
        %5494 = vmatprep.subr.mxu0 0.0
        %5495 = vmatpush1.msra.mxu0 0.0
        %5496 = vmatprep.subr.mxu0 0.0
        %5497 = vmatpush1.msra.mxu0 0.0
        %5498 = vmatprep.subr.mxu0 0.0
        %5499 = vmatpush1.msra.mxu0 0.0
        %5500 = vmatprep.subr.mxu0 0.0
        %5501 = vmatpush1.msra.mxu0 0.0
        %5502 = vmatprep.subr.mxu0 0.0
        %5503 = vmatpush1.msra.mxu0 0.0
        %5504 = vmatprep.subr.mxu0 0.0
        %5505 = vmatpush1.msra.mxu0 0.0
        %5506 = vmatprep.subr.mxu0 0.0
        %5507 = vmatpush1.msra.mxu0 0.0
        %5508 = vmatprep.subr.mxu0 0.0
        %5509 = vmatpush1.msra.mxu0 0.0
        %5510 = vmatprep.subr.mxu0 0.0
        %5511 = vmatpush1.msra.mxu0 0.0
        %5512 = vmatprep.subr.mxu0 0.0
        %5513 = vmatpush1.msra.mxu0 0.0
        %5514 = vmatprep.subr.mxu0 0.0
        %5515 = vmatpush1.msra.mxu0 0.0
        %5516 = vmatprep.subr.mxu0 0.0
        %5517 = vmatpush1.msra.mxu0 0.0
        %5518 = vmatprep.subr.mxu0 0.0
        %5519 = vmatpush1.msra.mxu0 0.0
        %5520 = vmatprep.subr.mxu0 0.0
        %5521 = vmatpush1.msra.mxu0 0.0
        %5522 = vmatprep.subr.mxu0 0.0
        %5523 = vmatpush1.msra.mxu0 0.0
        %5524 = vmatprep.subr.mxu0 0.0
        %5525 = vmatpush1.msra.mxu0 0.0
        %5526 = vmatprep.subr.mxu0 0.0
        %5527 = vmatpush1.msra.mxu0 0.0
        %5528 = vmatprep.subr.mxu0 0.0
        %5529 = vmatpush1.msra.mxu0 0.0
        %5530 = vmatprep.subr.mxu0 0.0
        %5531 = vmatpush1.msra.mxu0 0.0
        %5532 = vmatprep.subr.mxu0 0.0
        %5533 = vmatpush1.msra.mxu0 0.0
        %5534 = vmatprep.subr.mxu0 0.0
        %5535 = vmatpush1.msra.mxu0 0.0
        %5536 = vmatprep.subr.mxu0 0.0
        %5537 = vmatpush1.msra.mxu0 0.0
        %5538 = vmatprep.subr.mxu0 0.0
        %5539 = vmatpush1.msra.mxu0 0.0
        %5540 = vmatprep.subr.mxu0 0.0
        %5541 = vmatpush1.msra.mxu0 0.0
        %5542 = vmatprep.subr.mxu0 0.0
        %5543 = vmatpush1.msra.mxu0 0.0
        %5544 = vmatprep.subr.mxu0 0.0
        %5545 = vmatpush1.msra.mxu0 0.0
        %5546 = vmatprep.subr.mxu0 0.0
        %5547 = vmatpush1.msra.mxu0 0.0
        %5548 = vmatprep.subr.mxu0 0.0
        %5549 = vmatpush1.msra.mxu0 0.0
        %5550 = vmatprep.mubr.f32.mxu0 0.0
        %v5551 = vand.u32 %v5222, 4294901760
        %v5552 = vsub.f32 %v5222, %v5551
        %v5553 = vand.u32 %v5552, 4294901760
        %5554 = vmatmul.mubr.f32.gmra.mrb[0].mxu0 %v5553
        %v5555 = vpop.f32.mrb[0].mxu0
        %v5556 = vadd.f32 %v5474, %v5555
        %v5557 = vpop.f32.mrb[0].mxu0
        %5558 = vmatprep.mubr.f32.mxu0 0.0
        %v5559 = vand.u32 %v5225, 4294901760
        %v5560 = vsub.f32 %v5225, %v5559
        %v5561 = vand.u32 %v5560, 4294901760
        %5562 = vmatmul.mubr.f32.gmra.mrb[0].mxu0 %v5561
        %v5563 = vpop.f32.mrb[0].mxu0
        %v5564 = vadd.f32 %v5481, %v5563
        %v5565 = vpop.f32.mrb[0].mxu0
        %5566 = vdwg.mxu0
        %5567 = vmatprep.subr.mxu0 0.0
        %v5568 = vand.u32 %v332, 4294901760
        %v5569 = vsub.f32 %v332, %v5568
        %v5570 = vand.u32 %v5569, 4294901760
        %5571 = vmatpush1.msra.mxu0 %v5570
        %5572 = vmatprep.subr.mxu0 0.0
        %v5573 = vand.u32 %v333, 4294901760
        %v5574 = vsub.f32 %v333, %v5573
        %v5575 = vand.u32 %v5574, 4294901760
        %5576 = vmatpush1.msra.mxu0 %v5575
        %5577 = vmatprep.subr.mxu0 0.0
        %5578 = vmatpush1.msra.mxu0 0.0
        %5579 = vmatprep.subr.mxu0 0.0
        %5580 = vmatpush1.msra.mxu0 0.0
        %5581 = vmatprep.subr.mxu0 0.0
        %5582 = vmatpush1.msra.mxu0 0.0
        %5583 = vmatprep.subr.mxu0 0.0
        %5584 = vmatpush1.msra.mxu0 0.0
        %5585 = vmatprep.subr.mxu0 0.0
        %5586 = vmatpush1.msra.mxu0 0.0
        %5587 = vmatprep.subr.mxu0 0.0
        %5588 = vmatpush1.msra.mxu0 0.0
        %5589 = vmatprep.subr.mxu0 0.0
        %5590 = vmatpush1.msra.mxu0 0.0
        %5591 = vmatprep.subr.mxu0 0.0
        %5592 = vmatpush1.msra.mxu0 0.0
        %5593 = vmatprep.subr.mxu0 0.0
        %5594 = vmatpush1.msra.mxu0 0.0
        %5595 = vmatprep.subr.mxu0 0.0
        %5596 = vmatpush1.msra.mxu0 0.0
        %5597 = vmatprep.subr.mxu0 0.0
        %5598 = vmatpush1.msra.mxu0 0.0
        %5599 = vmatprep.subr.mxu0 0.0
        %5600 = vmatpush1.msra.mxu0 0.0
        %5601 = vmatprep.subr.mxu0 0.0
        %5602 = vmatpush1.msra.mxu0 0.0
        %5603 = vmatprep.subr.mxu0 0.0
        %5604 = vmatpush1.msra.mxu0 0.0
        %5605 = vmatprep.subr.mxu0 0.0
        %5606 = vmatpush1.msra.mxu0 0.0
        %5607 = vmatprep.subr.mxu0 0.0
        %5608 = vmatpush1.msra.mxu0 0.0
        %5609 = vmatprep.subr.mxu0 0.0
        %5610 = vmatpush1.msra.mxu0 0.0
        %5611 = vmatprep.subr.mxu0 0.0
        %5612 = vmatpush1.msra.mxu0 0.0
        %5613 = vmatprep.subr.mxu0 0.0
        %5614 = vmatpush1.msra.mxu0 0.0
        %5615 = vmatprep.subr.mxu0 0.0
        %5616 = vmatpush1.msra.mxu0 0.0
        %5617 = vmatprep.subr.mxu0 0.0
        %5618 = vmatpush1.msra.mxu0 0.0
        %5619 = vmatprep.subr.mxu0 0.0
        %5620 = vmatpush1.msra.mxu0 0.0
        %5621 = vmatprep.subr.mxu0 0.0
        %5622 = vmatpush1.msra.mxu0 0.0
        %5623 = vmatprep.subr.mxu0 0.0
        %5624 = vmatpush1.msra.mxu0 0.0
        %5625 = vmatprep.subr.mxu0 0.0
        %5626 = vmatpush1.msra.mxu0 0.0
        %5627 = vmatprep.subr.mxu0 0.0
        %5628 = vmatpush1.msra.mxu0 0.0
        %5629 = vmatprep.subr.mxu0 0.0
        %5630 = vmatpush1.msra.mxu0 0.0
        %5631 = vmatprep.subr.mxu0 0.0
        %5632 = vmatpush1.msra.mxu0 0.0
        %5633 = vmatprep.subr.mxu0 0.0
        %5634 = vmatpush1.msra.mxu0 0.0
        %5635 = vmatprep.subr.mxu0 0.0
        %5636 = vmatpush1.msra.mxu0 0.0
        %5637 = vmatprep.mubr.f32.mxu0 0.0
        %v5638 = vand.u32 %v5222, 4294901760
        %5639 = vmatmul.mubr.f32.gmra.mrb[0].mxu0 %v5638
        %v5640 = vpop.f32.mrb[0].mxu0
        %v5641 = vadd.f32 %v5556, %v5640
        %v5642 = vpop.f32.mrb[0].mxu0
        %5643 = vmatprep.mubr.f32.mxu0 0.0
        %v5644 = vand.u32 %v5225, 4294901760
        %5645 = vmatmul.mubr.f32.gmra.mrb[0].mxu0 %v5644
        %v5646 = vpop.f32.mrb[0].mxu0
        %v5647 = vadd.f32 %v5564, %v5646
        %v5648 = vpop.f32.mrb[0].mxu0
        %5649 = vdwg.mxu0
        %5650 = vmatprep.subr.mxu0 0.0
        %v5651 = vand.u32 %v332, 4294901760
        %5652 = vmatpush1.msra.mxu0 %v5651
        %5653 = vmatprep.subr.mxu0 0.0
        %v5654 = vand.u32 %v333, 4294901760
        %5655 = vmatpush1.msra.mxu0 %v5654
        %5656 = vmatprep.subr.mxu0 0.0
        %5657 = vmatpush1.msra.mxu0 0.0
        %5658 = vmatprep.subr.mxu0 0.0
        %5659 = vmatpush1.msra.mxu0 0.0
        %5660 = vmatprep.subr.mxu0 0.0
        %5661 = vmatpush1.msra.mxu0 0.0
        %5662 = vmatprep.subr.mxu0 0.0
        %5663 = vmatpush1.msra.mxu0 0.0
        %5664 = vmatprep.subr.mxu0 0.0
        %5665 = vmatpush1.msra.mxu0 0.0
        %5666 = vmatprep.subr.mxu0 0.0
        %5667 = vmatpush1.msra.mxu0 0.0
        %5668 = vmatprep.subr.mxu0 0.0
        %5669 = vmatpush1.msra.mxu0 0.0
        %5670 = vmatprep.subr.mxu0 0.0
        %5671 = vmatpush1.msra.mxu0 0.0
        %5672 = vmatprep.subr.mxu0 0.0
        %5673 = vmatpush1.msra.mxu0 0.0
        %5674 = vmatprep.subr.mxu0 0.0
        %5675 = vmatpush1.msra.mxu0 0.0
        %5676 = vmatprep.subr.mxu0 0.0
        %5677 = vmatpush1.msra.mxu0 0.0
        %5678 = vmatprep.subr.mxu0 0.0
        %5679 = vmatpush1.msra.mxu0 0.0
        %5680 = vmatprep.subr.mxu0 0.0
        %5681 = vmatpush1.msra.mxu0 0.0
        %5682 = vmatprep.subr.mxu0 0.0
        %5683 = vmatpush1.msra.mxu0 0.0
        %5684 = vmatprep.subr.mxu0 0.0
        %5685 = vmatpush1.msra.mxu0 0.0
        %5686 = vmatprep.subr.mxu0 0.0
        %5687 = vmatpush1.msra.mxu0 0.0
        %5688 = vmatprep.subr.mxu0 0.0
        %5689 = vmatpush1.msra.mxu0 0.0
        %5690 = vmatprep.subr.mxu0 0.0
        %5691 = vmatpush1.msra.mxu0 0.0
        %5692 = vmatprep.subr.mxu0 0.0
        %5693 = vmatpush1.msra.mxu0 0.0
        %5694 = vmatprep.subr.mxu0 0.0
        %5695 = vmatpush1.msra.mxu0 0.0
        %5696 = vmatprep.subr.mxu0 0.0
        %5697 = vmatpush1.msra.mxu0 0.0
        %5698 = vmatprep.subr.mxu0 0.0
        %5699 = vmatpush1.msra.mxu0 0.0
        %5700 = vmatprep.subr.mxu0 0.0
        %5701 = vmatpush1.msra.mxu0 0.0
        %5702 = vmatprep.subr.mxu0 0.0
        %5703 = vmatpush1.msra.mxu0 0.0
        %5704 = vmatprep.subr.mxu0 0.0
        %5705 = vmatpush1.msra.mxu0 0.0
        %5706 = vmatprep.subr.mxu0 0.0
        %5707 = vmatpush1.msra.mxu0 0.0
        %5708 = vmatprep.subr.mxu0 0.0
        %5709 = vmatpush1.msra.mxu0 0.0
        %5710 = vmatprep.subr.mxu0 0.0
        %5711 = vmatpush1.msra.mxu0 0.0
        %5712 = vmatprep.subr.mxu0 0.0
        %5713 = vmatpush1.msra.mxu0 0.0
        %5714 = vmatprep.subr.mxu0 0.0
        %5715 = vmatpush1.msra.mxu0 0.0
        %5716 = vmatprep.mubr.f32.mxu0 0.0
        %v5717 = vand.u32 %v5222, 4294901760
        %5718 = vmatmul.mubr.f32.gmra.mrb[0].mxu0 %v5717
        %v5719 = vpop.f32.mrb[0].mxu0
        %v5720 = vadd.f32 %v5641, %v5719
        %v5721 = vpop.f32.mrb[0].mxu0
        %5722 = vmatprep.mubr.f32.mxu0 0.0
        %v5723 = vand.u32 %v5225, 4294901760
        %5724 = vmatmul.mubr.f32.gmra.mrb[0].mxu0 %v5723
        %v5725 = vpop.f32.mrb[0].mxu0
        %v5726 = vadd.f32 %v5647, %v5725
        %v5727 = vpop.f32.mrb[0].mxu0
        %5728 = vdwg.mxu0
        %5729 = vmatprep.subr.mxu0 0.0
        %v5730 = vand.u32 %v5720, 4294901760
        %5731 = vmatpush1.msra.mxu0 %v5730
        %5732 = vmatprep.subr.mxu0 0.0
        %v5733 = vand.u32 %v5726, 4294901760
        %5734 = vmatpush1.msra.mxu0 %v5733
        %5735 = vmatprep.subr.mxu0 0.0
        %5736 = vmatpush1.msra.mxu0 0.0
        %5737 = vmatprep.subr.mxu0 0.0
        %5738 = vmatpush1.msra.mxu0 0.0
        %5739 = vmatprep.subr.mxu0 0.0
        %5740 = vmatpush1.msra.mxu0 0.0
        %5741 = vmatprep.subr.mxu0 0.0
        %5742 = vmatpush1.msra.mxu0 0.0
        %5743 = vmatprep.subr.mxu0 0.0
        %5744 = vmatpush1.msra.mxu0 0.0
        %5745 = vmatprep.subr.mxu0 0.0
        %5746 = vmatpush1.msra.mxu0 0.0
        %5747 = vmatprep.subr.mxu0 0.0
        %5748 = vmatpush1.msra.mxu0 0.0
        %5749 = vmatprep.subr.mxu0 0.0
        %5750 = vmatpush1.msra.mxu0 0.0
        %5751 = vmatprep.subr.mxu0 0.0
        %5752 = vmatpush1.msra.mxu0 0.0
        %5753 = vmatprep.subr.mxu0 0.0
        %5754 = vmatpush1.msra.mxu0 0.0
        %5755 = vmatprep.subr.mxu0 0.0
        %5756 = vmatpush1.msra.mxu0 0.0
        %5757 = vmatprep.subr.mxu0 0.0
        %5758 = vmatpush1.msra.mxu0 0.0
        %5759 = vmatprep.subr.mxu0 0.0
        %5760 = vmatpush1.msra.mxu0 0.0
        %5761 = vmatprep.subr.mxu0 0.0
        %5762 = vmatpush1.msra.mxu0 0.0
        %5763 = vmatprep.subr.mxu0 0.0
        %5764 = vmatpush1.msra.mxu0 0.0
        %5765 = vmatprep.subr.mxu0 0.0
        %5766 = vmatpush1.msra.mxu0 0.0
        %5767 = vmatprep.subr.mxu0 0.0
        %5768 = vmatpush1.msra.mxu0 0.0
        %5769 = vmatprep.subr.mxu0 0.0
        %5770 = vmatpush1.msra.mxu0 0.0
        %5771 = vmatprep.subr.mxu0 0.0
        %5772 = vmatpush1.msra.mxu0 0.0
        %5773 = vmatprep.subr.mxu0 0.0
        %5774 = vmatpush1.msra.mxu0 0.0
        %5775 = vmatprep.subr.mxu0 0.0
        %5776 = vmatpush1.msra.mxu0 0.0
        %5777 = vmatprep.subr.mxu0 0.0
        %5778 = vmatpush1.msra.mxu0 0.0
        %5779 = vmatprep.subr.mxu0 0.0
        %5780 = vmatpush1.msra.mxu0 0.0
        %5781 = vmatprep.subr.mxu0 0.0
        %5782 = vmatpush1.msra.mxu0 0.0
        %5783 = vmatprep.subr.mxu0 0.0
        %5784 = vmatpush1.msra.mxu0 0.0
        %5785 = vmatprep.subr.mxu0 0.0
        %5786 = vmatpush1.msra.mxu0 0.0
        %5787 = vmatprep.subr.mxu0 0.0
        %5788 = vmatpush1.msra.mxu0 0.0
        %5789 = vmatprep.subr.mxu0 0.0
        %5790 = vmatpush1.msra.mxu0 0.0
        %5791 = vmatprep.subr.mxu0 0.0
        %5792 = vmatpush1.msra.mxu0 0.0
        %5793 = vmatprep.subr.mxu0 0.0
        %5794 = vmatpush1.msra.mxu0 0.0
        %5795 = vmatprep.mubr.f32.mxu0 0.0
        %v5796 = vand.u32 %v849, 4294901760
        %v5797 = vsub.f32 %v849, %v5796
        %v5798 = vand.u32 %v5797, 4294901760
        %v5799 = vsub.f32 %v5797, %v5798
        %v5800 = vand.u32 %v5799, 4294901760
        %5801 = vmatmul.mubr.f32.gmra.mrb[0].mxu0 %v5800
        %v5802 = vpop.f32.mrb[0].mxu0
        %v5803 = vadd.f32 0.0, %v5802
        %v5804 = vpop.f32.mrb[0].mxu0
        %5805 = vdwg.mxu0
        %5806 = vmatprep.subr.mxu0 0.0
        %v5807 = vand.u32 %v5720, 4294901760
        %v5808 = vsub.f32 %v5720, %v5807
        %v5809 = vand.u32 %v5808, 4294901760
        %v5810 = vsub.f32 %v5808, %v5809
        %v5811 = vand.u32 %v5810, 4294901760
        %5812 = vmatpush1.msra.mxu0 %v5811
        %5813 = vmatprep.subr.mxu0 0.0
        %v5814 = vand.u32 %v5726, 4294901760
        %v5815 = vsub.f32 %v5726, %v5814
        %v5816 = vand.u32 %v5815, 4294901760
        %v5817 = vsub.f32 %v5815, %v5816
        %v5818 = vand.u32 %v5817, 4294901760
        %5819 = vmatpush1.msra.mxu0 %v5818
        %5820 = vmatprep.subr.mxu0 0.0
        %5821 = vmatpush1.msra.mxu0 0.0
        %5822 = vmatprep.subr.mxu0 0.0
        %5823 = vmatpush1.msra.mxu0 0.0
        %5824 = vmatprep.subr.mxu0 0.0
        %5825 = vmatpush1.msra.mxu0 0.0
        %5826 = vmatprep.subr.mxu0 0.0
        %5827 = vmatpush1.msra.mxu0 0.0
        %5828 = vmatprep.subr.mxu0 0.0
        %5829 = vmatpush1.msra.mxu0 0.0
        %5830 = vmatprep.subr.mxu0 0.0
        %5831 = vmatpush1.msra.mxu0 0.0
        %5832 = vmatprep.subr.mxu0 0.0
        %5833 = vmatpush1.msra.mxu0 0.0
        %5834 = vmatprep.subr.mxu0 0.0
        %5835 = vmatpush1.msra.mxu0 0.0
        %5836 = vmatprep.subr.mxu0 0.0
        %5837 = vmatpush1.msra.mxu0 0.0
        %5838 = vmatprep.subr.mxu0 0.0
        %5839 = vmatpush1.msra.mxu0 0.0
        %5840 = vmatprep.subr.mxu0 0.0
        %5841 = vmatpush1.msra.mxu0 0.0
        %5842 = vmatprep.subr.mxu0 0.0
        %5843 = vmatpush1.msra.mxu0 0.0
        %5844 = vmatprep.subr.mxu0 0.0
        %5845 = vmatpush1.msra.mxu0 0.0
        %5846 = vmatprep.subr.mxu0 0.0
        %5847 = vmatpush1.msra.mxu0 0.0
        %5848 = vmatprep.subr.mxu0 0.0
        %5849 = vmatpush1.msra.mxu0 0.0
        %5850 = vmatprep.subr.mxu0 0.0
        %5851 = vmatpush1.msra.mxu0 0.0
        %5852 = vmatprep.subr.mxu0 0.0
        %5853 = vmatpush1.msra.mxu0 0.0
        %5854 = vmatprep.subr.mxu0 0.0
        %5855 = vmatpush1.msra.mxu0 0.0
        %5856 = vmatprep.subr.mxu0 0.0
        %5857 = vmatpush1.msra.mxu0 0.0
        %5858 = vmatprep.subr.mxu0 0.0
        %5859 = vmatpush1.msra.mxu0 0.0
        %5860 = vmatprep.subr.mxu0 0.0
        %5861 = vmatpush1.msra.mxu0 0.0
        %5862 = vmatprep.subr.mxu0 0.0
        %5863 = vmatpush1.msra.mxu0 0.0
        %5864 = vmatprep.subr.mxu0 0.0
        %5865 = vmatpush1.msra.mxu0 0.0
        %5866 = vmatprep.subr.mxu0 0.0
        %5867 = vmatpush1.msra.mxu0 0.0
        %5868 = vmatprep.subr.mxu0 0.0
        %5869 = vmatpush1.msra.mxu0 0.0
        %5870 = vmatprep.subr.mxu0 0.0
        %5871 = vmatpush1.msra.mxu0 0.0
        %5872 = vmatprep.subr.mxu0 0.0
        %5873 = vmatpush1.msra.mxu0 0.0
        %5874 = vmatprep.subr.mxu0 0.0
        %5875 = vmatpush1.msra.mxu0 0.0
        %5876 = vmatprep.subr.mxu0 0.0
        %5877 = vmatpush1.msra.mxu0 0.0
        %5878 = vmatprep.subr.mxu0 0.0
        %5879 = vmatpush1.msra.mxu0 0.0
        %5880 = vmatprep.mubr.f32.mxu0 0.0
        %v5881 = vand.u32 %v849, 4294901760
        %5882 = vmatmul.mubr.f32.gmra.mrb[0].mxu0 %v5881
        %v5883 = vpop.f32.mrb[0].mxu0
        %v5884 = vadd.f32 %v5803, %v5883
        %v5885 = vpop.f32.mrb[0].mxu0
        %5886 = vdwg.mxu0
        %5887 = vmatprep.subr.mxu0 0.0
        %v5888 = vand.u32 %v5720, 4294901760
        %v5889 = vsub.f32 %v5720, %v5888
        %5890 = vmatpush1.msra.mxu0 %v5889
        %5891 = vmatprep.subr.mxu0 0.0
        %v5892 = vand.u32 %v5726, 4294901760
        %v5893 = vsub.f32 %v5726, %v5892
        %5894 = vmatpush1.msra.mxu0 %v5893
        %5895 = vmatprep.subr.mxu0 0.0
        %5896 = vmatpush1.msra.mxu0 0.0
        %5897 = vmatprep.subr.mxu0 0.0
        %5898 = vmatpush1.msra.mxu0 0.0
        %5899 = vmatprep.subr.mxu0 0.0
        %5900 = vmatpush1.msra.mxu0 0.0
        %5901 = vmatprep.subr.mxu0 0.0
        %5902 = vmatpush1.msra.mxu0 0.0
        %5903 = vmatprep.subr.mxu0 0.0
        %5904 = vmatpush1.msra.mxu0 0.0
        %5905 = vmatprep.subr.mxu0 0.0
        %5906 = vmatpush1.msra.mxu0 0.0
        %5907 = vmatprep.subr.mxu0 0.0
        %5908 = vmatpush1.msra.mxu0 0.0
        %5909 = vmatprep.subr.mxu0 0.0
        %5910 = vmatpush1.msra.mxu0 0.0
        %5911 = vmatprep.subr.mxu0 0.0
        %5912 = vmatpush1.msra.mxu0 0.0
        %5913 = vmatprep.subr.mxu0 0.0
        %5914 = vmatpush1.msra.mxu0 0.0
        %5915 = vmatprep.subr.mxu0 0.0
        %5916 = vmatpush1.msra.mxu0 0.0
        %5917 = vmatprep.subr.mxu0 0.0
        %5918 = vmatpush1.msra.mxu0 0.0
        %5919 = vmatprep.subr.mxu0 0.0
        %5920 = vmatpush1.msra.mxu0 0.0
        %5921 = vmatprep.subr.mxu0 0.0
        %5922 = vmatpush1.msra.mxu0 0.0
        %5923 = vmatprep.subr.mxu0 0.0
        %5924 = vmatpush1.msra.mxu0 0.0
        %5925 = vmatprep.subr.mxu0 0.0
        %5926 = vmatpush1.msra.mxu0 0.0
        %5927 = vmatprep.subr.mxu0 0.0
        %5928 = vmatpush1.msra.mxu0 0.0
        %5929 = vmatprep.subr.mxu0 0.0
        %5930 = vmatpush1.msra.mxu0 0.0
        %5931 = vmatprep.subr.mxu0 0.0
        %5932 = vmatpush1.msra.mxu0 0.0
        %5933 = vmatprep.subr.mxu0 0.0
        %5934 = vmatpush1.msra.mxu0 0.0
        %5935 = vmatprep.subr.mxu0 0.0
        %5936 = vmatpush1.msra.mxu0 0.0
        %5937 = vmatprep.subr.mxu0 0.0
        %5938 = vmatpush1.msra.mxu0 0.0
        %5939 = vmatprep.subr.mxu0 0.0
        %5940 = vmatpush1.msra.mxu0 0.0
        %5941 = vmatprep.subr.mxu0 0.0
        %5942 = vmatpush1.msra.mxu0 0.0
        %5943 = vmatprep.subr.mxu0 0.0
        %5944 = vmatpush1.msra.mxu0 0.0
        %5945 = vmatprep.subr.mxu0 0.0
        %5946 = vmatpush1.msra.mxu0 0.0
        %5947 = vmatprep.subr.mxu0 0.0
        %5948 = vmatpush1.msra.mxu0 0.0
        %5949 = vmatprep.subr.mxu0 0.0
        %5950 = vmatpush1.msra.mxu0 0.0
        %5951 = vmatprep.subr.mxu0 0.0
        %5952 = vmatpush1.msra.mxu0 0.0
        %5953 = vmatprep.subr.mxu0 0.0
        %5954 = vmatpush1.msra.mxu0 0.0
        %5955 = vmatprep.mubr.f32.mxu0 0.0
        %v5956 = vand.u32 %v849, 4294901760
        %v5957 = vsub.f32 %v849, %v5956
        %5958 = vmatmul.mubr.f32.gmra.mrb[0].mxu0 %v5957
        %v5959 = vpop.f32.mrb[0].mxu0
        %v5960 = vadd.f32 %v5884, %v5959
        %v5961 = vpop.f32.mrb[0].mxu0
        %5962 = vdwg.mxu0
        %5963 = vmatprep.subr.mxu0 0.0
        %v5964 = vand.u32 %v5720, 4294901760
        %5965 = vmatpush1.msra.mxu0 %v5964
        %5966 = vmatprep.subr.mxu0 0.0
        %v5967 = vand.u32 %v5726, 4294901760
        %5968 = vmatpush1.msra.mxu0 %v5967
        %5969 = vmatprep.subr.mxu0 0.0
        %5970 = vmatpush1.msra.mxu0 0.0
        %5971 = vmatprep.subr.mxu0 0.0
        %5972 = vmatpush1.msra.mxu0 0.0
        %5973 = vmatprep.subr.mxu0 0.0
        %5974 = vmatpush1.msra.mxu0 0.0
        %5975 = vmatprep.subr.mxu0 0.0
        %5976 = vmatpush1.msra.mxu0 0.0
        %5977 = vmatprep.subr.mxu0 0.0
        %5978 = vmatpush1.msra.mxu0 0.0
        %5979 = vmatprep.subr.mxu0 0.0
        %5980 = vmatpush1.msra.mxu0 0.0
        %5981 = vmatprep.subr.mxu0 0.0
        %5982 = vmatpush1.msra.mxu0 0.0
        %5983 = vmatprep.subr.mxu0 0.0
        %5984 = vmatpush1.msra.mxu0 0.0
        %5985 = vmatprep.subr.mxu0 0.0
        %5986 = vmatpush1.msra.mxu0 0.0
        %5987 = vmatprep.subr.mxu0 0.0
        %5988 = vmatpush1.msra.mxu0 0.0
        %5989 = vmatprep.subr.mxu0 0.0
        %5990 = vmatpush1.msra.mxu0 0.0
        %5991 = vmatprep.subr.mxu0 0.0
        %5992 = vmatpush1.msra.mxu0 0.0
        %5993 = vmatprep.subr.mxu0 0.0
        %5994 = vmatpush1.msra.mxu0 0.0
        %5995 = vmatprep.subr.mxu0 0.0
        %5996 = vmatpush1.msra.mxu0 0.0
        %5997 = vmatprep.subr.mxu0 0.0
        %5998 = vmatpush1.msra.mxu0 0.0
        %5999 = vmatprep.subr.mxu0 0.0
        %6000 = vmatpush1.msra.mxu0 0.0
        %6001 = vmatprep.subr.mxu0 0.0
        %6002 = vmatpush1.msra.mxu0 0.0
        %6003 = vmatprep.subr.mxu0 0.0
        %6004 = vmatpush1.msra.mxu0 0.0
        %6005 = vmatprep.subr.mxu0 0.0
        %6006 = vmatpush1.msra.mxu0 0.0
        %6007 = vmatprep.subr.mxu0 0.0
        %6008 = vmatpush1.msra.mxu0 0.0
        %6009 = vmatprep.subr.mxu0 0.0
        %6010 = vmatpush1.msra.mxu0 0.0
        %6011 = vmatprep.subr.mxu0 0.0
        %6012 = vmatpush1.msra.mxu0 0.0
        %6013 = vmatprep.subr.mxu0 0.0
        %6014 = vmatpush1.msra.mxu0 0.0
        %6015 = vmatprep.subr.mxu0 0.0
        %6016 = vmatpush1.msra.mxu0 0.0
        %6017 = vmatprep.subr.mxu0 0.0
        %6018 = vmatpush1.msra.mxu0 0.0
        %6019 = vmatprep.subr.mxu0 0.0
        %6020 = vmatpush1.msra.mxu0 0.0
        %6021 = vmatprep.subr.mxu0 0.0
        %6022 = vmatpush1.msra.mxu0 0.0
        %6023 = vmatprep.subr.mxu0 0.0
        %6024 = vmatpush1.msra.mxu0 0.0
        %6025 = vmatprep.subr.mxu0 0.0
        %6026 = vmatpush1.msra.mxu0 0.0
        %6027 = vmatprep.subr.mxu0 0.0
        %6028 = vmatpush1.msra.mxu0 0.0
        %6029 = vmatprep.mubr.f32.mxu0 0.0
        %v6030 = vand.u32 %v849, 4294901760
        %v6031 = vsub.f32 %v849, %v6030
        %v6032 = vand.u32 %v6031, 4294901760
        %6033 = vmatmul.mubr.f32.gmra.mrb[0].mxu0 %v6032
        %v6034 = vpop.f32.mrb[0].mxu0
        %v6035 = vadd.f32 %v5960, %v6034
        %v6036 = vpop.f32.mrb[0].mxu0
        %6037 = vdwg.mxu0
        %6038 = vmatprep.subr.mxu0 0.0
        %v6039 = vand.u32 %v5720, 4294901760
        %v6040 = vsub.f32 %v5720, %v6039
        %v6041 = vand.u32 %v6040, 4294901760
        %6042 = vmatpush1.msra.mxu0 %v6041
        %6043 = vmatprep.subr.mxu0 0.0
        %v6044 = vand.u32 %v5726, 4294901760
        %v6045 = vsub.f32 %v5726, %v6044
        %v6046 = vand.u32 %v6045, 4294901760
        %6047 = vmatpush1.msra.mxu0 %v6046
        %6048 = vmatprep.subr.mxu0 0.0
        %6049 = vmatpush1.msra.mxu0 0.0
        %6050 = vmatprep.subr.mxu0 0.0
        %6051 = vmatpush1.msra.mxu0 0.0
        %6052 = vmatprep.subr.mxu0 0.0
        %6053 = vmatpush1.msra.mxu0 0.0
        %6054 = vmatprep.subr.mxu0 0.0
        %6055 = vmatpush1.msra.mxu0 0.0
        %6056 = vmatprep.subr.mxu0 0.0
        %6057 = vmatpush1.msra.mxu0 0.0
        %6058 = vmatprep.subr.mxu0 0.0
        %6059 = vmatpush1.msra.mxu0 0.0
        %6060 = vmatprep.subr.mxu0 0.0
        %6061 = vmatpush1.msra.mxu0 0.0
        %6062 = vmatprep.subr.mxu0 0.0
        %6063 = vmatpush1.msra.mxu0 0.0
        %6064 = vmatprep.subr.mxu0 0.0
        %6065 = vmatpush1.msra.mxu0 0.0
        %6066 = vmatprep.subr.mxu0 0.0
        %6067 = vmatpush1.msra.mxu0 0.0
        %6068 = vmatprep.subr.mxu0 0.0
        %6069 = vmatpush1.msra.mxu0 0.0
        %6070 = vmatprep.subr.mxu0 0.0
        %6071 = vmatpush1.msra.mxu0 0.0
        %6072 = vmatprep.subr.mxu0 0.0
        %6073 = vmatpush1.msra.mxu0 0.0
        %6074 = vmatprep.subr.mxu0 0.0
        %6075 = vmatpush1.msra.mxu0 0.0
        %6076 = vmatprep.subr.mxu0 0.0
        %6077 = vmatpush1.msra.mxu0 0.0
        %6078 = vmatprep.subr.mxu0 0.0
        %6079 = vmatpush1.msra.mxu0 0.0
        %6080 = vmatprep.subr.mxu0 0.0
        %6081 = vmatpush1.msra.mxu0 0.0
        %6082 = vmatprep.subr.mxu0 0.0
        %6083 = vmatpush1.msra.mxu0 0.0
        %6084 = vmatprep.subr.mxu0 0.0
        %6085 = vmatpush1.msra.mxu0 0.0
        %6086 = vmatprep.subr.mxu0 0.0
        %6087 = vmatpush1.msra.mxu0 0.0
        %6088 = vmatprep.subr.mxu0 0.0
        %6089 = vmatpush1.msra.mxu0 0.0
        %6090 = vmatprep.subr.mxu0 0.0
        %6091 = vmatpush1.msra.mxu0 0.0
        %6092 = vmatprep.subr.mxu0 0.0
        %6093 = vmatpush1.msra.mxu0 0.0
        %6094 = vmatprep.subr.mxu0 0.0
        %6095 = vmatpush1.msra.mxu0 0.0
        %6096 = vmatprep.subr.mxu0 0.0
        %6097 = vmatpush1.msra.mxu0 0.0
        %6098 = vmatprep.subr.mxu0 0.0
        %6099 = vmatpush1.msra.mxu0 0.0
        %6100 = vmatprep.subr.mxu0 0.0
        %6101 = vmatpush1.msra.mxu0 0.0
        %6102 = vmatprep.subr.mxu0 0.0
        %6103 = vmatpush1.msra.mxu0 0.0
        %6104 = vmatprep.subr.mxu0 0.0
        %6105 = vmatpush1.msra.mxu0 0.0
        %6106 = vmatprep.subr.mxu0 0.0
        %6107 = vmatpush1.msra.mxu0 0.0
        %6108 = vmatprep.mubr.f32.mxu0 0.0
        %v6109 = vand.u32 %v849, 4294901760
        %6110 = vmatmul.mubr.f32.gmra.mrb[0].mxu0 %v6109
        %v6111 = vpop.f32.mrb[0].mxu0
        %v6112 = vadd.f32 %v6035, %v6111
        %v6113 = vpop.f32.mrb[0].mxu0
        %6114 = vdwg.mxu0
        %6115 = vmatprep.subr.mxu0 0.0
        %v6116 = vand.u32 %v5720, 4294901760
        %6117 = vmatpush1.msra.mxu0 %v6116
        %6118 = vmatprep.subr.mxu0 0.0
        %v6119 = vand.u32 %v5726, 4294901760
        %6120 = vmatpush1.msra.mxu0 %v6119
        %6121 = vmatprep.subr.mxu0 0.0
        %6122 = vmatpush1.msra.mxu0 0.0
        %6123 = vmatprep.subr.mxu0 0.0
        %6124 = vmatpush1.msra.mxu0 0.0
        %6125 = vmatprep.subr.mxu0 0.0
        %6126 = vmatpush1.msra.mxu0 0.0
        %6127 = vmatprep.subr.mxu0 0.0
        %6128 = vmatpush1.msra.mxu0 0.0
        %6129 = vmatprep.subr.mxu0 0.0
        %6130 = vmatpush1.msra.mxu0 0.0
        %6131 = vmatprep.subr.mxu0 0.0
        %6132 = vmatpush1.msra.mxu0 0.0
        %6133 = vmatprep.subr.mxu0 0.0
        %6134 = vmatpush1.msra.mxu0 0.0
        %6135 = vmatprep.subr.mxu0 0.0
        %6136 = vmatpush1.msra.mxu0 0.0
        %6137 = vmatprep.subr.mxu0 0.0
        %6138 = vmatpush1.msra.mxu0 0.0
        %6139 = vmatprep.subr.mxu0 0.0
        %6140 = vmatpush1.msra.mxu0 0.0
        %6141 = vmatprep.subr.mxu0 0.0
        %6142 = vmatpush1.msra.mxu0 0.0
        %6143 = vmatprep.subr.mxu0 0.0
        %6144 = vmatpush1.msra.mxu0 0.0
        %6145 = vmatprep.subr.mxu0 0.0
        %6146 = vmatpush1.msra.mxu0 0.0
        %6147 = vmatprep.subr.mxu0 0.0
        %6148 = vmatpush1.msra.mxu0 0.0
        %6149 = vmatprep.subr.mxu0 0.0
        %6150 = vmatpush1.msra.mxu0 0.0
        %6151 = vmatprep.subr.mxu0 0.0
        %6152 = vmatpush1.msra.mxu0 0.0
        %6153 = vmatprep.subr.mxu0 0.0
        %6154 = vmatpush1.msra.mxu0 0.0
        %6155 = vmatprep.subr.mxu0 0.0
        %6156 = vmatpush1.msra.mxu0 0.0
        %6157 = vmatprep.subr.mxu0 0.0
        %6158 = vmatpush1.msra.mxu0 0.0
        %6159 = vmatprep.subr.mxu0 0.0
        %6160 = vmatpush1.msra.mxu0 0.0
        %6161 = vmatprep.subr.mxu0 0.0
        %6162 = vmatpush1.msra.mxu0 0.0
        %6163 = vmatprep.subr.mxu0 0.0
        %6164 = vmatpush1.msra.mxu0 0.0
        %6165 = vmatprep.subr.mxu0 0.0
        %6166 = vmatpush1.msra.mxu0 0.0
        %6167 = vmatprep.subr.mxu0 0.0
        %6168 = vmatpush1.msra.mxu0 0.0
        %6169 = vmatprep.subr.mxu0 0.0
        %6170 = vmatpush1.msra.mxu0 0.0
        %6171 = vmatprep.subr.mxu0 0.0
        %6172 = vmatpush1.msra.mxu0 0.0
        %6173 = vmatprep.subr.mxu0 0.0
        %6174 = vmatpush1.msra.mxu0 0.0
        %6175 = vmatprep.subr.mxu0 0.0
        %6176 = vmatpush1.msra.mxu0 0.0
        %6177 = vmatprep.subr.mxu0 0.0
        %6178 = vmatpush1.msra.mxu0 0.0
        %6179 = vmatprep.subr.mxu0 0.0
        %6180 = vmatpush1.msra.mxu0 0.0
        %6181 = vmatprep.mubr.f32.mxu0 0.0
        %v6182 = vand.u32 %v849, 4294901760
        %6183 = vmatmul.mubr.f32.gmra.mrb[0].mxu0 %v6182
        %v6184 = vpop.f32.mrb[0].mxu0
        %v6185 = vadd.f32 %v6112, %v6184
        %v6186 = vpop.f32.mrb[0].mxu0
        %6187 = vdwg.mxu0
        %v6189 = vsel %vm339, %v5219, 0
        %v6192 = vsel %vm339, %v5220, 0
        %6194 = vmatprep.subr.mxu0 0.0
        %v6195 = vand.u32 %v332, 4294901760
        %6196 = vmatpush1.msra.mxu0 %v6195
        %6197 = vmatprep.subr.mxu0 0.0
        %v6198 = vand.u32 %v333, 4294901760
        %6199 = vmatpush1.msra.mxu0 %v6198
        %6200 = vmatprep.subr.mxu0 0.0
        %6201 = vmatpush1.msra.mxu0 0.0
        %6202 = vmatprep.subr.mxu0 0.0
        %6203 = vmatpush1.msra.mxu0 0.0
        %6204 = vmatprep.subr.mxu0 0.0
        %6205 = vmatpush1.msra.mxu0 0.0
        %6206 = vmatprep.subr.mxu0 0.0
        %6207 = vmatpush1.msra.mxu0 0.0
        %6208 = vmatprep.subr.mxu0 0.0
        %6209 = vmatpush1.msra.mxu0 0.0
        %6210 = vmatprep.subr.mxu0 0.0
        %6211 = vmatpush1.msra.mxu0 0.0
        %6212 = vmatprep.subr.mxu0 0.0
        %6213 = vmatpush1.msra.mxu0 0.0
        %6214 = vmatprep.subr.mxu0 0.0
        %6215 = vmatpush1.msra.mxu0 0.0
        %6216 = vmatprep.subr.mxu0 0.0
        %6217 = vmatpush1.msra.mxu0 0.0
        %6218 = vmatprep.subr.mxu0 0.0
        %6219 = vmatpush1.msra.mxu0 0.0
        %6220 = vmatprep.subr.mxu0 0.0
        %6221 = vmatpush1.msra.mxu0 0.0
        %6222 = vmatprep.subr.mxu0 0.0
        %6223 = vmatpush1.msra.mxu0 0.0
        %6224 = vmatprep.subr.mxu0 0.0
        %6225 = vmatpush1.msra.mxu0 0.0
        %6226 = vmatprep.subr.mxu0 0.0
        %6227 = vmatpush1.msra.mxu0 0.0
        %6228 = vmatprep.subr.mxu0 0.0
        %6229 = vmatpush1.msra.mxu0 0.0
        %6230 = vmatprep.subr.mxu0 0.0
        %6231 = vmatpush1.msra.mxu0 0.0
        %6232 = vmatprep.subr.mxu0 0.0
        %6233 = vmatpush1.msra.mxu0 0.0
        %6234 = vmatprep.subr.mxu0 0.0
        %6235 = vmatpush1.msra.mxu0 0.0
        %6236 = vmatprep.subr.mxu0 0.0
        %6237 = vmatpush1.msra.mxu0 0.0
        %6238 = vmatprep.subr.mxu0 0.0
        %6239 = vmatpush1.msra.mxu0 0.0
        %6240 = vmatprep.subr.mxu0 0.0
        %6241 = vmatpush1.msra.mxu0 0.0
        %6242 = vmatprep.subr.mxu0 0.0
        %6243 = vmatpush1.msra.mxu0 0.0
        %6244 = vmatprep.subr.mxu0 0.0
        %6245 = vmatpush1.msra.mxu0 0.0
        %6246 = vmatprep.subr.mxu0 0.0
        %6247 = vmatpush1.msra.mxu0 0.0
        %6248 = vmatprep.subr.mxu0 0.0
        %6249 = vmatpush1.msra.mxu0 0.0
        %6250 = vmatprep.subr.mxu0 0.0
        %6251 = vmatpush1.msra.mxu0 0.0
        %6252 = vmatprep.subr.mxu0 0.0
        %6253 = vmatpush1.msra.mxu0 0.0
        %6254 = vmatprep.subr.mxu0 0.0
        %6255 = vmatpush1.msra.mxu0 0.0
        %6256 = vmatprep.subr.mxu0 0.0
        %6257 = vmatpush1.msra.mxu0 0.0
        %6258 = vmatprep.subr.mxu0 0.0
        %6259 = vmatpush1.msra.mxu0 0.0
        %6260 = vmatprep.mubr.f32.mxu0 0.0
        %v6261 = vand.u32 %v6189, 4294901760
        %v6262 = vsub.f32 %v6189, %v6261
        %v6263 = vand.u32 %v6262, 4294901760
        %v6264 = vsub.f32 %v6262, %v6263
        %v6265 = vand.u32 %v6264, 4294901760
        %6266 = vmatmul.mubr.f32.gmra.mrb[0].mxu0 %v6265
        %v6267 = vpop.f32.mrb[0].mxu0
        %v6268 = vadd.f32 0.0, %v6267
        %v6269 = vpop.f32.mrb[0].mxu0
        %6270 = vmatprep.mubr.f32.mxu0 0.0
        %v6271 = vand.u32 %v6192, 4294901760
        %v6272 = vsub.f32 %v6192, %v6271
        %v6273 = vand.u32 %v6272, 4294901760
        %v6274 = vsub.f32 %v6272, %v6273
        %v6275 = vand.u32 %v6274, 4294901760
        %6276 = vmatmul.mubr.f32.gmra.mrb[0].mxu0 %v6275
        %v6277 = vpop.f32.mrb[0].mxu0
        %v6278 = vadd.f32 0.0, %v6277
        %v6279 = vpop.f32.mrb[0].mxu0
        %6280 = vdwg.mxu0
        %6281 = vmatprep.subr.mxu0 0.0
        %v6282 = vand.u32 %v332, 4294901760
        %v6283 = vsub.f32 %v332, %v6282
        %v6284 = vand.u32 %v6283, 4294901760
        %v6285 = vsub.f32 %v6283, %v6284
        %v6286 = vand.u32 %v6285, 4294901760
        %6287 = vmatpush1.msra.mxu0 %v6286
        %6288 = vmatprep.subr.mxu0 0.0
        %v6289 = vand.u32 %v333, 4294901760
        %v6290 = vsub.f32 %v333, %v6289
        %v6291 = vand.u32 %v6290, 4294901760
        %v6292 = vsub.f32 %v6290, %v6291
        %v6293 = vand.u32 %v6292, 4294901760
        %6294 = vmatpush1.msra.mxu0 %v6293
        %6295 = vmatprep.subr.mxu0 0.0
        %6296 = vmatpush1.msra.mxu0 0.0
        %6297 = vmatprep.subr.mxu0 0.0
        %6298 = vmatpush1.msra.mxu0 0.0
        %6299 = vmatprep.subr.mxu0 0.0
        %6300 = vmatpush1.msra.mxu0 0.0
        %6301 = vmatprep.subr.mxu0 0.0
        %6302 = vmatpush1.msra.mxu0 0.0
        %6303 = vmatprep.subr.mxu0 0.0
        %6304 = vmatpush1.msra.mxu0 0.0
        %6305 = vmatprep.subr.mxu0 0.0
        %6306 = vmatpush1.msra.mxu0 0.0
        %6307 = vmatprep.subr.mxu0 0.0
        %6308 = vmatpush1.msra.mxu0 0.0
        %6309 = vmatprep.subr.mxu0 0.0
        %6310 = vmatpush1.msra.mxu0 0.0
        %6311 = vmatprep.subr.mxu0 0.0
        %6312 = vmatpush1.msra.mxu0 0.0
        %6313 = vmatprep.subr.mxu0 0.0
        %6314 = vmatpush1.msra.mxu0 0.0
        %6315 = vmatprep.subr.mxu0 0.0
        %6316 = vmatpush1.msra.mxu0 0.0
        %6317 = vmatprep.subr.mxu0 0.0
        %6318 = vmatpush1.msra.mxu0 0.0
        %6319 = vmatprep.subr.mxu0 0.0
        %6320 = vmatpush1.msra.mxu0 0.0
        %6321 = vmatprep.subr.mxu0 0.0
        %6322 = vmatpush1.msra.mxu0 0.0
        %6323 = vmatprep.subr.mxu0 0.0
        %6324 = vmatpush1.msra.mxu0 0.0
        %6325 = vmatprep.subr.mxu0 0.0
        %6326 = vmatpush1.msra.mxu0 0.0
        %6327 = vmatprep.subr.mxu0 0.0
        %6328 = vmatpush1.msra.mxu0 0.0
        %6329 = vmatprep.subr.mxu0 0.0
        %6330 = vmatpush1.msra.mxu0 0.0
        %6331 = vmatprep.subr.mxu0 0.0
        %6332 = vmatpush1.msra.mxu0 0.0
        %6333 = vmatprep.subr.mxu0 0.0
        %6334 = vmatpush1.msra.mxu0 0.0
        %6335 = vmatprep.subr.mxu0 0.0
        %6336 = vmatpush1.msra.mxu0 0.0
        %6337 = vmatprep.subr.mxu0 0.0
        %6338 = vmatpush1.msra.mxu0 0.0
        %6339 = vmatprep.subr.mxu0 0.0
        %6340 = vmatpush1.msra.mxu0 0.0
        %6341 = vmatprep.subr.mxu0 0.0
        %6342 = vmatpush1.msra.mxu0 0.0
        %6343 = vmatprep.subr.mxu0 0.0
        %6344 = vmatpush1.msra.mxu0 0.0
        %6345 = vmatprep.subr.mxu0 0.0
        %6346 = vmatpush1.msra.mxu0 0.0
        %6347 = vmatprep.subr.mxu0 0.0
        %6348 = vmatpush1.msra.mxu0 0.0
        %6349 = vmatprep.subr.mxu0 0.0
        %6350 = vmatpush1.msra.mxu0 0.0
        %6351 = vmatprep.subr.mxu0 0.0
        %6352 = vmatpush1.msra.mxu0 0.0
        %6353 = vmatprep.subr.mxu0 0.0
        %6354 = vmatpush1.msra.mxu0 0.0
        %6355 = vmatprep.mubr.f32.mxu0 0.0
        %v6356 = vand.u32 %v6189, 4294901760
        %6357 = vmatmul.mubr.f32.gmra.mrb[0].mxu0 %v6356
        %v6358 = vpop.f32.mrb[0].mxu0
        %v6359 = vadd.f32 %v6268, %v6358
        %v6360 = vpop.f32.mrb[0].mxu0
        %6361 = vmatprep.mubr.f32.mxu0 0.0
        %v6362 = vand.u32 %v6192, 4294901760
        %6363 = vmatmul.mubr.f32.gmra.mrb[0].mxu0 %v6362
        %v6364 = vpop.f32.mrb[0].mxu0
        %v6365 = vadd.f32 %v6278, %v6364
        %v6366 = vpop.f32.mrb[0].mxu0
        %6367 = vdwg.mxu0
        %6368 = vmatprep.subr.mxu0 0.0
        %v6369 = vand.u32 %v332, 4294901760
        %v6370 = vsub.f32 %v332, %v6369
        %6371 = vmatpush1.msra.mxu0 %v6370
        %6372 = vmatprep.subr.mxu0 0.0
        %v6373 = vand.u32 %v333, 4294901760
        %v6374 = vsub.f32 %v333, %v6373
        %6375 = vmatpush1.msra.mxu0 %v6374
        %6376 = vmatprep.subr.mxu0 0.0
        %6377 = vmatpush1.msra.mxu0 0.0
        %6378 = vmatprep.subr.mxu0 0.0
        %6379 = vmatpush1.msra.mxu0 0.0
        %6380 = vmatprep.subr.mxu0 0.0
        %6381 = vmatpush1.msra.mxu0 0.0
        %6382 = vmatprep.subr.mxu0 0.0
        %6383 = vmatpush1.msra.mxu0 0.0
        %6384 = vmatprep.subr.mxu0 0.0
        %6385 = vmatpush1.msra.mxu0 0.0
        %6386 = vmatprep.subr.mxu0 0.0
        %6387 = vmatpush1.msra.mxu0 0.0
        %6388 = vmatprep.subr.mxu0 0.0
        %6389 = vmatpush1.msra.mxu0 0.0
        %6390 = vmatprep.subr.mxu0 0.0
        %6391 = vmatpush1.msra.mxu0 0.0
        %6392 = vmatprep.subr.mxu0 0.0
        %6393 = vmatpush1.msra.mxu0 0.0
        %6394 = vmatprep.subr.mxu0 0.0
        %6395 = vmatpush1.msra.mxu0 0.0
        %6396 = vmatprep.subr.mxu0 0.0
        %6397 = vmatpush1.msra.mxu0 0.0
        %6398 = vmatprep.subr.mxu0 0.0
        %6399 = vmatpush1.msra.mxu0 0.0
        %6400 = vmatprep.subr.mxu0 0.0
        %6401 = vmatpush1.msra.mxu0 0.0
        %6402 = vmatprep.subr.mxu0 0.0
        %6403 = vmatpush1.msra.mxu0 0.0
        %6404 = vmatprep.subr.mxu0 0.0
        %6405 = vmatpush1.msra.mxu0 0.0
        %6406 = vmatprep.subr.mxu0 0.0
        %6407 = vmatpush1.msra.mxu0 0.0
        %6408 = vmatprep.subr.mxu0 0.0
        %6409 = vmatpush1.msra.mxu0 0.0
        %6410 = vmatprep.subr.mxu0 0.0
        %6411 = vmatpush1.msra.mxu0 0.0
        %6412 = vmatprep.subr.mxu0 0.0
        %6413 = vmatpush1.msra.mxu0 0.0
        %6414 = vmatprep.subr.mxu0 0.0
        %6415 = vmatpush1.msra.mxu0 0.0
        %6416 = vmatprep.subr.mxu0 0.0
        %6417 = vmatpush1.msra.mxu0 0.0
        %6418 = vmatprep.subr.mxu0 0.0
        %6419 = vmatpush1.msra.mxu0 0.0
        %6420 = vmatprep.subr.mxu0 0.0
        %6421 = vmatpush1.msra.mxu0 0.0
        %6422 = vmatprep.subr.mxu0 0.0
        %6423 = vmatpush1.msra.mxu0 0.0
        %6424 = vmatprep.subr.mxu0 0.0
        %6425 = vmatpush1.msra.mxu0 0.0
        %6426 = vmatprep.subr.mxu0 0.0
        %6427 = vmatpush1.msra.mxu0 0.0
        %6428 = vmatprep.subr.mxu0 0.0
        %6429 = vmatpush1.msra.mxu0 0.0
        %6430 = vmatprep.subr.mxu0 0.0
        %6431 = vmatpush1.msra.mxu0 0.0
        %6432 = vmatprep.subr.mxu0 0.0
        %6433 = vmatpush1.msra.mxu0 0.0
        %6434 = vmatprep.subr.mxu0 0.0
        %6435 = vmatpush1.msra.mxu0 0.0
        %6436 = vmatprep.mubr.f32.mxu0 0.0
        %v6437 = vand.u32 %v6189, 4294901760
        %v6438 = vsub.f32 %v6189, %v6437
        %6439 = vmatmul.mubr.f32.gmra.mrb[0].mxu0 %v6438
        %v6440 = vpop.f32.mrb[0].mxu0
        %v6441 = vadd.f32 %v6359, %v6440
        %v6442 = vpop.f32.mrb[0].mxu0
        %6443 = vmatprep.mubr.f32.mxu0 0.0
        %v6444 = vand.u32 %v6192, 4294901760
        %v6445 = vsub.f32 %v6192, %v6444
        %6446 = vmatmul.mubr.f32.gmra.mrb[0].mxu0 %v6445
        %v6447 = vpop.f32.mrb[0].mxu0
        %v6448 = vadd.f32 %v6365, %v6447
        %v6449 = vpop.f32.mrb[0].mxu0
        %6450 = vdwg.mxu0
        %6451 = vmatprep.subr.mxu0 0.0
        %v6452 = vand.u32 %v332, 4294901760
        %6453 = vmatpush1.msra.mxu0 %v6452
        %6454 = vmatprep.subr.mxu0 0.0
        %v6455 = vand.u32 %v333, 4294901760
        %6456 = vmatpush1.msra.mxu0 %v6455
        %6457 = vmatprep.subr.mxu0 0.0
        %6458 = vmatpush1.msra.mxu0 0.0
        %6459 = vmatprep.subr.mxu0 0.0
        %6460 = vmatpush1.msra.mxu0 0.0
        %6461 = vmatprep.subr.mxu0 0.0
        %6462 = vmatpush1.msra.mxu0 0.0
        %6463 = vmatprep.subr.mxu0 0.0
        %6464 = vmatpush1.msra.mxu0 0.0
        %6465 = vmatprep.subr.mxu0 0.0
        %6466 = vmatpush1.msra.mxu0 0.0
        %6467 = vmatprep.subr.mxu0 0.0
        %6468 = vmatpush1.msra.mxu0 0.0
        %6469 = vmatprep.subr.mxu0 0.0
        %6470 = vmatpush1.msra.mxu0 0.0
        %6471 = vmatprep.subr.mxu0 0.0
        %6472 = vmatpush1.msra.mxu0 0.0
        %6473 = vmatprep.subr.mxu0 0.0
        %6474 = vmatpush1.msra.mxu0 0.0
        %6475 = vmatprep.subr.mxu0 0.0
        %6476 = vmatpush1.msra.mxu0 0.0
        %6477 = vmatprep.subr.mxu0 0.0
        %6478 = vmatpush1.msra.mxu0 0.0
        %6479 = vmatprep.subr.mxu0 0.0
        %6480 = vmatpush1.msra.mxu0 0.0
        %6481 = vmatprep.subr.mxu0 0.0
        %6482 = vmatpush1.msra.mxu0 0.0
        %6483 = vmatprep.subr.mxu0 0.0
        %6484 = vmatpush1.msra.mxu0 0.0
        %6485 = vmatprep.subr.mxu0 0.0
        %6486 = vmatpush1.msra.mxu0 0.0
        %6487 = vmatprep.subr.mxu0 0.0
        %6488 = vmatpush1.msra.mxu0 0.0
        %6489 = vmatprep.subr.mxu0 0.0
        %6490 = vmatpush1.msra.mxu0 0.0
        %6491 = vmatprep.subr.mxu0 0.0
        %6492 = vmatpush1.msra.mxu0 0.0
        %6493 = vmatprep.subr.mxu0 0.0
        %6494 = vmatpush1.msra.mxu0 0.0
        %6495 = vmatprep.subr.mxu0 0.0
        %6496 = vmatpush1.msra.mxu0 0.0
        %6497 = vmatprep.subr.mxu0 0.0
        %6498 = vmatpush1.msra.mxu0 0.0
        %6499 = vmatprep.subr.mxu0 0.0
        %6500 = vmatpush1.msra.mxu0 0.0
        %6501 = vmatprep.subr.mxu0 0.0
        %6502 = vmatpush1.msra.mxu0 0.0
        %6503 = vmatprep.subr.mxu0 0.0
        %6504 = vmatpush1.msra.mxu0 0.0
        %6505 = vmatprep.subr.mxu0 0.0
        %6506 = vmatpush1.msra.mxu0 0.0
        %6507 = vmatprep.subr.mxu0 0.0
        %6508 = vmatpush1.msra.mxu0 0.0
        %6509 = vmatprep.subr.mxu0 0.0
        %6510 = vmatpush1.msra.mxu0 0.0
        %6511 = vmatprep.subr.mxu0 0.0
        %6512 = vmatpush1.msra.mxu0 0.0
        %6513 = vmatprep.subr.mxu0 0.0
        %6514 = vmatpush1.msra.mxu0 0.0
        %6515 = vmatprep.subr.mxu0 0.0
        %6516 = vmatpush1.msra.mxu0 0.0
        %6517 = vmatprep.mubr.f32.mxu0 0.0
        %v6518 = vand.u32 %v6189, 4294901760
        %v6519 = vsub.f32 %v6189, %v6518
        %v6520 = vand.u32 %v6519, 4294901760
        %6521 = vmatmul.mubr.f32.gmra.mrb[0].mxu0 %v6520
        %v6522 = vpop.f32.mrb[0].mxu0
        %v6523 = vadd.f32 %v6441, %v6522
        %v6524 = vpop.f32.mrb[0].mxu0
        %6525 = vmatprep.mubr.f32.mxu0 0.0
        %v6526 = vand.u32 %v6192, 4294901760
        %v6527 = vsub.f32 %v6192, %v6526
        %v6528 = vand.u32 %v6527, 4294901760
        %6529 = vmatmul.mubr.f32.gmra.mrb[0].mxu0 %v6528
        %v6530 = vpop.f32.mrb[0].mxu0
        %v6531 = vadd.f32 %v6448, %v6530
        %v6532 = vpop.f32.mrb[0].mxu0
        %6533 = vdwg.mxu0
        %6534 = vmatprep.subr.mxu0 0.0
        %v6535 = vand.u32 %v332, 4294901760
        %v6536 = vsub.f32 %v332, %v6535
        %v6537 = vand.u32 %v6536, 4294901760
        %6538 = vmatpush1.msra.mxu0 %v6537
        %6539 = vmatprep.subr.mxu0 0.0
        %v6540 = vand.u32 %v333, 4294901760
        %v6541 = vsub.f32 %v333, %v6540
        %v6542 = vand.u32 %v6541, 4294901760
        %6543 = vmatpush1.msra.mxu0 %v6542
        %6544 = vmatprep.subr.mxu0 0.0
        %6545 = vmatpush1.msra.mxu0 0.0
        %6546 = vmatprep.subr.mxu0 0.0
        %6547 = vmatpush1.msra.mxu0 0.0
        %6548 = vmatprep.subr.mxu0 0.0
        %6549 = vmatpush1.msra.mxu0 0.0
        %6550 = vmatprep.subr.mxu0 0.0
        %6551 = vmatpush1.msra.mxu0 0.0
        %6552 = vmatprep.subr.mxu0 0.0
        %6553 = vmatpush1.msra.mxu0 0.0
        %6554 = vmatprep.subr.mxu0 0.0
        %6555 = vmatpush1.msra.mxu0 0.0
        %6556 = vmatprep.subr.mxu0 0.0
        %6557 = vmatpush1.msra.mxu0 0.0
        %6558 = vmatprep.subr.mxu0 0.0
        %6559 = vmatpush1.msra.mxu0 0.0
        %6560 = vmatprep.subr.mxu0 0.0
        %6561 = vmatpush1.msra.mxu0 0.0
        %6562 = vmatprep.subr.mxu0 0.0
        %6563 = vmatpush1.msra.mxu0 0.0
        %6564 = vmatprep.subr.mxu0 0.0
        %6565 = vmatpush1.msra.mxu0 0.0
        %6566 = vmatprep.subr.mxu0 0.0
        %6567 = vmatpush1.msra.mxu0 0.0
        %6568 = vmatprep.subr.mxu0 0.0
        %6569 = vmatpush1.msra.mxu0 0.0
        %6570 = vmatprep.subr.mxu0 0.0
        %6571 = vmatpush1.msra.mxu0 0.0
        %6572 = vmatprep.subr.mxu0 0.0
        %6573 = vmatpush1.msra.mxu0 0.0
        %6574 = vmatprep.subr.mxu0 0.0
        %6575 = vmatpush1.msra.mxu0 0.0
        %6576 = vmatprep.subr.mxu0 0.0
        %6577 = vmatpush1.msra.mxu0 0.0
        %6578 = vmatprep.subr.mxu0 0.0
        %6579 = vmatpush1.msra.mxu0 0.0
        %6580 = vmatprep.subr.mxu0 0.0
        %6581 = vmatpush1.msra.mxu0 0.0
        %6582 = vmatprep.subr.mxu0 0.0
        %6583 = vmatpush1.msra.mxu0 0.0
        %6584 = vmatprep.subr.mxu0 0.0
        %6585 = vmatpush1.msra.mxu0 0.0
        %6586 = vmatprep.subr.mxu0 0.0
        %6587 = vmatpush1.msra.mxu0 0.0
        %6588 = vmatprep.subr.mxu0 0.0
        %6589 = vmatpush1.msra.mxu0 0.0
        %6590 = vmatprep.subr.mxu0 0.0
        %6591 = vmatpush1.msra.mxu0 0.0
        %6592 = vmatprep.subr.mxu0 0.0
        %6593 = vmatpush1.msra.mxu0 0.0
        %6594 = vmatprep.subr.mxu0 0.0
        %6595 = vmatpush1.msra.mxu0 0.0
        %6596 = vmatprep.subr.mxu0 0.0
        %6597 = vmatpush1.msra.mxu0 0.0
        %6598 = vmatprep.subr.mxu0 0.0
        %6599 = vmatpush1.msra.mxu0 0.0
        %6600 = vmatprep.subr.mxu0 0.0
        %6601 = vmatpush1.msra.mxu0 0.0
        %6602 = vmatprep.subr.mxu0 0.0
        %6603 = vmatpush1.msra.mxu0 0.0
        %6604 = vmatprep.mubr.f32.mxu0 0.0
        %v6605 = vand.u32 %v6189, 4294901760
        %6606 = vmatmul.mubr.f32.gmra.mrb[0].mxu0 %v6605
        %v6607 = vpop.f32.mrb[0].mxu0
        %v6608 = vadd.f32 %v6523, %v6607
        %v6609 = vpop.f32.mrb[0].mxu0
        %6610 = vmatprep.mubr.f32.mxu0 0.0
        %v6611 = vand.u32 %v6192, 4294901760
        %6612 = vmatmul.mubr.f32.gmra.mrb[0].mxu0 %v6611
        %v6613 = vpop.f32.mrb[0].mxu0
        %v6614 = vadd.f32 %v6531, %v6613
        %v6615 = vpop.f32.mrb[0].mxu0
        %6616 = vdwg.mxu0
        %6617 = vmatprep.subr.mxu0 0.0
        %v6618 = vand.u32 %v332, 4294901760
        %6619 = vmatpush1.msra.mxu0 %v6618
        %6620 = vmatprep.subr.mxu0 0.0
        %v6621 = vand.u32 %v333, 4294901760
        %6622 = vmatpush1.msra.mxu0 %v6621
        %6623 = vmatprep.subr.mxu0 0.0
        %6624 = vmatpush1.msra.mxu0 0.0
        %6625 = vmatprep.subr.mxu0 0.0
        %6626 = vmatpush1.msra.mxu0 0.0
        %6627 = vmatprep.subr.mxu0 0.0
        %6628 = vmatpush1.msra.mxu0 0.0
        %6629 = vmatprep.subr.mxu0 0.0
        %6630 = vmatpush1.msra.mxu0 0.0
        %6631 = vmatprep.subr.mxu0 0.0
        %6632 = vmatpush1.msra.mxu0 0.0
        %6633 = vmatprep.subr.mxu0 0.0
        %6634 = vmatpush1.msra.mxu0 0.0
        %6635 = vmatprep.subr.mxu0 0.0
        %6636 = vmatpush1.msra.mxu0 0.0
        %6637 = vmatprep.subr.mxu0 0.0
        %6638 = vmatpush1.msra.mxu0 0.0
        %6639 = vmatprep.subr.mxu0 0.0
        %6640 = vmatpush1.msra.mxu0 0.0
        %6641 = vmatprep.subr.mxu0 0.0
        %6642 = vmatpush1.msra.mxu0 0.0
        %6643 = vmatprep.subr.mxu0 0.0
        %6644 = vmatpush1.msra.mxu0 0.0
        %6645 = vmatprep.subr.mxu0 0.0
        %6646 = vmatpush1.msra.mxu0 0.0
        %6647 = vmatprep.subr.mxu0 0.0
        %6648 = vmatpush1.msra.mxu0 0.0
        %6649 = vmatprep.subr.mxu0 0.0
        %6650 = vmatpush1.msra.mxu0 0.0
        %6651 = vmatprep.subr.mxu0 0.0
        %6652 = vmatpush1.msra.mxu0 0.0
        %6653 = vmatprep.subr.mxu0 0.0
        %6654 = vmatpush1.msra.mxu0 0.0
        %6655 = vmatprep.subr.mxu0 0.0
        %6656 = vmatpush1.msra.mxu0 0.0
        %6657 = vmatprep.subr.mxu0 0.0
        %6658 = vmatpush1.msra.mxu0 0.0
        %6659 = vmatprep.subr.mxu0 0.0
        %6660 = vmatpush1.msra.mxu0 0.0
        %6661 = vmatprep.subr.mxu0 0.0
        %6662 = vmatpush1.msra.mxu0 0.0
        %6663 = vmatprep.subr.mxu0 0.0
        %6664 = vmatpush1.msra.mxu0 0.0
        %6665 = vmatprep.subr.mxu0 0.0
        %6666 = vmatpush1.msra.mxu0 0.0
        %6667 = vmatprep.subr.mxu0 0.0
        %6668 = vmatpush1.msra.mxu0 0.0
        %6669 = vmatprep.subr.mxu0 0.0
        %6670 = vmatpush1.msra.mxu0 0.0
        %6671 = vmatprep.subr.mxu0 0.0
        %6672 = vmatpush1.msra.mxu0 0.0
        %6673 = vmatprep.subr.mxu0 0.0
        %6674 = vmatpush1.msra.mxu0 0.0
        %6675 = vmatprep.subr.mxu0 0.0
        %6676 = vmatpush1.msra.mxu0 0.0
        %6677 = vmatprep.subr.mxu0 0.0
        %6678 = vmatpush1.msra.mxu0 0.0
        %6679 = vmatprep.subr.mxu0 0.0
        %6680 = vmatpush1.msra.mxu0 0.0
        %6681 = vmatprep.subr.mxu0 0.0
        %6682 = vmatpush1.msra.mxu0 0.0
        %6683 = vmatprep.mubr.f32.mxu0 0.0
        %v6684 = vand.u32 %v6189, 4294901760
        %6685 = vmatmul.mubr.f32.gmra.mrb[0].mxu0 %v6684
        %v6686 = vpop.f32.mrb[0].mxu0
        %v6687 = vadd.f32 %v6608, %v6686
        %v6688 = vpop.f32.mrb[0].mxu0
        %6689 = vmatprep.mubr.f32.mxu0 0.0
        %v6690 = vand.u32 %v6192, 4294901760
        %6691 = vmatmul.mubr.f32.gmra.mrb[0].mxu0 %v6690
        %v6692 = vpop.f32.mrb[0].mxu0
        %v6693 = vadd.f32 %v6614, %v6692
        %v6694 = vpop.f32.mrb[0].mxu0
        %6695 = vdwg.mxu0
        %6696 = vmatprep.subr.mxu0 0.0
        %v6697 = vand.u32 %v6687, 4294901760
        %6698 = vmatpush1.msra.mxu0 %v6697
        %6699 = vmatprep.subr.mxu0 0.0
        %v6700 = vand.u32 %v6693, 4294901760
        %6701 = vmatpush1.msra.mxu0 %v6700
        %6702 = vmatprep.subr.mxu0 0.0
        %6703 = vmatpush1.msra.mxu0 0.0
        %6704 = vmatprep.subr.mxu0 0.0
        %6705 = vmatpush1.msra.mxu0 0.0
        %6706 = vmatprep.subr.mxu0 0.0
        %6707 = vmatpush1.msra.mxu0 0.0
        %6708 = vmatprep.subr.mxu0 0.0
        %6709 = vmatpush1.msra.mxu0 0.0
        %6710 = vmatprep.subr.mxu0 0.0
        %6711 = vmatpush1.msra.mxu0 0.0
        %6712 = vmatprep.subr.mxu0 0.0
        %6713 = vmatpush1.msra.mxu0 0.0
        %6714 = vmatprep.subr.mxu0 0.0
        %6715 = vmatpush1.msra.mxu0 0.0
        %6716 = vmatprep.subr.mxu0 0.0
        %6717 = vmatpush1.msra.mxu0 0.0
        %6718 = vmatprep.subr.mxu0 0.0
        %6719 = vmatpush1.msra.mxu0 0.0
        %6720 = vmatprep.subr.mxu0 0.0
        %6721 = vmatpush1.msra.mxu0 0.0
        %6722 = vmatprep.subr.mxu0 0.0
        %6723 = vmatpush1.msra.mxu0 0.0
        %6724 = vmatprep.subr.mxu0 0.0
        %6725 = vmatpush1.msra.mxu0 0.0
        %6726 = vmatprep.subr.mxu0 0.0
        %6727 = vmatpush1.msra.mxu0 0.0
        %6728 = vmatprep.subr.mxu0 0.0
        %6729 = vmatpush1.msra.mxu0 0.0
        %6730 = vmatprep.subr.mxu0 0.0
        %6731 = vmatpush1.msra.mxu0 0.0
        %6732 = vmatprep.subr.mxu0 0.0
        %6733 = vmatpush1.msra.mxu0 0.0
        %6734 = vmatprep.subr.mxu0 0.0
        %6735 = vmatpush1.msra.mxu0 0.0
        %6736 = vmatprep.subr.mxu0 0.0
        %6737 = vmatpush1.msra.mxu0 0.0
        %6738 = vmatprep.subr.mxu0 0.0
        %6739 = vmatpush1.msra.mxu0 0.0
        %6740 = vmatprep.subr.mxu0 0.0
        %6741 = vmatpush1.msra.mxu0 0.0
        %6742 = vmatprep.subr.mxu0 0.0
        %6743 = vmatpush1.msra.mxu0 0.0
        %6744 = vmatprep.subr.mxu0 0.0
        %6745 = vmatpush1.msra.mxu0 0.0
        %6746 = vmatprep.subr.mxu0 0.0
        %6747 = vmatpush1.msra.mxu0 0.0
        %6748 = vmatprep.subr.mxu0 0.0
        %6749 = vmatpush1.msra.mxu0 0.0
        %6750 = vmatprep.subr.mxu0 0.0
        %6751 = vmatpush1.msra.mxu0 0.0
        %6752 = vmatprep.subr.mxu0 0.0
        %6753 = vmatpush1.msra.mxu0 0.0
        %6754 = vmatprep.subr.mxu0 0.0
        %6755 = vmatpush1.msra.mxu0 0.0
        %6756 = vmatprep.subr.mxu0 0.0
        %6757 = vmatpush1.msra.mxu0 0.0
        %6758 = vmatprep.subr.mxu0 0.0
        %6759 = vmatpush1.msra.mxu0 0.0
        %6760 = vmatprep.subr.mxu0 0.0
        %6761 = vmatpush1.msra.mxu0 0.0
        %6762 = vmatprep.mubr.f32.mxu0 0.0
        %v6763 = vand.u32 %v849, 4294901760
        %v6764 = vsub.f32 %v849, %v6763
        %v6765 = vand.u32 %v6764, 4294901760
        %v6766 = vsub.f32 %v6764, %v6765
        %v6767 = vand.u32 %v6766, 4294901760
        %6768 = vmatmul.mubr.f32.gmra.mrb[0].mxu0 %v6767
        %v6769 = vpop.f32.mrb[0].mxu0
        %v6770 = vadd.f32 0.0, %v6769
        %v6771 = vpop.f32.mrb[0].mxu0
        %6772 = vdwg.mxu0
        %6773 = vmatprep.subr.mxu0 0.0
        %v6774 = vand.u32 %v6687, 4294901760
        %v6775 = vsub.f32 %v6687, %v6774
        %v6776 = vand.u32 %v6775, 4294901760
        %v6777 = vsub.f32 %v6775, %v6776
        %v6778 = vand.u32 %v6777, 4294901760
        %6779 = vmatpush1.msra.mxu0 %v6778
        %6780 = vmatprep.subr.mxu0 0.0
        %v6781 = vand.u32 %v6693, 4294901760
        %v6782 = vsub.f32 %v6693, %v6781
        %v6783 = vand.u32 %v6782, 4294901760
        %v6784 = vsub.f32 %v6782, %v6783
        %v6785 = vand.u32 %v6784, 4294901760
        %6786 = vmatpush1.msra.mxu0 %v6785
        %6787 = vmatprep.subr.mxu0 0.0
        %6788 = vmatpush1.msra.mxu0 0.0
        %6789 = vmatprep.subr.mxu0 0.0
        %6790 = vmatpush1.msra.mxu0 0.0
        %6791 = vmatprep.subr.mxu0 0.0
        %6792 = vmatpush1.msra.mxu0 0.0
        %6793 = vmatprep.subr.mxu0 0.0
        %6794 = vmatpush1.msra.mxu0 0.0
        %6795 = vmatprep.subr.mxu0 0.0
        %6796 = vmatpush1.msra.mxu0 0.0
        %6797 = vmatprep.subr.mxu0 0.0
        %6798 = vmatpush1.msra.mxu0 0.0
        %6799 = vmatprep.subr.mxu0 0.0
        %6800 = vmatpush1.msra.mxu0 0.0
        %6801 = vmatprep.subr.mxu0 0.0
        %6802 = vmatpush1.msra.mxu0 0.0
        %6803 = vmatprep.subr.mxu0 0.0
        %6804 = vmatpush1.msra.mxu0 0.0
        %6805 = vmatprep.subr.mxu0 0.0
        %6806 = vmatpush1.msra.mxu0 0.0
        %6807 = vmatprep.subr.mxu0 0.0
        %6808 = vmatpush1.msra.mxu0 0.0
        %6809 = vmatprep.subr.mxu0 0.0
        %6810 = vmatpush1.msra.mxu0 0.0
        %6811 = vmatprep.subr.mxu0 0.0
        %6812 = vmatpush1.msra.mxu0 0.0
        %6813 = vmatprep.subr.mxu0 0.0
        %6814 = vmatpush1.msra.mxu0 0.0
        %6815 = vmatprep.subr.mxu0 0.0
        %6816 = vmatpush1.msra.mxu0 0.0
        %6817 = vmatprep.subr.mxu0 0.0
        %6818 = vmatpush1.msra.mxu0 0.0
        %6819 = vmatprep.subr.mxu0 0.0
        %6820 = vmatpush1.msra.mxu0 0.0
        %6821 = vmatprep.subr.mxu0 0.0
        %6822 = vmatpush1.msra.mxu0 0.0
        %6823 = vmatprep.subr.mxu0 0.0
        %6824 = vmatpush1.msra.mxu0 0.0
        %6825 = vmatprep.subr.mxu0 0.0
        %6826 = vmatpush1.msra.mxu0 0.0
        %6827 = vmatprep.subr.mxu0 0.0
        %6828 = vmatpush1.msra.mxu0 0.0
        %6829 = vmatprep.subr.mxu0 0.0
        %6830 = vmatpush1.msra.mxu0 0.0
        %6831 = vmatprep.subr.mxu0 0.0
        %6832 = vmatpush1.msra.mxu0 0.0
        %6833 = vmatprep.subr.mxu0 0.0
        %6834 = vmatpush1.msra.mxu0 0.0
        %6835 = vmatprep.subr.mxu0 0.0
        %6836 = vmatpush1.msra.mxu0 0.0
        %6837 = vmatprep.subr.mxu0 0.0
        %6838 = vmatpush1.msra.mxu0 0.0
        %6839 = vmatprep.subr.mxu0 0.0
        %6840 = vmatpush1.msra.mxu0 0.0
        %6841 = vmatprep.subr.mxu0 0.0
        %6842 = vmatpush1.msra.mxu0 0.0
        %6843 = vmatprep.subr.mxu0 0.0
        %6844 = vmatpush1.msra.mxu0 0.0
        %6845 = vmatprep.subr.mxu0 0.0
        %6846 = vmatpush1.msra.mxu0 0.0
        %6847 = vmatprep.mubr.f32.mxu0 0.0
        %v6848 = vand.u32 %v849, 4294901760
        %6849 = vmatmul.mubr.f32.gmra.mrb[0].mxu0 %v6848
        %v6850 = vpop.f32.mrb[0].mxu0
        %v6851 = vadd.f32 %v6770, %v6850
        %v6852 = vpop.f32.mrb[0].mxu0
        %6853 = vdwg.mxu0
        %6854 = vmatprep.subr.mxu0 0.0
        %v6855 = vand.u32 %v6687, 4294901760
        %v6856 = vsub.f32 %v6687, %v6855
        %6857 = vmatpush1.msra.mxu0 %v6856
        %6858 = vmatprep.subr.mxu0 0.0
        %v6859 = vand.u32 %v6693, 4294901760
        %v6860 = vsub.f32 %v6693, %v6859
        %6861 = vmatpush1.msra.mxu0 %v6860
        %6862 = vmatprep.subr.mxu0 0.0
        %6863 = vmatpush1.msra.mxu0 0.0
        %6864 = vmatprep.subr.mxu0 0.0
        %6865 = vmatpush1.msra.mxu0 0.0
        %6866 = vmatprep.subr.mxu0 0.0
        %6867 = vmatpush1.msra.mxu0 0.0
        %6868 = vmatprep.subr.mxu0 0.0
        %6869 = vmatpush1.msra.mxu0 0.0
        %6870 = vmatprep.subr.mxu0 0.0
        %6871 = vmatpush1.msra.mxu0 0.0
        %6872 = vmatprep.subr.mxu0 0.0
        %6873 = vmatpush1.msra.mxu0 0.0
        %6874 = vmatprep.subr.mxu0 0.0
        %6875 = vmatpush1.msra.mxu0 0.0
        %6876 = vmatprep.subr.mxu0 0.0
        %6877 = vmatpush1.msra.mxu0 0.0
        %6878 = vmatprep.subr.mxu0 0.0
        %6879 = vmatpush1.msra.mxu0 0.0
        %6880 = vmatprep.subr.mxu0 0.0
        %6881 = vmatpush1.msra.mxu0 0.0
        %6882 = vmatprep.subr.mxu0 0.0
        %6883 = vmatpush1.msra.mxu0 0.0
        %6884 = vmatprep.subr.mxu0 0.0
        %6885 = vmatpush1.msra.mxu0 0.0
        %6886 = vmatprep.subr.mxu0 0.0
        %6887 = vmatpush1.msra.mxu0 0.0
        %6888 = vmatprep.subr.mxu0 0.0
        %6889 = vmatpush1.msra.mxu0 0.0
        %6890 = vmatprep.subr.mxu0 0.0
        %6891 = vmatpush1.msra.mxu0 0.0
        %6892 = vmatprep.subr.mxu0 0.0
        %6893 = vmatpush1.msra.mxu0 0.0
        %6894 = vmatprep.subr.mxu0 0.0
        %6895 = vmatpush1.msra.mxu0 0.0
        %6896 = vmatprep.subr.mxu0 0.0
        %6897 = vmatpush1.msra.mxu0 0.0
        %6898 = vmatprep.subr.mxu0 0.0
        %6899 = vmatpush1.msra.mxu0 0.0
        %6900 = vmatprep.subr.mxu0 0.0
        %6901 = vmatpush1.msra.mxu0 0.0
        %6902 = vmatprep.subr.mxu0 0.0
        %6903 = vmatpush1.msra.mxu0 0.0
        %6904 = vmatprep.subr.mxu0 0.0
        %6905 = vmatpush1.msra.mxu0 0.0
        %6906 = vmatprep.subr.mxu0 0.0
        %6907 = vmatpush1.msra.mxu0 0.0
        %6908 = vmatprep.subr.mxu0 0.0
        %6909 = vmatpush1.msra.mxu0 0.0
        %6910 = vmatprep.subr.mxu0 0.0
        %6911 = vmatpush1.msra.mxu0 0.0
        %6912 = vmatprep.subr.mxu0 0.0
        %6913 = vmatpush1.msra.mxu0 0.0
        %6914 = vmatprep.subr.mxu0 0.0
        %6915 = vmatpush1.msra.mxu0 0.0
        %6916 = vmatprep.subr.mxu0 0.0
        %6917 = vmatpush1.msra.mxu0 0.0
        %6918 = vmatprep.subr.mxu0 0.0
        %6919 = vmatpush1.msra.mxu0 0.0
        %6920 = vmatprep.subr.mxu0 0.0
        %6921 = vmatpush1.msra.mxu0 0.0
        %6922 = vmatprep.mubr.f32.mxu0 0.0
        %v6923 = vand.u32 %v849, 4294901760
        %v6924 = vsub.f32 %v849, %v6923
        %6925 = vmatmul.mubr.f32.gmra.mrb[0].mxu0 %v6924
        %v6926 = vpop.f32.mrb[0].mxu0
        %v6927 = vadd.f32 %v6851, %v6926
        %v6928 = vpop.f32.mrb[0].mxu0
        %6929 = vdwg.mxu0
        %6930 = vmatprep.subr.mxu0 0.0
        %v6931 = vand.u32 %v6687, 4294901760
        %6932 = vmatpush1.msra.mxu0 %v6931
        %6933 = vmatprep.subr.mxu0 0.0
        %v6934 = vand.u32 %v6693, 4294901760
        %6935 = vmatpush1.msra.mxu0 %v6934
        %6936 = vmatprep.subr.mxu0 0.0
        %6937 = vmatpush1.msra.mxu0 0.0
        %6938 = vmatprep.subr.mxu0 0.0
        %6939 = vmatpush1.msra.mxu0 0.0
        %6940 = vmatprep.subr.mxu0 0.0
        %6941 = vmatpush1.msra.mxu0 0.0
        %6942 = vmatprep.subr.mxu0 0.0
        %6943 = vmatpush1.msra.mxu0 0.0
        %6944 = vmatprep.subr.mxu0 0.0
        %6945 = vmatpush1.msra.mxu0 0.0
        %6946 = vmatprep.subr.mxu0 0.0
        %6947 = vmatpush1.msra.mxu0 0.0
        %6948 = vmatprep.subr.mxu0 0.0
        %6949 = vmatpush1.msra.mxu0 0.0
        %6950 = vmatprep.subr.mxu0 0.0
        %6951 = vmatpush1.msra.mxu0 0.0
        %6952 = vmatprep.subr.mxu0 0.0
        %6953 = vmatpush1.msra.mxu0 0.0
        %6954 = vmatprep.subr.mxu0 0.0
        %6955 = vmatpush1.msra.mxu0 0.0
        %6956 = vmatprep.subr.mxu0 0.0
        %6957 = vmatpush1.msra.mxu0 0.0
        %6958 = vmatprep.subr.mxu0 0.0
        %6959 = vmatpush1.msra.mxu0 0.0
        %6960 = vmatprep.subr.mxu0 0.0
        %6961 = vmatpush1.msra.mxu0 0.0
        %6962 = vmatprep.subr.mxu0 0.0
        %6963 = vmatpush1.msra.mxu0 0.0
        %6964 = vmatprep.subr.mxu0 0.0
        %6965 = vmatpush1.msra.mxu0 0.0
        %6966 = vmatprep.subr.mxu0 0.0
        %6967 = vmatpush1.msra.mxu0 0.0
        %6968 = vmatprep.subr.mxu0 0.0
        %6969 = vmatpush1.msra.mxu0 0.0
        %6970 = vmatprep.subr.mxu0 0.0
        %6971 = vmatpush1.msra.mxu0 0.0
        %6972 = vmatprep.subr.mxu0 0.0
        %6973 = vmatpush1.msra.mxu0 0.0
        %6974 = vmatprep.subr.mxu0 0.0
        %6975 = vmatpush1.msra.mxu0 0.0
        %6976 = vmatprep.subr.mxu0 0.0
        %6977 = vmatpush1.msra.mxu0 0.0
        %6978 = vmatprep.subr.mxu0 0.0
        %6979 = vmatpush1.msra.mxu0 0.0
        %6980 = vmatprep.subr.mxu0 0.0
        %6981 = vmatpush1.msra.mxu0 0.0
        %6982 = vmatprep.subr.mxu0 0.0
        %6983 = vmatpush1.msra.mxu0 0.0
        %6984 = vmatprep.subr.mxu0 0.0
        %6985 = vmatpush1.msra.mxu0 0.0
        %6986 = vmatprep.subr.mxu0 0.0
        %6987 = vmatpush1.msra.mxu0 0.0
        %6988 = vmatprep.subr.mxu0 0.0
        %6989 = vmatpush1.msra.mxu0 0.0
        %6990 = vmatprep.subr.mxu0 0.0
        %6991 = vmatpush1.msra.mxu0 0.0
        %6992 = vmatprep.subr.mxu0 0.0
        %6993 = vmatpush1.msra.mxu0 0.0
        %6994 = vmatprep.subr.mxu0 0.0
        %6995 = vmatpush1.msra.mxu0 0.0
        %6996 = vmatprep.mubr.f32.mxu0 0.0
        %v6997 = vand.u32 %v849, 4294901760
        %v6998 = vsub.f32 %v849, %v6997
        %v6999 = vand.u32 %v6998, 4294901760
        %7000 = vmatmul.mubr.f32.gmra.mrb[0].mxu0 %v6999
        %v7001 = vpop.f32.mrb[0].mxu0
        %v7002 = vadd.f32 %v6927, %v7001
        %v7003 = vpop.f32.mrb[0].mxu0
        %7004 = vdwg.mxu0
        %7005 = vmatprep.subr.mxu0 0.0
        %v7006 = vand.u32 %v6687, 4294901760
        %v7007 = vsub.f32 %v6687, %v7006
        %v7008 = vand.u32 %v7007, 4294901760
        %7009 = vmatpush1.msra.mxu0 %v7008
        %7010 = vmatprep.subr.mxu0 0.0
        %v7011 = vand.u32 %v6693, 4294901760
        %v7012 = vsub.f32 %v6693, %v7011
        %v7013 = vand.u32 %v7012, 4294901760
        %7014 = vmatpush1.msra.mxu0 %v7013
        %7015 = vmatprep.subr.mxu0 0.0
        %7016 = vmatpush1.msra.mxu0 0.0
        %7017 = vmatprep.subr.mxu0 0.0
        %7018 = vmatpush1.msra.mxu0 0.0
        %7019 = vmatprep.subr.mxu0 0.0
        %7020 = vmatpush1.msra.mxu0 0.0
        %7021 = vmatprep.subr.mxu0 0.0
        %7022 = vmatpush1.msra.mxu0 0.0
        %7023 = vmatprep.subr.mxu0 0.0
        %7024 = vmatpush1.msra.mxu0 0.0
        %7025 = vmatprep.subr.mxu0 0.0
        %7026 = vmatpush1.msra.mxu0 0.0
        %7027 = vmatprep.subr.mxu0 0.0
        %7028 = vmatpush1.msra.mxu0 0.0
        %7029 = vmatprep.subr.mxu0 0.0
        %7030 = vmatpush1.msra.mxu0 0.0
        %7031 = vmatprep.subr.mxu0 0.0
        %7032 = vmatpush1.msra.mxu0 0.0
        %7033 = vmatprep.subr.mxu0 0.0
        %7034 = vmatpush1.msra.mxu0 0.0
        %7035 = vmatprep.subr.mxu0 0.0
        %7036 = vmatpush1.msra.mxu0 0.0
        %7037 = vmatprep.subr.mxu0 0.0
        %7038 = vmatpush1.msra.mxu0 0.0
        %7039 = vmatprep.subr.mxu0 0.0
        %7040 = vmatpush1.msra.mxu0 0.0
        %7041 = vmatprep.subr.mxu0 0.0
        %7042 = vmatpush1.msra.mxu0 0.0
        %7043 = vmatprep.subr.mxu0 0.0
        %7044 = vmatpush1.msra.mxu0 0.0
        %7045 = vmatprep.subr.mxu0 0.0
        %7046 = vmatpush1.msra.mxu0 0.0
        %7047 = vmatprep.subr.mxu0 0.0
        %7048 = vmatpush1.msra.mxu0 0.0
        %7049 = vmatprep.subr.mxu0 0.0
        %7050 = vmatpush1.msra.mxu0 0.0
        %7051 = vmatprep.subr.mxu0 0.0
        %7052 = vmatpush1.msra.mxu0 0.0
        %7053 = vmatprep.subr.mxu0 0.0
        %7054 = vmatpush1.msra.mxu0 0.0
        %7055 = vmatprep.subr.mxu0 0.0
        %7056 = vmatpush1.msra.mxu0 0.0
        %7057 = vmatprep.subr.mxu0 0.0
        %7058 = vmatpush1.msra.mxu0 0.0
        %7059 = vmatprep.subr.mxu0 0.0
        %7060 = vmatpush1.msra.mxu0 0.0
        %7061 = vmatprep.subr.mxu0 0.0
        %7062 = vmatpush1.msra.mxu0 0.0
        %7063 = vmatprep.subr.mxu0 0.0
        %7064 = vmatpush1.msra.mxu0 0.0
        %7065 = vmatprep.subr.mxu0 0.0
        %7066 = vmatpush1.msra.mxu0 0.0
        %7067 = vmatprep.subr.mxu0 0.0
        %7068 = vmatpush1.msra.mxu0 0.0
        %7069 = vmatprep.subr.mxu0 0.0
        %7070 = vmatpush1.msra.mxu0 0.0
        %7071 = vmatprep.subr.mxu0 0.0
        %7072 = vmatpush1.msra.mxu0 0.0
        %7073 = vmatprep.subr.mxu0 0.0
        %7074 = vmatpush1.msra.mxu0 0.0
        %7075 = vmatprep.mubr.f32.mxu0 0.0
        %v7076 = vand.u32 %v849, 4294901760
        %7077 = vmatmul.mubr.f32.gmra.mrb[0].mxu0 %v7076
        %v7078 = vpop.f32.mrb[0].mxu0
        %v7079 = vadd.f32 %v7002, %v7078
        %v7080 = vpop.f32.mrb[0].mxu0
        %7081 = vdwg.mxu0
        %7082 = vmatprep.subr.mxu0 0.0
        %v7083 = vand.u32 %v6687, 4294901760
        %7084 = vmatpush1.msra.mxu0 %v7083
        %7085 = vmatprep.subr.mxu0 0.0
        %v7086 = vand.u32 %v6693, 4294901760
        %7087 = vmatpush1.msra.mxu0 %v7086
        %7088 = vmatprep.subr.mxu0 0.0
        %7089 = vmatpush1.msra.mxu0 0.0
        %7090 = vmatprep.subr.mxu0 0.0
        %7091 = vmatpush1.msra.mxu0 0.0
        %7092 = vmatprep.subr.mxu0 0.0
        %7093 = vmatpush1.msra.mxu0 0.0
        %7094 = vmatprep.subr.mxu0 0.0
        %7095 = vmatpush1.msra.mxu0 0.0
        %7096 = vmatprep.subr.mxu0 0.0
        %7097 = vmatpush1.msra.mxu0 0.0
        %7098 = vmatprep.subr.mxu0 0.0
        %7099 = vmatpush1.msra.mxu0 0.0
        %7100 = vmatprep.subr.mxu0 0.0
        %7101 = vmatpush1.msra.mxu0 0.0
        %7102 = vmatprep.subr.mxu0 0.0
        %7103 = vmatpush1.msra.mxu0 0.0
        %7104 = vmatprep.subr.mxu0 0.0
        %7105 = vmatpush1.msra.mxu0 0.0
        %7106 = vmatprep.subr.mxu0 0.0
        %7107 = vmatpush1.msra.mxu0 0.0
        %7108 = vmatprep.subr.mxu0 0.0
        %7109 = vmatpush1.msra.mxu0 0.0
        %7110 = vmatprep.subr.mxu0 0.0
        %7111 = vmatpush1.msra.mxu0 0.0
        %7112 = vmatprep.subr.mxu0 0.0
        %7113 = vmatpush1.msra.mxu0 0.0
        %7114 = vmatprep.subr.mxu0 0.0
        %7115 = vmatpush1.msra.mxu0 0.0
        %7116 = vmatprep.subr.mxu0 0.0
        %7117 = vmatpush1.msra.mxu0 0.0
        %7118 = vmatprep.subr.mxu0 0.0
        %7119 = vmatpush1.msra.mxu0 0.0
        %7120 = vmatprep.subr.mxu0 0.0
        %7121 = vmatpush1.msra.mxu0 0.0
        %7122 = vmatprep.subr.mxu0 0.0
        %7123 = vmatpush1.msra.mxu0 0.0
        %7124 = vmatprep.subr.mxu0 0.0
        %7125 = vmatpush1.msra.mxu0 0.0
        %7126 = vmatprep.subr.mxu0 0.0
        %7127 = vmatpush1.msra.mxu0 0.0
        %7128 = vmatprep.subr.mxu0 0.0
        %7129 = vmatpush1.msra.mxu0 0.0
        %7130 = vmatprep.subr.mxu0 0.0
        %7131 = vmatpush1.msra.mxu0 0.0
        %7132 = vmatprep.subr.mxu0 0.0
        %7133 = vmatpush1.msra.mxu0 0.0
        %7134 = vmatprep.subr.mxu0 0.0
        %7135 = vmatpush1.msra.mxu0 0.0
        %7136 = vmatprep.subr.mxu0 0.0
        %7137 = vmatpush1.msra.mxu0 0.0
        %7138 = vmatprep.subr.mxu0 0.0
        %7139 = vmatpush1.msra.mxu0 0.0
        %7140 = vmatprep.subr.mxu0 0.0
        %7141 = vmatpush1.msra.mxu0 0.0
        %7142 = vmatprep.subr.mxu0 0.0
        %7143 = vmatpush1.msra.mxu0 0.0
        %7144 = vmatprep.subr.mxu0 0.0
        %7145 = vmatpush1.msra.mxu0 0.0
        %7146 = vmatprep.subr.mxu0 0.0
        %7147 = vmatpush1.msra.mxu0 0.0
        %7148 = vmatprep.mubr.f32.mxu0 0.0
        %v7149 = vand.u32 %v849, 4294901760
        %7150 = vmatmul.mubr.f32.gmra.mrb[0].mxu0 %v7149
        %v7151 = vpop.f32.mrb[0].mxu0
        %v7152 = vadd.f32 %v7079, %v7151
        %v7153 = vpop.f32.mrb[0].mxu0
        %7154 = vdwg.mxu0
        %v7155 = vmul.f32 %v5216, %v5216
        %v7156 = vmul.f32 %v5217, %v5217
        %v7158 = vsel %vm339, %v7155, 0
        %v7161 = vsel %vm339, %v7156, 0
        %7163 = vmatprep.subr.mxu0 0.0
        %v7164 = vand.u32 %v332, 4294901760
        %7165 = vmatpush1.msra.mxu0 %v7164
        %7166 = vmatprep.subr.mxu0 0.0
        %v7167 = vand.u32 %v333, 4294901760
        %7168 = vmatpush1.msra.mxu0 %v7167
        %7169 = vmatprep.subr.mxu0 0.0
        %7170 = vmatpush1.msra.mxu0 0.0
        %7171 = vmatprep.subr.mxu0 0.0
        %7172 = vmatpush1.msra.mxu0 0.0
        %7173 = vmatprep.subr.mxu0 0.0
        %7174 = vmatpush1.msra.mxu0 0.0
        %7175 = vmatprep.subr.mxu0 0.0
        %7176 = vmatpush1.msra.mxu0 0.0
        %7177 = vmatprep.subr.mxu0 0.0
        %7178 = vmatpush1.msra.mxu0 0.0
        %7179 = vmatprep.subr.mxu0 0.0
        %7180 = vmatpush1.msra.mxu0 0.0
        %7181 = vmatprep.subr.mxu0 0.0
        %7182 = vmatpush1.msra.mxu0 0.0
        %7183 = vmatprep.subr.mxu0 0.0
        %7184 = vmatpush1.msra.mxu0 0.0
        %7185 = vmatprep.subr.mxu0 0.0
        %7186 = vmatpush1.msra.mxu0 0.0
        %7187 = vmatprep.subr.mxu0 0.0
        %7188 = vmatpush1.msra.mxu0 0.0
        %7189 = vmatprep.subr.mxu0 0.0
        %7190 = vmatpush1.msra.mxu0 0.0
        %7191 = vmatprep.subr.mxu0 0.0
        %7192 = vmatpush1.msra.mxu0 0.0
        %7193 = vmatprep.subr.mxu0 0.0
        %7194 = vmatpush1.msra.mxu0 0.0
        %7195 = vmatprep.subr.mxu0 0.0
        %7196 = vmatpush1.msra.mxu0 0.0
        %7197 = vmatprep.subr.mxu0 0.0
        %7198 = vmatpush1.msra.mxu0 0.0
        %7199 = vmatprep.subr.mxu0 0.0
        %7200 = vmatpush1.msra.mxu0 0.0
        %7201 = vmatprep.subr.mxu0 0.0
        %7202 = vmatpush1.msra.mxu0 0.0
        %7203 = vmatprep.subr.mxu0 0.0
        %7204 = vmatpush1.msra.mxu0 0.0
        %7205 = vmatprep.subr.mxu0 0.0
        %7206 = vmatpush1.msra.mxu0 0.0
        %7207 = vmatprep.subr.mxu0 0.0
        %7208 = vmatpush1.msra.mxu0 0.0
        %7209 = vmatprep.subr.mxu0 0.0
        %7210 = vmatpush1.msra.mxu0 0.0
        %7211 = vmatprep.subr.mxu0 0.0
        %7212 = vmatpush1.msra.mxu0 0.0
        %7213 = vmatprep.subr.mxu0 0.0
        %7214 = vmatpush1.msra.mxu0 0.0
        %7215 = vmatprep.subr.mxu0 0.0
        %7216 = vmatpush1.msra.mxu0 0.0
        %7217 = vmatprep.subr.mxu0 0.0
        %7218 = vmatpush1.msra.mxu0 0.0
        %7219 = vmatprep.subr.mxu0 0.0
        %7220 = vmatpush1.msra.mxu0 0.0
        %7221 = vmatprep.subr.mxu0 0.0
        %7222 = vmatpush1.msra.mxu0 0.0
        %7223 = vmatprep.subr.mxu0 0.0
        %7224 = vmatpush1.msra.mxu0 0.0
        %7225 = vmatprep.subr.mxu0 0.0
        %7226 = vmatpush1.msra.mxu0 0.0
        %7227 = vmatprep.subr.mxu0 0.0
        %7228 = vmatpush1.msra.mxu0 0.0
        %7229 = vmatprep.mubr.f32.mxu0 0.0
        %v7230 = vand.u32 %v7158, 4294901760
        %v7231 = vsub.f32 %v7158, %v7230
        %v7232 = vand.u32 %v7231, 4294901760
        %v7233 = vsub.f32 %v7231, %v7232
        %v7234 = vand.u32 %v7233, 4294901760
        %7235 = vmatmul.mubr.f32.gmra.mrb[0].mxu0 %v7234
        %v7236 = vpop.f32.mrb[0].mxu0
        %v7237 = vadd.f32 0.0, %v7236
        %v7238 = vpop.f32.mrb[0].mxu0
        %7239 = vmatprep.mubr.f32.mxu0 0.0
        %v7240 = vand.u32 %v7161, 4294901760
        %v7241 = vsub.f32 %v7161, %v7240
        %v7242 = vand.u32 %v7241, 4294901760
        %v7243 = vsub.f32 %v7241, %v7242
        %v7244 = vand.u32 %v7243, 4294901760
        %7245 = vmatmul.mubr.f32.gmra.mrb[0].mxu0 %v7244
        %v7246 = vpop.f32.mrb[0].mxu0
        %v7247 = vadd.f32 0.0, %v7246
        %v7248 = vpop.f32.mrb[0].mxu0
        %7249 = vdwg.mxu0
        %7250 = vmatprep.subr.mxu0 0.0
        %v7251 = vand.u32 %v332, 4294901760
        %v7252 = vsub.f32 %v332, %v7251
        %v7253 = vand.u32 %v7252, 4294901760
        %v7254 = vsub.f32 %v7252, %v7253
        %v7255 = vand.u32 %v7254, 4294901760
        %7256 = vmatpush1.msra.mxu0 %v7255
        %7257 = vmatprep.subr.mxu0 0.0
        %v7258 = vand.u32 %v333, 4294901760
        %v7259 = vsub.f32 %v333, %v7258
        %v7260 = vand.u32 %v7259, 4294901760
        %v7261 = vsub.f32 %v7259, %v7260
        %v7262 = vand.u32 %v7261, 4294901760
        %7263 = vmatpush1.msra.mxu0 %v7262
        %7264 = vmatprep.subr.mxu0 0.0
        %7265 = vmatpush1.msra.mxu0 0.0
        %7266 = vmatprep.subr.mxu0 0.0
        %7267 = vmatpush1.msra.mxu0 0.0
        %7268 = vmatprep.subr.mxu0 0.0
        %7269 = vmatpush1.msra.mxu0 0.0
        %7270 = vmatprep.subr.mxu0 0.0
        %7271 = vmatpush1.msra.mxu0 0.0
        %7272 = vmatprep.subr.mxu0 0.0
        %7273 = vmatpush1.msra.mxu0 0.0
        %7274 = vmatprep.subr.mxu0 0.0
        %7275 = vmatpush1.msra.mxu0 0.0
        %7276 = vmatprep.subr.mxu0 0.0
        %7277 = vmatpush1.msra.mxu0 0.0
        %7278 = vmatprep.subr.mxu0 0.0
        %7279 = vmatpush1.msra.mxu0 0.0
        %7280 = vmatprep.subr.mxu0 0.0
        %7281 = vmatpush1.msra.mxu0 0.0
        %7282 = vmatprep.subr.mxu0 0.0
        %7283 = vmatpush1.msra.mxu0 0.0
        %7284 = vmatprep.subr.mxu0 0.0
        %7285 = vmatpush1.msra.mxu0 0.0
        %7286 = vmatprep.subr.mxu0 0.0
        %7287 = vmatpush1.msra.mxu0 0.0
        %7288 = vmatprep.subr.mxu0 0.0
        %7289 = vmatpush1.msra.mxu0 0.0
        %7290 = vmatprep.subr.mxu0 0.0
        %7291 = vmatpush1.msra.mxu0 0.0
        %7292 = vmatprep.subr.mxu0 0.0
        %7293 = vmatpush1.msra.mxu0 0.0
        %7294 = vmatprep.subr.mxu0 0.0
        %7295 = vmatpush1.msra.mxu0 0.0
        %7296 = vmatprep.subr.mxu0 0.0
        %7297 = vmatpush1.msra.mxu0 0.0
        %7298 = vmatprep.subr.mxu0 0.0
        %7299 = vmatpush1.msra.mxu0 0.0
        %7300 = vmatprep.subr.mxu0 0.0
        %7301 = vmatpush1.msra.mxu0 0.0
        %7302 = vmatprep.subr.mxu0 0.0
        %7303 = vmatpush1.msra.mxu0 0.0
        %7304 = vmatprep.subr.mxu0 0.0
        %7305 = vmatpush1.msra.mxu0 0.0
        %7306 = vmatprep.subr.mxu0 0.0
        %7307 = vmatpush1.msra.mxu0 0.0
        %7308 = vmatprep.subr.mxu0 0.0
        %7309 = vmatpush1.msra.mxu0 0.0
        %7310 = vmatprep.subr.mxu0 0.0
        %7311 = vmatpush1.msra.mxu0 0.0
        %7312 = vmatprep.subr.mxu0 0.0
        %7313 = vmatpush1.msra.mxu0 0.0
        %7314 = vmatprep.subr.mxu0 0.0
        %7315 = vmatpush1.msra.mxu0 0.0
        %7316 = vmatprep.subr.mxu0 0.0
        %7317 = vmatpush1.msra.mxu0 0.0
        %7318 = vmatprep.subr.mxu0 0.0
        %7319 = vmatpush1.msra.mxu0 0.0
        %7320 = vmatprep.subr.mxu0 0.0
        %7321 = vmatpush1.msra.mxu0 0.0
        %7322 = vmatprep.subr.mxu0 0.0
        %7323 = vmatpush1.msra.mxu0 0.0
        %7324 = vmatprep.mubr.f32.mxu0 0.0
        %v7325 = vand.u32 %v7158, 4294901760
        %7326 = vmatmul.mubr.f32.gmra.mrb[0].mxu0 %v7325
        %v7327 = vpop.f32.mrb[0].mxu0
        %v7328 = vadd.f32 %v7237, %v7327
        %v7329 = vpop.f32.mrb[0].mxu0
        %7330 = vmatprep.mubr.f32.mxu0 0.0
        %v7331 = vand.u32 %v7161, 4294901760
        %7332 = vmatmul.mubr.f32.gmra.mrb[0].mxu0 %v7331
        %v7333 = vpop.f32.mrb[0].mxu0
        %v7334 = vadd.f32 %v7247, %v7333
        %v7335 = vpop.f32.mrb[0].mxu0
        %7336 = vdwg.mxu0
        %7337 = vmatprep.subr.mxu0 0.0
        %v7338 = vand.u32 %v332, 4294901760
        %v7339 = vsub.f32 %v332, %v7338
        %7340 = vmatpush1.msra.mxu0 %v7339
        %7341 = vmatprep.subr.mxu0 0.0
        %v7342 = vand.u32 %v333, 4294901760
        %v7343 = vsub.f32 %v333, %v7342
        %7344 = vmatpush1.msra.mxu0 %v7343
        %7345 = vmatprep.subr.mxu0 0.0
        %7346 = vmatpush1.msra.mxu0 0.0
        %7347 = vmatprep.subr.mxu0 0.0
        %7348 = vmatpush1.msra.mxu0 0.0
        %7349 = vmatprep.subr.mxu0 0.0
        %7350 = vmatpush1.msra.mxu0 0.0
        %7351 = vmatprep.subr.mxu0 0.0
        %7352 = vmatpush1.msra.mxu0 0.0
        %7353 = vmatprep.subr.mxu0 0.0
        %7354 = vmatpush1.msra.mxu0 0.0
        %7355 = vmatprep.subr.mxu0 0.0
        %7356 = vmatpush1.msra.mxu0 0.0
        %7357 = vmatprep.subr.mxu0 0.0
        %7358 = vmatpush1.msra.mxu0 0.0
        %7359 = vmatprep.subr.mxu0 0.0
        %7360 = vmatpush1.msra.mxu0 0.0
        %7361 = vmatprep.subr.mxu0 0.0
        %7362 = vmatpush1.msra.mxu0 0.0
        %7363 = vmatprep.subr.mxu0 0.0
        %7364 = vmatpush1.msra.mxu0 0.0
        %7365 = vmatprep.subr.mxu0 0.0
        %7366 = vmatpush1.msra.mxu0 0.0
        %7367 = vmatprep.subr.mxu0 0.0
        %7368 = vmatpush1.msra.mxu0 0.0
        %7369 = vmatprep.subr.mxu0 0.0
        %7370 = vmatpush1.msra.mxu0 0.0
        %7371 = vmatprep.subr.mxu0 0.0
        %7372 = vmatpush1.msra.mxu0 0.0
        %7373 = vmatprep.subr.mxu0 0.0
        %7374 = vmatpush1.msra.mxu0 0.0
        %7375 = vmatprep.subr.mxu0 0.0
        %7376 = vmatpush1.msra.mxu0 0.0
        %7377 = vmatprep.subr.mxu0 0.0
        %7378 = vmatpush1.msra.mxu0 0.0
        %7379 = vmatprep.subr.mxu0 0.0
        %7380 = vmatpush1.msra.mxu0 0.0
        %7381 = vmatprep.subr.mxu0 0.0
        %7382 = vmatpush1.msra.mxu0 0.0
        %7383 = vmatprep.subr.mxu0 0.0
        %7384 = vmatpush1.msra.mxu0 0.0
        %7385 = vmatprep.subr.mxu0 0.0
        %7386 = vmatpush1.msra.mxu0 0.0
        %7387 = vmatprep.subr.mxu0 0.0
        %7388 = vmatpush1.msra.mxu0 0.0
        %7389 = vmatprep.subr.mxu0 0.0
        %7390 = vmatpush1.msra.mxu0 0.0
        %7391 = vmatprep.subr.mxu0 0.0
        %7392 = vmatpush1.msra.mxu0 0.0
        %7393 = vmatprep.subr.mxu0 0.0
        %7394 = vmatpush1.msra.mxu0 0.0
        %7395 = vmatprep.subr.mxu0 0.0
        %7396 = vmatpush1.msra.mxu0 0.0
        %7397 = vmatprep.subr.mxu0 0.0
        %7398 = vmatpush1.msra.mxu0 0.0
        %7399 = vmatprep.subr.mxu0 0.0
        %7400 = vmatpush1.msra.mxu0 0.0
        %7401 = vmatprep.subr.mxu0 0.0
        %7402 = vmatpush1.msra.mxu0 0.0
        %7403 = vmatprep.subr.mxu0 0.0
        %7404 = vmatpush1.msra.mxu0 0.0
        %7405 = vmatprep.mubr.f32.mxu0 0.0
        %v7406 = vand.u32 %v7158, 4294901760
        %v7407 = vsub.f32 %v7158, %v7406
        %7408 = vmatmul.mubr.f32.gmra.mrb[0].mxu0 %v7407
        %v7409 = vpop.f32.mrb[0].mxu0
        %v7410 = vadd.f32 %v7328, %v7409
        %v7411 = vpop.f32.mrb[0].mxu0
        %7412 = vmatprep.mubr.f32.mxu0 0.0
        %v7413 = vand.u32 %v7161, 4294901760
        %v7414 = vsub.f32 %v7161, %v7413
        %7415 = vmatmul.mubr.f32.gmra.mrb[0].mxu0 %v7414
        %v7416 = vpop.f32.mrb[0].mxu0
        %v7417 = vadd.f32 %v7334, %v7416
        %v7418 = vpop.f32.mrb[0].mxu0
        %7419 = vdwg.mxu0
        %7420 = vmatprep.subr.mxu0 0.0
        %v7421 = vand.u32 %v332, 4294901760
        %7422 = vmatpush1.msra.mxu0 %v7421
        %7423 = vmatprep.subr.mxu0 0.0
        %v7424 = vand.u32 %v333, 4294901760
        %7425 = vmatpush1.msra.mxu0 %v7424
        %7426 = vmatprep.subr.mxu0 0.0
        %7427 = vmatpush1.msra.mxu0 0.0
        %7428 = vmatprep.subr.mxu0 0.0
        %7429 = vmatpush1.msra.mxu0 0.0
        %7430 = vmatprep.subr.mxu0 0.0
        %7431 = vmatpush1.msra.mxu0 0.0
        %7432 = vmatprep.subr.mxu0 0.0
        %7433 = vmatpush1.msra.mxu0 0.0
        %7434 = vmatprep.subr.mxu0 0.0
        %7435 = vmatpush1.msra.mxu0 0.0
        %7436 = vmatprep.subr.mxu0 0.0
        %7437 = vmatpush1.msra.mxu0 0.0
        %7438 = vmatprep.subr.mxu0 0.0
        %7439 = vmatpush1.msra.mxu0 0.0
        %7440 = vmatprep.subr.mxu0 0.0
        %7441 = vmatpush1.msra.mxu0 0.0
        %7442 = vmatprep.subr.mxu0 0.0
        %7443 = vmatpush1.msra.mxu0 0.0
        %7444 = vmatprep.subr.mxu0 0.0
        %7445 = vmatpush1.msra.mxu0 0.0
        %7446 = vmatprep.subr.mxu0 0.0
        %7447 = vmatpush1.msra.mxu0 0.0
        %7448 = vmatprep.subr.mxu0 0.0
        %7449 = vmatpush1.msra.mxu0 0.0
        %7450 = vmatprep.subr.mxu0 0.0
        %7451 = vmatpush1.msra.mxu0 0.0
        %7452 = vmatprep.subr.mxu0 0.0
        %7453 = vmatpush1.msra.mxu0 0.0
        %7454 = vmatprep.subr.mxu0 0.0
        %7455 = vmatpush1.msra.mxu0 0.0
        %7456 = vmatprep.subr.mxu0 0.0
        %7457 = vmatpush1.msra.mxu0 0.0
        %7458 = vmatprep.subr.mxu0 0.0
        %7459 = vmatpush1.msra.mxu0 0.0
        %7460 = vmatprep.subr.mxu0 0.0
        %7461 = vmatpush1.msra.mxu0 0.0
        %7462 = vmatprep.subr.mxu0 0.0
        %7463 = vmatpush1.msra.mxu0 0.0
        %7464 = vmatprep.subr.mxu0 0.0
        %7465 = vmatpush1.msra.mxu0 0.0
        %7466 = vmatprep.subr.mxu0 0.0
        %7467 = vmatpush1.msra.mxu0 0.0
        %7468 = vmatprep.subr.mxu0 0.0
        %7469 = vmatpush1.msra.mxu0 0.0
        %7470 = vmatprep.subr.mxu0 0.0
        %7471 = vmatpush1.msra.mxu0 0.0
        %7472 = vmatprep.subr.mxu0 0.0
        %7473 = vmatpush1.msra.mxu0 0.0
        %7474 = vmatprep.subr.mxu0 0.0
        %7475 = vmatpush1.msra.mxu0 0.0
        %7476 = vmatprep.subr.mxu0 0.0
        %7477 = vmatpush1.msra.mxu0 0.0
        %7478 = vmatprep.subr.mxu0 0.0
        %7479 = vmatpush1.msra.mxu0 0.0
        %7480 = vmatprep.subr.mxu0 0.0
        %7481 = vmatpush1.msra.mxu0 0.0
        %7482 = vmatprep.subr.mxu0 0.0
        %7483 = vmatpush1.msra.mxu0 0.0
        %7484 = vmatprep.subr.mxu0 0.0
        %7485 = vmatpush1.msra.mxu0 0.0
        %7486 = vmatprep.mubr.f32.mxu0 0.0
        %v7487 = vand.u32 %v7158, 4294901760
        %v7488 = vsub.f32 %v7158, %v7487
        %v7489 = vand.u32 %v7488, 4294901760
        %7490 = vmatmul.mubr.f32.gmra.mrb[0].mxu0 %v7489
        %v7491 = vpop.f32.mrb[0].mxu0
        %v7492 = vadd.f32 %v7410, %v7491
        %v7493 = vpop.f32.mrb[0].mxu0
        %7494 = vmatprep.mubr.f32.mxu0 0.0
        %v7495 = vand.u32 %v7161, 4294901760
        %v7496 = vsub.f32 %v7161, %v7495
        %v7497 = vand.u32 %v7496, 4294901760
        %7498 = vmatmul.mubr.f32.gmra.mrb[0].mxu0 %v7497
        %v7499 = vpop.f32.mrb[0].mxu0
        %v7500 = vadd.f32 %v7417, %v7499
        %v7501 = vpop.f32.mrb[0].mxu0
        %7502 = vdwg.mxu0
        %7503 = vmatprep.subr.mxu0 0.0
        %v7504 = vand.u32 %v332, 4294901760
        %v7505 = vsub.f32 %v332, %v7504
        %v7506 = vand.u32 %v7505, 4294901760
        %7507 = vmatpush1.msra.mxu0 %v7506
        %7508 = vmatprep.subr.mxu0 0.0
        %v7509 = vand.u32 %v333, 4294901760
        %v7510 = vsub.f32 %v333, %v7509
        %v7511 = vand.u32 %v7510, 4294901760
        %7512 = vmatpush1.msra.mxu0 %v7511
        %7513 = vmatprep.subr.mxu0 0.0
        %7514 = vmatpush1.msra.mxu0 0.0
        %7515 = vmatprep.subr.mxu0 0.0
        %7516 = vmatpush1.msra.mxu0 0.0
        %7517 = vmatprep.subr.mxu0 0.0
        %7518 = vmatpush1.msra.mxu0 0.0
        %7519 = vmatprep.subr.mxu0 0.0
        %7520 = vmatpush1.msra.mxu0 0.0
        %7521 = vmatprep.subr.mxu0 0.0
        %7522 = vmatpush1.msra.mxu0 0.0
        %7523 = vmatprep.subr.mxu0 0.0
        %7524 = vmatpush1.msra.mxu0 0.0
        %7525 = vmatprep.subr.mxu0 0.0
        %7526 = vmatpush1.msra.mxu0 0.0
        %7527 = vmatprep.subr.mxu0 0.0
        %7528 = vmatpush1.msra.mxu0 0.0
        %7529 = vmatprep.subr.mxu0 0.0
        %7530 = vmatpush1.msra.mxu0 0.0
        %7531 = vmatprep.subr.mxu0 0.0
        %7532 = vmatpush1.msra.mxu0 0.0
        %7533 = vmatprep.subr.mxu0 0.0
        %7534 = vmatpush1.msra.mxu0 0.0
        %7535 = vmatprep.subr.mxu0 0.0
        %7536 = vmatpush1.msra.mxu0 0.0
        %7537 = vmatprep.subr.mxu0 0.0
        %7538 = vmatpush1.msra.mxu0 0.0
        %7539 = vmatprep.subr.mxu0 0.0
        %7540 = vmatpush1.msra.mxu0 0.0
        %7541 = vmatprep.subr.mxu0 0.0
        %7542 = vmatpush1.msra.mxu0 0.0
        %7543 = vmatprep.subr.mxu0 0.0
        %7544 = vmatpush1.msra.mxu0 0.0
        %7545 = vmatprep.subr.mxu0 0.0
        %7546 = vmatpush1.msra.mxu0 0.0
        %7547 = vmatprep.subr.mxu0 0.0
        %7548 = vmatpush1.msra.mxu0 0.0
        %7549 = vmatprep.subr.mxu0 0.0
        %7550 = vmatpush1.msra.mxu0 0.0
        %7551 = vmatprep.subr.mxu0 0.0
        %7552 = vmatpush1.msra.mxu0 0.0
        %7553 = vmatprep.subr.mxu0 0.0
        %7554 = vmatpush1.msra.mxu0 0.0
        %7555 = vmatprep.subr.mxu0 0.0
        %7556 = vmatpush1.msra.mxu0 0.0
        %7557 = vmatprep.subr.mxu0 0.0
        %7558 = vmatpush1.msra.mxu0 0.0
        %7559 = vmatprep.subr.mxu0 0.0
        %7560 = vmatpush1.msra.mxu0 0.0
        %7561 = vmatprep.subr.mxu0 0.0
        %7562 = vmatpush1.msra.mxu0 0.0
        %7563 = vmatprep.subr.mxu0 0.0
        %7564 = vmatpush1.msra.mxu0 0.0
        %7565 = vmatprep.subr.mxu0 0.0
        %7566 = vmatpush1.msra.mxu0 0.0
        %7567 = vmatprep.subr.mxu0 0.0
        %7568 = vmatpush1.msra.mxu0 0.0
        %7569 = vmatprep.subr.mxu0 0.0
        %7570 = vmatpush1.msra.mxu0 0.0
        %7571 = vmatprep.subr.mxu0 0.0
        %7572 = vmatpush1.msra.mxu0 0.0
        %7573 = vmatprep.mubr.f32.mxu0 0.0
        %v7574 = vand.u32 %v7158, 4294901760
        %7575 = vmatmul.mubr.f32.gmra.mrb[0].mxu0 %v7574
        %v7576 = vpop.f32.mrb[0].mxu0
        %v7577 = vadd.f32 %v7492, %v7576
        %v7578 = vpop.f32.mrb[0].mxu0
        %7579 = vmatprep.mubr.f32.mxu0 0.0
        %v7580 = vand.u32 %v7161, 4294901760
        %7581 = vmatmul.mubr.f32.gmra.mrb[0].mxu0 %v7580
        %v7582 = vpop.f32.mrb[0].mxu0
        %v7583 = vadd.f32 %v7500, %v7582
        %v7584 = vpop.f32.mrb[0].mxu0
        %7585 = vdwg.mxu0
        %7586 = vmatprep.subr.mxu0 0.0
        %v7587 = vand.u32 %v332, 4294901760
        %7588 = vmatpush1.msra.mxu0 %v7587
        %7589 = vmatprep.subr.mxu0 0.0
        %v7590 = vand.u32 %v333, 4294901760
        %7591 = vmatpush1.msra.mxu0 %v7590
        %7592 = vmatprep.subr.mxu0 0.0
        %7593 = vmatpush1.msra.mxu0 0.0
        %7594 = vmatprep.subr.mxu0 0.0
        %7595 = vmatpush1.msra.mxu0 0.0
        %7596 = vmatprep.subr.mxu0 0.0
        %7597 = vmatpush1.msra.mxu0 0.0
        %7598 = vmatprep.subr.mxu0 0.0
        %7599 = vmatpush1.msra.mxu0 0.0
        %7600 = vmatprep.subr.mxu0 0.0
        %7601 = vmatpush1.msra.mxu0 0.0
        %7602 = vmatprep.subr.mxu0 0.0
        %7603 = vmatpush1.msra.mxu0 0.0
        %7604 = vmatprep.subr.mxu0 0.0
        %7605 = vmatpush1.msra.mxu0 0.0
        %7606 = vmatprep.subr.mxu0 0.0
        %7607 = vmatpush1.msra.mxu0 0.0
        %7608 = vmatprep.subr.mxu0 0.0
        %7609 = vmatpush1.msra.mxu0 0.0
        %7610 = vmatprep.subr.mxu0 0.0
        %7611 = vmatpush1.msra.mxu0 0.0
        %7612 = vmatprep.subr.mxu0 0.0
        %7613 = vmatpush1.msra.mxu0 0.0
        %7614 = vmatprep.subr.mxu0 0.0
        %7615 = vmatpush1.msra.mxu0 0.0
        %7616 = vmatprep.subr.mxu0 0.0
        %7617 = vmatpush1.msra.mxu0 0.0
        %7618 = vmatprep.subr.mxu0 0.0
        %7619 = vmatpush1.msra.mxu0 0.0
        %7620 = vmatprep.subr.mxu0 0.0
        %7621 = vmatpush1.msra.mxu0 0.0
        %7622 = vmatprep.subr.mxu0 0.0
        %7623 = vmatpush1.msra.mxu0 0.0
        %7624 = vmatprep.subr.mxu0 0.0
        %7625 = vmatpush1.msra.mxu0 0.0
        %7626 = vmatprep.subr.mxu0 0.0
        %7627 = vmatpush1.msra.mxu0 0.0
        %7628 = vmatprep.subr.mxu0 0.0
        %7629 = vmatpush1.msra.mxu0 0.0
        %7630 = vmatprep.subr.mxu0 0.0
        %7631 = vmatpush1.msra.mxu0 0.0
        %7632 = vmatprep.subr.mxu0 0.0
        %7633 = vmatpush1.msra.mxu0 0.0
        %7634 = vmatprep.subr.mxu0 0.0
        %7635 = vmatpush1.msra.mxu0 0.0
        %7636 = vmatprep.subr.mxu0 0.0
        %7637 = vmatpush1.msra.mxu0 0.0
        %7638 = vmatprep.subr.mxu0 0.0
        %7639 = vmatpush1.msra.mxu0 0.0
        %7640 = vmatprep.subr.mxu0 0.0
        %7641 = vmatpush1.msra.mxu0 0.0
        %7642 = vmatprep.subr.mxu0 0.0
        %7643 = vmatpush1.msra.mxu0 0.0
        %7644 = vmatprep.subr.mxu0 0.0
        %7645 = vmatpush1.msra.mxu0 0.0
        %7646 = vmatprep.subr.mxu0 0.0
        %7647 = vmatpush1.msra.mxu0 0.0
        %7648 = vmatprep.subr.mxu0 0.0
        %7649 = vmatpush1.msra.mxu0 0.0
        %7650 = vmatprep.subr.mxu0 0.0
        %7651 = vmatpush1.msra.mxu0 0.0
        %7652 = vmatprep.mubr.f32.mxu0 0.0
        %v7653 = vand.u32 %v7158, 4294901760
        %7654 = vmatmul.mubr.f32.gmra.mrb[0].mxu0 %v7653
        %v7655 = vpop.f32.mrb[0].mxu0
        %v7656 = vadd.f32 %v7577, %v7655
        %v7657 = vpop.f32.mrb[0].mxu0
        %7658 = vmatprep.mubr.f32.mxu0 0.0
        %v7659 = vand.u32 %v7161, 4294901760
        %7660 = vmatmul.mubr.f32.gmra.mrb[0].mxu0 %v7659
        %v7661 = vpop.f32.mrb[0].mxu0
        %v7662 = vadd.f32 %v7583, %v7661
        %v7663 = vpop.f32.mrb[0].mxu0
        %7664 = vdwg.mxu0
        %7665 = vmatprep.subr.mxu0 0.0
        %v7666 = vand.u32 %v7656, 4294901760
        %7667 = vmatpush1.msra.mxu0 %v7666
        %7668 = vmatprep.subr.mxu0 0.0
        %v7669 = vand.u32 %v7662, 4294901760
        %7670 = vmatpush1.msra.mxu0 %v7669
        %7671 = vmatprep.subr.mxu0 0.0
        %7672 = vmatpush1.msra.mxu0 0.0
        %7673 = vmatprep.subr.mxu0 0.0
        %7674 = vmatpush1.msra.mxu0 0.0
        %7675 = vmatprep.subr.mxu0 0.0
        %7676 = vmatpush1.msra.mxu0 0.0
        %7677 = vmatprep.subr.mxu0 0.0
        %7678 = vmatpush1.msra.mxu0 0.0
        %7679 = vmatprep.subr.mxu0 0.0
        %7680 = vmatpush1.msra.mxu0 0.0
        %7681 = vmatprep.subr.mxu0 0.0
        %7682 = vmatpush1.msra.mxu0 0.0
        %7683 = vmatprep.subr.mxu0 0.0
        %7684 = vmatpush1.msra.mxu0 0.0
        %7685 = vmatprep.subr.mxu0 0.0
        %7686 = vmatpush1.msra.mxu0 0.0
        %7687 = vmatprep.subr.mxu0 0.0
        %7688 = vmatpush1.msra.mxu0 0.0
        %7689 = vmatprep.subr.mxu0 0.0
        %7690 = vmatpush1.msra.mxu0 0.0
        %7691 = vmatprep.subr.mxu0 0.0
        %7692 = vmatpush1.msra.mxu0 0.0
        %7693 = vmatprep.subr.mxu0 0.0
        %7694 = vmatpush1.msra.mxu0 0.0
        %7695 = vmatprep.subr.mxu0 0.0
        %7696 = vmatpush1.msra.mxu0 0.0
        %7697 = vmatprep.subr.mxu0 0.0
        %7698 = vmatpush1.msra.mxu0 0.0
        %7699 = vmatprep.subr.mxu0 0.0
        %7700 = vmatpush1.msra.mxu0 0.0
        %7701 = vmatprep.subr.mxu0 0.0
        %7702 = vmatpush1.msra.mxu0 0.0
        %7703 = vmatprep.subr.mxu0 0.0
        %7704 = vmatpush1.msra.mxu0 0.0
        %7705 = vmatprep.subr.mxu0 0.0
        %7706 = vmatpush1.msra.mxu0 0.0
        %7707 = vmatprep.subr.mxu0 0.0
        %7708 = vmatpush1.msra.mxu0 0.0
        %7709 = vmatprep.subr.mxu0 0.0
        %7710 = vmatpush1.msra.mxu0 0.0
        %7711 = vmatprep.subr.mxu0 0.0
        %7712 = vmatpush1.msra.mxu0 0.0
        %7713 = vmatprep.subr.mxu0 0.0
        %7714 = vmatpush1.msra.mxu0 0.0
        %7715 = vmatprep.subr.mxu0 0.0
        %7716 = vmatpush1.msra.mxu0 0.0
        %7717 = vmatprep.subr.mxu0 0.0
        %7718 = vmatpush1.msra.mxu0 0.0
        %7719 = vmatprep.subr.mxu0 0.0
        %7720 = vmatpush1.msra.mxu0 0.0
        %7721 = vmatprep.subr.mxu0 0.0
        %7722 = vmatpush1.msra.mxu0 0.0
        %7723 = vmatprep.subr.mxu0 0.0
        %7724 = vmatpush1.msra.mxu0 0.0
        %7725 = vmatprep.subr.mxu0 0.0
        %7726 = vmatpush1.msra.mxu0 0.0
        %7727 = vmatprep.subr.mxu0 0.0
        %7728 = vmatpush1.msra.mxu0 0.0
        %7729 = vmatprep.subr.mxu0 0.0
        %7730 = vmatpush1.msra.mxu0 0.0
        %7731 = vmatprep.mubr.f32.mxu0 0.0
        %v7732 = vand.u32 %v849, 4294901760
        %v7733 = vsub.f32 %v849, %v7732
        %v7734 = vand.u32 %v7733, 4294901760
        %v7735 = vsub.f32 %v7733, %v7734
        %v7736 = vand.u32 %v7735, 4294901760
        %7737 = vmatmul.mubr.f32.gmra.mrb[0].mxu0 %v7736
        %v7738 = vpop.f32.mrb[0].mxu0
        %v7739 = vadd.f32 0.0, %v7738
        %v7740 = vpop.f32.mrb[0].mxu0
        %7741 = vdwg.mxu0
        %7742 = vmatprep.subr.mxu0 0.0
        %v7743 = vand.u32 %v7656, 4294901760
        %v7744 = vsub.f32 %v7656, %v7743
        %v7745 = vand.u32 %v7744, 4294901760
        %v7746 = vsub.f32 %v7744, %v7745
        %v7747 = vand.u32 %v7746, 4294901760
        %7748 = vmatpush1.msra.mxu0 %v7747
        %7749 = vmatprep.subr.mxu0 0.0
        %v7750 = vand.u32 %v7662, 4294901760
        %v7751 = vsub.f32 %v7662, %v7750
        %v7752 = vand.u32 %v7751, 4294901760
        %v7753 = vsub.f32 %v7751, %v7752
        %v7754 = vand.u32 %v7753, 4294901760
        %7755 = vmatpush1.msra.mxu0 %v7754
        %7756 = vmatprep.subr.mxu0 0.0
        %7757 = vmatpush1.msra.mxu0 0.0
        %7758 = vmatprep.subr.mxu0 0.0
        %7759 = vmatpush1.msra.mxu0 0.0
        %7760 = vmatprep.subr.mxu0 0.0
        %7761 = vmatpush1.msra.mxu0 0.0
        %7762 = vmatprep.subr.mxu0 0.0
        %7763 = vmatpush1.msra.mxu0 0.0
        %7764 = vmatprep.subr.mxu0 0.0
        %7765 = vmatpush1.msra.mxu0 0.0
        %7766 = vmatprep.subr.mxu0 0.0
        %7767 = vmatpush1.msra.mxu0 0.0
        %7768 = vmatprep.subr.mxu0 0.0
        %7769 = vmatpush1.msra.mxu0 0.0
        %7770 = vmatprep.subr.mxu0 0.0
        %7771 = vmatpush1.msra.mxu0 0.0
        %7772 = vmatprep.subr.mxu0 0.0
        %7773 = vmatpush1.msra.mxu0 0.0
        %7774 = vmatprep.subr.mxu0 0.0
        %7775 = vmatpush1.msra.mxu0 0.0
        %7776 = vmatprep.subr.mxu0 0.0
        %7777 = vmatpush1.msra.mxu0 0.0
        %7778 = vmatprep.subr.mxu0 0.0
        %7779 = vmatpush1.msra.mxu0 0.0
        %7780 = vmatprep.subr.mxu0 0.0
        %7781 = vmatpush1.msra.mxu0 0.0
        %7782 = vmatprep.subr.mxu0 0.0
        %7783 = vmatpush1.msra.mxu0 0.0
        %7784 = vmatprep.subr.mxu0 0.0
        %7785 = vmatpush1.msra.mxu0 0.0
        %7786 = vmatprep.subr.mxu0 0.0
        %7787 = vmatpush1.msra.mxu0 0.0
        %7788 = vmatprep.subr.mxu0 0.0
        %7789 = vmatpush1.msra.mxu0 0.0
        %7790 = vmatprep.subr.mxu0 0.0
        %7791 = vmatpush1.msra.mxu0 0.0
        %7792 = vmatprep.subr.mxu0 0.0
        %7793 = vmatpush1.msra.mxu0 0.0
        %7794 = vmatprep.subr.mxu0 0.0
        %7795 = vmatpush1.msra.mxu0 0.0
        %7796 = vmatprep.subr.mxu0 0.0
        %7797 = vmatpush1.msra.mxu0 0.0
        %7798 = vmatprep.subr.mxu0 0.0
        %7799 = vmatpush1.msra.mxu0 0.0
        %7800 = vmatprep.subr.mxu0 0.0
        %7801 = vmatpush1.msra.mxu0 0.0
        %7802 = vmatprep.subr.mxu0 0.0
        %7803 = vmatpush1.msra.mxu0 0.0
        %7804 = vmatprep.subr.mxu0 0.0
        %7805 = vmatpush1.msra.mxu0 0.0
        %7806 = vmatprep.subr.mxu0 0.0
        %7807 = vmatpush1.msra.mxu0 0.0
        %7808 = vmatprep.subr.mxu0 0.0
        %7809 = vmatpush1.msra.mxu0 0.0
        %7810 = vmatprep.subr.mxu0 0.0
        %7811 = vmatpush1.msra.mxu0 0.0
        %7812 = vmatprep.subr.mxu0 0.0
        %7813 = vmatpush1.msra.mxu0 0.0
        %7814 = vmatprep.subr.mxu0 0.0
        %7815 = vmatpush1.msra.mxu0 0.0
        %7816 = vmatprep.mubr.f32.mxu0 0.0
        %v7817 = vand.u32 %v849, 4294901760
        %7818 = vmatmul.mubr.f32.gmra.mrb[0].mxu0 %v7817
        %v7819 = vpop.f32.mrb[0].mxu0
        %v7820 = vadd.f32 %v7739, %v7819
        %v7821 = vpop.f32.mrb[0].mxu0
        %7822 = vdwg.mxu0
        %7823 = vmatprep.subr.mxu0 0.0
        %v7824 = vand.u32 %v7656, 4294901760
        %v7825 = vsub.f32 %v7656, %v7824
        %7826 = vmatpush1.msra.mxu0 %v7825
        %7827 = vmatprep.subr.mxu0 0.0
        %v7828 = vand.u32 %v7662, 4294901760
        %v7829 = vsub.f32 %v7662, %v7828
        %7830 = vmatpush1.msra.mxu0 %v7829
        %7831 = vmatprep.subr.mxu0 0.0
        %7832 = vmatpush1.msra.mxu0 0.0
        %7833 = vmatprep.subr.mxu0 0.0
        %7834 = vmatpush1.msra.mxu0 0.0
        %7835 = vmatprep.subr.mxu0 0.0
        %7836 = vmatpush1.msra.mxu0 0.0
        %7837 = vmatprep.subr.mxu0 0.0
        %7838 = vmatpush1.msra.mxu0 0.0
        %7839 = vmatprep.subr.mxu0 0.0
        %7840 = vmatpush1.msra.mxu0 0.0
        %7841 = vmatprep.subr.mxu0 0.0
        %7842 = vmatpush1.msra.mxu0 0.0
        %7843 = vmatprep.subr.mxu0 0.0
        %7844 = vmatpush1.msra.mxu0 0.0
        %7845 = vmatprep.subr.mxu0 0.0
        %7846 = vmatpush1.msra.mxu0 0.0
        %7847 = vmatprep.subr.mxu0 0.0
        %7848 = vmatpush1.msra.mxu0 0.0
        %7849 = vmatprep.subr.mxu0 0.0
        %7850 = vmatpush1.msra.mxu0 0.0
        %7851 = vmatprep.subr.mxu0 0.0
        %7852 = vmatpush1.msra.mxu0 0.0
        %7853 = vmatprep.subr.mxu0 0.0
        %7854 = vmatpush1.msra.mxu0 0.0
        %7855 = vmatprep.subr.mxu0 0.0
        %7856 = vmatpush1.msra.mxu0 0.0
        %7857 = vmatprep.subr.mxu0 0.0
        %7858 = vmatpush1.msra.mxu0 0.0
        %7859 = vmatprep.subr.mxu0 0.0
        %7860 = vmatpush1.msra.mxu0 0.0
        %7861 = vmatprep.subr.mxu0 0.0
        %7862 = vmatpush1.msra.mxu0 0.0
        %7863 = vmatprep.subr.mxu0 0.0
        %7864 = vmatpush1.msra.mxu0 0.0
        %7865 = vmatprep.subr.mxu0 0.0
        %7866 = vmatpush1.msra.mxu0 0.0
        %7867 = vmatprep.subr.mxu0 0.0
        %7868 = vmatpush1.msra.mxu0 0.0
        %7869 = vmatprep.subr.mxu0 0.0
        %7870 = vmatpush1.msra.mxu0 0.0
        %7871 = vmatprep.subr.mxu0 0.0
        %7872 = vmatpush1.msra.mxu0 0.0
        %7873 = vmatprep.subr.mxu0 0.0
        %7874 = vmatpush1.msra.mxu0 0.0
        %7875 = vmatprep.subr.mxu0 0.0
        %7876 = vmatpush1.msra.mxu0 0.0
        %7877 = vmatprep.subr.mxu0 0.0
        %7878 = vmatpush1.msra.mxu0 0.0
        %7879 = vmatprep.subr.mxu0 0.0
        %7880 = vmatpush1.msra.mxu0 0.0
        %7881 = vmatprep.subr.mxu0 0.0
        %7882 = vmatpush1.msra.mxu0 0.0
        %7883 = vmatprep.subr.mxu0 0.0
        %7884 = vmatpush1.msra.mxu0 0.0
        %7885 = vmatprep.subr.mxu0 0.0
        %7886 = vmatpush1.msra.mxu0 0.0
        %7887 = vmatprep.subr.mxu0 0.0
        %7888 = vmatpush1.msra.mxu0 0.0
        %7889 = vmatprep.subr.mxu0 0.0
        %7890 = vmatpush1.msra.mxu0 0.0
        %7891 = vmatprep.mubr.f32.mxu0 0.0
        %v7892 = vand.u32 %v849, 4294901760
        %v7893 = vsub.f32 %v849, %v7892
        %7894 = vmatmul.mubr.f32.gmra.mrb[0].mxu0 %v7893
        %v7895 = vpop.f32.mrb[0].mxu0
        %v7896 = vadd.f32 %v7820, %v7895
        %v7897 = vpop.f32.mrb[0].mxu0
        %7898 = vdwg.mxu0
        %7899 = vmatprep.subr.mxu0 0.0
        %v7900 = vand.u32 %v7656, 4294901760
        %7901 = vmatpush1.msra.mxu0 %v7900
        %7902 = vmatprep.subr.mxu0 0.0
        %v7903 = vand.u32 %v7662, 4294901760
        %7904 = vmatpush1.msra.mxu0 %v7903
        %7905 = vmatprep.subr.mxu0 0.0
        %7906 = vmatpush1.msra.mxu0 0.0
        %7907 = vmatprep.subr.mxu0 0.0
        %7908 = vmatpush1.msra.mxu0 0.0
        %7909 = vmatprep.subr.mxu0 0.0
        %7910 = vmatpush1.msra.mxu0 0.0
        %7911 = vmatprep.subr.mxu0 0.0
        %7912 = vmatpush1.msra.mxu0 0.0
        %7913 = vmatprep.subr.mxu0 0.0
        %7914 = vmatpush1.msra.mxu0 0.0
        %7915 = vmatprep.subr.mxu0 0.0
        %7916 = vmatpush1.msra.mxu0 0.0
        %7917 = vmatprep.subr.mxu0 0.0
        %7918 = vmatpush1.msra.mxu0 0.0
        %7919 = vmatprep.subr.mxu0 0.0
        %7920 = vmatpush1.msra.mxu0 0.0
        %7921 = vmatprep.subr.mxu0 0.0
        %7922 = vmatpush1.msra.mxu0 0.0
        %7923 = vmatprep.subr.mxu0 0.0
        %7924 = vmatpush1.msra.mxu0 0.0
        %7925 = vmatprep.subr.mxu0 0.0
        %7926 = vmatpush1.msra.mxu0 0.0
        %7927 = vmatprep.subr.mxu0 0.0
        %7928 = vmatpush1.msra.mxu0 0.0
        %7929 = vmatprep.subr.mxu0 0.0
        %7930 = vmatpush1.msra.mxu0 0.0
        %7931 = vmatprep.subr.mxu0 0.0
        %7932 = vmatpush1.msra.mxu0 0.0
        %7933 = vmatprep.subr.mxu0 0.0
        %7934 = vmatpush1.msra.mxu0 0.0
        %7935 = vmatprep.subr.mxu0 0.0
        %7936 = vmatpush1.msra.mxu0 0.0
        %7937 = vmatprep.subr.mxu0 0.0
        %7938 = vmatpush1.msra.mxu0 0.0
        %7939 = vmatprep.subr.mxu0 0.0
        %7940 = vmatpush1.msra.mxu0 0.0
        %7941 = vmatprep.subr.mxu0 0.0
        %7942 = vmatpush1.msra.mxu0 0.0
        %7943 = vmatprep.subr.mxu0 0.0
        %7944 = vmatpush1.msra.mxu0 0.0
        %7945 = vmatprep.subr.mxu0 0.0
        %7946 = vmatpush1.msra.mxu0 0.0
        %7947 = vmatprep.subr.mxu0 0.0
        %7948 = vmatpush1.msra.mxu0 0.0
        %7949 = vmatprep.subr.mxu0 0.0
        %7950 = vmatpush1.msra.mxu0 0.0
        %7951 = vmatprep.subr.mxu0 0.0
        %7952 = vmatpush1.msra.mxu0 0.0
        %7953 = vmatprep.subr.mxu0 0.0
        %7954 = vmatpush1.msra.mxu0 0.0
        %7955 = vmatprep.subr.mxu0 0.0
        %7956 = vmatpush1.msra.mxu0 0.0
        %7957 = vmatprep.subr.mxu0 0.0
        %7958 = vmatpush1.msra.mxu0 0.0
        %7959 = vmatprep.subr.mxu0 0.0
        %7960 = vmatpush1.msra.mxu0 0.0
        %7961 = vmatprep.subr.mxu0 0.0
        %7962 = vmatpush1.msra.mxu0 0.0
        %7963 = vmatprep.subr.mxu0 0.0
        %7964 = vmatpush1.msra.mxu0 0.0
        %7965 = vmatprep.mubr.f32.mxu0 0.0
        %v7966 = vand.u32 %v849, 4294901760
        %v7967 = vsub.f32 %v849, %v7966
        %v7968 = vand.u32 %v7967, 4294901760
        %7969 = vmatmul.mubr.f32.gmra.mrb[0].mxu0 %v7968
        %v7970 = vpop.f32.mrb[0].mxu0
        %v7971 = vadd.f32 %v7896, %v7970
        %v7972 = vpop.f32.mrb[0].mxu0
        %7973 = vdwg.mxu0
        %7974 = vmatprep.subr.mxu0 0.0
        %v7975 = vand.u32 %v7656, 4294901760
        %v7976 = vsub.f32 %v7656, %v7975
        %v7977 = vand.u32 %v7976, 4294901760
        %7978 = vmatpush1.msra.mxu0 %v7977
        %7979 = vmatprep.subr.mxu0 0.0
        %v7980 = vand.u32 %v7662, 4294901760
        %v7981 = vsub.f32 %v7662, %v7980
        %v7982 = vand.u32 %v7981, 4294901760
        %7983 = vmatpush1.msra.mxu0 %v7982
        %7984 = vmatprep.subr.mxu0 0.0
        %7985 = vmatpush1.msra.mxu0 0.0
        %7986 = vmatprep.subr.mxu0 0.0
        %7987 = vmatpush1.msra.mxu0 0.0
        %7988 = vmatprep.subr.mxu0 0.0
        %7989 = vmatpush1.msra.mxu0 0.0
        %7990 = vmatprep.subr.mxu0 0.0
        %7991 = vmatpush1.msra.mxu0 0.0
        %7992 = vmatprep.subr.mxu0 0.0
        %7993 = vmatpush1.msra.mxu0 0.0
        %7994 = vmatprep.subr.mxu0 0.0
        %7995 = vmatpush1.msra.mxu0 0.0
        %7996 = vmatprep.subr.mxu0 0.0
        %7997 = vmatpush1.msra.mxu0 0.0
        %7998 = vmatprep.subr.mxu0 0.0
        %7999 = vmatpush1.msra.mxu0 0.0
        %8000 = vmatprep.subr.mxu0 0.0
        %8001 = vmatpush1.msra.mxu0 0.0
        %8002 = vmatprep.subr.mxu0 0.0
        %8003 = vmatpush1.msra.mxu0 0.0
        %8004 = vmatprep.subr.mxu0 0.0
        %8005 = vmatpush1.msra.mxu0 0.0
        %8006 = vmatprep.subr.mxu0 0.0
        %8007 = vmatpush1.msra.mxu0 0.0
        %8008 = vmatprep.subr.mxu0 0.0
        %8009 = vmatpush1.msra.mxu0 0.0
        %8010 = vmatprep.subr.mxu0 0.0
        %8011 = vmatpush1.msra.mxu0 0.0
        %8012 = vmatprep.subr.mxu0 0.0
        %8013 = vmatpush1.msra.mxu0 0.0
        %8014 = vmatprep.subr.mxu0 0.0
        %8015 = vmatpush1.msra.mxu0 0.0
        %8016 = vmatprep.subr.mxu0 0.0
        %8017 = vmatpush1.msra.mxu0 0.0
        %8018 = vmatprep.subr.mxu0 0.0
        %8019 = vmatpush1.msra.mxu0 0.0
        %8020 = vmatprep.subr.mxu0 0.0
        %8021 = vmatpush1.msra.mxu0 0.0
        %8022 = vmatprep.subr.mxu0 0.0
        %8023 = vmatpush1.msra.mxu0 0.0
        %8024 = vmatprep.subr.mxu0 0.0
        %8025 = vmatpush1.msra.mxu0 0.0
        %8026 = vmatprep.subr.mxu0 0.0
        %8027 = vmatpush1.msra.mxu0 0.0
        %8028 = vmatprep.subr.mxu0 0.0
        %8029 = vmatpush1.msra.mxu0 0.0
        %8030 = vmatprep.subr.mxu0 0.0
        %8031 = vmatpush1.msra.mxu0 0.0
        %8032 = vmatprep.subr.mxu0 0.0
        %8033 = vmatpush1.msra.mxu0 0.0
        %8034 = vmatprep.subr.mxu0 0.0
        %8035 = vmatpush1.msra.mxu0 0.0
        %8036 = vmatprep.subr.mxu0 0.0
        %8037 = vmatpush1.msra.mxu0 0.0
        %8038 = vmatprep.subr.mxu0 0.0
        %8039 = vmatpush1.msra.mxu0 0.0
        %8040 = vmatprep.subr.mxu0 0.0
        %8041 = vmatpush1.msra.mxu0 0.0
        %8042 = vmatprep.subr.mxu0 0.0
        %8043 = vmatpush1.msra.mxu0 0.0
        %8044 = vmatprep.mubr.f32.mxu0 0.0
        %v8045 = vand.u32 %v849, 4294901760
        %8046 = vmatmul.mubr.f32.gmra.mrb[0].mxu0 %v8045
        %v8047 = vpop.f32.mrb[0].mxu0
        %v8048 = vadd.f32 %v7971, %v8047
        %v8049 = vpop.f32.mrb[0].mxu0
        %8050 = vdwg.mxu0
        %8051 = vmatprep.subr.mxu0 0.0
        %v8052 = vand.u32 %v7656, 4294901760
        %8053 = vmatpush1.msra.mxu0 %v8052
        %8054 = vmatprep.subr.mxu0 0.0
        %v8055 = vand.u32 %v7662, 4294901760
        %8056 = vmatpush1.msra.mxu0 %v8055
        %8057 = vmatprep.subr.mxu0 0.0
        %8058 = vmatpush1.msra.mxu0 0.0
        %8059 = vmatprep.subr.mxu0 0.0
        %8060 = vmatpush1.msra.mxu0 0.0
        %8061 = vmatprep.subr.mxu0 0.0
        %8062 = vmatpush1.msra.mxu0 0.0
        %8063 = vmatprep.subr.mxu0 0.0
        %8064 = vmatpush1.msra.mxu0 0.0
        %8065 = vmatprep.subr.mxu0 0.0
        %8066 = vmatpush1.msra.mxu0 0.0
        %8067 = vmatprep.subr.mxu0 0.0
        %8068 = vmatpush1.msra.mxu0 0.0
        %8069 = vmatprep.subr.mxu0 0.0
        %8070 = vmatpush1.msra.mxu0 0.0
        %8071 = vmatprep.subr.mxu0 0.0
        %8072 = vmatpush1.msra.mxu0 0.0
        %8073 = vmatprep.subr.mxu0 0.0
        %8074 = vmatpush1.msra.mxu0 0.0
        %8075 = vmatprep.subr.mxu0 0.0
        %8076 = vmatpush1.msra.mxu0 0.0
        %8077 = vmatprep.subr.mxu0 0.0
        %8078 = vmatpush1.msra.mxu0 0.0
        %8079 = vmatprep.subr.mxu0 0.0
        %8080 = vmatpush1.msra.mxu0 0.0
        %8081 = vmatprep.subr.mxu0 0.0
        %8082 = vmatpush1.msra.mxu0 0.0
        %8083 = vmatprep.subr.mxu0 0.0
        %8084 = vmatpush1.msra.mxu0 0.0
        %8085 = vmatprep.subr.mxu0 0.0
        %8086 = vmatpush1.msra.mxu0 0.0
        %8087 = vmatprep.subr.mxu0 0.0
        %8088 = vmatpush1.msra.mxu0 0.0
        %8089 = vmatprep.subr.mxu0 0.0
        %8090 = vmatpush1.msra.mxu0 0.0
        %8091 = vmatprep.subr.mxu0 0.0
        %8092 = vmatpush1.msra.mxu0 0.0
        %8093 = vmatprep.subr.mxu0 0.0
        %8094 = vmatpush1.msra.mxu0 0.0
        %8095 = vmatprep.subr.mxu0 0.0
        %8096 = vmatpush1.msra.mxu0 0.0
        %8097 = vmatprep.subr.mxu0 0.0
        %8098 = vmatpush1.msra.mxu0 0.0
        %8099 = vmatprep.subr.mxu0 0.0
        %8100 = vmatpush1.msra.mxu0 0.0
        %8101 = vmatprep.subr.mxu0 0.0
        %8102 = vmatpush1.msra.mxu0 0.0
        %8103 = vmatprep.subr.mxu0 0.0
        %8104 = vmatpush1.msra.mxu0 0.0
        %8105 = vmatprep.subr.mxu0 0.0
        %8106 = vmatpush1.msra.mxu0 0.0
        %8107 = vmatprep.subr.mxu0 0.0
        %8108 = vmatpush1.msra.mxu0 0.0
        %8109 = vmatprep.subr.mxu0 0.0
        %8110 = vmatpush1.msra.mxu0 0.0
        %8111 = vmatprep.subr.mxu0 0.0
        %8112 = vmatpush1.msra.mxu0 0.0
        %8113 = vmatprep.subr.mxu0 0.0
        %8114 = vmatpush1.msra.mxu0 0.0
        %8115 = vmatprep.subr.mxu0 0.0
        %8116 = vmatpush1.msra.mxu0 0.0
        %8117 = vmatprep.mubr.f32.mxu0 0.0
        %v8118 = vand.u32 %v849, 4294901760
        %8119 = vmatmul.mubr.f32.gmra.mrb[0].mxu0 %v8118
        %v8120 = vpop.f32.mrb[0].mxu0
        %v8121 = vadd.f32 %v8048, %v8120
        %v8122 = vpop.f32.mrb[0].mxu0
        %8123 = vdwg.mxu0
        %v8124 = vmul.f32 %v5219, %v5219
        %v8125 = vmul.f32 %v5220, %v5220
        %v8127 = vsel %vm339, %v8124, 0
        %v8130 = vsel %vm339, %v8125, 0
        %8132 = vmatprep.subr.mxu0 0.0
        %v8133 = vand.u32 %v332, 4294901760
        %8134 = vmatpush1.msra.mxu0 %v8133
        %8135 = vmatprep.subr.mxu0 0.0
        %v8136 = vand.u32 %v333, 4294901760
        %8137 = vmatpush1.msra.mxu0 %v8136
        %8138 = vmatprep.subr.mxu0 0.0
        %8139 = vmatpush1.msra.mxu0 0.0
        %8140 = vmatprep.subr.mxu0 0.0
        %8141 = vmatpush1.msra.mxu0 0.0
        %8142 = vmatprep.subr.mxu0 0.0
        %8143 = vmatpush1.msra.mxu0 0.0
        %8144 = vmatprep.subr.mxu0 0.0
        %8145 = vmatpush1.msra.mxu0 0.0
        %8146 = vmatprep.subr.mxu0 0.0
        %8147 = vmatpush1.msra.mxu0 0.0
        %8148 = vmatprep.subr.mxu0 0.0
        %8149 = vmatpush1.msra.mxu0 0.0
        %8150 = vmatprep.subr.mxu0 0.0
        %8151 = vmatpush1.msra.mxu0 0.0
        %8152 = vmatprep.subr.mxu0 0.0
        %8153 = vmatpush1.msra.mxu0 0.0
        %8154 = vmatprep.subr.mxu0 0.0
        %8155 = vmatpush1.msra.mxu0 0.0
        %8156 = vmatprep.subr.mxu0 0.0
        %8157 = vmatpush1.msra.mxu0 0.0
        %8158 = vmatprep.subr.mxu0 0.0
        %8159 = vmatpush1.msra.mxu0 0.0
        %8160 = vmatprep.subr.mxu0 0.0
        %8161 = vmatpush1.msra.mxu0 0.0
        %8162 = vmatprep.subr.mxu0 0.0
        %8163 = vmatpush1.msra.mxu0 0.0
        %8164 = vmatprep.subr.mxu0 0.0
        %8165 = vmatpush1.msra.mxu0 0.0
        %8166 = vmatprep.subr.mxu0 0.0
        %8167 = vmatpush1.msra.mxu0 0.0
        %8168 = vmatprep.subr.mxu0 0.0
        %8169 = vmatpush1.msra.mxu0 0.0
        %8170 = vmatprep.subr.mxu0 0.0
        %8171 = vmatpush1.msra.mxu0 0.0
        %8172 = vmatprep.subr.mxu0 0.0
        %8173 = vmatpush1.msra.mxu0 0.0
        %8174 = vmatprep.subr.mxu0 0.0
        %8175 = vmatpush1.msra.mxu0 0.0
        %8176 = vmatprep.subr.mxu0 0.0
        %8177 = vmatpush1.msra.mxu0 0.0
        %8178 = vmatprep.subr.mxu0 0.0
        %8179 = vmatpush1.msra.mxu0 0.0
        %8180 = vmatprep.subr.mxu0 0.0
        %8181 = vmatpush1.msra.mxu0 0.0
        %8182 = vmatprep.subr.mxu0 0.0
        %8183 = vmatpush1.msra.mxu0 0.0
        %8184 = vmatprep.subr.mxu0 0.0
        %8185 = vmatpush1.msra.mxu0 0.0
        %8186 = vmatprep.subr.mxu0 0.0
        %8187 = vmatpush1.msra.mxu0 0.0
        %8188 = vmatprep.subr.mxu0 0.0
        %8189 = vmatpush1.msra.mxu0 0.0
        %8190 = vmatprep.subr.mxu0 0.0
        %8191 = vmatpush1.msra.mxu0 0.0
        %8192 = vmatprep.subr.mxu0 0.0
        %8193 = vmatpush1.msra.mxu0 0.0
        %8194 = vmatprep.subr.mxu0 0.0
        %8195 = vmatpush1.msra.mxu0 0.0
        %8196 = vmatprep.subr.mxu0 0.0
        %8197 = vmatpush1.msra.mxu0 0.0
        %8198 = vmatprep.mubr.f32.mxu0 0.0
        %v8199 = vand.u32 %v8127, 4294901760
        %v8200 = vsub.f32 %v8127, %v8199
        %v8201 = vand.u32 %v8200, 4294901760
        %v8202 = vsub.f32 %v8200, %v8201
        %v8203 = vand.u32 %v8202, 4294901760
        %8204 = vmatmul.mubr.f32.gmra.mrb[0].mxu0 %v8203
        %v8205 = vpop.f32.mrb[0].mxu0
        %v8206 = vadd.f32 0.0, %v8205
        %v8207 = vpop.f32.mrb[0].mxu0
        %8208 = vmatprep.mubr.f32.mxu0 0.0
        %v8209 = vand.u32 %v8130, 4294901760
        %v8210 = vsub.f32 %v8130, %v8209
        %v8211 = vand.u32 %v8210, 4294901760
        %v8212 = vsub.f32 %v8210, %v8211
        %v8213 = vand.u32 %v8212, 4294901760
        %8214 = vmatmul.mubr.f32.gmra.mrb[0].mxu0 %v8213
        %v8215 = vpop.f32.mrb[0].mxu0
        %v8216 = vadd.f32 0.0, %v8215
        %v8217 = vpop.f32.mrb[0].mxu0
        %8218 = vdwg.mxu0
        %8219 = vmatprep.subr.mxu0 0.0
        %v8220 = vand.u32 %v332, 4294901760
        %v8221 = vsub.f32 %v332, %v8220
        %v8222 = vand.u32 %v8221, 4294901760
        %v8223 = vsub.f32 %v8221, %v8222
        %v8224 = vand.u32 %v8223, 4294901760
        %8225 = vmatpush1.msra.mxu0 %v8224
        %8226 = vmatprep.subr.mxu0 0.0
        %v8227 = vand.u32 %v333, 4294901760
        %v8228 = vsub.f32 %v333, %v8227
        %v8229 = vand.u32 %v8228, 4294901760
        %v8230 = vsub.f32 %v8228, %v8229
        %v8231 = vand.u32 %v8230, 4294901760
        %8232 = vmatpush1.msra.mxu0 %v8231
        %8233 = vmatprep.subr.mxu0 0.0
        %8234 = vmatpush1.msra.mxu0 0.0
        %8235 = vmatprep.subr.mxu0 0.0
        %8236 = vmatpush1.msra.mxu0 0.0
        %8237 = vmatprep.subr.mxu0 0.0
        %8238 = vmatpush1.msra.mxu0 0.0
        %8239 = vmatprep.subr.mxu0 0.0
        %8240 = vmatpush1.msra.mxu0 0.0
        %8241 = vmatprep.subr.mxu0 0.0
        %8242 = vmatpush1.msra.mxu0 0.0
        %8243 = vmatprep.subr.mxu0 0.0
        %8244 = vmatpush1.msra.mxu0 0.0
        %8245 = vmatprep.subr.mxu0 0.0
        %8246 = vmatpush1.msra.mxu0 0.0
        %8247 = vmatprep.subr.mxu0 0.0
        %8248 = vmatpush1.msra.mxu0 0.0
        %8249 = vmatprep.subr.mxu0 0.0
        %8250 = vmatpush1.msra.mxu0 0.0
        %8251 = vmatprep.subr.mxu0 0.0
        %8252 = vmatpush1.msra.mxu0 0.0
        %8253 = vmatprep.subr.mxu0 0.0
        %8254 = vmatpush1.msra.mxu0 0.0
        %8255 = vmatprep.subr.mxu0 0.0
        %8256 = vmatpush1.msra.mxu0 0.0
        %8257 = vmatprep.subr.mxu0 0.0
        %8258 = vmatpush1.msra.mxu0 0.0
        %8259 = vmatprep.subr.mxu0 0.0
        %8260 = vmatpush1.msra.mxu0 0.0
        %8261 = vmatprep.subr.mxu0 0.0
        %8262 = vmatpush1.msra.mxu0 0.0
        %8263 = vmatprep.subr.mxu0 0.0
        %8264 = vmatpush1.msra.mxu0 0.0
        %8265 = vmatprep.subr.mxu0 0.0
        %8266 = vmatpush1.msra.mxu0 0.0
        %8267 = vmatprep.subr.mxu0 0.0
        %8268 = vmatpush1.msra.mxu0 0.0
        %8269 = vmatprep.subr.mxu0 0.0
        %8270 = vmatpush1.msra.mxu0 0.0
        %8271 = vmatprep.subr.mxu0 0.0
        %8272 = vmatpush1.msra.mxu0 0.0
        %8273 = vmatprep.subr.mxu0 0.0
        %8274 = vmatpush1.msra.mxu0 0.0
        %8275 = vmatprep.subr.mxu0 0.0
        %8276 = vmatpush1.msra.mxu0 0.0
        %8277 = vmatprep.subr.mxu0 0.0
        %8278 = vmatpush1.msra.mxu0 0.0
        %8279 = vmatprep.subr.mxu0 0.0
        %8280 = vmatpush1.msra.mxu0 0.0
        %8281 = vmatprep.subr.mxu0 0.0
        %8282 = vmatpush1.msra.mxu0 0.0
        %8283 = vmatprep.subr.mxu0 0.0
        %8284 = vmatpush1.msra.mxu0 0.0
        %8285 = vmatprep.subr.mxu0 0.0
        %8286 = vmatpush1.msra.mxu0 0.0
        %8287 = vmatprep.subr.mxu0 0.0
        %8288 = vmatpush1.msra.mxu0 0.0
        %8289 = vmatprep.subr.mxu0 0.0
        %8290 = vmatpush1.msra.mxu0 0.0
        %8291 = vmatprep.subr.mxu0 0.0
        %8292 = vmatpush1.msra.mxu0 0.0
        %8293 = vmatprep.mubr.f32.mxu0 0.0
        %v8294 = vand.u32 %v8127, 4294901760
        %8295 = vmatmul.mubr.f32.gmra.mrb[0].mxu0 %v8294
        %v8296 = vpop.f32.mrb[0].mxu0
        %v8297 = vadd.f32 %v8206, %v8296
        %v8298 = vpop.f32.mrb[0].mxu0
        %8299 = vmatprep.mubr.f32.mxu0 0.0
        %v8300 = vand.u32 %v8130, 4294901760
        %8301 = vmatmul.mubr.f32.gmra.mrb[0].mxu0 %v8300
        %v8302 = vpop.f32.mrb[0].mxu0
        %v8303 = vadd.f32 %v8216, %v8302
        %v8304 = vpop.f32.mrb[0].mxu0
        %8305 = vdwg.mxu0
        %8306 = vmatprep.subr.mxu0 0.0
        %v8307 = vand.u32 %v332, 4294901760
        %v8308 = vsub.f32 %v332, %v8307
        %8309 = vmatpush1.msra.mxu0 %v8308
        %8310 = vmatprep.subr.mxu0 0.0
        %v8311 = vand.u32 %v333, 4294901760
        %v8312 = vsub.f32 %v333, %v8311
        %8313 = vmatpush1.msra.mxu0 %v8312
        %8314 = vmatprep.subr.mxu0 0.0
        %8315 = vmatpush1.msra.mxu0 0.0
        %8316 = vmatprep.subr.mxu0 0.0
        %8317 = vmatpush1.msra.mxu0 0.0
        %8318 = vmatprep.subr.mxu0 0.0
        %8319 = vmatpush1.msra.mxu0 0.0
        %8320 = vmatprep.subr.mxu0 0.0
        %8321 = vmatpush1.msra.mxu0 0.0
        %8322 = vmatprep.subr.mxu0 0.0
        %8323 = vmatpush1.msra.mxu0 0.0
        %8324 = vmatprep.subr.mxu0 0.0
        %8325 = vmatpush1.msra.mxu0 0.0
        %8326 = vmatprep.subr.mxu0 0.0
        %8327 = vmatpush1.msra.mxu0 0.0
        %8328 = vmatprep.subr.mxu0 0.0
        %8329 = vmatpush1.msra.mxu0 0.0
        %8330 = vmatprep.subr.mxu0 0.0
        %8331 = vmatpush1.msra.mxu0 0.0
        %8332 = vmatprep.subr.mxu0 0.0
        %8333 = vmatpush1.msra.mxu0 0.0
        %8334 = vmatprep.subr.mxu0 0.0
        %8335 = vmatpush1.msra.mxu0 0.0
        %8336 = vmatprep.subr.mxu0 0.0
        %8337 = vmatpush1.msra.mxu0 0.0
        %8338 = vmatprep.subr.mxu0 0.0
        %8339 = vmatpush1.msra.mxu0 0.0
        %8340 = vmatprep.subr.mxu0 0.0
        %8341 = vmatpush1.msra.mxu0 0.0
        %8342 = vmatprep.subr.mxu0 0.0
        %8343 = vmatpush1.msra.mxu0 0.0
        %8344 = vmatprep.subr.mxu0 0.0
        %8345 = vmatpush1.msra.mxu0 0.0
        %8346 = vmatprep.subr.mxu0 0.0
        %8347 = vmatpush1.msra.mxu0 0.0
        %8348 = vmatprep.subr.mxu0 0.0
        %8349 = vmatpush1.msra.mxu0 0.0
        %8350 = vmatprep.subr.mxu0 0.0
        %8351 = vmatpush1.msra.mxu0 0.0
        %8352 = vmatprep.subr.mxu0 0.0
        %8353 = vmatpush1.msra.mxu0 0.0
        %8354 = vmatprep.subr.mxu0 0.0
        %8355 = vmatpush1.msra.mxu0 0.0
        %8356 = vmatprep.subr.mxu0 0.0
        %8357 = vmatpush1.msra.mxu0 0.0
        %8358 = vmatprep.subr.mxu0 0.0
        %8359 = vmatpush1.msra.mxu0 0.0
        %8360 = vmatprep.subr.mxu0 0.0
        %8361 = vmatpush1.msra.mxu0 0.0
        %8362 = vmatprep.subr.mxu0 0.0
        %8363 = vmatpush1.msra.mxu0 0.0
        %8364 = vmatprep.subr.mxu0 0.0
        %8365 = vmatpush1.msra.mxu0 0.0
        %8366 = vmatprep.subr.mxu0 0.0
        %8367 = vmatpush1.msra.mxu0 0.0
        %8368 = vmatprep.subr.mxu0 0.0
        %8369 = vmatpush1.msra.mxu0 0.0
        %8370 = vmatprep.subr.mxu0 0.0
        %8371 = vmatpush1.msra.mxu0 0.0
        %8372 = vmatprep.subr.mxu0 0.0
        %8373 = vmatpush1.msra.mxu0 0.0
        %8374 = vmatprep.mubr.f32.mxu0 0.0
        %v8375 = vand.u32 %v8127, 4294901760
        %v8376 = vsub.f32 %v8127, %v8375
        %8377 = vmatmul.mubr.f32.gmra.mrb[0].mxu0 %v8376
        %v8378 = vpop.f32.mrb[0].mxu0
        %v8379 = vadd.f32 %v8297, %v8378
        %v8380 = vpop.f32.mrb[0].mxu0
        %8381 = vmatprep.mubr.f32.mxu0 0.0
        %v8382 = vand.u32 %v8130, 4294901760
        %v8383 = vsub.f32 %v8130, %v8382
        %8384 = vmatmul.mubr.f32.gmra.mrb[0].mxu0 %v8383
        %v8385 = vpop.f32.mrb[0].mxu0
        %v8386 = vadd.f32 %v8303, %v8385
        %v8387 = vpop.f32.mrb[0].mxu0
        %8388 = vdwg.mxu0
        %8389 = vmatprep.subr.mxu0 0.0
        %v8390 = vand.u32 %v332, 4294901760
        %8391 = vmatpush1.msra.mxu0 %v8390
        %8392 = vmatprep.subr.mxu0 0.0
        %v8393 = vand.u32 %v333, 4294901760
        %8394 = vmatpush1.msra.mxu0 %v8393
        %8395 = vmatprep.subr.mxu0 0.0
        %8396 = vmatpush1.msra.mxu0 0.0
        %8397 = vmatprep.subr.mxu0 0.0
        %8398 = vmatpush1.msra.mxu0 0.0
        %8399 = vmatprep.subr.mxu0 0.0
        %8400 = vmatpush1.msra.mxu0 0.0
        %8401 = vmatprep.subr.mxu0 0.0
        %8402 = vmatpush1.msra.mxu0 0.0
        %8403 = vmatprep.subr.mxu0 0.0
        %8404 = vmatpush1.msra.mxu0 0.0
        %8405 = vmatprep.subr.mxu0 0.0
        %8406 = vmatpush1.msra.mxu0 0.0
        %8407 = vmatprep.subr.mxu0 0.0
        %8408 = vmatpush1.msra.mxu0 0.0
        %8409 = vmatprep.subr.mxu0 0.0
        %8410 = vmatpush1.msra.mxu0 0.0
        %8411 = vmatprep.subr.mxu0 0.0
        %8412 = vmatpush1.msra.mxu0 0.0
        %8413 = vmatprep.subr.mxu0 0.0
        %8414 = vmatpush1.msra.mxu0 0.0
        %8415 = vmatprep.subr.mxu0 0.0
        %8416 = vmatpush1.msra.mxu0 0.0
        %8417 = vmatprep.subr.mxu0 0.0
        %8418 = vmatpush1.msra.mxu0 0.0
        %8419 = vmatprep.subr.mxu0 0.0
        %8420 = vmatpush1.msra.mxu0 0.0
        %8421 = vmatprep.subr.mxu0 0.0
        %8422 = vmatpush1.msra.mxu0 0.0
        %8423 = vmatprep.subr.mxu0 0.0
        %8424 = vmatpush1.msra.mxu0 0.0
        %8425 = vmatprep.subr.mxu0 0.0
        %8426 = vmatpush1.msra.mxu0 0.0
        %8427 = vmatprep.subr.mxu0 0.0
        %8428 = vmatpush1.msra.mxu0 0.0
        %8429 = vmatprep.subr.mxu0 0.0
        %8430 = vmatpush1.msra.mxu0 0.0
        %8431 = vmatprep.subr.mxu0 0.0
        %8432 = vmatpush1.msra.mxu0 0.0
        %8433 = vmatprep.subr.mxu0 0.0
        %8434 = vmatpush1.msra.mxu0 0.0
        %8435 = vmatprep.subr.mxu0 0.0
        %8436 = vmatpush1.msra.mxu0 0.0
        %8437 = vmatprep.subr.mxu0 0.0
        %8438 = vmatpush1.msra.mxu0 0.0
        %8439 = vmatprep.subr.mxu0 0.0
        %8440 = vmatpush1.msra.mxu0 0.0
        %8441 = vmatprep.subr.mxu0 0.0
        %8442 = vmatpush1.msra.mxu0 0.0
        %8443 = vmatprep.subr.mxu0 0.0
        %8444 = vmatpush1.msra.mxu0 0.0
        %8445 = vmatprep.subr.mxu0 0.0
        %8446 = vmatpush1.msra.mxu0 0.0
        %8447 = vmatprep.subr.mxu0 0.0
        %8448 = vmatpush1.msra.mxu0 0.0
        %8449 = vmatprep.subr.mxu0 0.0
        %8450 = vmatpush1.msra.mxu0 0.0
        %8451 = vmatprep.subr.mxu0 0.0
        %8452 = vmatpush1.msra.mxu0 0.0
        %8453 = vmatprep.subr.mxu0 0.0
        %8454 = vmatpush1.msra.mxu0 0.0
        %8455 = vmatprep.mubr.f32.mxu0 0.0
        %v8456 = vand.u32 %v8127, 4294901760
        %v8457 = vsub.f32 %v8127, %v8456
        %v8458 = vand.u32 %v8457, 4294901760
        %8459 = vmatmul.mubr.f32.gmra.mrb[0].mxu0 %v8458
        %v8460 = vpop.f32.mrb[0].mxu0
        %v8461 = vadd.f32 %v8379, %v8460
        %v8462 = vpop.f32.mrb[0].mxu0
        %8463 = vmatprep.mubr.f32.mxu0 0.0
        %v8464 = vand.u32 %v8130, 4294901760
        %v8465 = vsub.f32 %v8130, %v8464
        %v8466 = vand.u32 %v8465, 4294901760
        %8467 = vmatmul.mubr.f32.gmra.mrb[0].mxu0 %v8466
        %v8468 = vpop.f32.mrb[0].mxu0
        %v8469 = vadd.f32 %v8386, %v8468
        %v8470 = vpop.f32.mrb[0].mxu0
        %8471 = vdwg.mxu0
        %8472 = vmatprep.subr.mxu0 0.0
        %v8473 = vand.u32 %v332, 4294901760
        %v8474 = vsub.f32 %v332, %v8473
        %v8475 = vand.u32 %v8474, 4294901760
        %8476 = vmatpush1.msra.mxu0 %v8475
        %8477 = vmatprep.subr.mxu0 0.0
        %v8478 = vand.u32 %v333, 4294901760
        %v8479 = vsub.f32 %v333, %v8478
        %v8480 = vand.u32 %v8479, 4294901760
        %8481 = vmatpush1.msra.mxu0 %v8480
        %8482 = vmatprep.subr.mxu0 0.0
        %8483 = vmatpush1.msra.mxu0 0.0
        %8484 = vmatprep.subr.mxu0 0.0
        %8485 = vmatpush1.msra.mxu0 0.0
        %8486 = vmatprep.subr.mxu0 0.0
        %8487 = vmatpush1.msra.mxu0 0.0
        %8488 = vmatprep.subr.mxu0 0.0
        %8489 = vmatpush1.msra.mxu0 0.0
        %8490 = vmatprep.subr.mxu0 0.0
        %8491 = vmatpush1.msra.mxu0 0.0
        %8492 = vmatprep.subr.mxu0 0.0
        %8493 = vmatpush1.msra.mxu0 0.0
        %8494 = vmatprep.subr.mxu0 0.0
        %8495 = vmatpush1.msra.mxu0 0.0
        %8496 = vmatprep.subr.mxu0 0.0
        %8497 = vmatpush1.msra.mxu0 0.0
        %8498 = vmatprep.subr.mxu0 0.0
        %8499 = vmatpush1.msra.mxu0 0.0
        %8500 = vmatprep.subr.mxu0 0.0
        %8501 = vmatpush1.msra.mxu0 0.0
        %8502 = vmatprep.subr.mxu0 0.0
        %8503 = vmatpush1.msra.mxu0 0.0
        %8504 = vmatprep.subr.mxu0 0.0
        %8505 = vmatpush1.msra.mxu0 0.0
        %8506 = vmatprep.subr.mxu0 0.0
        %8507 = vmatpush1.msra.mxu0 0.0
        %8508 = vmatprep.subr.mxu0 0.0
        %8509 = vmatpush1.msra.mxu0 0.0
        %8510 = vmatprep.subr.mxu0 0.0
        %8511 = vmatpush1.msra.mxu0 0.0
        %8512 = vmatprep.subr.mxu0 0.0
        %8513 = vmatpush1.msra.mxu0 0.0
        %8514 = vmatprep.subr.mxu0 0.0
        %8515 = vmatpush1.msra.mxu0 0.0
        %8516 = vmatprep.subr.mxu0 0.0
        %8517 = vmatpush1.msra.mxu0 0.0
        %8518 = vmatprep.subr.mxu0 0.0
        %8519 = vmatpush1.msra.mxu0 0.0
        %8520 = vmatprep.subr.mxu0 0.0
        %8521 = vmatpush1.msra.mxu0 0.0
        %8522 = vmatprep.subr.mxu0 0.0
        %8523 = vmatpush1.msra.mxu0 0.0
        %8524 = vmatprep.subr.mxu0 0.0
        %8525 = vmatpush1.msra.mxu0 0.0
        %8526 = vmatprep.subr.mxu0 0.0
        %8527 = vmatpush1.msra.mxu0 0.0
        %8528 = vmatprep.subr.mxu0 0.0
        %8529 = vmatpush1.msra.mxu0 0.0
        %8530 = vmatprep.subr.mxu0 0.0
        %8531 = vmatpush1.msra.mxu0 0.0
        %8532 = vmatprep.subr.mxu0 0.0
        %8533 = vmatpush1.msra.mxu0 0.0
        %8534 = vmatprep.subr.mxu0 0.0
        %8535 = vmatpush1.msra.mxu0 0.0
        %8536 = vmatprep.subr.mxu0 0.0
        %8537 = vmatpush1.msra.mxu0 0.0
        %8538 = vmatprep.subr.mxu0 0.0
        %8539 = vmatpush1.msra.mxu0 0.0
        %8540 = vmatprep.subr.mxu0 0.0
        %8541 = vmatpush1.msra.mxu0 0.0
        %8542 = vmatprep.mubr.f32.mxu0 0.0
        %v8543 = vand.u32 %v8127, 4294901760
        %8544 = vmatmul.mubr.f32.gmra.mrb[0].mxu0 %v8543
        %v8545 = vpop.f32.mrb[0].mxu0
        %v8546 = vadd.f32 %v8461, %v8545
        %v8547 = vpop.f32.mrb[0].mxu0
        %8548 = vmatprep.mubr.f32.mxu0 0.0
        %v8549 = vand.u32 %v8130, 4294901760
        %8550 = vmatmul.mubr.f32.gmra.mrb[0].mxu0 %v8549
        %v8551 = vpop.f32.mrb[0].mxu0
        %v8552 = vadd.f32 %v8469, %v8551
        %v8553 = vpop.f32.mrb[0].mxu0
        %8554 = vdwg.mxu0
        %8555 = vmatprep.subr.mxu0 0.0
        %v8556 = vand.u32 %v332, 4294901760
        %8557 = vmatpush1.msra.mxu0 %v8556
        %8558 = vmatprep.subr.mxu0 0.0
        %v8559 = vand.u32 %v333, 4294901760
        %8560 = vmatpush1.msra.mxu0 %v8559
        %8561 = vmatprep.subr.mxu0 0.0
        %8562 = vmatpush1.msra.mxu0 0.0
        %8563 = vmatprep.subr.mxu0 0.0
        %8564 = vmatpush1.msra.mxu0 0.0
        %8565 = vmatprep.subr.mxu0 0.0
        %8566 = vmatpush1.msra.mxu0 0.0
        %8567 = vmatprep.subr.mxu0 0.0
        %8568 = vmatpush1.msra.mxu0 0.0
        %8569 = vmatprep.subr.mxu0 0.0
        %8570 = vmatpush1.msra.mxu0 0.0
        %8571 = vmatprep.subr.mxu0 0.0
        %8572 = vmatpush1.msra.mxu0 0.0
        %8573 = vmatprep.subr.mxu0 0.0
        %8574 = vmatpush1.msra.mxu0 0.0
        %8575 = vmatprep.subr.mxu0 0.0
        %8576 = vmatpush1.msra.mxu0 0.0
        %8577 = vmatprep.subr.mxu0 0.0
        %8578 = vmatpush1.msra.mxu0 0.0
        %8579 = vmatprep.subr.mxu0 0.0
        %8580 = vmatpush1.msra.mxu0 0.0
        %8581 = vmatprep.subr.mxu0 0.0
        %8582 = vmatpush1.msra.mxu0 0.0
        %8583 = vmatprep.subr.mxu0 0.0
        %8584 = vmatpush1.msra.mxu0 0.0
        %8585 = vmatprep.subr.mxu0 0.0
        %8586 = vmatpush1.msra.mxu0 0.0
        %8587 = vmatprep.subr.mxu0 0.0
        %8588 = vmatpush1.msra.mxu0 0.0
        %8589 = vmatprep.subr.mxu0 0.0
        %8590 = vmatpush1.msra.mxu0 0.0
        %8591 = vmatprep.subr.mxu0 0.0
        %8592 = vmatpush1.msra.mxu0 0.0
        %8593 = vmatprep.subr.mxu0 0.0
        %8594 = vmatpush1.msra.mxu0 0.0
        %8595 = vmatprep.subr.mxu0 0.0
        %8596 = vmatpush1.msra.mxu0 0.0
        %8597 = vmatprep.subr.mxu0 0.0
        %8598 = vmatpush1.msra.mxu0 0.0
        %8599 = vmatprep.subr.mxu0 0.0
        %8600 = vmatpush1.msra.mxu0 0.0
        %8601 = vmatprep.subr.mxu0 0.0
        %8602 = vmatpush1.msra.mxu0 0.0
        %8603 = vmatprep.subr.mxu0 0.0
        %8604 = vmatpush1.msra.mxu0 0.0
        %8605 = vmatprep.subr.mxu0 0.0
        %8606 = vmatpush1.msra.mxu0 0.0
        %8607 = vmatprep.subr.mxu0 0.0
        %8608 = vmatpush1.msra.mxu0 0.0
        %8609 = vmatprep.subr.mxu0 0.0
        %8610 = vmatpush1.msra.mxu0 0.0
        %8611 = vmatprep.subr.mxu0 0.0
        %8612 = vmatpush1.msra.mxu0 0.0
        %8613 = vmatprep.subr.mxu0 0.0
        %8614 = vmatpush1.msra.mxu0 0.0
        %8615 = vmatprep.subr.mxu0 0.0
        %8616 = vmatpush1.msra.mxu0 0.0
        %8617 = vmatprep.subr.mxu0 0.0
        %8618 = vmatpush1.msra.mxu0 0.0
        %8619 = vmatprep.subr.mxu0 0.0
        %8620 = vmatpush1.msra.mxu0 0.0
        %8621 = vmatprep.mubr.f32.mxu0 0.0
        %v8622 = vand.u32 %v8127, 4294901760
        %8623 = vmatmul.mubr.f32.gmra.mrb[0].mxu0 %v8622
        %v8624 = vpop.f32.mrb[0].mxu0
        %v8625 = vadd.f32 %v8546, %v8624
        %v8626 = vpop.f32.mrb[0].mxu0
        %8627 = vmatprep.mubr.f32.mxu0 0.0
        %v8628 = vand.u32 %v8130, 4294901760
        %8629 = vmatmul.mubr.f32.gmra.mrb[0].mxu0 %v8628
        %v8630 = vpop.f32.mrb[0].mxu0
        %v8631 = vadd.f32 %v8552, %v8630
        %v8632 = vpop.f32.mrb[0].mxu0
        %8633 = vdwg.mxu0
        %8634 = vmatprep.subr.mxu0 0.0
        %v8635 = vand.u32 %v8625, 4294901760
        %8636 = vmatpush1.msra.mxu0 %v8635
        %8637 = vmatprep.subr.mxu0 0.0
        %v8638 = vand.u32 %v8631, 4294901760
        %8639 = vmatpush1.msra.mxu0 %v8638
        %8640 = vmatprep.subr.mxu0 0.0
        %8641 = vmatpush1.msra.mxu0 0.0
        %8642 = vmatprep.subr.mxu0 0.0
        %8643 = vmatpush1.msra.mxu0 0.0
        %8644 = vmatprep.subr.mxu0 0.0
        %8645 = vmatpush1.msra.mxu0 0.0
        %8646 = vmatprep.subr.mxu0 0.0
        %8647 = vmatpush1.msra.mxu0 0.0
        %8648 = vmatprep.subr.mxu0 0.0
        %8649 = vmatpush1.msra.mxu0 0.0
        %8650 = vmatprep.subr.mxu0 0.0
        %8651 = vmatpush1.msra.mxu0 0.0
        %8652 = vmatprep.subr.mxu0 0.0
        %8653 = vmatpush1.msra.mxu0 0.0
        %8654 = vmatprep.subr.mxu0 0.0
        %8655 = vmatpush1.msra.mxu0 0.0
        %8656 = vmatprep.subr.mxu0 0.0
        %8657 = vmatpush1.msra.mxu0 0.0
        %8658 = vmatprep.subr.mxu0 0.0
        %8659 = vmatpush1.msra.mxu0 0.0
        %8660 = vmatprep.subr.mxu0 0.0
        %8661 = vmatpush1.msra.mxu0 0.0
        %8662 = vmatprep.subr.mxu0 0.0
        %8663 = vmatpush1.msra.mxu0 0.0
        %8664 = vmatprep.subr.mxu0 0.0
        %8665 = vmatpush1.msra.mxu0 0.0
        %8666 = vmatprep.subr.mxu0 0.0
        %8667 = vmatpush1.msra.mxu0 0.0
        %8668 = vmatprep.subr.mxu0 0.0
        %8669 = vmatpush1.msra.mxu0 0.0
        %8670 = vmatprep.subr.mxu0 0.0
        %8671 = vmatpush1.msra.mxu0 0.0
        %8672 = vmatprep.subr.mxu0 0.0
        %8673 = vmatpush1.msra.mxu0 0.0
        %8674 = vmatprep.subr.mxu0 0.0
        %8675 = vmatpush1.msra.mxu0 0.0
        %8676 = vmatprep.subr.mxu0 0.0
        %8677 = vmatpush1.msra.mxu0 0.0
        %8678 = vmatprep.subr.mxu0 0.0
        %8679 = vmatpush1.msra.mxu0 0.0
        %8680 = vmatprep.subr.mxu0 0.0
        %8681 = vmatpush1.msra.mxu0 0.0
        %8682 = vmatprep.subr.mxu0 0.0
        %8683 = vmatpush1.msra.mxu0 0.0
        %8684 = vmatprep.subr.mxu0 0.0
        %8685 = vmatpush1.msra.mxu0 0.0
        %8686 = vmatprep.subr.mxu0 0.0
        %8687 = vmatpush1.msra.mxu0 0.0
        %8688 = vmatprep.subr.mxu0 0.0
        %8689 = vmatpush1.msra.mxu0 0.0
        %8690 = vmatprep.subr.mxu0 0.0
        %8691 = vmatpush1.msra.mxu0 0.0
        %8692 = vmatprep.subr.mxu0 0.0
        %8693 = vmatpush1.msra.mxu0 0.0
        %8694 = vmatprep.subr.mxu0 0.0
        %8695 = vmatpush1.msra.mxu0 0.0
        %8696 = vmatprep.subr.mxu0 0.0
        %8697 = vmatpush1.msra.mxu0 0.0
        %8698 = vmatprep.subr.mxu0 0.0
        %8699 = vmatpush1.msra.mxu0 0.0
        %8700 = vmatprep.mubr.f32.mxu0 0.0
        %v8701 = vand.u32 %v849, 4294901760
        %v8702 = vsub.f32 %v849, %v8701
        %v8703 = vand.u32 %v8702, 4294901760
        %v8704 = vsub.f32 %v8702, %v8703
        %v8705 = vand.u32 %v8704, 4294901760
        %8706 = vmatmul.mubr.f32.gmra.mrb[0].mxu0 %v8705
        %v8707 = vpop.f32.mrb[0].mxu0
        %v8708 = vadd.f32 0.0, %v8707
        %v8709 = vpop.f32.mrb[0].mxu0
        %8710 = vdwg.mxu0
        %8711 = vmatprep.subr.mxu0 0.0
        %v8712 = vand.u32 %v8625, 4294901760
        %v8713 = vsub.f32 %v8625, %v8712
        %v8714 = vand.u32 %v8713, 4294901760
        %v8715 = vsub.f32 %v8713, %v8714
        %v8716 = vand.u32 %v8715, 4294901760
        %8717 = vmatpush1.msra.mxu0 %v8716
        %8718 = vmatprep.subr.mxu0 0.0
        %v8719 = vand.u32 %v8631, 4294901760
        %v8720 = vsub.f32 %v8631, %v8719
        %v8721 = vand.u32 %v8720, 4294901760
        %v8722 = vsub.f32 %v8720, %v8721
        %v8723 = vand.u32 %v8722, 4294901760
        %8724 = vmatpush1.msra.mxu0 %v8723
        %8725 = vmatprep.subr.mxu0 0.0
        %8726 = vmatpush1.msra.mxu0 0.0
        %8727 = vmatprep.subr.mxu0 0.0
        %8728 = vmatpush1.msra.mxu0 0.0
        %8729 = vmatprep.subr.mxu0 0.0
        %8730 = vmatpush1.msra.mxu0 0.0
        %8731 = vmatprep.subr.mxu0 0.0
        %8732 = vmatpush1.msra.mxu0 0.0
        %8733 = vmatprep.subr.mxu0 0.0
        %8734 = vmatpush1.msra.mxu0 0.0
        %8735 = vmatprep.subr.mxu0 0.0
        %8736 = vmatpush1.msra.mxu0 0.0
        %8737 = vmatprep.subr.mxu0 0.0
        %8738 = vmatpush1.msra.mxu0 0.0
        %8739 = vmatprep.subr.mxu0 0.0
        %8740 = vmatpush1.msra.mxu0 0.0
        %8741 = vmatprep.subr.mxu0 0.0
        %8742 = vmatpush1.msra.mxu0 0.0
        %8743 = vmatprep.subr.mxu0 0.0
        %8744 = vmatpush1.msra.mxu0 0.0
        %8745 = vmatprep.subr.mxu0 0.0
        %8746 = vmatpush1.msra.mxu0 0.0
        %8747 = vmatprep.subr.mxu0 0.0
        %8748 = vmatpush1.msra.mxu0 0.0
        %8749 = vmatprep.subr.mxu0 0.0
        %8750 = vmatpush1.msra.mxu0 0.0
        %8751 = vmatprep.subr.mxu0 0.0
        %8752 = vmatpush1.msra.mxu0 0.0
        %8753 = vmatprep.subr.mxu0 0.0
        %8754 = vmatpush1.msra.mxu0 0.0
        %8755 = vmatprep.subr.mxu0 0.0
        %8756 = vmatpush1.msra.mxu0 0.0
        %8757 = vmatprep.subr.mxu0 0.0
        %8758 = vmatpush1.msra.mxu0 0.0
        %8759 = vmatprep.subr.mxu0 0.0
        %8760 = vmatpush1.msra.mxu0 0.0
        %8761 = vmatprep.subr.mxu0 0.0
        %8762 = vmatpush1.msra.mxu0 0.0
        %8763 = vmatprep.subr.mxu0 0.0
        %8764 = vmatpush1.msra.mxu0 0.0
        %8765 = vmatprep.subr.mxu0 0.0
        %8766 = vmatpush1.msra.mxu0 0.0
        %8767 = vmatprep.subr.mxu0 0.0
        %8768 = vmatpush1.msra.mxu0 0.0
        %8769 = vmatprep.subr.mxu0 0.0
        %8770 = vmatpush1.msra.mxu0 0.0
        %8771 = vmatprep.subr.mxu0 0.0
        %8772 = vmatpush1.msra.mxu0 0.0
        %8773 = vmatprep.subr.mxu0 0.0
        %8774 = vmatpush1.msra.mxu0 0.0
        %8775 = vmatprep.subr.mxu0 0.0
        %8776 = vmatpush1.msra.mxu0 0.0
        %8777 = vmatprep.subr.mxu0 0.0
        %8778 = vmatpush1.msra.mxu0 0.0
        %8779 = vmatprep.subr.mxu0 0.0
        %8780 = vmatpush1.msra.mxu0 0.0
        %8781 = vmatprep.subr.mxu0 0.0
        %8782 = vmatpush1.msra.mxu0 0.0
        %8783 = vmatprep.subr.mxu0 0.0
        %8784 = vmatpush1.msra.mxu0 0.0
        %8785 = vmatprep.mubr.f32.mxu0 0.0
        %v8786 = vand.u32 %v849, 4294901760
        %8787 = vmatmul.mubr.f32.gmra.mrb[0].mxu0 %v8786
        %v8788 = vpop.f32.mrb[0].mxu0
        %v8789 = vadd.f32 %v8708, %v8788
        %v8790 = vpop.f32.mrb[0].mxu0
        %8791 = vdwg.mxu0
        %8792 = vmatprep.subr.mxu0 0.0
        %v8793 = vand.u32 %v8625, 4294901760
        %v8794 = vsub.f32 %v8625, %v8793
        %8795 = vmatpush1.msra.mxu0 %v8794
        %8796 = vmatprep.subr.mxu0 0.0
        %v8797 = vand.u32 %v8631, 4294901760
        %v8798 = vsub.f32 %v8631, %v8797
        %8799 = vmatpush1.msra.mxu0 %v8798
        %8800 = vmatprep.subr.mxu0 0.0
        %8801 = vmatpush1.msra.mxu0 0.0
        %8802 = vmatprep.subr.mxu0 0.0
        %8803 = vmatpush1.msra.mxu0 0.0
        %8804 = vmatprep.subr.mxu0 0.0
        %8805 = vmatpush1.msra.mxu0 0.0
        %8806 = vmatprep.subr.mxu0 0.0
        %8807 = vmatpush1.msra.mxu0 0.0
        %8808 = vmatprep.subr.mxu0 0.0
        %8809 = vmatpush1.msra.mxu0 0.0
        %8810 = vmatprep.subr.mxu0 0.0
        %8811 = vmatpush1.msra.mxu0 0.0
        %8812 = vmatprep.subr.mxu0 0.0
        %8813 = vmatpush1.msra.mxu0 0.0
        %8814 = vmatprep.subr.mxu0 0.0
        %8815 = vmatpush1.msra.mxu0 0.0
        %8816 = vmatprep.subr.mxu0 0.0
        %8817 = vmatpush1.msra.mxu0 0.0
        %8818 = vmatprep.subr.mxu0 0.0
        %8819 = vmatpush1.msra.mxu0 0.0
        %8820 = vmatprep.subr.mxu0 0.0
        %8821 = vmatpush1.msra.mxu0 0.0
        %8822 = vmatprep.subr.mxu0 0.0
        %8823 = vmatpush1.msra.mxu0 0.0
        %8824 = vmatprep.subr.mxu0 0.0
        %8825 = vmatpush1.msra.mxu0 0.0
        %8826 = vmatprep.subr.mxu0 0.0
        %8827 = vmatpush1.msra.mxu0 0.0
        %8828 = vmatprep.subr.mxu0 0.0
        %8829 = vmatpush1.msra.mxu0 0.0
        %8830 = vmatprep.subr.mxu0 0.0
        %8831 = vmatpush1.msra.mxu0 0.0
        %8832 = vmatprep.subr.mxu0 0.0
        %8833 = vmatpush1.msra.mxu0 0.0
        %8834 = vmatprep.subr.mxu0 0.0
        %8835 = vmatpush1.msra.mxu0 0.0
        %8836 = vmatprep.subr.mxu0 0.0
        %8837 = vmatpush1.msra.mxu0 0.0
        %8838 = vmatprep.subr.mxu0 0.0
        %8839 = vmatpush1.msra.mxu0 0.0
        %8840 = vmatprep.subr.mxu0 0.0
        %8841 = vmatpush1.msra.mxu0 0.0
        %8842 = vmatprep.subr.mxu0 0.0
        %8843 = vmatpush1.msra.mxu0 0.0
        %8844 = vmatprep.subr.mxu0 0.0
        %8845 = vmatpush1.msra.mxu0 0.0
        %8846 = vmatprep.subr.mxu0 0.0
        %8847 = vmatpush1.msra.mxu0 0.0
        %8848 = vmatprep.subr.mxu0 0.0
        %8849 = vmatpush1.msra.mxu0 0.0
        %8850 = vmatprep.subr.mxu0 0.0
        %8851 = vmatpush1.msra.mxu0 0.0
        %8852 = vmatprep.subr.mxu0 0.0
        %8853 = vmatpush1.msra.mxu0 0.0
        %8854 = vmatprep.subr.mxu0 0.0
        %8855 = vmatpush1.msra.mxu0 0.0
        %8856 = vmatprep.subr.mxu0 0.0
        %8857 = vmatpush1.msra.mxu0 0.0
        %8858 = vmatprep.subr.mxu0 0.0
        %8859 = vmatpush1.msra.mxu0 0.0
        %8860 = vmatprep.mubr.f32.mxu0 0.0
        %v8861 = vand.u32 %v849, 4294901760
        %v8862 = vsub.f32 %v849, %v8861
        %8863 = vmatmul.mubr.f32.gmra.mrb[0].mxu0 %v8862
        %v8864 = vpop.f32.mrb[0].mxu0
        %v8865 = vadd.f32 %v8789, %v8864
        %v8866 = vpop.f32.mrb[0].mxu0
        %8867 = vdwg.mxu0
        %8868 = vmatprep.subr.mxu0 0.0
        %v8869 = vand.u32 %v8625, 4294901760
        %8870 = vmatpush1.msra.mxu0 %v8869
        %8871 = vmatprep.subr.mxu0 0.0
        %v8872 = vand.u32 %v8631, 4294901760
        %8873 = vmatpush1.msra.mxu0 %v8872
        %8874 = vmatprep.subr.mxu0 0.0
        %8875 = vmatpush1.msra.mxu0 0.0
        %8876 = vmatprep.subr.mxu0 0.0
        %8877 = vmatpush1.msra.mxu0 0.0
        %8878 = vmatprep.subr.mxu0 0.0
        %8879 = vmatpush1.msra.mxu0 0.0
        %8880 = vmatprep.subr.mxu0 0.0
        %8881 = vmatpush1.msra.mxu0 0.0
        %8882 = vmatprep.subr.mxu0 0.0
        %8883 = vmatpush1.msra.mxu0 0.0
        %8884 = vmatprep.subr.mxu0 0.0
        %8885 = vmatpush1.msra.mxu0 0.0
        %8886 = vmatprep.subr.mxu0 0.0
        %8887 = vmatpush1.msra.mxu0 0.0
        %8888 = vmatprep.subr.mxu0 0.0
        %8889 = vmatpush1.msra.mxu0 0.0
        %8890 = vmatprep.subr.mxu0 0.0
        %8891 = vmatpush1.msra.mxu0 0.0
        %8892 = vmatprep.subr.mxu0 0.0
        %8893 = vmatpush1.msra.mxu0 0.0
        %8894 = vmatprep.subr.mxu0 0.0
        %8895 = vmatpush1.msra.mxu0 0.0
        %8896 = vmatprep.subr.mxu0 0.0
        %8897 = vmatpush1.msra.mxu0 0.0
        %8898 = vmatprep.subr.mxu0 0.0
        %8899 = vmatpush1.msra.mxu0 0.0
        %8900 = vmatprep.subr.mxu0 0.0
        %8901 = vmatpush1.msra.mxu0 0.0
        %8902 = vmatprep.subr.mxu0 0.0
        %8903 = vmatpush1.msra.mxu0 0.0
        %8904 = vmatprep.subr.mxu0 0.0
        %8905 = vmatpush1.msra.mxu0 0.0
        %8906 = vmatprep.subr.mxu0 0.0
        %8907 = vmatpush1.msra.mxu0 0.0
        %8908 = vmatprep.subr.mxu0 0.0
        %8909 = vmatpush1.msra.mxu0 0.0
        %8910 = vmatprep.subr.mxu0 0.0
        %8911 = vmatpush1.msra.mxu0 0.0
        %8912 = vmatprep.subr.mxu0 0.0
        %8913 = vmatpush1.msra.mxu0 0.0
        %8914 = vmatprep.subr.mxu0 0.0
        %8915 = vmatpush1.msra.mxu0 0.0
        %8916 = vmatprep.subr.mxu0 0.0
        %8917 = vmatpush1.msra.mxu0 0.0
        %8918 = vmatprep.subr.mxu0 0.0
        %8919 = vmatpush1.msra.mxu0 0.0
        %8920 = vmatprep.subr.mxu0 0.0
        %8921 = vmatpush1.msra.mxu0 0.0
        %8922 = vmatprep.subr.mxu0 0.0
        %8923 = vmatpush1.msra.mxu0 0.0
        %8924 = vmatprep.subr.mxu0 0.0
        %8925 = vmatpush1.msra.mxu0 0.0
        %8926 = vmatprep.subr.mxu0 0.0
        %8927 = vmatpush1.msra.mxu0 0.0
        %8928 = vmatprep.subr.mxu0 0.0
        %8929 = vmatpush1.msra.mxu0 0.0
        %8930 = vmatprep.subr.mxu0 0.0
        %8931 = vmatpush1.msra.mxu0 0.0
        %8932 = vmatprep.subr.mxu0 0.0
        %8933 = vmatpush1.msra.mxu0 0.0
        %8934 = vmatprep.mubr.f32.mxu0 0.0
        %v8935 = vand.u32 %v849, 4294901760
        %v8936 = vsub.f32 %v849, %v8935
        %v8937 = vand.u32 %v8936, 4294901760
        %8938 = vmatmul.mubr.f32.gmra.mrb[0].mxu0 %v8937
        %v8939 = vpop.f32.mrb[0].mxu0
        %v8940 = vadd.f32 %v8865, %v8939
        %v8941 = vpop.f32.mrb[0].mxu0
        %8942 = vdwg.mxu0
        %8943 = vmatprep.subr.mxu0 0.0
        %v8944 = vand.u32 %v8625, 4294901760
        %v8945 = vsub.f32 %v8625, %v8944
        %v8946 = vand.u32 %v8945, 4294901760
        %8947 = vmatpush1.msra.mxu0 %v8946
        %8948 = vmatprep.subr.mxu0 0.0
        %v8949 = vand.u32 %v8631, 4294901760
        %v8950 = vsub.f32 %v8631, %v8949
        %v8951 = vand.u32 %v8950, 4294901760
        %8952 = vmatpush1.msra.mxu0 %v8951
        %8953 = vmatprep.subr.mxu0 0.0
        %8954 = vmatpush1.msra.mxu0 0.0
        %8955 = vmatprep.subr.mxu0 0.0
        %8956 = vmatpush1.msra.mxu0 0.0
        %8957 = vmatprep.subr.mxu0 0.0
        %8958 = vmatpush1.msra.mxu0 0.0
        %8959 = vmatprep.subr.mxu0 0.0
        %8960 = vmatpush1.msra.mxu0 0.0
        %8961 = vmatprep.subr.mxu0 0.0
        %8962 = vmatpush1.msra.mxu0 0.0
        %8963 = vmatprep.subr.mxu0 0.0
        %8964 = vmatpush1.msra.mxu0 0.0
        %8965 = vmatprep.subr.mxu0 0.0
        %8966 = vmatpush1.msra.mxu0 0.0
        %8967 = vmatprep.subr.mxu0 0.0
        %8968 = vmatpush1.msra.mxu0 0.0
        %8969 = vmatprep.subr.mxu0 0.0
        %8970 = vmatpush1.msra.mxu0 0.0
        %8971 = vmatprep.subr.mxu0 0.0
        %8972 = vmatpush1.msra.mxu0 0.0
        %8973 = vmatprep.subr.mxu0 0.0
        %8974 = vmatpush1.msra.mxu0 0.0
        %8975 = vmatprep.subr.mxu0 0.0
        %8976 = vmatpush1.msra.mxu0 0.0
        %8977 = vmatprep.subr.mxu0 0.0
        %8978 = vmatpush1.msra.mxu0 0.0
        %8979 = vmatprep.subr.mxu0 0.0
        %8980 = vmatpush1.msra.mxu0 0.0
        %8981 = vmatprep.subr.mxu0 0.0
        %8982 = vmatpush1.msra.mxu0 0.0
        %8983 = vmatprep.subr.mxu0 0.0
        %8984 = vmatpush1.msra.mxu0 0.0
        %8985 = vmatprep.subr.mxu0 0.0
        %8986 = vmatpush1.msra.mxu0 0.0
        %8987 = vmatprep.subr.mxu0 0.0
        %8988 = vmatpush1.msra.mxu0 0.0
        %8989 = vmatprep.subr.mxu0 0.0
        %8990 = vmatpush1.msra.mxu0 0.0
        %8991 = vmatprep.subr.mxu0 0.0
        %8992 = vmatpush1.msra.mxu0 0.0
        %8993 = vmatprep.subr.mxu0 0.0
        %8994 = vmatpush1.msra.mxu0 0.0
        %8995 = vmatprep.subr.mxu0 0.0
        %8996 = vmatpush1.msra.mxu0 0.0
        %8997 = vmatprep.subr.mxu0 0.0
        %8998 = vmatpush1.msra.mxu0 0.0
        %8999 = vmatprep.subr.mxu0 0.0
        %9000 = vmatpush1.msra.mxu0 0.0
        %9001 = vmatprep.subr.mxu0 0.0
        %9002 = vmatpush1.msra.mxu0 0.0
        %9003 = vmatprep.subr.mxu0 0.0
        %9004 = vmatpush1.msra.mxu0 0.0
        %9005 = vmatprep.subr.mxu0 0.0
        %9006 = vmatpush1.msra.mxu0 0.0
        %9007 = vmatprep.subr.mxu0 0.0
        %9008 = vmatpush1.msra.mxu0 0.0
        %9009 = vmatprep.subr.mxu0 0.0
        %9010 = vmatpush1.msra.mxu0 0.0
        %9011 = vmatprep.subr.mxu0 0.0
        %9012 = vmatpush1.msra.mxu0 0.0
        %9013 = vmatprep.mubr.f32.mxu0 0.0
        %v9014 = vand.u32 %v849, 4294901760
        %9015 = vmatmul.mubr.f32.gmra.mrb[0].mxu0 %v9014
        %v9016 = vpop.f32.mrb[0].mxu0
        %v9017 = vadd.f32 %v8940, %v9016
        %v9018 = vpop.f32.mrb[0].mxu0
        %9019 = vdwg.mxu0
        %9020 = vmatprep.subr.mxu0 0.0
        %v9021 = vand.u32 %v8625, 4294901760
        %9022 = vmatpush1.msra.mxu0 %v9021
        %9023 = vmatprep.subr.mxu0 0.0
        %v9024 = vand.u32 %v8631, 4294901760
        %9025 = vmatpush1.msra.mxu0 %v9024
        %9026 = vmatprep.subr.mxu0 0.0
        %9027 = vmatpush1.msra.mxu0 0.0
        %9028 = vmatprep.subr.mxu0 0.0
        %9029 = vmatpush1.msra.mxu0 0.0
        %9030 = vmatprep.subr.mxu0 0.0
        %9031 = vmatpush1.msra.mxu0 0.0
        %9032 = vmatprep.subr.mxu0 0.0
        %9033 = vmatpush1.msra.mxu0 0.0
        %9034 = vmatprep.subr.mxu0 0.0
        %9035 = vmatpush1.msra.mxu0 0.0
        %9036 = vmatprep.subr.mxu0 0.0
        %9037 = vmatpush1.msra.mxu0 0.0
        %9038 = vmatprep.subr.mxu0 0.0
        %9039 = vmatpush1.msra.mxu0 0.0
        %9040 = vmatprep.subr.mxu0 0.0
        %9041 = vmatpush1.msra.mxu0 0.0
        %9042 = vmatprep.subr.mxu0 0.0
        %9043 = vmatpush1.msra.mxu0 0.0
        %9044 = vmatprep.subr.mxu0 0.0
        %9045 = vmatpush1.msra.mxu0 0.0
        %9046 = vmatprep.subr.mxu0 0.0
        %9047 = vmatpush1.msra.mxu0 0.0
        %9048 = vmatprep.subr.mxu0 0.0
        %9049 = vmatpush1.msra.mxu0 0.0
        %9050 = vmatprep.subr.mxu0 0.0
        %9051 = vmatpush1.msra.mxu0 0.0
        %9052 = vmatprep.subr.mxu0 0.0
        %9053 = vmatpush1.msra.mxu0 0.0
        %9054 = vmatprep.subr.mxu0 0.0
        %9055 = vmatpush1.msra.mxu0 0.0
        %9056 = vmatprep.subr.mxu0 0.0
        %9057 = vmatpush1.msra.mxu0 0.0
        %9058 = vmatprep.subr.mxu0 0.0
        %9059 = vmatpush1.msra.mxu0 0.0
        %9060 = vmatprep.subr.mxu0 0.0
        %9061 = vmatpush1.msra.mxu0 0.0
        %9062 = vmatprep.subr.mxu0 0.0
        %9063 = vmatpush1.msra.mxu0 0.0
        %9064 = vmatprep.subr.mxu0 0.0
        %9065 = vmatpush1.msra.mxu0 0.0
        %9066 = vmatprep.subr.mxu0 0.0
        %9067 = vmatpush1.msra.mxu0 0.0
        %9068 = vmatprep.subr.mxu0 0.0
        %9069 = vmatpush1.msra.mxu0 0.0
        %9070 = vmatprep.subr.mxu0 0.0
        %9071 = vmatpush1.msra.mxu0 0.0
        %9072 = vmatprep.subr.mxu0 0.0
        %9073 = vmatpush1.msra.mxu0 0.0
        %9074 = vmatprep.subr.mxu0 0.0
        %9075 = vmatpush1.msra.mxu0 0.0
        %9076 = vmatprep.subr.mxu0 0.0
        %9077 = vmatpush1.msra.mxu0 0.0
        %9078 = vmatprep.subr.mxu0 0.0
        %9079 = vmatpush1.msra.mxu0 0.0
        %9080 = vmatprep.subr.mxu0 0.0
        %9081 = vmatpush1.msra.mxu0 0.0
        %9082 = vmatprep.subr.mxu0 0.0
        %9083 = vmatpush1.msra.mxu0 0.0
        %9084 = vmatprep.subr.mxu0 0.0
        %9085 = vmatpush1.msra.mxu0 0.0
        %9086 = vmatprep.mubr.f32.mxu0 0.0
        %v9087 = vand.u32 %v849, 4294901760
        %9088 = vmatmul.mubr.f32.gmra.mrb[0].mxu0 %v9087
        %v9089 = vpop.f32.mrb[0].mxu0
        %v9090 = vadd.f32 %v9017, %v9089
        %v9091 = vpop.f32.mrb[0].mxu0
        %9092 = vdwg.mxu0
        %v9093 = vmul.f32 %v5216, %v5219
        %v9094 = vmul.f32 %v5217, %v5220
        %v9096 = vsel %vm339, %v9093, 0
        %v9099 = vsel %vm339, %v9094, 0
        %9101 = vmatprep.subr.mxu0 0.0
        %v9102 = vand.u32 %v332, 4294901760
        %9103 = vmatpush1.msra.mxu0 %v9102
        %9104 = vmatprep.subr.mxu0 0.0
        %v9105 = vand.u32 %v333, 4294901760
        %9106 = vmatpush1.msra.mxu0 %v9105
        %9107 = vmatprep.subr.mxu0 0.0
        %9108 = vmatpush1.msra.mxu0 0.0
        %9109 = vmatprep.subr.mxu0 0.0
        %9110 = vmatpush1.msra.mxu0 0.0
        %9111 = vmatprep.subr.mxu0 0.0
        %9112 = vmatpush1.msra.mxu0 0.0
        %9113 = vmatprep.subr.mxu0 0.0
        %9114 = vmatpush1.msra.mxu0 0.0
        %9115 = vmatprep.subr.mxu0 0.0
        %9116 = vmatpush1.msra.mxu0 0.0
        %9117 = vmatprep.subr.mxu0 0.0
        %9118 = vmatpush1.msra.mxu0 0.0
        %9119 = vmatprep.subr.mxu0 0.0
        %9120 = vmatpush1.msra.mxu0 0.0
        %9121 = vmatprep.subr.mxu0 0.0
        %9122 = vmatpush1.msra.mxu0 0.0
        %9123 = vmatprep.subr.mxu0 0.0
        %9124 = vmatpush1.msra.mxu0 0.0
        %9125 = vmatprep.subr.mxu0 0.0
        %9126 = vmatpush1.msra.mxu0 0.0
        %9127 = vmatprep.subr.mxu0 0.0
        %9128 = vmatpush1.msra.mxu0 0.0
        %9129 = vmatprep.subr.mxu0 0.0
        %9130 = vmatpush1.msra.mxu0 0.0
        %9131 = vmatprep.subr.mxu0 0.0
        %9132 = vmatpush1.msra.mxu0 0.0
        %9133 = vmatprep.subr.mxu0 0.0
        %9134 = vmatpush1.msra.mxu0 0.0
        %9135 = vmatprep.subr.mxu0 0.0
        %9136 = vmatpush1.msra.mxu0 0.0
        %9137 = vmatprep.subr.mxu0 0.0
        %9138 = vmatpush1.msra.mxu0 0.0
        %9139 = vmatprep.subr.mxu0 0.0
        %9140 = vmatpush1.msra.mxu0 0.0
        %9141 = vmatprep.subr.mxu0 0.0
        %9142 = vmatpush1.msra.mxu0 0.0
        %9143 = vmatprep.subr.mxu0 0.0
        %9144 = vmatpush1.msra.mxu0 0.0
        %9145 = vmatprep.subr.mxu0 0.0
        %9146 = vmatpush1.msra.mxu0 0.0
        %9147 = vmatprep.subr.mxu0 0.0
        %9148 = vmatpush1.msra.mxu0 0.0
        %9149 = vmatprep.subr.mxu0 0.0
        %9150 = vmatpush1.msra.mxu0 0.0
        %9151 = vmatprep.subr.mxu0 0.0
        %9152 = vmatpush1.msra.mxu0 0.0
        %9153 = vmatprep.subr.mxu0 0.0
        %9154 = vmatpush1.msra.mxu0 0.0
        %9155 = vmatprep.subr.mxu0 0.0
        %9156 = vmatpush1.msra.mxu0 0.0
        %9157 = vmatprep.subr.mxu0 0.0
        %9158 = vmatpush1.msra.mxu0 0.0
        %9159 = vmatprep.subr.mxu0 0.0
        %9160 = vmatpush1.msra.mxu0 0.0
        %9161 = vmatprep.subr.mxu0 0.0
        %9162 = vmatpush1.msra.mxu0 0.0
        %9163 = vmatprep.subr.mxu0 0.0
        %9164 = vmatpush1.msra.mxu0 0.0
        %9165 = vmatprep.subr.mxu0 0.0
        %9166 = vmatpush1.msra.mxu0 0.0
        %9167 = vmatprep.mubr.f32.mxu0 0.0
        %v9168 = vand.u32 %v9096, 4294901760
        %v9169 = vsub.f32 %v9096, %v9168
        %v9170 = vand.u32 %v9169, 4294901760
        %v9171 = vsub.f32 %v9169, %v9170
        %v9172 = vand.u32 %v9171, 4294901760
        %9173 = vmatmul.mubr.f32.gmra.mrb[0].mxu0 %v9172
        %v9174 = vpop.f32.mrb[0].mxu0
        %v9175 = vadd.f32 0.0, %v9174
        %v9176 = vpop.f32.mrb[0].mxu0
        %9177 = vmatprep.mubr.f32.mxu0 0.0
        %v9178 = vand.u32 %v9099, 4294901760
        %v9179 = vsub.f32 %v9099, %v9178
        %v9180 = vand.u32 %v9179, 4294901760
        %v9181 = vsub.f32 %v9179, %v9180
        %v9182 = vand.u32 %v9181, 4294901760
        %9183 = vmatmul.mubr.f32.gmra.mrb[0].mxu0 %v9182
        %v9184 = vpop.f32.mrb[0].mxu0
        %v9185 = vadd.f32 0.0, %v9184
        %v9186 = vpop.f32.mrb[0].mxu0
        %9187 = vdwg.mxu0
        %9188 = vmatprep.subr.mxu0 0.0
        %v9189 = vand.u32 %v332, 4294901760
        %v9190 = vsub.f32 %v332, %v9189
        %v9191 = vand.u32 %v9190, 4294901760
        %v9192 = vsub.f32 %v9190, %v9191
        %v9193 = vand.u32 %v9192, 4294901760
        %9194 = vmatpush1.msra.mxu0 %v9193
        %9195 = vmatprep.subr.mxu0 0.0
        %v9196 = vand.u32 %v333, 4294901760
        %v9197 = vsub.f32 %v333, %v9196
        %v9198 = vand.u32 %v9197, 4294901760
        %v9199 = vsub.f32 %v9197, %v9198
        %v9200 = vand.u32 %v9199, 4294901760
        %9201 = vmatpush1.msra.mxu0 %v9200
        %9202 = vmatprep.subr.mxu0 0.0
        %9203 = vmatpush1.msra.mxu0 0.0
        %9204 = vmatprep.subr.mxu0 0.0
        %9205 = vmatpush1.msra.mxu0 0.0
        %9206 = vmatprep.subr.mxu0 0.0
        %9207 = vmatpush1.msra.mxu0 0.0
        %9208 = vmatprep.subr.mxu0 0.0
        %9209 = vmatpush1.msra.mxu0 0.0
        %9210 = vmatprep.subr.mxu0 0.0
        %9211 = vmatpush1.msra.mxu0 0.0
        %9212 = vmatprep.subr.mxu0 0.0
        %9213 = vmatpush1.msra.mxu0 0.0
        %9214 = vmatprep.subr.mxu0 0.0
        %9215 = vmatpush1.msra.mxu0 0.0
        %9216 = vmatprep.subr.mxu0 0.0
        %9217 = vmatpush1.msra.mxu0 0.0
        %9218 = vmatprep.subr.mxu0 0.0
        %9219 = vmatpush1.msra.mxu0 0.0
        %9220 = vmatprep.subr.mxu0 0.0
        %9221 = vmatpush1.msra.mxu0 0.0
        %9222 = vmatprep.subr.mxu0 0.0
        %9223 = vmatpush1.msra.mxu0 0.0
        %9224 = vmatprep.subr.mxu0 0.0
        %9225 = vmatpush1.msra.mxu0 0.0
        %9226 = vmatprep.subr.mxu0 0.0
        %9227 = vmatpush1.msra.mxu0 0.0
        %9228 = vmatprep.subr.mxu0 0.0
        %9229 = vmatpush1.msra.mxu0 0.0
        %9230 = vmatprep.subr.mxu0 0.0
        %9231 = vmatpush1.msra.mxu0 0.0
        %9232 = vmatprep.subr.mxu0 0.0
        %9233 = vmatpush1.msra.mxu0 0.0
        %9234 = vmatprep.subr.mxu0 0.0
        %9235 = vmatpush1.msra.mxu0 0.0
        %9236 = vmatprep.subr.mxu0 0.0
        %9237 = vmatpush1.msra.mxu0 0.0
        %9238 = vmatprep.subr.mxu0 0.0
        %9239 = vmatpush1.msra.mxu0 0.0
        %9240 = vmatprep.subr.mxu0 0.0
        %9241 = vmatpush1.msra.mxu0 0.0
        %9242 = vmatprep.subr.mxu0 0.0
        %9243 = vmatpush1.msra.mxu0 0.0
        %9244 = vmatprep.subr.mxu0 0.0
        %9245 = vmatpush1.msra.mxu0 0.0
        %9246 = vmatprep.subr.mxu0 0.0
        %9247 = vmatpush1.msra.mxu0 0.0
        %9248 = vmatprep.subr.mxu0 0.0
        %9249 = vmatpush1.msra.mxu0 0.0
        %9250 = vmatprep.subr.mxu0 0.0
        %9251 = vmatpush1.msra.mxu0 0.0
        %9252 = vmatprep.subr.mxu0 0.0
        %9253 = vmatpush1.msra.mxu0 0.0
        %9254 = vmatprep.subr.mxu0 0.0
        %9255 = vmatpush1.msra.mxu0 0.0
        %9256 = vmatprep.subr.mxu0 0.0
        %9257 = vmatpush1.msra.mxu0 0.0
        %9258 = vmatprep.subr.mxu0 0.0
        %9259 = vmatpush1.msra.mxu0 0.0
        %9260 = vmatprep.subr.mxu0 0.0
        %9261 = vmatpush1.msra.mxu0 0.0
        %9262 = vmatprep.mubr.f32.mxu0 0.0
        %v9263 = vand.u32 %v9096, 4294901760
        %9264 = vmatmul.mubr.f32.gmra.mrb[0].mxu0 %v9263
        %v9265 = vpop.f32.mrb[0].mxu0
        %v9266 = vadd.f32 %v9175, %v9265
        %v9267 = vpop.f32.mrb[0].mxu0
        %9268 = vmatprep.mubr.f32.mxu0 0.0
        %v9269 = vand.u32 %v9099, 4294901760
        %9270 = vmatmul.mubr.f32.gmra.mrb[0].mxu0 %v9269
        %v9271 = vpop.f32.mrb[0].mxu0
        %v9272 = vadd.f32 %v9185, %v9271
        %v9273 = vpop.f32.mrb[0].mxu0
        %9274 = vdwg.mxu0
        %9275 = vmatprep.subr.mxu0 0.0
        %v9276 = vand.u32 %v332, 4294901760
        %v9277 = vsub.f32 %v332, %v9276
        %9278 = vmatpush1.msra.mxu0 %v9277
        %9279 = vmatprep.subr.mxu0 0.0
        %v9280 = vand.u32 %v333, 4294901760
        %v9281 = vsub.f32 %v333, %v9280
        %9282 = vmatpush1.msra.mxu0 %v9281
        %9283 = vmatprep.subr.mxu0 0.0
        %9284 = vmatpush1.msra.mxu0 0.0
        %9285 = vmatprep.subr.mxu0 0.0
        %9286 = vmatpush1.msra.mxu0 0.0
        %9287 = vmatprep.subr.mxu0 0.0
        %9288 = vmatpush1.msra.mxu0 0.0
        %9289 = vmatprep.subr.mxu0 0.0
        %9290 = vmatpush1.msra.mxu0 0.0
        %9291 = vmatprep.subr.mxu0 0.0
        %9292 = vmatpush1.msra.mxu0 0.0
        %9293 = vmatprep.subr.mxu0 0.0
        %9294 = vmatpush1.msra.mxu0 0.0
        %9295 = vmatprep.subr.mxu0 0.0
        %9296 = vmatpush1.msra.mxu0 0.0
        %9297 = vmatprep.subr.mxu0 0.0
        %9298 = vmatpush1.msra.mxu0 0.0
        %9299 = vmatprep.subr.mxu0 0.0
        %9300 = vmatpush1.msra.mxu0 0.0
        %9301 = vmatprep.subr.mxu0 0.0
        %9302 = vmatpush1.msra.mxu0 0.0
        %9303 = vmatprep.subr.mxu0 0.0
        %9304 = vmatpush1.msra.mxu0 0.0
        %9305 = vmatprep.subr.mxu0 0.0
        %9306 = vmatpush1.msra.mxu0 0.0
        %9307 = vmatprep.subr.mxu0 0.0
        %9308 = vmatpush1.msra.mxu0 0.0
        %9309 = vmatprep.subr.mxu0 0.0
        %9310 = vmatpush1.msra.mxu0 0.0
        %9311 = vmatprep.subr.mxu0 0.0
        %9312 = vmatpush1.msra.mxu0 0.0
        %9313 = vmatprep.subr.mxu0 0.0
        %9314 = vmatpush1.msra.mxu0 0.0
        %9315 = vmatprep.subr.mxu0 0.0
        %9316 = vmatpush1.msra.mxu0 0.0
        %9317 = vmatprep.subr.mxu0 0.0
        %9318 = vmatpush1.msra.mxu0 0.0
        %9319 = vmatprep.subr.mxu0 0.0
        %9320 = vmatpush1.msra.mxu0 0.0
        %9321 = vmatprep.subr.mxu0 0.0
        %9322 = vmatpush1.msra.mxu0 0.0
        %9323 = vmatprep.subr.mxu0 0.0
        %9324 = vmatpush1.msra.mxu0 0.0
        %9325 = vmatprep.subr.mxu0 0.0
        %9326 = vmatpush1.msra.mxu0 0.0
        %9327 = vmatprep.subr.mxu0 0.0
        %9328 = vmatpush1.msra.mxu0 0.0
        %9329 = vmatprep.subr.mxu0 0.0
        %9330 = vmatpush1.msra.mxu0 0.0
        %9331 = vmatprep.subr.mxu0 0.0
        %9332 = vmatpush1.msra.mxu0 0.0
        %9333 = vmatprep.subr.mxu0 0.0
        %9334 = vmatpush1.msra.mxu0 0.0
        %9335 = vmatprep.subr.mxu0 0.0
        %9336 = vmatpush1.msra.mxu0 0.0
        %9337 = vmatprep.subr.mxu0 0.0
        %9338 = vmatpush1.msra.mxu0 0.0
        %9339 = vmatprep.subr.mxu0 0.0
        %9340 = vmatpush1.msra.mxu0 0.0
        %9341 = vmatprep.subr.mxu0 0.0
        %9342 = vmatpush1.msra.mxu0 0.0
        %9343 = vmatprep.mubr.f32.mxu0 0.0
        %v9344 = vand.u32 %v9096, 4294901760
        %v9345 = vsub.f32 %v9096, %v9344
        %9346 = vmatmul.mubr.f32.gmra.mrb[0].mxu0 %v9345
        %v9347 = vpop.f32.mrb[0].mxu0
        %v9348 = vadd.f32 %v9266, %v9347
        %v9349 = vpop.f32.mrb[0].mxu0
        %9350 = vmatprep.mubr.f32.mxu0 0.0
        %v9351 = vand.u32 %v9099, 4294901760
        %v9352 = vsub.f32 %v9099, %v9351
        %9353 = vmatmul.mubr.f32.gmra.mrb[0].mxu0 %v9352
        %v9354 = vpop.f32.mrb[0].mxu0
        %v9355 = vadd.f32 %v9272, %v9354
        %v9356 = vpop.f32.mrb[0].mxu0
        %9357 = vdwg.mxu0
        %9358 = vmatprep.subr.mxu0 0.0
        %v9359 = vand.u32 %v332, 4294901760
        %9360 = vmatpush1.msra.mxu0 %v9359
        %9361 = vmatprep.subr.mxu0 0.0
        %v9362 = vand.u32 %v333, 4294901760
        %9363 = vmatpush1.msra.mxu0 %v9362
        %9364 = vmatprep.subr.mxu0 0.0
        %9365 = vmatpush1.msra.mxu0 0.0
        %9366 = vmatprep.subr.mxu0 0.0
        %9367 = vmatpush1.msra.mxu0 0.0
        %9368 = vmatprep.subr.mxu0 0.0
        %9369 = vmatpush1.msra.mxu0 0.0
        %9370 = vmatprep.subr.mxu0 0.0
        %9371 = vmatpush1.msra.mxu0 0.0
        %9372 = vmatprep.subr.mxu0 0.0
        %9373 = vmatpush1.msra.mxu0 0.0
        %9374 = vmatprep.subr.mxu0 0.0
        %9375 = vmatpush1.msra.mxu0 0.0
        %9376 = vmatprep.subr.mxu0 0.0
        %9377 = vmatpush1.msra.mxu0 0.0
        %9378 = vmatprep.subr.mxu0 0.0
        %9379 = vmatpush1.msra.mxu0 0.0
        %9380 = vmatprep.subr.mxu0 0.0
        %9381 = vmatpush1.msra.mxu0 0.0
        %9382 = vmatprep.subr.mxu0 0.0
        %9383 = vmatpush1.msra.mxu0 0.0
        %9384 = vmatprep.subr.mxu0 0.0
        %9385 = vmatpush1.msra.mxu0 0.0
        %9386 = vmatprep.subr.mxu0 0.0
        %9387 = vmatpush1.msra.mxu0 0.0
        %9388 = vmatprep.subr.mxu0 0.0
        %9389 = vmatpush1.msra.mxu0 0.0
        %9390 = vmatprep.subr.mxu0 0.0
        %9391 = vmatpush1.msra.mxu0 0.0
        %9392 = vmatprep.subr.mxu0 0.0
        %9393 = vmatpush1.msra.mxu0 0.0
        %9394 = vmatprep.subr.mxu0 0.0
        %9395 = vmatpush1.msra.mxu0 0.0
        %9396 = vmatprep.subr.mxu0 0.0
        %9397 = vmatpush1.msra.mxu0 0.0
        %9398 = vmatprep.subr.mxu0 0.0
        %9399 = vmatpush1.msra.mxu0 0.0
        %9400 = vmatprep.subr.mxu0 0.0
        %9401 = vmatpush1.msra.mxu0 0.0
        %9402 = vmatprep.subr.mxu0 0.0
        %9403 = vmatpush1.msra.mxu0 0.0
        %9404 = vmatprep.subr.mxu0 0.0
        %9405 = vmatpush1.msra.mxu0 0.0
        %9406 = vmatprep.subr.mxu0 0.0
        %9407 = vmatpush1.msra.mxu0 0.0
        %9408 = vmatprep.subr.mxu0 0.0
        %9409 = vmatpush1.msra.mxu0 0.0
        %9410 = vmatprep.subr.mxu0 0.0
        %9411 = vmatpush1.msra.mxu0 0.0
        %9412 = vmatprep.subr.mxu0 0.0
        %9413 = vmatpush1.msra.mxu0 0.0
        %9414 = vmatprep.subr.mxu0 0.0
        %9415 = vmatpush1.msra.mxu0 0.0
        %9416 = vmatprep.subr.mxu0 0.0
        %9417 = vmatpush1.msra.mxu0 0.0
        %9418 = vmatprep.subr.mxu0 0.0
        %9419 = vmatpush1.msra.mxu0 0.0
        %9420 = vmatprep.subr.mxu0 0.0
        %9421 = vmatpush1.msra.mxu0 0.0
        %9422 = vmatprep.subr.mxu0 0.0
        %9423 = vmatpush1.msra.mxu0 0.0
        %9424 = vmatprep.mubr.f32.mxu0 0.0
        %v9425 = vand.u32 %v9096, 4294901760
        %v9426 = vsub.f32 %v9096, %v9425
        %v9427 = vand.u32 %v9426, 4294901760
        %9428 = vmatmul.mubr.f32.gmra.mrb[0].mxu0 %v9427
        %v9429 = vpop.f32.mrb[0].mxu0
        %v9430 = vadd.f32 %v9348, %v9429
        %v9431 = vpop.f32.mrb[0].mxu0
        %9432 = vmatprep.mubr.f32.mxu0 0.0
        %v9433 = vand.u32 %v9099, 4294901760
        %v9434 = vsub.f32 %v9099, %v9433
        %v9435 = vand.u32 %v9434, 4294901760
        %9436 = vmatmul.mubr.f32.gmra.mrb[0].mxu0 %v9435
        %v9437 = vpop.f32.mrb[0].mxu0
        %v9438 = vadd.f32 %v9355, %v9437
        %v9439 = vpop.f32.mrb[0].mxu0
        %9440 = vdwg.mxu0
        %9441 = vmatprep.subr.mxu0 0.0
        %v9442 = vand.u32 %v332, 4294901760
        %v9443 = vsub.f32 %v332, %v9442
        %v9444 = vand.u32 %v9443, 4294901760
        %9445 = vmatpush1.msra.mxu0 %v9444
        %9446 = vmatprep.subr.mxu0 0.0
        %v9447 = vand.u32 %v333, 4294901760
        %v9448 = vsub.f32 %v333, %v9447
        %v9449 = vand.u32 %v9448, 4294901760
        %9450 = vmatpush1.msra.mxu0 %v9449
        %9451 = vmatprep.subr.mxu0 0.0
        %9452 = vmatpush1.msra.mxu0 0.0
        %9453 = vmatprep.subr.mxu0 0.0
        %9454 = vmatpush1.msra.mxu0 0.0
        %9455 = vmatprep.subr.mxu0 0.0
        %9456 = vmatpush1.msra.mxu0 0.0
        %9457 = vmatprep.subr.mxu0 0.0
        %9458 = vmatpush1.msra.mxu0 0.0
        %9459 = vmatprep.subr.mxu0 0.0
        %9460 = vmatpush1.msra.mxu0 0.0
        %9461 = vmatprep.subr.mxu0 0.0
        %9462 = vmatpush1.msra.mxu0 0.0
        %9463 = vmatprep.subr.mxu0 0.0
        %9464 = vmatpush1.msra.mxu0 0.0
        %9465 = vmatprep.subr.mxu0 0.0
        %9466 = vmatpush1.msra.mxu0 0.0
        %9467 = vmatprep.subr.mxu0 0.0
        %9468 = vmatpush1.msra.mxu0 0.0
        %9469 = vmatprep.subr.mxu0 0.0
        %9470 = vmatpush1.msra.mxu0 0.0
        %9471 = vmatprep.subr.mxu0 0.0
        %9472 = vmatpush1.msra.mxu0 0.0
        %9473 = vmatprep.subr.mxu0 0.0
        %9474 = vmatpush1.msra.mxu0 0.0
        %9475 = vmatprep.subr.mxu0 0.0
        %9476 = vmatpush1.msra.mxu0 0.0
        %9477 = vmatprep.subr.mxu0 0.0
        %9478 = vmatpush1.msra.mxu0 0.0
        %9479 = vmatprep.subr.mxu0 0.0
        %9480 = vmatpush1.msra.mxu0 0.0
        %9481 = vmatprep.subr.mxu0 0.0
        %9482 = vmatpush1.msra.mxu0 0.0
        %9483 = vmatprep.subr.mxu0 0.0
        %9484 = vmatpush1.msra.mxu0 0.0
        %9485 = vmatprep.subr.mxu0 0.0
        %9486 = vmatpush1.msra.mxu0 0.0
        %9487 = vmatprep.subr.mxu0 0.0
        %9488 = vmatpush1.msra.mxu0 0.0
        %9489 = vmatprep.subr.mxu0 0.0
        %9490 = vmatpush1.msra.mxu0 0.0
        %9491 = vmatprep.subr.mxu0 0.0
        %9492 = vmatpush1.msra.mxu0 0.0
        %9493 = vmatprep.subr.mxu0 0.0
        %9494 = vmatpush1.msra.mxu0 0.0
        %9495 = vmatprep.subr.mxu0 0.0
        %9496 = vmatpush1.msra.mxu0 0.0
        %9497 = vmatprep.subr.mxu0 0.0
        %9498 = vmatpush1.msra.mxu0 0.0
        %9499 = vmatprep.subr.mxu0 0.0
        %9500 = vmatpush1.msra.mxu0 0.0
        %9501 = vmatprep.subr.mxu0 0.0
        %9502 = vmatpush1.msra.mxu0 0.0
        %9503 = vmatprep.subr.mxu0 0.0
        %9504 = vmatpush1.msra.mxu0 0.0
        %9505 = vmatprep.subr.mxu0 0.0
        %9506 = vmatpush1.msra.mxu0 0.0
        %9507 = vmatprep.subr.mxu0 0.0
        %9508 = vmatpush1.msra.mxu0 0.0
        %9509 = vmatprep.subr.mxu0 0.0
        %9510 = vmatpush1.msra.mxu0 0.0
        %9511 = vmatprep.mubr.f32.mxu0 0.0
        %v9512 = vand.u32 %v9096, 4294901760
        %9513 = vmatmul.mubr.f32.gmra.mrb[0].mxu0 %v9512
        %v9514 = vpop.f32.mrb[0].mxu0
        %v9515 = vadd.f32 %v9430, %v9514
        %v9516 = vpop.f32.mrb[0].mxu0
        %9517 = vmatprep.mubr.f32.mxu0 0.0
        %v9518 = vand.u32 %v9099, 4294901760
        %9519 = vmatmul.mubr.f32.gmra.mrb[0].mxu0 %v9518
        %v9520 = vpop.f32.mrb[0].mxu0
        %v9521 = vadd.f32 %v9438, %v9520
        %v9522 = vpop.f32.mrb[0].mxu0
        %9523 = vdwg.mxu0
        %9524 = vmatprep.subr.mxu0 0.0
        %v9525 = vand.u32 %v332, 4294901760
        %9526 = vmatpush1.msra.mxu0 %v9525
        %9527 = vmatprep.subr.mxu0 0.0
        %v9528 = vand.u32 %v333, 4294901760
        %9529 = vmatpush1.msra.mxu0 %v9528
        %9530 = vmatprep.subr.mxu0 0.0
        %9531 = vmatpush1.msra.mxu0 0.0
        %9532 = vmatprep.subr.mxu0 0.0
        %9533 = vmatpush1.msra.mxu0 0.0
        %9534 = vmatprep.subr.mxu0 0.0
        %9535 = vmatpush1.msra.mxu0 0.0
        %9536 = vmatprep.subr.mxu0 0.0
        %9537 = vmatpush1.msra.mxu0 0.0
        %9538 = vmatprep.subr.mxu0 0.0
        %9539 = vmatpush1.msra.mxu0 0.0
        %9540 = vmatprep.subr.mxu0 0.0
        %9541 = vmatpush1.msra.mxu0 0.0
        %9542 = vmatprep.subr.mxu0 0.0
        %9543 = vmatpush1.msra.mxu0 0.0
        %9544 = vmatprep.subr.mxu0 0.0
        %9545 = vmatpush1.msra.mxu0 0.0
        %9546 = vmatprep.subr.mxu0 0.0
        %9547 = vmatpush1.msra.mxu0 0.0
        %9548 = vmatprep.subr.mxu0 0.0
        %9549 = vmatpush1.msra.mxu0 0.0
        %9550 = vmatprep.subr.mxu0 0.0
        %9551 = vmatpush1.msra.mxu0 0.0
        %9552 = vmatprep.subr.mxu0 0.0
        %9553 = vmatpush1.msra.mxu0 0.0
        %9554 = vmatprep.subr.mxu0 0.0
        %9555 = vmatpush1.msra.mxu0 0.0
        %9556 = vmatprep.subr.mxu0 0.0
        %9557 = vmatpush1.msra.mxu0 0.0
        %9558 = vmatprep.subr.mxu0 0.0
        %9559 = vmatpush1.msra.mxu0 0.0
        %9560 = vmatprep.subr.mxu0 0.0
        %9561 = vmatpush1.msra.mxu0 0.0
        %9562 = vmatprep.subr.mxu0 0.0
        %9563 = vmatpush1.msra.mxu0 0.0
        %9564 = vmatprep.subr.mxu0 0.0
        %9565 = vmatpush1.msra.mxu0 0.0
        %9566 = vmatprep.subr.mxu0 0.0
        %9567 = vmatpush1.msra.mxu0 0.0
        %9568 = vmatprep.subr.mxu0 0.0
        %9569 = vmatpush1.msra.mxu0 0.0
        %9570 = vmatprep.subr.mxu0 0.0
        %9571 = vmatpush1.msra.mxu0 0.0
        %9572 = vmatprep.subr.mxu0 0.0
        %9573 = vmatpush1.msra.mxu0 0.0
        %9574 = vmatprep.subr.mxu0 0.0
        %9575 = vmatpush1.msra.mxu0 0.0
        %9576 = vmatprep.subr.mxu0 0.0
        %9577 = vmatpush1.msra.mxu0 0.0
        %9578 = vmatprep.subr.mxu0 0.0
        %9579 = vmatpush1.msra.mxu0 0.0
        %9580 = vmatprep.subr.mxu0 0.0
        %9581 = vmatpush1.msra.mxu0 0.0
        %9582 = vmatprep.subr.mxu0 0.0
        %9583 = vmatpush1.msra.mxu0 0.0
        %9584 = vmatprep.subr.mxu0 0.0
        %9585 = vmatpush1.msra.mxu0 0.0
        %9586 = vmatprep.subr.mxu0 0.0
        %9587 = vmatpush1.msra.mxu0 0.0
        %9588 = vmatprep.subr.mxu0 0.0
        %9589 = vmatpush1.msra.mxu0 0.0
        %9590 = vmatprep.mubr.f32.mxu0 0.0
        %v9591 = vand.u32 %v9096, 4294901760
        %9592 = vmatmul.mubr.f32.gmra.mrb[0].mxu0 %v9591
        %v9593 = vpop.f32.mrb[0].mxu0
        %v9594 = vadd.f32 %v9515, %v9593
        %v9595 = vpop.f32.mrb[0].mxu0
        %9596 = vmatprep.mubr.f32.mxu0 0.0
        %v9597 = vand.u32 %v9099, 4294901760
        %9598 = vmatmul.mubr.f32.gmra.mrb[0].mxu0 %v9597
        %v9599 = vpop.f32.mrb[0].mxu0
        %v9600 = vadd.f32 %v9521, %v9599
        %v9601 = vpop.f32.mrb[0].mxu0
        %9602 = vdwg.mxu0
        %9603 = vmatprep.subr.mxu0 0.0
        %v9604 = vand.u32 %v9594, 4294901760
        %9605 = vmatpush1.msra.mxu0 %v9604
        %9606 = vmatprep.subr.mxu0 0.0
        %v9607 = vand.u32 %v9600, 4294901760
        %9608 = vmatpush1.msra.mxu0 %v9607
        %9609 = vmatprep.subr.mxu0 0.0
        %9610 = vmatpush1.msra.mxu0 0.0
        %9611 = vmatprep.subr.mxu0 0.0
        %9612 = vmatpush1.msra.mxu0 0.0
        %9613 = vmatprep.subr.mxu0 0.0
        %9614 = vmatpush1.msra.mxu0 0.0
        %9615 = vmatprep.subr.mxu0 0.0
        %9616 = vmatpush1.msra.mxu0 0.0
        %9617 = vmatprep.subr.mxu0 0.0
        %9618 = vmatpush1.msra.mxu0 0.0
        %9619 = vmatprep.subr.mxu0 0.0
        %9620 = vmatpush1.msra.mxu0 0.0
        %9621 = vmatprep.subr.mxu0 0.0
        %9622 = vmatpush1.msra.mxu0 0.0
        %9623 = vmatprep.subr.mxu0 0.0
        %9624 = vmatpush1.msra.mxu0 0.0
        %9625 = vmatprep.subr.mxu0 0.0
        %9626 = vmatpush1.msra.mxu0 0.0
        %9627 = vmatprep.subr.mxu0 0.0
        %9628 = vmatpush1.msra.mxu0 0.0
        %9629 = vmatprep.subr.mxu0 0.0
        %9630 = vmatpush1.msra.mxu0 0.0
        %9631 = vmatprep.subr.mxu0 0.0
        %9632 = vmatpush1.msra.mxu0 0.0
        %9633 = vmatprep.subr.mxu0 0.0
        %9634 = vmatpush1.msra.mxu0 0.0
        %9635 = vmatprep.subr.mxu0 0.0
        %9636 = vmatpush1.msra.mxu0 0.0
        %9637 = vmatprep.subr.mxu0 0.0
        %9638 = vmatpush1.msra.mxu0 0.0
        %9639 = vmatprep.subr.mxu0 0.0
        %9640 = vmatpush1.msra.mxu0 0.0
        %9641 = vmatprep.subr.mxu0 0.0
        %9642 = vmatpush1.msra.mxu0 0.0
        %9643 = vmatprep.subr.mxu0 0.0
        %9644 = vmatpush1.msra.mxu0 0.0
        %9645 = vmatprep.subr.mxu0 0.0
        %9646 = vmatpush1.msra.mxu0 0.0
        %9647 = vmatprep.subr.mxu0 0.0
        %9648 = vmatpush1.msra.mxu0 0.0
        %9649 = vmatprep.subr.mxu0 0.0
        %9650 = vmatpush1.msra.mxu0 0.0
        %9651 = vmatprep.subr.mxu0 0.0
        %9652 = vmatpush1.msra.mxu0 0.0
        %9653 = vmatprep.subr.mxu0 0.0
        %9654 = vmatpush1.msra.mxu0 0.0
        %9655 = vmatprep.subr.mxu0 0.0
        %9656 = vmatpush1.msra.mxu0 0.0
        %9657 = vmatprep.subr.mxu0 0.0
        %9658 = vmatpush1.msra.mxu0 0.0
        %9659 = vmatprep.subr.mxu0 0.0
        %9660 = vmatpush1.msra.mxu0 0.0
        %9661 = vmatprep.subr.mxu0 0.0
        %9662 = vmatpush1.msra.mxu0 0.0
        %9663 = vmatprep.subr.mxu0 0.0
        %9664 = vmatpush1.msra.mxu0 0.0
        %9665 = vmatprep.subr.mxu0 0.0
        %9666 = vmatpush1.msra.mxu0 0.0
        %9667 = vmatprep.subr.mxu0 0.0
        %9668 = vmatpush1.msra.mxu0 0.0
        %9669 = vmatprep.mubr.f32.mxu0 0.0
        %v9670 = vand.u32 %v849, 4294901760
        %v9671 = vsub.f32 %v849, %v9670
        %v9672 = vand.u32 %v9671, 4294901760
        %v9673 = vsub.f32 %v9671, %v9672
        %v9674 = vand.u32 %v9673, 4294901760
        %9675 = vmatmul.mubr.f32.gmra.mrb[0].mxu0 %v9674
        %v9676 = vpop.f32.mrb[0].mxu0
        %v9677 = vadd.f32 0.0, %v9676
        %v9678 = vpop.f32.mrb[0].mxu0
        %9679 = vdwg.mxu0
        %9680 = vmatprep.subr.mxu0 0.0
        %v9681 = vand.u32 %v9594, 4294901760
        %v9682 = vsub.f32 %v9594, %v9681
        %v9683 = vand.u32 %v9682, 4294901760
        %v9684 = vsub.f32 %v9682, %v9683
        %v9685 = vand.u32 %v9684, 4294901760
        %9686 = vmatpush1.msra.mxu0 %v9685
        %9687 = vmatprep.subr.mxu0 0.0
        %v9688 = vand.u32 %v9600, 4294901760
        %v9689 = vsub.f32 %v9600, %v9688
        %v9690 = vand.u32 %v9689, 4294901760
        %v9691 = vsub.f32 %v9689, %v9690
        %v9692 = vand.u32 %v9691, 4294901760
        %9693 = vmatpush1.msra.mxu0 %v9692
        %9694 = vmatprep.subr.mxu0 0.0
        %9695 = vmatpush1.msra.mxu0 0.0
        %9696 = vmatprep.subr.mxu0 0.0
        %9697 = vmatpush1.msra.mxu0 0.0
        %9698 = vmatprep.subr.mxu0 0.0
        %9699 = vmatpush1.msra.mxu0 0.0
        %9700 = vmatprep.subr.mxu0 0.0
        %9701 = vmatpush1.msra.mxu0 0.0
        %9702 = vmatprep.subr.mxu0 0.0
        %9703 = vmatpush1.msra.mxu0 0.0
        %9704 = vmatprep.subr.mxu0 0.0
        %9705 = vmatpush1.msra.mxu0 0.0
        %9706 = vmatprep.subr.mxu0 0.0
        %9707 = vmatpush1.msra.mxu0 0.0
        %9708 = vmatprep.subr.mxu0 0.0
        %9709 = vmatpush1.msra.mxu0 0.0
        %9710 = vmatprep.subr.mxu0 0.0
        %9711 = vmatpush1.msra.mxu0 0.0
        %9712 = vmatprep.subr.mxu0 0.0
        %9713 = vmatpush1.msra.mxu0 0.0
        %9714 = vmatprep.subr.mxu0 0.0
        %9715 = vmatpush1.msra.mxu0 0.0
        %9716 = vmatprep.subr.mxu0 0.0
        %9717 = vmatpush1.msra.mxu0 0.0
        %9718 = vmatprep.subr.mxu0 0.0
        %9719 = vmatpush1.msra.mxu0 0.0
        %9720 = vmatprep.subr.mxu0 0.0
        %9721 = vmatpush1.msra.mxu0 0.0
        %9722 = vmatprep.subr.mxu0 0.0
        %9723 = vmatpush1.msra.mxu0 0.0
        %9724 = vmatprep.subr.mxu0 0.0
        %9725 = vmatpush1.msra.mxu0 0.0
        %9726 = vmatprep.subr.mxu0 0.0
        %9727 = vmatpush1.msra.mxu0 0.0
        %9728 = vmatprep.subr.mxu0 0.0
        %9729 = vmatpush1.msra.mxu0 0.0
        %9730 = vmatprep.subr.mxu0 0.0
        %9731 = vmatpush1.msra.mxu0 0.0
        %9732 = vmatprep.subr.mxu0 0.0
        %9733 = vmatpush1.msra.mxu0 0.0
        %9734 = vmatprep.subr.mxu0 0.0
        %9735 = vmatpush1.msra.mxu0 0.0
        %9736 = vmatprep.subr.mxu0 0.0
        %9737 = vmatpush1.msra.mxu0 0.0
        %9738 = vmatprep.subr.mxu0 0.0
        %9739 = vmatpush1.msra.mxu0 0.0
        %9740 = vmatprep.subr.mxu0 0.0
        %9741 = vmatpush1.msra.mxu0 0.0
        %9742 = vmatprep.subr.mxu0 0.0
        %9743 = vmatpush1.msra.mxu0 0.0
        %9744 = vmatprep.subr.mxu0 0.0
        %9745 = vmatpush1.msra.mxu0 0.0
        %9746 = vmatprep.subr.mxu0 0.0
        %9747 = vmatpush1.msra.mxu0 0.0
        %9748 = vmatprep.subr.mxu0 0.0
        %9749 = vmatpush1.msra.mxu0 0.0
        %9750 = vmatprep.subr.mxu0 0.0
        %9751 = vmatpush1.msra.mxu0 0.0
        %9752 = vmatprep.subr.mxu0 0.0
        %9753 = vmatpush1.msra.mxu0 0.0
        %9754 = vmatprep.mubr.f32.mxu0 0.0
        %v9755 = vand.u32 %v849, 4294901760
        %9756 = vmatmul.mubr.f32.gmra.mrb[0].mxu0 %v9755
        %v9757 = vpop.f32.mrb[0].mxu0
        %v9758 = vadd.f32 %v9677, %v9757
        %v9759 = vpop.f32.mrb[0].mxu0
        %9760 = vdwg.mxu0
        %9761 = vmatprep.subr.mxu0 0.0
        %v9762 = vand.u32 %v9594, 4294901760
        %v9763 = vsub.f32 %v9594, %v9762
        %9764 = vmatpush1.msra.mxu0 %v9763
        %9765 = vmatprep.subr.mxu0 0.0
        %v9766 = vand.u32 %v9600, 4294901760
        %v9767 = vsub.f32 %v9600, %v9766
        %9768 = vmatpush1.msra.mxu0 %v9767
        %9769 = vmatprep.subr.mxu0 0.0
        %9770 = vmatpush1.msra.mxu0 0.0
        %9771 = vmatprep.subr.mxu0 0.0
        %9772 = vmatpush1.msra.mxu0 0.0
        %9773 = vmatprep.subr.mxu0 0.0
        %9774 = vmatpush1.msra.mxu0 0.0
        %9775 = vmatprep.subr.mxu0 0.0
        %9776 = vmatpush1.msra.mxu0 0.0
        %9777 = vmatprep.subr.mxu0 0.0
        %9778 = vmatpush1.msra.mxu0 0.0
        %9779 = vmatprep.subr.mxu0 0.0
        %9780 = vmatpush1.msra.mxu0 0.0
        %9781 = vmatprep.subr.mxu0 0.0
        %9782 = vmatpush1.msra.mxu0 0.0
        %9783 = vmatprep.subr.mxu0 0.0
        %9784 = vmatpush1.msra.mxu0 0.0
        %9785 = vmatprep.subr.mxu0 0.0
        %9786 = vmatpush1.msra.mxu0 0.0
        %9787 = vmatprep.subr.mxu0 0.0
        %9788 = vmatpush1.msra.mxu0 0.0
        %9789 = vmatprep.subr.mxu0 0.0
        %9790 = vmatpush1.msra.mxu0 0.0
        %9791 = vmatprep.subr.mxu0 0.0
        %9792 = vmatpush1.msra.mxu0 0.0
        %9793 = vmatprep.subr.mxu0 0.0
        %9794 = vmatpush1.msra.mxu0 0.0
        %9795 = vmatprep.subr.mxu0 0.0
        %9796 = vmatpush1.msra.mxu0 0.0
        %9797 = vmatprep.subr.mxu0 0.0
        %9798 = vmatpush1.msra.mxu0 0.0
        %9799 = vmatprep.subr.mxu0 0.0
        %9800 = vmatpush1.msra.mxu0 0.0
        %9801 = vmatprep.subr.mxu0 0.0
        %9802 = vmatpush1.msra.mxu0 0.0
        %9803 = vmatprep.subr.mxu0 0.0
        %9804 = vmatpush1.msra.mxu0 0.0
        %9805 = vmatprep.subr.mxu0 0.0
        %9806 = vmatpush1.msra.mxu0 0.0
        %9807 = vmatprep.subr.mxu0 0.0
        %9808 = vmatpush1.msra.mxu0 0.0
        %9809 = vmatprep.subr.mxu0 0.0
        %9810 = vmatpush1.msra.mxu0 0.0
        %9811 = vmatprep.subr.mxu0 0.0
        %9812 = vmatpush1.msra.mxu0 0.0
        %9813 = vmatprep.subr.mxu0 0.0
        %9814 = vmatpush1.msra.mxu0 0.0
        %9815 = vmatprep.subr.mxu0 0.0
        %9816 = vmatpush1.msra.mxu0 0.0
        %9817 = vmatprep.subr.mxu0 0.0
        %9818 = vmatpush1.msra.mxu0 0.0
        %9819 = vmatprep.subr.mxu0 0.0
        %9820 = vmatpush1.msra.mxu0 0.0
        %9821 = vmatprep.subr.mxu0 0.0
        %9822 = vmatpush1.msra.mxu0 0.0
        %9823 = vmatprep.subr.mxu0 0.0
        %9824 = vmatpush1.msra.mxu0 0.0
        %9825 = vmatprep.subr.mxu0 0.0
        %9826 = vmatpush1.msra.mxu0 0.0
        %9827 = vmatprep.subr.mxu0 0.0
        %9828 = vmatpush1.msra.mxu0 0.0
        %9829 = vmatprep.mubr.f32.mxu0 0.0
        %v9830 = vand.u32 %v849, 4294901760
        %v9831 = vsub.f32 %v849, %v9830
        %9832 = vmatmul.mubr.f32.gmra.mrb[0].mxu0 %v9831
        %v9833 = vpop.f32.mrb[0].mxu0
        %v9834 = vadd.f32 %v9758, %v9833
        %v9835 = vpop.f32.mrb[0].mxu0
        %9836 = vdwg.mxu0
        %9837 = vmatprep.subr.mxu0 0.0
        %v9838 = vand.u32 %v9594, 4294901760
        %9839 = vmatpush1.msra.mxu0 %v9838
        %9840 = vmatprep.subr.mxu0 0.0
        %v9841 = vand.u32 %v9600, 4294901760
        %9842 = vmatpush1.msra.mxu0 %v9841
        %9843 = vmatprep.subr.mxu0 0.0
        %9844 = vmatpush1.msra.mxu0 0.0
        %9845 = vmatprep.subr.mxu0 0.0
        %9846 = vmatpush1.msra.mxu0 0.0
        %9847 = vmatprep.subr.mxu0 0.0
        %9848 = vmatpush1.msra.mxu0 0.0
        %9849 = vmatprep.subr.mxu0 0.0
        %9850 = vmatpush1.msra.mxu0 0.0
        %9851 = vmatprep.subr.mxu0 0.0
        %9852 = vmatpush1.msra.mxu0 0.0
        %9853 = vmatprep.subr.mxu0 0.0
        %9854 = vmatpush1.msra.mxu0 0.0
        %9855 = vmatprep.subr.mxu0 0.0
        %9856 = vmatpush1.msra.mxu0 0.0
        %9857 = vmatprep.subr.mxu0 0.0
        %9858 = vmatpush1.msra.mxu0 0.0
        %9859 = vmatprep.subr.mxu0 0.0
        %9860 = vmatpush1.msra.mxu0 0.0
        %9861 = vmatprep.subr.mxu0 0.0
        %9862 = vmatpush1.msra.mxu0 0.0
        %9863 = vmatprep.subr.mxu0 0.0
        %9864 = vmatpush1.msra.mxu0 0.0
        %9865 = vmatprep.subr.mxu0 0.0
        %9866 = vmatpush1.msra.mxu0 0.0
        %9867 = vmatprep.subr.mxu0 0.0
        %9868 = vmatpush1.msra.mxu0 0.0
        %9869 = vmatprep.subr.mxu0 0.0
        %9870 = vmatpush1.msra.mxu0 0.0
        %9871 = vmatprep.subr.mxu0 0.0
        %9872 = vmatpush1.msra.mxu0 0.0
        %9873 = vmatprep.subr.mxu0 0.0
        %9874 = vmatpush1.msra.mxu0 0.0
        %9875 = vmatprep.subr.mxu0 0.0
        %9876 = vmatpush1.msra.mxu0 0.0
        %9877 = vmatprep.subr.mxu0 0.0
        %9878 = vmatpush1.msra.mxu0 0.0
        %9879 = vmatprep.subr.mxu0 0.0
        %9880 = vmatpush1.msra.mxu0 0.0
        %9881 = vmatprep.subr.mxu0 0.0
        %9882 = vmatpush1.msra.mxu0 0.0
        %9883 = vmatprep.subr.mxu0 0.0
        %9884 = vmatpush1.msra.mxu0 0.0
        %9885 = vmatprep.subr.mxu0 0.0
        %9886 = vmatpush1.msra.mxu0 0.0
        %9887 = vmatprep.subr.mxu0 0.0
        %9888 = vmatpush1.msra.mxu0 0.0
        %9889 = vmatprep.subr.mxu0 0.0
        %9890 = vmatpush1.msra.mxu0 0.0
        %9891 = vmatprep.subr.mxu0 0.0
        %9892 = vmatpush1.msra.mxu0 0.0
        %9893 = vmatprep.subr.mxu0 0.0
        %9894 = vmatpush1.msra.mxu0 0.0
        %9895 = vmatprep.subr.mxu0 0.0
        %9896 = vmatpush1.msra.mxu0 0.0
        %9897 = vmatprep.subr.mxu0 0.0
        %9898 = vmatpush1.msra.mxu0 0.0
        %9899 = vmatprep.subr.mxu0 0.0
        %9900 = vmatpush1.msra.mxu0 0.0
        %9901 = vmatprep.subr.mxu0 0.0
        %9902 = vmatpush1.msra.mxu0 0.0
        %9903 = vmatprep.mubr.f32.mxu0 0.0
        %v9904 = vand.u32 %v849, 4294901760
        %v9905 = vsub.f32 %v849, %v9904
        %v9906 = vand.u32 %v9905, 4294901760
        %9907 = vmatmul.mubr.f32.gmra.mrb[0].mxu0 %v9906
        %v9908 = vpop.f32.mrb[0].mxu0
        %v9909 = vadd.f32 %v9834, %v9908
        %v9910 = vpop.f32.mrb[0].mxu0
        %9911 = vdwg.mxu0
        %9912 = vmatprep.subr.mxu0 0.0
        %v9913 = vand.u32 %v9594, 4294901760
        %v9914 = vsub.f32 %v9594, %v9913
        %v9915 = vand.u32 %v9914, 4294901760
        %9916 = vmatpush1.msra.mxu0 %v9915
        %9917 = vmatprep.subr.mxu0 0.0
        %v9918 = vand.u32 %v9600, 4294901760
        %v9919 = vsub.f32 %v9600, %v9918
        %v9920 = vand.u32 %v9919, 4294901760
        %9921 = vmatpush1.msra.mxu0 %v9920
        %9922 = vmatprep.subr.mxu0 0.0
        %9923 = vmatpush1.msra.mxu0 0.0
        %9924 = vmatprep.subr.mxu0 0.0
        %9925 = vmatpush1.msra.mxu0 0.0
        %9926 = vmatprep.subr.mxu0 0.0
        %9927 = vmatpush1.msra.mxu0 0.0
        %9928 = vmatprep.subr.mxu0 0.0
        %9929 = vmatpush1.msra.mxu0 0.0
        %9930 = vmatprep.subr.mxu0 0.0
        %9931 = vmatpush1.msra.mxu0 0.0
        %9932 = vmatprep.subr.mxu0 0.0
        %9933 = vmatpush1.msra.mxu0 0.0
        %9934 = vmatprep.subr.mxu0 0.0
        %9935 = vmatpush1.msra.mxu0 0.0
        %9936 = vmatprep.subr.mxu0 0.0
        %9937 = vmatpush1.msra.mxu0 0.0
        %9938 = vmatprep.subr.mxu0 0.0
        %9939 = vmatpush1.msra.mxu0 0.0
        %9940 = vmatprep.subr.mxu0 0.0
        %9941 = vmatpush1.msra.mxu0 0.0
        %9942 = vmatprep.subr.mxu0 0.0
        %9943 = vmatpush1.msra.mxu0 0.0
        %9944 = vmatprep.subr.mxu0 0.0
        %9945 = vmatpush1.msra.mxu0 0.0
        %9946 = vmatprep.subr.mxu0 0.0
        %9947 = vmatpush1.msra.mxu0 0.0
        %9948 = vmatprep.subr.mxu0 0.0
        %9949 = vmatpush1.msra.mxu0 0.0
        %9950 = vmatprep.subr.mxu0 0.0
        %9951 = vmatpush1.msra.mxu0 0.0
        %9952 = vmatprep.subr.mxu0 0.0
        %9953 = vmatpush1.msra.mxu0 0.0
        %9954 = vmatprep.subr.mxu0 0.0
        %9955 = vmatpush1.msra.mxu0 0.0
        %9956 = vmatprep.subr.mxu0 0.0
        %9957 = vmatpush1.msra.mxu0 0.0
        %9958 = vmatprep.subr.mxu0 0.0
        %9959 = vmatpush1.msra.mxu0 0.0
        %9960 = vmatprep.subr.mxu0 0.0
        %9961 = vmatpush1.msra.mxu0 0.0
        %9962 = vmatprep.subr.mxu0 0.0
        %9963 = vmatpush1.msra.mxu0 0.0
        %9964 = vmatprep.subr.mxu0 0.0
        %9965 = vmatpush1.msra.mxu0 0.0
        %9966 = vmatprep.subr.mxu0 0.0
        %9967 = vmatpush1.msra.mxu0 0.0
        %9968 = vmatprep.subr.mxu0 0.0
        %9969 = vmatpush1.msra.mxu0 0.0
        %9970 = vmatprep.subr.mxu0 0.0
        %9971 = vmatpush1.msra.mxu0 0.0
        %9972 = vmatprep.subr.mxu0 0.0
        %9973 = vmatpush1.msra.mxu0 0.0
        %9974 = vmatprep.subr.mxu0 0.0
        %9975 = vmatpush1.msra.mxu0 0.0
        %9976 = vmatprep.subr.mxu0 0.0
        %9977 = vmatpush1.msra.mxu0 0.0
        %9978 = vmatprep.subr.mxu0 0.0
        %9979 = vmatpush1.msra.mxu0 0.0
        %9980 = vmatprep.subr.mxu0 0.0
        %9981 = vmatpush1.msra.mxu0 0.0
        %9982 = vmatprep.mubr.f32.mxu0 0.0
        %v9983 = vand.u32 %v849, 4294901760
        %9984 = vmatmul.mubr.f32.gmra.mrb[0].mxu0 %v9983
        %v9985 = vpop.f32.mrb[0].mxu0
        %v9986 = vadd.f32 %v9909, %v9985
        %v9987 = vpop.f32.mrb[0].mxu0
        %9988 = vdwg.mxu0
        %9989 = vmatprep.subr.mxu0 0.0
        %v9990 = vand.u32 %v9594, 4294901760
        %9991 = vmatpush1.msra.mxu0 %v9990
        %9992 = vmatprep.subr.mxu0 0.0
        %v9993 = vand.u32 %v9600, 4294901760
        %9994 = vmatpush1.msra.mxu0 %v9993
        %9995 = vmatprep.subr.mxu0 0.0
        %9996 = vmatpush1.msra.mxu0 0.0
        %9997 = vmatprep.subr.mxu0 0.0
        %9998 = vmatpush1.msra.mxu0 0.0
        %9999 = vmatprep.subr.mxu0 0.0
        %10000 = vmatpush1.msra.mxu0 0.0
        %10001 = vmatprep.subr.mxu0 0.0
        %10002 = vmatpush1.msra.mxu0 0.0
        %10003 = vmatprep.subr.mxu0 0.0
        %10004 = vmatpush1.msra.mxu0 0.0
        %10005 = vmatprep.subr.mxu0 0.0
        %10006 = vmatpush1.msra.mxu0 0.0
        %10007 = vmatprep.subr.mxu0 0.0
        %10008 = vmatpush1.msra.mxu0 0.0
        %10009 = vmatprep.subr.mxu0 0.0
        %10010 = vmatpush1.msra.mxu0 0.0
        %10011 = vmatprep.subr.mxu0 0.0
        %10012 = vmatpush1.msra.mxu0 0.0
        %10013 = vmatprep.subr.mxu0 0.0
        %10014 = vmatpush1.msra.mxu0 0.0
        %10015 = vmatprep.subr.mxu0 0.0
        %10016 = vmatpush1.msra.mxu0 0.0
        %10017 = vmatprep.subr.mxu0 0.0
        %10018 = vmatpush1.msra.mxu0 0.0
        %10019 = vmatprep.subr.mxu0 0.0
        %10020 = vmatpush1.msra.mxu0 0.0
        %10021 = vmatprep.subr.mxu0 0.0
        %10022 = vmatpush1.msra.mxu0 0.0
        %10023 = vmatprep.subr.mxu0 0.0
        %10024 = vmatpush1.msra.mxu0 0.0
        %10025 = vmatprep.subr.mxu0 0.0
        %10026 = vmatpush1.msra.mxu0 0.0
        %10027 = vmatprep.subr.mxu0 0.0
        %10028 = vmatpush1.msra.mxu0 0.0
        %10029 = vmatprep.subr.mxu0 0.0
        %10030 = vmatpush1.msra.mxu0 0.0
        %10031 = vmatprep.subr.mxu0 0.0
        %10032 = vmatpush1.msra.mxu0 0.0
        %10033 = vmatprep.subr.mxu0 0.0
        %10034 = vmatpush1.msra.mxu0 0.0
        %10035 = vmatprep.subr.mxu0 0.0
        %10036 = vmatpush1.msra.mxu0 0.0
        %10037 = vmatprep.subr.mxu0 0.0
        %10038 = vmatpush1.msra.mxu0 0.0
        %10039 = vmatprep.subr.mxu0 0.0
        %10040 = vmatpush1.msra.mxu0 0.0
        %10041 = vmatprep.subr.mxu0 0.0
        %10042 = vmatpush1.msra.mxu0 0.0
        %10043 = vmatprep.subr.mxu0 0.0
        %10044 = vmatpush1.msra.mxu0 0.0
        %10045 = vmatprep.subr.mxu0 0.0
        %10046 = vmatpush1.msra.mxu0 0.0
        %10047 = vmatprep.subr.mxu0 0.0
        %10048 = vmatpush1.msra.mxu0 0.0
        %10049 = vmatprep.subr.mxu0 0.0
        %10050 = vmatpush1.msra.mxu0 0.0
        %10051 = vmatprep.subr.mxu0 0.0
        %10052 = vmatpush1.msra.mxu0 0.0
        %10053 = vmatprep.subr.mxu0 0.0
        %10054 = vmatpush1.msra.mxu0 0.0
        %10055 = vmatprep.mubr.f32.mxu0 0.0
        %v10056 = vand.u32 %v849, 4294901760
        %10057 = vmatmul.mubr.f32.gmra.mrb[0].mxu0 %v10056
        %v10058 = vpop.f32.mrb[0].mxu0
        %v10059 = vadd.f32 %v9986, %v10058
        %v10060 = vpop.f32.mrb[0].mxu0
        %10061 = vdwg.mxu0
        %v10062 = vmul.f32 %v6185, %v6185
        %v10063 = vmul.f32 %v7152, %v7152
        %v10064 = vmul.f32 %v6185, %v7152
        %v10065 = vsub.f32 %v8121, %v10062
        %v10066 = vsub.f32 %v9090, %v10063
        %v10067 = vsub.f32 %v10059, %v10064
        %v10068 = vmul.f32 %v10067, 2.0
        %v10069 = vadd.f32 %v10068, 58.5225
        %v10070 = vadd.f32 %v10065, %v10066
        %v10071 = vadd.f32 %v10070, 58.5225
        %v10072 = vrcp.pop %v10071
        %v10073 = vmul.f32 %v10069, %v10072
        %v10074 = vmul.f32 %v10064, 2.0
        %v10075 = vadd.f32 %v10074, 6.5025
        %v10076 = vadd.f32 %v10062, %v10063
        %v10077 = vadd.f32 %v10076, 6.5025
        %v10078 = vrcp.pop %v10077
        %v10079 = vmul.f32 %v10075, %v10078
        %v10080 = vmul.f32 %v10079, %v10073
        %v10081 = vsel %vm5203, %v10080, 0.0
        %10082 = vadd.xlane.f32.xlu0 %v10081
        %v10083 = vpop.xlane.xlu0 %10082
        %v10084 = vrot.slane %v10083, 4
        %v10085 = vadd.f32 %v10083, %v10084
        %v10086 = vrot.slane %v10085, 2
        %v10087 = vadd.f32 %v10085, %v10086
        %v10088 = vrot.slane %v10087, 1
        %v10089 = vadd.f32 %v10087, %v10088
        %s10090 = vtos %v10089
        %s10091 = sadd.f32 %s5214, %s10090
        %v10092 = vstv %s10091
        %10093 = vst [vmem:[%s329] sm:$0xff] %v10092
        %s10094 = sand.u32 %s144, 1
        %s10095 = scalar_lea.sflag [#allocation4], %s10094
        %s10096 = sand.u32 %s144, 1
        %s10097 = smul.addr %s10096, 8
        %s10098 = scalar_lea.vmem [#allocation7], %s10097
        // Predicated region
        $region45: #{tpu_custom_call.1} parent=35 // pred_check
          %p10099 = pneg %p154
        $region46: #{tpu_custom_call.1} parent=35 // pred_check_branch
          %10101 = sbr.rel (%p10099) target = $region48
        $region47: #{tpu_custom_call.1} parent=35 // pred_region
          %s10103 = ssub.s32 128, 128
          %10104 = vsyncadd %s10095, %s10103
          %s10105 = smul.addr %s28, 3
          %s10106 = sadd.s32 %s29, %s10105
          %s10107 = smul.addr %s10106, 128
          %s10108 = scalar_lea.hbm %s4, %s10107
          %s10110 = sshll.u32 %s10098, 4
          %s10111 = int_to_ptr.vmem [resolvable:$true] %s10110
          %10113 = dma.vmem_to_hbm [thread:$0]  %s10111, 128, %s10108, %s10095
        $region48: #{tpu_custom_call.1} parent=35 // pred_fallthru
          _
      $region36: #{tpu_custom_call.1} parent=5 // pred_fallthru
        _
      %p10114 = scmp.le.s32.totalorder 2, %s19
      // Predicated region
      $region49: #{tpu_custom_call.1} parent=5 // pred_check
        %p10115 = pneg %p10114
      $region50: #{tpu_custom_call.1} parent=5 // pred_check_branch
        %10117 = sbr.rel (%p10115) target = $region52
      $region51: #{tpu_custom_call.1} parent=5 // pred_region
        %s10118 = ssub.s32 %s19, 2
        // Predicated region
        $region53: #{tpu_custom_call.1} parent=51 // pred_check
          %p10119 = pneg %p160
        $region54: #{tpu_custom_call.1} parent=51 // pred_check_branch
          %10121 = sbr.rel (%p10119) target = $region56
        $region55: #{tpu_custom_call.1} parent=51 // pred_region
          %s10122 = sand.u32 %s145, 1
          %s10123 = scalar_lea.sflag [#allocation4], %s10122
          %s10124 = sand.u32 %s145, 1
          %s10125 = smul.addr %s10124, 8
          %s10126 = scalar_lea.vmem [#allocation7], %s10125
          %10127 = dma.done %s10123, 128
        $region56: #{tpu_custom_call.1} parent=51 // pred_fallthru
          _
      $region52: #{tpu_custom_call.1} parent=5 // pred_fallthru
        _
    $region6: #{tpu_custom_call.1} parent=1 // loop_footer
      %s23 = sadd.s32 1, %s19
    $region7: #{tpu_custom_call.1} parent=1 // loop_footer_branch
      %18 = sbr.rel target = $region3
    $region8: #{tpu_custom_call.1} parent=1 // loop_exit
      _
    %10128 = vsyncpa [#allocation3], 1
    %s10129 = scalar_lea.sflag [#allocation3], 1
    %10130 = vsyncpa %s10129, 1
    %10131 = vsyncpa [#allocation6], 1
    %s10132 = scalar_lea.sflag [#allocation6], 1
    %10133 = vsyncpa %s10132, 1
    %10134 = vsyncpa [#allocation4], 1
    %s10135 = scalar_lea.sflag [#allocation4], 1
    %10136 = vsyncpa %s10135, 1

</llo_original>
